<compile_context>
chip_gen: v7x
topology: tpu7x:2x2x1
jax: 0.10.0
libtpu: 0.0.40
codegen_flags: <defaults>
</compile_context>

<pallas_src>
import functools
import math

import jax
import jax.numpy as jnp
from jax.experimental import pallas as pl
from jax.experimental.pallas import tpu as pltpu


# ---------------------------------------------------------------------------
# Generation-aware VMEM budget
# ---------------------------------------------------------------------------
def _default_vmem_limit():
    cap = None
    try:
        cap = getattr(pltpu.get_tpu_info(), "vmem_capacity_bytes", None)
    except Exception:
        cap = None
    if not cap:
        return 40 * 1024 * 1024                       # conservative, safe on every gen
    return max(16 * 1024 * 1024, min(int(cap) // 2, 96 * 1024 * 1024))


VMEM_LIMIT = _default_vmem_limit()
# v5e/v6e (128 MiB VMEM) -> wider N tiles; keep 512 when the budget is v7x-sized.
TN_TARGET = 1024 if VMEM_LIMIT >= 56 * 1024 * 1024 else 512


def _round_up(x, m):
    return ((x + m - 1) // m) * m


def _choose_tile(dim, target, quantum):
    """Tile size (multiple of `quantum`).  Prefers an exact divisor of `dim`; otherwise the
    caller pads `dim` up to a multiple of the returned tile (never a full-dim fallback)."""
    if dim <= target:
        return _round_up(dim, quantum)
    cand = (target // quantum) * quantum
    top = cand
    while cand >= quantum:
        if dim % cand == 0:
            return cand
        cand -= quantum
    return top


def _pad_axis(x, axis, new_size, value=0):
    pad = new_size - x.shape[axis]
    if pad <= 0:
        return x
    widths = [(0, 0)] * x.ndim
    widths[axis] = (0, pad)
    return jnp.pad(x, widths, constant_values=value)


# ---------------------------------------------------------------------------
# Linear (bf16 MXU, f32 accumulation, fused bias / activation epilogue)
# ---------------------------------------------------------------------------
def _linear_kernel(x_ref, w_ref, b_ref, o_ref, acc_ref, *, act):
    k = pl.program_id(2)

    @pl.when(k == 0)
    def _():
        acc_ref[...] = jnp.zeros_like(acc_ref)

    acc_ref[...] += jnp.dot(x_ref[...], w_ref[...],
                            preferred_element_type=jnp.float32)

    @pl.when(k == pl.num_programs(2) - 1)
    def _():
        y = acc_ref[...] + b_ref[...]                  # f32 epilogue
        if act == "tanh":
            y = jnp.tanh(y)
        elif act == "relu":
            y = jnp.maximum(y, 0.0)
        o_ref[...] = y.astype(o_ref.dtype)


def linear(x, w, b=None, act=None):
    """y = act(x @ w + b).  x: [M, K], w: [K, N] -> [M, N] bf16."""
    M, K = x.shape
    K2, N = w.shape
    assert K == K2
    xb = x.astype(jnp.bfloat16)
    wb = w.astype(jnp.bfloat16)
    b2 = (jnp.zeros((N,), jnp.float32) if b is None else b).reshape(1, N).astype(jnp.float32)

    tm = _choose_tile(M, 512, 16)
    tk = _choose_tile(K, 512, 128)
    tn = _choose_tile(N, TN_TARGET, 128)
    Mp, Kp, Np = _round_up(M, tm), _round_up(K, tk), _round_up(N, tn)
    xb = _pad_axis(_pad_axis(xb, 0, Mp), 1, Kp)
    wb = _pad_axis(_pad_axis(wb, 0, Kp), 1, Np)
    b2 = _pad_axis(b2, 1, Np)

    out = pl.pallas_call(
        functools.partial(_linear_kernel, act=act),
        out_shape=jax.ShapeDtypeStruct((Mp, Np), jnp.bfloat16),
        grid_spec=pltpu.PrefetchScalarGridSpec(
            num_scalar_prefetch=0,
            grid=(Mp // tm, Np // tn, Kp // tk),
            in_specs=[
                pl.BlockSpec((tm, tk), lambda i, j, k: (i, k)),
                pl.BlockSpec((tk, tn), lambda i, j, k: (k, j)),
                pl.BlockSpec((1, tn), lambda i, j, k: (0, j)),
            ],
            out_specs=pl.BlockSpec((tm, tn), lambda i, j, k: (i, j)),
            scratch_shapes=[pltpu.VMEM((tm, tn), jnp.float32)],
        ),
        compiler_params=pltpu.CompilerParams(
            dimension_semantics=("parallel", "parallel", "arbitrary"),
            vmem_limit_bytes=VMEM_LIMIT),
    )(xb, wb, b2)
    if Mp != M or Np != N:
        out = out[:M, :N]
    return out


# ---------------------------------------------------------------------------
# Flash attention (online softmax, no HBM transposes, heads split in-kernel)
# ---------------------------------------------------------------------------
def _flash_attn_kernel(q_ref, k_ref, v_ref, kpad_ref, o_ref,
                       m_sc, l_sc, acc_sc, *, n_heads, d, causal):
    qi = pl.program_id(1)
    ki = pl.program_id(2)
    tq = q_ref.shape[1]
    tk = k_ref.shape[1]

    @pl.when(ki == 0)
    def _():
        m_sc[...] = jnp.full(m_sc.shape, -jnp.inf, jnp.float32)
        l_sc[...] = jnp.zeros_like(l_sc)
        acc_sc[...] = jnp.zeros_like(acc_sc)

    def update():
        q = q_ref[0]                                    # [tq, H] bf16 (scale folded into W_q)
        k = k_ref[0]                                    # [tk, H] bf16
        v = v_ref[0]
        bias = kpad_ref[0].astype(jnp.float32)          # [1, tk] additive key-pad mask
        if causal:
            rows = qi * tq + jax.lax.broadcasted_iota(jnp.int32, (tq, tk), 0)
            cols = ki * tk + jax.lax.broadcasted_iota(jnp.int32, (tq, tk), 1)
            bias = bias + jnp.where(rows >= cols, 0.0, -10000.0)   # == -10000*(1-tril)
        for h in range(n_heads):                        # static unroll over heads
            sl = slice(h * d, (h + 1) * d)
            s = jax.lax.dot_general(q[:, sl], k[:, sl], (((1,), (1,)), ((), ())),
                                    preferred_element_type=jnp.float32)   # [tq, tk]
            s = s + bias
            m_prev = m_sc[h]
            m_new = jnp.maximum(m_prev, jnp.max(s, axis=-1, keepdims=True))
            alpha = jnp.exp(m_prev - m_new)
            p = jnp.exp(s - m_new)
            l_sc[h] = alpha * l_sc[h] + jnp.sum(p, axis=-1, keepdims=True)
            acc_sc[:, sl] = alpha * acc_sc[:, sl] + jnp.dot(
                p.astype(jnp.bfloat16), v[:, sl], preferred_element_type=jnp.float32)
            m_sc[h] = m_new

    if causal:
        # skip key blocks that lie entirely in the future of this query block
        @pl.when(ki * tk <= qi * tq + (tq - 1))
        def _():
            update()
    else:
        update()

    @pl.when(ki == pl.num_programs(2) - 1)
    def _():
        outs = []
        for h in range(n_heads):
            sl = slice(h * d, (h + 1) * d)
            outs.append(acc_sc[:, sl] * pl.reciprocal(l_sc[h], approx=True))
        o_ref[0] = jnp.concatenate(outs, axis=-1).astype(o_ref.dtype)


def flash_attention(q_src, kv_src, kpad, *, hidden, n_heads, causal,
                    q_block, k_block, v_block):
    """Flash attention over packed projection outputs.

    q_src:  [B, Tq, Cq]  containing Q at column-block `q_block` (width H = hidden)
    kv_src: [B, Tk, Ck]  containing K / V at column-blocks `k_block` / `v_block`
    kpad:   [B, 1, Tk]   additive key-padding mask (0 or -1e9)
    Returns [B, Tq, H] bf16.  Q/K/V are read in [B, T, H] layout straight from the packed
    projection arrays (column-blocked BlockSpecs) -- no HBM transposes or slices.
    """
    B, Tq, Cq = q_src.shape
    Tk = kv_src.shape[1]
    H = hidden
    d = H // n_heads
    assert n_heads * d == H
    assert Cq == H or H % 128 == 0, "hidden must be a multiple of 128 for packed QKV blocks"

    tq = _choose_tile(Tq, 128, 8)
    tk = _choose_tile(Tk, 128, 8)
    Tqp, Tkp = _round_up(Tq, tq), _round_up(Tk, tk)

    kv_p = _pad_axis(kv_src, 1, Tkp)
    kpad_p = _pad_axis(kpad.astype(jnp.float32), 2, Tkp, value=-1e9)
    q_p = kv_p if q_src is kv_src else _pad_axis(q_src, 1, Tqp)

    kernel = functools.partial(_flash_attn_kernel, n_heads=n_heads, d=d, causal=causal)
    out = pl.pallas_call(
        kernel,
        out_shape=jax.ShapeDtypeStruct((B, Tqp, H), jnp.bfloat16),
        grid_spec=pltpu.PrefetchScalarGridSpec(
            num_scalar_prefetch=0,
            grid=(B, Tqp // tq, Tkp // tk),
            in_specs=[
                pl.BlockSpec((1, tq, H), lambda b, qi, ki: (b, qi, q_block)),
                pl.BlockSpec((1, tk, H), lambda b, qi, ki: (b, ki, k_block)),
                pl.BlockSpec((1, tk, H), lambda b, qi, ki: (b, ki, v_block)),
                pl.BlockSpec((1, 1, tk), lambda b, qi, ki: (b, 0, ki)),
            ],
            out_specs=pl.BlockSpec((1, tq, H), lambda b, qi, ki: (b, qi, 0)),
            scratch_shapes=[
                pltpu.VMEM((n_heads, tq, 1), jnp.float32),
                pltpu.VMEM((n_heads, tq, 1), jnp.float32),
                pltpu.VMEM((tq, H), jnp.float32),
            ],
        ),
        compiler_params=pltpu.CompilerParams(
            dimension_semantics=("parallel", "parallel", "arbitrary"),
            vmem_limit_bytes=VMEM_LIMIT),
    )(q_p.astype(jnp.bfloat16), kv_p.astype(jnp.bfloat16),
      kv_p.astype(jnp.bfloat16), kpad_p)
    if Tqp != Tq:
        out = out[:, :Tq]
    return out


# ---------------------------------------------------------------------------
# Fused residual-add + LayerNorm
# ---------------------------------------------------------------------------
def _add_ln_kernel(x_ref, y_ref, g_ref, b_ref, o_ref, *, eps):
    s = x_ref[...].astype(jnp.float32) + y_ref[...].astype(jnp.float32)
    mu = jnp.mean(s, axis=-1, keepdims=True)
    var = jnp.mean((s - mu) ** 2, axis=-1, keepdims=True)
    o_ref[...] = ((s - mu) * jax.lax.rsqrt(var + eps) * g_ref[...]
                  + b_ref[...]).astype(o_ref.dtype)


def add_layer_norm(x, y, g, b, eps=1e-5):
    """LayerNorm(x + y), row-tiled.  x, y: [M, H] -> [M, H] bf16."""
    M, H = x.shape
    tm = _choose_tile(M, 512, 16)
    Mp = _round_up(M, tm)
    xb = _pad_axis(x.astype(jnp.bfloat16), 0, Mp)
    yb = _pad_axis(y.astype(jnp.bfloat16), 0, Mp)
    out = pl.pallas_call(
        functools.partial(_add_ln_kernel, eps=eps),
        out_shape=jax.ShapeDtypeStruct((Mp, H), jnp.bfloat16),
        grid_spec=pltpu.PrefetchScalarGridSpec(
            num_scalar_prefetch=0, grid=(Mp // tm,),
            in_specs=[
                pl.BlockSpec((tm, H), lambda i: (i, 0)),
                pl.BlockSpec((tm, H), lambda i: (i, 0)),
                pl.BlockSpec((1, H), lambda i: (0, 0)),
                pl.BlockSpec((1, H), lambda i: (0, 0)),
            ],
            out_specs=pl.BlockSpec((tm, H), lambda i: (i, 0)),
        ),
        compiler_params=pltpu.CompilerParams(
            dimension_semantics=("parallel",),
            vmem_limit_bytes=VMEM_LIMIT),
    )(xb, yb, g.reshape(1, H).astype(jnp.float32), b.reshape(1, H).astype(jnp.float32))
    return out[:M] if Mp != M else out


# ---------------------------------------------------------------------------
# Fused FFN + residual + LayerNorm (W1/W2 streamed along F)
# ---------------------------------------------------------------------------
def _ffn_ln_kernel(x_ref, w1_ref, b1_ref, w2_ref, b2_ref, g_ref, bb_ref, o_ref,
                   acc_ref, *, eps):
    f = pl.program_id(1)

    @pl.when(f == 0)
    def _():
        acc_ref[...] = jnp.zeros_like(acc_ref)

    x = x_ref[...]                                                   # bf16 [tm, H]
    h = jnp.dot(x, w1_ref[...], preferred_element_type=jnp.float32) + b1_ref[...]
    h = jnp.maximum(h, 0.0).astype(jnp.bfloat16)                     # [tm, tf], stays in VMEM
    acc_ref[...] += jnp.dot(h, w2_ref[...], preferred_element_type=jnp.float32)

    @pl.when(f == pl.num_programs(1) - 1)
    def _():
        y = acc_ref[...] + b2_ref[...] + x.astype(jnp.float32)       # + residual
        mu = jnp.mean(y, axis=-1, keepdims=True)
        var = jnp.mean((y - mu) ** 2, axis=-1, keepdims=True)
        o_ref[...] = ((y - mu) * jax.lax.rsqrt(var + eps) * g_ref[...]
                      + bb_ref[...]).astype(o_ref.dtype)


def ffn_add_ln(x, w1, b1, w2, b2, g, b, eps=1e-5):
    """LayerNorm(x + relu(x@w1+b1)@w2+b2).  The [M,F] intermediate never leaves VMEM and
    W1/W2 are streamed in F tiles (bounded VMEM on v7x, weight DMA overlaps compute)."""
    M, H = x.shape
    F = w1.shape[1]
    tm = _choose_tile(M, 256, 16)
    tf = _choose_tile(F, 512, 128)
    Mp, Fp = _round_up(M, tm), _round_up(F, tf)
    xb = _pad_axis(x.astype(jnp.bfloat16), 0, Mp)
    w1b = _pad_axis(w1.astype(jnp.bfloat16), 1, Fp)
    b1b = _pad_axis(b1.reshape(1, F).astype(jnp.float32), 1, Fp)
    w2b = _pad_axis(w2.astype(jnp.bfloat16), 0, Fp)
    out = pl.pallas_call(
        functools.partial(_ffn_ln_kernel, eps=eps),
        out_shape=jax.ShapeDtypeStruct((Mp, H), jnp.bfloat16),
        grid_spec=pltpu.PrefetchScalarGridSpec(
            num_scalar_prefetch=0, grid=(Mp // tm, Fp // tf),
            in_specs=[
                pl.BlockSpec((tm, H), lambda i, f: (i, 0)),
                pl.BlockSpec((H, tf), lambda i, f: (0, f)),
                pl.BlockSpec((1, tf), lambda i, f: (0, f)),
                pl.BlockSpec((tf, H), lambda i, f: (f, 0)),
                pl.BlockSpec((1, H), lambda i, f: (0, 0)),
                pl.BlockSpec((1, H), lambda i, f: (0, 0)),
                pl.BlockSpec((1, H), lambda i, f: (0, 0)),
            ],
            out_specs=pl.BlockSpec((tm, H), lambda i, f: (i, 0)),
            scratch_shapes=[pltpu.VMEM((tm, H), jnp.float32)],
        ),
        compiler_params=pltpu.CompilerParams(
            dimension_semantics=("parallel", "arbitrary"),
            vmem_limit_bytes=VMEM_LIMIT),
    )(xb, w1b, b1b, w2b,
      b2.reshape(1, H).astype(jnp.float32),
      g.reshape(1, H).astype(jnp.float32),
      b.reshape(1, H).astype(jnp.float32))
    return out[:M] if Mp != M else out


# ---------------------------------------------------------------------------
# Fused lm_head (tied embedding) + cross-entropy (online logsumexp over vocab)
# ---------------------------------------------------------------------------
def _lmce_kernel(h_ref, wt_ref, lbl_ref, o_ref, m_sc, l_sc, p_sc, *,
                 vocab, tv, mask_cols):
    j = pl.program_id(1)

    @pl.when(j == 0)
    def _():
        m_sc[...] = jnp.full(m_sc.shape, -jnp.inf, jnp.float32)
        l_sc[...] = jnp.zeros_like(l_sc)
        p_sc[...] = jnp.zeros_like(p_sc)

    logits = jnp.dot(h_ref[...], wt_ref[...],
                     preferred_element_type=jnp.float32)             # [tm, tv]
    cols = j * tv + jax.lax.broadcasted_iota(jnp.int32, logits.shape, 1)
    if mask_cols:
        logits = jnp.where(cols < vocab, logits, -1e30)              # mask padded vocab cols
    p_sc[...] += jnp.sum(jnp.where(cols == lbl_ref[...], logits, 0.0),
                         axis=-1, keepdims=True)

    m_new = jnp.maximum(m_sc[...], jnp.max(logits, axis=-1, keepdims=True))
    l_sc[...] = (l_sc[...] * jnp.exp(m_sc[...] - m_new)
                 + jnp.sum(jnp.exp(logits - m_new), axis=-1, keepdims=True))
    m_sc[...] = m_new

    @pl.when(j == pl.num_programs(1) - 1)
    def _():
        o_ref[...] = (m_sc[...] + jnp.log(l_sc[...])) - p_sc[...]    # per-row NLL


def lm_head_nll(hidden, emb, labels):
    """Fused lm_head (tied [V,H] embedding, no bias) + cross-entropy NLL.
    hidden: [N, H] bf16, emb: [V, H], labels: [N] int -> [N] f32 NLL.
    The [N, V] logits never hit HBM.  Rows with label == -1 get nll = lse (caller masks)."""
    N, H = hidden.shape
    V = emb.shape[0]
    tm = _choose_tile(N, 512, 16)
    tv = _choose_tile(V, 512, 128)
    Np, Vp = _round_up(N, tm), _round_up(V, tv)

    hb = _pad_axis(hidden.astype(jnp.bfloat16), 0, Np)
    lbl = _pad_axis(labels.reshape(N, 1).astype(jnp.int32), 0, Np, value=-1)
    # One-time HBM transpose of the tied embedding: every vocab tile becomes a plain
    # [tm,H] @ [H,tv] MXU matmul (no per-tile XLU transpose of a [tv,H] block).
    wt = _pad_axis(emb.astype(jnp.bfloat16).T, 1, Vp)

    kernel = functools.partial(_lmce_kernel, vocab=V, tv=tv, mask_cols=(Vp != V))
    out = pl.pallas_call(
        kernel,
        out_shape=jax.ShapeDtypeStruct((Np, 1), jnp.float32),
        grid_spec=pltpu.PrefetchScalarGridSpec(
            num_scalar_prefetch=0,
            grid=(Np // tm, Vp // tv),
            in_specs=[
                pl.BlockSpec((tm, H), lambda i, j: (i, 0)),
                pl.BlockSpec((H, tv), lambda i, j: (0, j)),
                pl.BlockSpec((tm, 1), lambda i, j: (i, 0)),
            ],
            out_specs=pl.BlockSpec((tm, 1), lambda i, j: (i, 0)),
            scratch_shapes=[pltpu.VMEM((tm, 1), jnp.float32)] * 3,
        ),
        compiler_params=pltpu.CompilerParams(
            dimension_semantics=("parallel", "arbitrary"),
            vmem_limit_bytes=VMEM_LIMIT),
    )(hb, wt, lbl)
    return out.reshape(Np)[:N]


# ---------------------------------------------------------------------------
# Model glue (plain JAX orchestrating the Pallas kernels)
# ---------------------------------------------------------------------------
def self_attention(x, p, kpad, n_heads, causal):
    B, T, H = x.shape
    qkv = linear(x.reshape(B * T, H), p["wqkv"], p["bqkv"]).reshape(B, T, 3 * H)
    o = flash_attention(qkv, qkv, kpad, hidden=H, n_heads=n_heads, causal=causal,
                        q_block=0, k_block=1, v_block=2)
    return linear(o.reshape(B * T, H), p["wo"], p["bo"]).reshape(B, T, H)


def cross_attention(x, mem, p, kpad, n_heads):
    B, Tq, H = x.shape
    Tk = mem.shape[1]
    q = linear(x.reshape(B * Tq, H), p["wq"], p["bq"]).reshape(B, Tq, H)
    kv = linear(mem.reshape(B * Tk, H), p["wkv"], p["bkv"]).reshape(B, Tk, 2 * H)
    o = flash_attention(q, kv, kpad, hidden=H, n_heads=n_heads, causal=False,
                        q_block=0, k_block=0, v_block=1)
    return linear(o.reshape(B * Tq, H), p["wo"], p["bo"]).reshape(B, Tq, H)


def embed(ids, p):
    B, T = ids.shape
    H = p["word_emb"].shape[1]
    word = jnp.take(p["word_emb"], ids, axis=0).reshape(B * T, H)    # gather: plain-JAX glue
    pos = jnp.broadcast_to(p["pos_emb"][:T][None], (B, T, H)).reshape(B * T, H)
    return add_layer_norm(word, pos, p["emb_ln_g"], p["emb_ln_b"]).reshape(B, T, H)


def encoder_layer(x, p, src_kpad, n_heads):
    B, S, H = x.shape
    a = self_attention(x, p["attn"], src_kpad, n_heads, causal=False)
    xf = add_layer_norm(x.reshape(B * S, H), a.reshape(B * S, H), p["ln1_g"], p["ln1_b"])
    xf = ffn_add_ln(xf, p["w1"], p["b1"], p["w2"], p["b2"], p["ln2_g"], p["ln2_b"])
    return xf.reshape(B, S, H)


def decoder_layer(x, mem, p, src_kpad, n_heads):
    # post-LN TransformerDecoderLayer semantics (self-attn, cross-attn, relu FFN)
    B, T, H = x.shape
    no_pad = jnp.zeros((B, 1, T), jnp.float32)
    a = self_attention(x, p["self_attn"], no_pad, n_heads, causal=True)
    xf = add_layer_norm(x.reshape(B * T, H), a.reshape(B * T, H), p["ln1_g"], p["ln1_b"])
    c = cross_attention(xf.reshape(B, T, H), mem, p["cross_attn"], src_kpad, n_heads)
    xf = add_layer_norm(xf, c.reshape(B * T, H), p["ln2_g"], p["ln2_b"])
    xf = ffn_add_ln(xf, p["w1"], p["b1"], p["w2"], p["b2"], p["ln3_g"], p["ln3_b"])
    return xf.reshape(B, T, H)


def refine_seq2seq_forward(params, source_ids, source_mask, target_ids, target_mask,
                           n_heads):
    """Training branch of RefineSeq2Seq.forward (target_ids is not None) -> scalar loss."""
    B, S = source_ids.shape
    T = target_ids.shape[1]
    H = params["word_emb"].shape[1]

    # key-padding additive row (== (1 - source_mask).bool() in torch), [B, 1, S]
    src_kpad = jnp.where(source_mask != 0, 0.0, -1e9).astype(jnp.float32).reshape(B, 1, S)

    # ----- encoder -----
    # TODO(synk): full multi-layer pretrained RoBERTa encoder abbreviated to embeddings +
    # one transformer layer (extend by looping encoder_layer with per-layer params).
    enc = embed(source_ids, params)
    enc = encoder_layer(enc, params["enc_layer"], src_kpad, n_heads)           # [B, S, H]

    # ----- decoder ----- (causal -10000*(1-tril) mask built inside the attention kernel)
    tgt = embed(target_ids, params)
    out = decoder_layer(tgt, enc, params["dec_layer"], src_kpad, n_heads)      # [B, T, H]

    # hidden_states = tanh(dense(out))
    hidden = linear(out.reshape(B * T, H), params["dense_w"], params["dense_b"],
                    act="tanh")                                                # [B*T, H] bf16

    # fused lm_head (tied word embeddings, no bias) + cross-entropy; the logits shift is
    # folded into the labels / valid mask so the hidden activation is fed un-sliced.
    shift_labels = jnp.concatenate(
        [target_ids[:, 1:], jnp.full((B, 1), -1, target_ids.dtype)], axis=1
    ).reshape(-1).astype(jnp.int32)
    active = jnp.concatenate(
        [target_mask[:, 1:], jnp.zeros((B, 1), target_mask.dtype)], axis=1
    ).reshape(-1) != 0
    nll = lm_head_nll(hidden, params["word_emb"], shift_labels)                # [B*T] f32

    valid = jnp.logical_and(active, shift_labels != -1)     # CrossEntropyLoss(ignore_index=-1)
    valid_f = valid.astype(jnp.float32)
    loss = jnp.sum(nll * valid_f) / jnp.maximum(jnp.sum(valid_f), 1.0)

    # TODO(synk): inference beam-search branch (Beam class, per-sample dynamic python loop)
    # and the return_last_hidden / return_hidden host-transfer branches are not translated.
    return loss


# ---------------------------------------------------------------------------
# Deterministic parameter init (weights bf16, biases / LN params f32)
# ---------------------------------------------------------------------------
def _norm(key, shape, scale=0.02):
    return (scale * jax.random.normal(key, shape)).astype(jnp.bfloat16)


def _self_attn_params(key, H, n_heads):
    k1, k2 = jax.random.split(key)
    q_scale = 1.0 / math.sqrt(H // n_heads)
    # softmax 1/sqrt(d) scale folded into W_q (a checkpoint loader would also scale b_q)
    wqkv = (0.02 * jax.random.normal(k1, (H, 3 * H))).at[:, :H].multiply(q_scale)
    return dict(wqkv=wqkv.astype(jnp.bfloat16), bqkv=jnp.zeros((3 * H,), jnp.float32),
                wo=_norm(k2, (H, H)), bo=jnp.zeros((H,), jnp.float32))


def _cross_attn_params(key, H, n_heads):
    k1, k2, k3 = jax.random.split(key, 3)
    q_scale = 1.0 / math.sqrt(H // n_heads)
    wq = (0.02 * q_scale) * jax.random.normal(k1, (H, H))
    return dict(wq=wq.astype(jnp.bfloat16), bq=jnp.zeros((H,), jnp.float32),
                wkv=_norm(k2, (H, 2 * H)), bkv=jnp.zeros((2 * H,), jnp.float32),
                wo=_norm(k3, (H, H)), bo=jnp.zeros((H,), jnp.float32))


def init_params(key, V, H, F, max_pos, n_heads):
    ks = jax.random.split(key, 12)
    ones = lambda n: jnp.ones((n,), jnp.float32)
    zeros = lambda n: jnp.zeros((n,), jnp.float32)
    enc_layer = dict(attn=_self_attn_params(ks[2], H, n_heads),
                     ln1_g=ones(H), ln1_b=zeros(H),
                     w1=_norm(ks[3], (H, F)), b1=zeros(F),
                     w2=_norm(ks[4], (F, H)), b2=zeros(H),
                     ln2_g=ones(H), ln2_b=zeros(H))
    dec_layer = dict(self_attn=_self_attn_params(ks[5], H, n_heads),
                     cross_attn=_cross_attn_params(ks[6], H, n_heads),
                     ln1_g=ones(H), ln1_b=zeros(H),
                     ln2_g=ones(H), ln2_b=zeros(H),
                     w1=_norm(ks[7], (H, F)), b1=zeros(F),
                     w2=_norm(ks[8], (F, H)), b2=zeros(H),
                     ln3_g=ones(H), ln3_b=zeros(H))
    return dict(word_emb=_norm(ks[0], (V, H)),
                pos_emb=_norm(ks[1], (max_pos, H)),
                emb_ln_g=ones(H), emb_ln_b=zeros(H),
                enc_layer=enc_layer, dec_layer=dec_layer,
                dense_w=_norm(ks[9], (H, H)), dense_b=zeros(H))


# ---------------------------------------------------------------------------
if __name__ == "__main__":
    B, S, T = 2, 16, 8
    H, V, F, n_heads, max_pos = 128, 256, 256, 4, 64

    key = jax.random.PRNGKey(0)
    kp, k1, k2 = jax.random.split(key, 3)
    params = init_params(kp, V, H, F, max_pos, n_heads)

    source_ids = jax.random.randint(k1, (B, S), 0, V, dtype=jnp.int32)
    source_mask = jnp.ones((B, S), jnp.int32).at[1, S - 3:].set(0)
    target_ids = jax.random.randint(k2, (B, T), 0, V, dtype=jnp.int32)
    target_mask = jnp.ones((B, T), jnp.int32).at[0, T - 2:].set(0)

    fwd = jax.jit(functools.partial(refine_seq2seq_forward, n_heads=n_heads))
    loss = fwd(params, source_ids, source_mask, target_ids, target_mask)
    jax.block_until_ready(loss)
    assert loss.shape == () and bool(jnp.isfinite(loss))
    print("KERNEL_OK")
</pallas_src>

<mosaic_0001>
module attributes {stable_mosaic.version = 11 : i64} {
  func.func @_add_ln_kernel(%arg0: i32, %arg1: memref<16x128xbf16, #tpu.memory_space<vmem>>, %arg2: memref<16x128xbf16, #tpu.memory_space<vmem>>, %arg3: memref<1x128xf32, #tpu.memory_space<vmem>>, %arg4: memref<1x128xf32, #tpu.memory_space<vmem>>, %arg5: memref<16x128xbf16, #tpu.memory_space<vmem>>) attributes {dimension_semantics = [#tpu.dimension_semantics<parallel>], iteration_bounds = array<i64: 1>, scalar_prefetch = 0 : i64, scratch_operands = 0 : i64, tpu.core_type = #tpu.core_type<tc>, window_params = [{transform_indices = @transform_0, window_bounds = array<i64: 16, 128>}, {transform_indices = @transform_1, window_bounds = array<i64: 16, 128>}, {pipeline_mode = #tpu.pipeline_mode<synchronous>, transform_indices = @transform_2, window_bounds = array<i64: 1, 128>}, {pipeline_mode = #tpu.pipeline_mode<synchronous>, transform_indices = @transform_3, window_bounds = array<i64: 1, 128>}, {transform_indices = @transform_4, window_bounds = array<i64: 16, 128>}]} {
    %c0 = arith.constant 0 : index
    %c0_0 = arith.constant 0 : index
    %0 = vector.load %arg1[%c0, %c0_0] : memref<16x128xbf16, #tpu.memory_space<vmem>>, vector<16x128xbf16>
    %1 = arith.extf %0 : vector<16x128xbf16> to vector<16x128xf32>
    %c0_1 = arith.constant 0 : index
    %c0_2 = arith.constant 0 : index
    %2 = vector.load %arg2[%c0_1, %c0_2] : memref<16x128xbf16, #tpu.memory_space<vmem>>, vector<16x128xbf16>
    %3 = arith.extf %2 : vector<16x128xbf16> to vector<16x128xf32>
    %4 = arith.addf %1, %3 : vector<16x128xf32>
    %cst = arith.constant dense<0.000000e+00> : vector<16xf32>
    %5 = vector.multi_reduction <add>, %4, %cst [1] : vector<16x128xf32> to vector<16xf32>
    %6 = vector.shape_cast %5 : vector<16xf32> to vector<16x1xf32>
    %cst_3 = arith.constant 1.280000e+02 : f32
    %7 = vector.broadcast %cst_3 : f32 to vector<16x1xf32>
    %8 = arith.divf %6, %7 : vector<16x1xf32>
    %9 = vector.broadcast %8 : vector<16x1xf32> to vector<16x128xf32>
    %10 = arith.subf %4, %9 : vector<16x128xf32>
    %11 = arith.mulf %10, %10 : vector<16x128xf32>
    %cst_4 = arith.constant dense<0.000000e+00> : vector<16xf32>
    %12 = vector.multi_reduction <add>, %11, %cst_4 [1] : vector<16x128xf32> to vector<16xf32>
    %13 = vector.shape_cast %12 : vector<16xf32> to vector<16x1xf32>
    %cst_5 = arith.constant 1.280000e+02 : f32
    %14 = vector.broadcast %cst_5 : f32 to vector<16x1xf32>
    %15 = arith.divf %13, %14 : vector<16x1xf32>
    %16 = vector.broadcast %8 : vector<16x1xf32> to vector<16x128xf32>
    %17 = arith.subf %4, %16 : vector<16x128xf32>
    %cst_6 = arith.constant 9.99999974E-6 : f32
    %18 = vector.broadcast %cst_6 : f32 to vector<16x1xf32>
    %19 = arith.addf %15, %18 : vector<16x1xf32>
    %20 = math.rsqrt %19 : vector<16x1xf32>
    %21 = vector.broadcast %20 : vector<16x1xf32> to vector<16x128xf32>
    %22 = arith.mulf %17, %21 : vector<16x128xf32>
    %c0_7 = arith.constant 0 : index
    %c0_8 = arith.constant 0 : index
    %23 = vector.load %arg3[%c0_7, %c0_8] : memref<1x128xf32, #tpu.memory_space<vmem>>, vector<1x128xf32>
    %24 = vector.broadcast %23 : vector<1x128xf32> to vector<16x128xf32>
    %25 = arith.mulf %22, %24 : vector<16x128xf32>
    %c0_9 = arith.constant 0 : index
    %c0_10 = arith.constant 0 : index
    %26 = vector.load %arg4[%c0_9, %c0_10] : memref<1x128xf32, #tpu.memory_space<vmem>>, vector<1x128xf32>
    %27 = vector.broadcast %26 : vector<1x128xf32> to vector<16x128xf32>
    %28 = arith.addf %25, %27 : vector<16x128xf32>
    %29 = arith.truncf %28 : vector<16x128xf32> to vector<16x128xbf16>
    %c0_11 = arith.constant 0 : index
    %c0_12 = arith.constant 0 : index
    %30 = vector.load %arg5[%c0_11, %c0_12] : memref<16x128xbf16, #tpu.memory_space<vmem>>, vector<16x128xbf16>
    tpu.vector_store %arg5[%c0_11, %c0_12], %29 {strides = array<i32>} : memref<16x128xbf16, #tpu.memory_space<vmem>>, vector<16x128xbf16>,
    return
  }
  func.func @transform_0(%arg0: i32) -> (i32, i32) {
    %c0_i32 = arith.constant 0 : i32
    %c0_i32_0 = arith.constant 0 : i32
    return %arg0, %c0_i32 : i32, i32
  }
  func.func @transform_1(%arg0: i32) -> (i32, i32) {
    %c0_i32 = arith.constant 0 : i32
    %c0_i32_0 = arith.constant 0 : i32
    return %arg0, %c0_i32 : i32, i32
  }
  func.func @transform_2(%arg0: i32) -> (i32, i32) {
    %c0_i32 = arith.constant 0 : i32
    %c0_i32_0 = arith.constant 0 : i32
    %c0_i32_1 = arith.constant 0 : i32
    return %c0_i32, %c0_i32_0 : i32, i32
  }
  func.func @transform_3(%arg0: i32) -> (i32, i32) {
    %c0_i32 = arith.constant 0 : i32
    %c0_i32_0 = arith.constant 0 : i32
    %c0_i32_1 = arith.constant 0 : i32
    return %c0_i32, %c0_i32_0 : i32, i32
  }
  func.func @transform_4(%arg0: i32) -> (i32, i32) {
    %c0_i32 = arith.constant 0 : i32
    %c0_i32_0 = arith.constant 0 : i32
    return %arg0, %c0_i32 : i32, i32
  }
}

module attributes {stable_mosaic.version = 11 : i64} {
  func.func @_add_ln_kernel(%arg0: i32, %arg1: memref<32x128xbf16, #tpu.memory_space<vmem>>, %arg2: memref<32x128xbf16, #tpu.memory_space<vmem>>, %arg3: memref<1x128xf32, #tpu.memory_space<vmem>>, %arg4: memref<1x128xf32, #tpu.memory_space<vmem>>, %arg5: memref<32x128xbf16, #tpu.memory_space<vmem>>) attributes {dimension_semantics = [#tpu.dimension_semantics<parallel>], iteration_bounds = array<i64: 1>, scalar_prefetch = 0 : i64, scratch_operands = 0 : i64, tpu.core_type = #tpu.core_type<tc>, window_params = [{transform_indices = @transform_0, window_bounds = array<i64: 32, 128>}, {transform_indices = @transform_1, window_bounds = array<i64: 32, 128>}, {pipeline_mode = #tpu.pipeline_mode<synchronous>, transform_indices = @transform_2, window_bounds = array<i64: 1, 128>}, {pipeline_mode = #tpu.pipeline_mode<synchronous>, transform_indices = @transform_3, window_bounds = array<i64: 1, 128>}, {transform_indices = @transform_4, window_bounds = array<i64: 32, 128>}]} {
    %c0 = arith.constant 0 : index
    %c0_0 = arith.constant 0 : index
    %0 = vector.load %arg1[%c0, %c0_0] : memref<32x128xbf16, #tpu.memory_space<vmem>>, vector<32x128xbf16>
    %1 = arith.extf %0 : vector<32x128xbf16> to vector<32x128xf32>
    %c0_1 = arith.constant 0 : index
    %c0_2 = arith.constant 0 : index
    %2 = vector.load %arg2[%c0_1, %c0_2] : memref<32x128xbf16, #tpu.memory_space<vmem>>, vector<32x128xbf16>
    %3 = arith.extf %2 : vector<32x128xbf16> to vector<32x128xf32>
    %4 = arith.addf %1, %3 : vector<32x128xf32>
    %cst = arith.constant dense<0.000000e+00> : vector<32xf32>
    %5 = vector.multi_reduction <add>, %4, %cst [1] : vector<32x128xf32> to vector<32xf32>
    %6 = vector.shape_cast %5 : vector<32xf32> to vector<32x1xf32>
    %cst_3 = arith.constant 1.280000e+02 : f32
    %7 = vector.broadcast %cst_3 : f32 to vector<32x1xf32>
    %8 = arith.divf %6, %7 : vector<32x1xf32>
    %9 = vector.broadcast %8 : vector<32x1xf32> to vector<32x128xf32>
    %10 = arith.subf %4, %9 : vector<32x128xf32>
    %11 = arith.mulf %10, %10 : vector<32x128xf32>
    %cst_4 = arith.constant dense<0.000000e+00> : vector<32xf32>
    %12 = vector.multi_reduction <add>, %11, %cst_4 [1] : vector<32x128xf32> to vector<32xf32>
    %13 = vector.shape_cast %12 : vector<32xf32> to vector<32x1xf32>
    %cst_5 = arith.constant 1.280000e+02 : f32
    %14 = vector.broadcast %cst_5 : f32 to vector<32x1xf32>
    %15 = arith.divf %13, %14 : vector<32x1xf32>
    %16 = vector.broadcast %8 : vector<32x1xf32> to vector<32x128xf32>
    %17 = arith.subf %4, %16 : vector<32x128xf32>
    %cst_6 = arith.constant 9.99999974E-6 : f32
    %18 = vector.broadcast %cst_6 : f32 to vector<32x1xf32>
    %19 = arith.addf %15, %18 : vector<32x1xf32>
    %20 = math.rsqrt %19 : vector<32x1xf32>
    %21 = vector.broadcast %20 : vector<32x1xf32> to vector<32x128xf32>
    %22 = arith.mulf %17, %21 : vector<32x128xf32>
    %c0_7 = arith.constant 0 : index
    %c0_8 = arith.constant 0 : index
    %23 = vector.load %arg3[%c0_7, %c0_8] : memref<1x128xf32, #tpu.memory_space<vmem>>, vector<1x128xf32>
    %24 = vector.broadcast %23 : vector<1x128xf32> to vector<32x128xf32>
    %25 = arith.mulf %22, %24 : vector<32x128xf32>
    %c0_9 = arith.constant 0 : index
    %c0_10 = arith.constant 0 : index
    %26 = vector.load %arg4[%c0_9, %c0_10] : memref<1x128xf32, #tpu.memory_space<vmem>>, vector<1x128xf32>
    %27 = vector.broadcast %26 : vector<1x128xf32> to vector<32x128xf32>
    %28 = arith.addf %25, %27 : vector<32x128xf32>
    %29 = arith.truncf %28 : vector<32x128xf32> to vector<32x128xbf16>
    %c0_11 = arith.constant 0 : index
    %c0_12 = arith.constant 0 : index
    %30 = vector.load %arg5[%c0_11, %c0_12] : memref<32x128xbf16, #tpu.memory_space<vmem>>, vector<32x128xbf16>
    tpu.vector_store %arg5[%c0_11, %c0_12], %29 {strides = array<i32>} : memref<32x128xbf16, #tpu.memory_space<vmem>>, vector<32x128xbf16>,
    return
  }
  func.func @transform_0(%arg0: i32) -> (i32, i32) {
    %c0_i32 = arith.constant 0 : i32
    %c0_i32_0 = arith.constant 0 : i32
    return %arg0, %c0_i32 : i32, i32
  }
  func.func @transform_1(%arg0: i32) -> (i32, i32) {
    %c0_i32 = arith.constant 0 : i32
    %c0_i32_0 = arith.constant 0 : i32
    return %arg0, %c0_i32 : i32, i32
  }
  func.func @transform_2(%arg0: i32) -> (i32, i32) {
    %c0_i32 = arith.constant 0 : i32
    %c0_i32_0 = arith.constant 0 : i32
    %c0_i32_1 = arith.constant 0 : i32
    return %c0_i32, %c0_i32_0 : i32, i32
  }
  func.func @transform_3(%arg0: i32) -> (i32, i32) {
    %c0_i32 = arith.constant 0 : i32
    %c0_i32_0 = arith.constant 0 : i32
    %c0_i32_1 = arith.constant 0 : i32
    return %c0_i32, %c0_i32_0 : i32, i32
  }
  func.func @transform_4(%arg0: i32) -> (i32, i32) {
    %c0_i32 = arith.constant 0 : i32
    %c0_i32_0 = arith.constant 0 : i32
    return %arg0, %c0_i32 : i32, i32
  }
}

module attributes {stable_mosaic.version = 11 : i64} {
  func.func @_linear_kernel(%arg0: i32, %arg1: i32, %arg2: i32, %arg3: memref<16x128xbf16, #tpu.memory_space<vmem>>, %arg4: memref<128x384xbf16, #tpu.memory_space<vmem>>, %arg5: memref<1x384xf32, #tpu.memory_space<vmem>>, %arg6: memref<16x384xbf16, #tpu.memory_space<vmem>>, %arg7: memref<16x384xf32, #tpu.memory_space<vmem>>) attributes {dimension_semantics = [#tpu.dimension_semantics<parallel>, #tpu.dimension_semantics<parallel>, #tpu.dimension_semantics<arbitrary>], iteration_bounds = array<i64: 1, 1, 1>, scalar_prefetch = 0 : i64, scratch_operands = 1 : i64, tpu.core_type = #tpu.core_type<tc>, window_params = [{transform_indices = @transform_0, window_bounds = array<i64: 16, 128>}, {transform_indices = @transform_1, window_bounds = array<i64: 128, 384>}, {transform_indices = @transform_2, window_bounds = array<i64: 1, 384>}, {transform_indices = @transform_3, window_bounds = array<i64: 16, 384>}]} {
    %c0_i32 = arith.constant 0 : i32
    %0 = arith.cmpi eq, %arg2, %c0_i32 : i32
    %1 = arith.extui %0 : i1 to i32
    %c0_i32_0 = arith.constant 0 : i32
    %2 = arith.cmpi ne, %1, %c0_i32_0 : i32
    scf.if %2 {
      %cst_10 = arith.constant 0.000000e+00 : f32
      %12 = vector.broadcast %cst_10 : f32 to vector<16x384xf32>
      %c0_11 = arith.constant 0 : index
      %c0_12 = arith.constant 0 : index
      %13 = vector.load %arg7[%c0_11, %c0_12] : memref<16x384xf32, #tpu.memory_space<vmem>>, vector<16x384xf32>
      tpu.vector_store %arg7[%c0_11, %c0_12], %12 {strides = array<i32>} : memref<16x384xf32, #tpu.memory_space<vmem>>, vector<16x384xf32>,
    } else {
    }
    %c0 = arith.constant 0 : index
    %c0_1 = arith.constant 0 : index
    %3 = vector.load %arg7[%c0, %c0_1] : memref<16x384xf32, #tpu.memory_space<vmem>>, vector<16x384xf32>
    %c0_2 = arith.constant 0 : index
    %c0_3 = arith.constant 0 : index
    %4 = vector.load %arg3[%c0_2, %c0_3] : memref<16x128xbf16, #tpu.memory_space<vmem>>, vector<16x128xbf16>
    %c0_4 = arith.constant 0 : index
    %c0_5 = arith.constant 0 : index
    %5 = vector.load %arg4[%c0_4, %c0_5] : memref<128x384xbf16, #tpu.memory_space<vmem>>, vector<128x384xbf16>
    %cst = arith.constant dense<0.000000e+00> : vector<16x384xf32>
    %6 = tpu.matmul %4, %5, %cst {dimension_numbers = #tpu.dot_dimension_numbers<[1], [0], [0], [1], [0, 0, 1, 1], [], []>} : vector<16x128xbf16>, vector<128x384xbf16>, vector<16x384xf32> -> vector<16x384xf32>
    %7 = arith.addf %3, %6 : vector<16x384xf32>
    %c0_6 = arith.constant 0 : index
    %c0_7 = arith.constant 0 : index
    %8 = vector.load %arg7[%c0_6, %c0_7] : memref<16x384xf32, #tpu.memory_space<vmem>>, vector<16x384xf32>
    tpu.vector_store %arg7[%c0_6, %c0_7], %7 {strides = array<i32>} : memref<16x384xf32, #tpu.memory_space<vmem>>, vector<16x384xf32>,
    %c0_i32_8 = arith.constant 0 : i32
    %9 = arith.cmpi eq, %arg2, %c0_i32_8 : i32
    %10 = arith.extui %9 : i1 to i32
    %c0_i32_9 = arith.constant 0 : i32
    %11 = arith.cmpi ne, %10, %c0_i32_9 : i32
    scf.if %11 {
      %c0_10 = arith.constant 0 : index
      %c0_11 = arith.constant 0 : index
      %12 = vector.load %arg7[%c0_10, %c0_11] : memref<16x384xf32, #tpu.memory_space<vmem>>, vector<16x384xf32>
      %c0_12 = arith.constant 0 : index
      %c0_13 = arith.constant 0 : index
      %13 = vector.load %arg5[%c0_12, %c0_13] : memref<1x384xf32, #tpu.memory_space<vmem>>, vector<1x384xf32>
      %14 = vector.broadcast %13 : vector<1x384xf32> to vector<16x384xf32>
      %15 = arith.addf %12, %14 : vector<16x384xf32>
      %16 = arith.truncf %15 : vector<16x384xf32> to vector<16x384xbf16>
      %c0_14 = arith.constant 0 : index
      %c0_15 = arith.constant 0 : index
      %17 = vector.load %arg6[%c0_14, %c0_15] : memref<16x384xbf16, #tpu.memory_space<vmem>>, vector<16x384xbf16>
      tpu.vector_store %arg6[%c0_14, %c0_15], %16 {strides = array<i32>} : memref<16x384xbf16, #tpu.memory_space<vmem>>, vector<16x384xbf16>,
    } else {
    }
    return
  }
  func.func @transform_0(%arg0: i32, %arg1: i32, %arg2: i32) -> (i32, i32) {
    %c0_i32 = arith.constant 0 : i32
    return %arg0, %arg2 : i32, i32
  }
  func.func @transform_1(%arg0: i32, %arg1: i32, %arg2: i32) -> (i32, i32) {
    %c0_i32 = arith.constant 0 : i32
    return %arg2, %arg1 : i32, i32
  }
  func.func @transform_2(%arg0: i32, %arg1: i32, %arg2: i32) -> (i32, i32) {
    %c0_i32 = arith.constant 0 : i32
    %c0_i32_0 = arith.constant 0 : i32
    return %c0_i32, %arg1 : i32, i32
  }
  func.func @transform_3(%arg0: i32, %arg1: i32, %arg2: i32) -> (i32, i32) {
    %c0_i32 = arith.constant 0 : i32
    return %arg0, %arg1 : i32, i32
  }
}

module attributes {stable_mosaic.version = 11 : i64} {
  func.func @_flash_attn_kernel(%arg0: i32, %arg1: i32, %arg2: i32, %arg3: memref<1x8x128xbf16, #tpu.memory_space<vmem>>, %arg4: memref<1x8x128xbf16, #tpu.memory_space<vmem>>, %arg5: memref<1x8x128xbf16, #tpu.memory_space<vmem>>, %arg6: memref<1x1x8xf32, #tpu.memory_space<vmem>>, %arg7: memref<1x8x128xbf16, #tpu.memory_space<vmem>>, %arg8: memref<4x8x1xf32, #tpu.memory_space<vmem>>, %arg9: memref<4x8x1xf32, #tpu.memory_space<vmem>>, %arg10: memref<8x128xf32, #tpu.memory_space<vmem>>) attributes {dimension_semantics = [#tpu.dimension_semantics<parallel>, #tpu.dimension_semantics<parallel>, #tpu.dimension_semantics<arbitrary>], iteration_bounds = array<i64: 2, 1, 1>, scalar_prefetch = 0 : i64, scratch_operands = 3 : i64, tpu.core_type = #tpu.core_type<tc>, window_params = [{transform_indices = @transform_0, window_bounds = array<i64: 1, 8, 128>}, {transform_indices = @transform_1, window_bounds = array<i64: 1, 8, 128>}, {transform_indices = @transform_2, window_bounds = array<i64: 1, 8, 128>}, {transform_indices = @transform_3, window_bounds = array<i64: 1, 1, 8>}, {transform_indices = @transform_4, window_bounds = array<i64: 1, 8, 128>}]} {
    %c0_i32 = arith.constant 0 : i32
    %0 = arith.cmpi eq, %arg2, %c0_i32 : i32
    %1 = arith.extui %0 : i1 to i32
    %c0_i32_0 = arith.constant 0 : i32
    %2 = arith.cmpi ne, %1, %c0_i32_0 : i32
    scf.if %2 {
      %cst = arith.constant 0xFF800000 : f32
      %12 = vector.broadcast %cst : f32 to vector<4x8x1xf32>
      %c0 = arith.constant 0 : index
      %c0_5 = arith.constant 0 : index
      %c0_6 = arith.constant 0 : index
      %13 = vector.load %arg8[%c0, %c0_5, %c0_6] : memref<4x8x1xf32, #tpu.memory_space<vmem>>, vector<4x8x1xf32>
      tpu.vector_store %arg8[%c0, %c0_5, %c0_6], %12 {strides = array<i32>} : memref<4x8x1xf32, #tpu.memory_space<vmem>>, vector<4x8x1xf32>,
      %cst_7 = arith.constant 0.000000e+00 : f32
      %14 = vector.broadcast %cst_7 : f32 to vector<4x8x1xf32>
      %c0_8 = arith.constant 0 : index
      %c0_9 = arith.constant 0 : index
      %c0_10 = arith.constant 0 : index
      %15 = vector.load %arg9[%c0_8, %c0_9, %c0_10] : memref<4x8x1xf32, #tpu.memory_space<vmem>>, vector<4x8x1xf32>
      tpu.vector_store %arg9[%c0_8, %c0_9, %c0_10], %14 {strides = array<i32>} : memref<4x8x1xf32, #tpu.memory_space<vmem>>, vector<4x8x1xf32>,
      %cst_11 = arith.constant 0.000000e+00 : f32
      %16 = vector.broadcast %cst_11 : f32 to vector<8x128xf32>
      %c0_12 = arith.constant 0 : index
      %c0_13 = arith.constant 0 : index
      %17 = vector.load %arg10[%c0_12, %c0_13] : memref<8x128xf32, #tpu.memory_space<vmem>>, vector<8x128xf32>
      tpu.vector_store %arg10[%c0_12, %c0_13], %16 {strides = array<i32>} : memref<8x128xf32, #tpu.memory_space<vmem>>, vector<8x128xf32>,
    } else {
    }
    %c8_i32 = arith.constant 8 : i32
    %3 = arith.muli %arg2, %c8_i32 : i32
    %c8_i32_1 = arith.constant 8 : i32
    %4 = arith.muli %arg1, %c8_i32_1 : i32
    %c7_i32 = arith.constant 7 : i32
    %5 = arith.addi %4, %c7_i32 : i32
    %6 = arith.cmpi sle, %3, %5 : i32
    %7 = arith.extui %6 : i1 to i32
    %c0_i32_2 = arith.constant 0 : i32
    %8 = arith.cmpi ne, %7, %c0_i32_2 : i32
    scf.if %8 {
      %c0 = arith.constant 0 : index
      %c0_5 = arith.constant 0 : index
      %c0_6 = arith.constant 0 : index
      %12 = vector.load %arg3[%c0, %c0_5, %c0_6] : memref<1x8x128xbf16, #tpu.memory_space<vmem>>, vector<1x8x128xbf16>
      %13 = vector.shape_cast %12 : vector<1x8x128xbf16> to vector<8x128xbf16>
      %c0_7 = arith.constant 0 : index
      %c0_8 = arith.constant 0 : index
      %c0_9 = arith.constant 0 : index
      %14 = vector.load %arg4[%c0_7, %c0_8, %c0_9] : memref<1x8x128xbf16, #tpu.memory_space<vmem>>, vector<1x8x128xbf16>
      %15 = vector.shape_cast %14 : vector<1x8x128xbf16> to vector<8x128xbf16>
      %c0_10 = arith.constant 0 : index
      %c0_11 = arith.constant 0 : index
      %c0_12 = arith.constant 0 : index
      %16 = vector.load %arg5[%c0_10, %c0_11, %c0_12] : memref<1x8x128xbf16, #tpu.memory_space<vmem>>, vector<1x8x128xbf16>
      %17 = vector.shape_cast %16 : vector<1x8x128xbf16> to vector<8x128xbf16>
      %c0_13 = arith.constant 0 : index
      %c0_14 = arith.constant 0 : index
      %c0_15 = arith.constant 0 : index
      %18 = vector.load %arg6[%c0_13, %c0_14, %c0_15] : memref<1x1x8xf32, #tpu.memory_space<vmem>>, vector<1x1x8xf32>
      %19 = vector.shape_cast %18 : vector<1x1x8xf32> to vector<1x8xf32>
      %c8_i32_16 = arith.constant 8 : i32
      %20 = arith.muli %arg1, %c8_i32_16 : i32
      %21 = tpu.iota {dimensions = array<i32: 0>} : vector<8x8xi32>
      %22 = vector.broadcast %20 : i32 to vector<8x8xi32>
      %23 = arith.addi %22, %21 : vector<8x8xi32>
      %c8_i32_17 = arith.constant 8 : i32
      %24 = arith.muli %arg2, %c8_i32_17 : i32
      %25 = tpu.iota {dimensions = array<i32: 1>} : vector<8x8xi32>
      %26 = vector.broadcast %24 : i32 to vector<8x8xi32>
      %27 = arith.addi %26, %25 : vector<8x8xi32>
      %28 = arith.cmpi sge, %23, %27 : vector<8x8xi32>
      %cst = arith.constant 0.000000e+00 : f32
      %cst_18 = arith.constant -1.000000e+04 : f32
      %29 = vector.broadcast %cst : f32 to vector<8x8xf32>
      %30 = vector.broadcast %cst_18 : f32 to vector<8x8xf32>
      %31 = arith.select %28, %29, %30 : vector<8x8xi1>, vector<8x8xf32>
      %32 = vector.broadcast %19 : vector<1x8xf32> to vector<8x8xf32>
      %33 = arith.addf %32, %31 : vector<8x8xf32>
      %34 = vector.extract_strided_slice %13 {offsets = [0, 0], sizes = [8, 32], strides = [1, 1]} : vector<8x128xbf16> to vector<8x32xbf16>
      %35 = vector.extract_strided_slice %15 {offsets = [0, 0], sizes = [8, 32], strides = [1, 1]} : vector<8x128xbf16> to vector<8x32xbf16>
      %cst_19 = arith.constant dense<0.000000e+00> : vector<8x8xf32>
      %36 = tpu.matmul %34, %35, %cst_19 {dimension_numbers = #tpu.dot_dimension_numbers<[1], [1], [0], [0], [0, 0, 1, 0], [], []>} : vector<8x32xbf16>, vector<8x32xbf16>, vector<8x8xf32> -> vector<8x8xf32>
      %37 = arith.addf %36, %33 : vector<8x8xf32>
      %c0_20 = arith.constant 0 : index
      %c0_21 = arith.constant 0 : index
      %c0_22 = arith.constant 0 : index
      %38 = vector.load %arg8[%c0_20, %c0_21, %c0_22] : memref<4x8x1xf32, #tpu.memory_space<vmem>>, vector<1x8x1xf32>
      %39 = vector.shape_cast %38 : vector<1x8x1xf32> to vector<8x1xf32>
      %cst_23 = arith.constant dense<0xFF800000> : vector<8xf32>
      %40 = vector.multi_reduction <maximumf>, %37, %cst_23 [1] : vector<8x8xf32> to vector<8xf32>
      %41 = vector.shape_cast %40 : vector<8xf32> to vector<8x1xf32>
      %42 = arith.maximumf %39, %41 : vector<8x1xf32>
      %43 = arith.subf %39, %42 : vector<8x1xf32>
      %44 = math.exp %43 : vector<8x1xf32>
      %45 = vector.broadcast %42 : vector<8x1xf32> to vector<8x8xf32>
      %46 = arith.subf %37, %45 : vector<8x8xf32>
      %47 = math.exp %46 : vector<8x8xf32>
      %c0_24 = arith.constant 0 : index
      %c0_25 = arith.constant 0 : index
      %c0_26 = arith.constant 0 : index
      %48 = vector.load %arg9[%c0_24, %c0_25, %c0_26] : memref<4x8x1xf32, #tpu.memory_space<vmem>>, vector<1x8x1xf32>
      %49 = vector.shape_cast %48 : vector<1x8x1xf32> to vector<8x1xf32>
      %50 = arith.mulf %44, %49 : vector<8x1xf32>
      %cst_27 = arith.constant dense<0.000000e+00> : vector<8xf32>
      %51 = vector.multi_reduction <add>, %47, %cst_27 [1] : vector<8x8xf32> to vector<8xf32>
      %52 = vector.shape_cast %51 : vector<8xf32> to vector<8x1xf32>
      %53 = arith.addf %50, %52 : vector<8x1xf32>
      %c0_28 = arith.constant 0 : index
      %c0_29 = arith.constant 0 : index
      %c0_30 = arith.constant 0 : index
      %54 = vector.load %arg9[%c0_28, %c0_29, %c0_30] : memref<4x8x1xf32, #tpu.memory_space<vmem>>, vector<1x8x1xf32>
      %55 = vector.shape_cast %54 : vector<1x8x1xf32> to vector<8x1xf32>
      %56 = vector.shape_cast %53 : vector<8x1xf32> to vector<1x8x1xf32>
      tpu.vector_store %arg9[%c0_28, %c0_29, %c0_30], %56 {strides = array<i32>} : memref<4x8x1xf32, #tpu.memory_space<vmem>>, vector<1x8x1xf32>,
      %c0_31 = arith.constant 0 : index
      %c0_32 = arith.constant 0 : index
      %57 = vector.load %arg10[%c0_31, %c0_32] : memref<8x128xf32, #tpu.memory_space<vmem>>, vector<8x32xf32>
      %58 = vector.broadcast %44 : vector<8x1xf32> to vector<8x32xf32>
      %59 = arith.mulf %58, %57 : vector<8x32xf32>
      %60 = arith.truncf %47 : vector<8x8xf32> to vector<8x8xbf16>
      %61 = vector.extract_strided_slice %17 {offsets = [0, 0], sizes = [8, 32], strides = [1, 1]} : vector<8x128xbf16> to vector<8x32xbf16>
      %cst_33 = arith.constant dense<0.000000e+00> : vector<8x32xf32>
      %62 = tpu.matmul %60, %61, %cst_33 {dimension_numbers = #tpu.dot_dimension_numbers<[1], [0], [0], [1], [0, 0, 1, 1], [], []>} : vector<8x8xbf16>, vector<8x32xbf16>, vector<8x32xf32> -> vector<8x32xf32>
      %63 = arith.addf %59, %62 : vector<8x32xf32>
      %c0_34 = arith.constant 0 : index
      %c0_35 = arith.constant 0 : index
      %64 = vector.load %arg10[%c0_34, %c0_35] : memref<8x128xf32, #tpu.memory_space<vmem>>, vector<8x32xf32>
      tpu.vector_store %arg10[%c0_34, %c0_35], %63 {strides = array<i32>} : memref<8x128xf32, #tpu.memory_space<vmem>>, vector<8x32xf32>,
      %c0_36 = arith.constant 0 : index
      %c0_37 = arith.constant 0 : index
      %c0_38 = arith.constant 0 : index
      %65 = vector.load %arg8[%c0_36, %c0_37, %c0_38] : memref<4x8x1xf32, #tpu.memory_space<vmem>>, vector<1x8x1xf32>
      %66 = vector.shape_cast %65 : vector<1x8x1xf32> to vector<8x1xf32>
      %67 = vector.shape_cast %42 : vector<8x1xf32> to vector<1x8x1xf32>
      tpu.vector_store %arg8[%c0_36, %c0_37, %c0_38], %67 {strides = array<i32>} : memref<4x8x1xf32, #tpu.memory_space<vmem>>, vector<1x8x1xf32>,
      %68 = vector.extract_strided_slice %13 {offsets = [0, 32], sizes = [8, 32], strides = [1, 1]} : vector<8x128xbf16> to vector<8x32xbf16>
      %69 = vector.extract_strided_slice %15 {offsets = [0, 32], sizes = [8, 32], strides = [1, 1]} : vector<8x128xbf16> to vector<8x32xbf16>
      %cst_39 = arith.constant dense<0.000000e+00> : vector<8x8xf32>
      %70 = tpu.matmul %68, %69, %cst_39 {dimension_numbers = #tpu.dot_dimension_numbers<[1], [1], [0], [0], [0, 0, 1, 0], [], []>} : vector<8x32xbf16>, vector<8x32xbf16>, vector<8x8xf32> -> vector<8x8xf32>
      %71 = arith.addf %70, %33 : vector<8x8xf32>
      %c1 = arith.constant 1 : index
      %c0_40 = arith.constant 0 : index
      %c0_41 = arith.constant 0 : index
      %72 = vector.load %arg8[%c1, %c0_40, %c0_41] : memref<4x8x1xf32, #tpu.memory_space<vmem>>, vector<1x8x1xf32>
      %73 = vector.shape_cast %72 : vector<1x8x1xf32> to vector<8x1xf32>
      %cst_42 = arith.constant dense<0xFF800000> : vector<8xf32>
      %74 = vector.multi_reduction <maximumf>, %71, %cst_42 [1] : vector<8x8xf32> to vector<8xf32>
      %75 = vector.shape_cast %74 : vector<8xf32> to vector<8x1xf32>
      %76 = arith.maximumf %73, %75 : vector<8x1xf32>
      %77 = arith.subf %73, %76 : vector<8x1xf32>
      %78 = math.exp %77 : vector<8x1xf32>
      %79 = vector.broadcast %76 : vector<8x1xf32> to vector<8x8xf32>
      %80 = arith.subf %71, %79 : vector<8x8xf32>
      %81 = math.exp %80 : vector<8x8xf32>
      %c1_43 = arith.constant 1 : index
      %c0_44 = arith.constant 0 : index
      %c0_45 = arith.constant 0 : index
      %82 = vector.load %arg9[%c1_43, %c0_44, %c0_45] : memref<4x8x1xf32, #tpu.memory_space<vmem>>, vector<1x8x1xf32>
      %83 = vector.shape_cast %82 : vector<1x8x1xf32> to vector<8x1xf32>
      %84 = arith.mulf %78, %83 : vector<8x1xf32>
      %cst_46 = arith.constant dense<0.000000e+00> : vector<8xf32>
      %85 = vector.multi_reduction <add>, %81, %cst_46 [1] : vector<8x8xf32> to vector<8xf32>
      %86 = vector.shape_cast %85 : vector<8xf32> to vector<8x1xf32>
      %87 = arith.addf %84, %86 : vector<8x1xf32>
      %c1_47 = arith.constant 1 : index
      %c0_48 = arith.constant 0 : index
      %c0_49 = arith.constant 0 : index
      %88 = vector.load %arg9[%c1_47, %c0_48, %c0_49] : memref<4x8x1xf32, #tpu.memory_space<vmem>>, vector<1x8x1xf32>
      %89 = vector.shape_cast %88 : vector<1x8x1xf32> to vector<8x1xf32>
      %90 = vector.shape_cast %87 : vector<8x1xf32> to vector<1x8x1xf32>
      tpu.vector_store %arg9[%c1_47, %c0_48, %c0_49], %90 {strides = array<i32>} : memref<4x8x1xf32, #tpu.memory_space<vmem>>, vector<1x8x1xf32>,
      %c0_50 = arith.constant 0 : index
      %c32 = arith.constant 32 : index
      %91 = vector.load %arg10[%c0_50, %c32] : memref<8x128xf32, #tpu.memory_space<vmem>>, vector<8x32xf32>
      %92 = vector.broadcast %78 : vector<8x1xf32> to vector<8x32xf32>
      %93 = arith.mulf %92, %91 : vector<8x32xf32>
      %94 = arith.truncf %81 : vector<8x8xf32> to vector<8x8xbf16>
      %95 = vector.extract_strided_slice %17 {offsets = [0, 32], sizes = [8, 32], strides = [1, 1]} : vector<8x128xbf16> to vector<8x32xbf16>
      %cst_51 = arith.constant dense<0.000000e+00> : vector<8x32xf32>
      %96 = tpu.matmul %94, %95, %cst_51 {dimension_numbers = #tpu.dot_dimension_numbers<[1], [0], [0], [1], [0, 0, 1, 1], [], []>} : vector<8x8xbf16>, vector<8x32xbf16>, vector<8x32xf32> -> vector<8x32xf32>
      %97 = arith.addf %93, %96 : vector<8x32xf32>
      %c0_52 = arith.constant 0 : index
      %c32_53 = arith.constant 32 : index
      %98 = vector.load %arg10[%c0_52, %c32_53] : memref<8x128xf32, #tpu.memory_space<vmem>>, vector<8x32xf32>
      tpu.vector_store %arg10[%c0_52, %c32_53], %97 {strides = array<i32>} : memref<8x128xf32, #tpu.memory_space<vmem>>, vector<8x32xf32>,
      %c1_54 = arith.constant 1 : index
      %c0_55 = arith.constant 0 : index
      %c0_56 = arith.constant 0 : index
      %99 = vector.load %arg8[%c1_54, %c0_55, %c0_56] : memref<4x8x1xf32, #tpu.memory_space<vmem>>, vector<1x8x1xf32>
      %100 = vector.shape_cast %99 : vector<1x8x1xf32> to vector<8x1xf32>
      %101 = vector.shape_cast %76 : vector<8x1xf32> to vector<1x8x1xf32>
      tpu.vector_store %arg8[%c1_54, %c0_55, %c0_56], %101 {strides = array<i32>} : memref<4x8x1xf32, #tpu.memory_space<vmem>>, vector<1x8x1xf32>,
      %102 = vector.extract_strided_slice %13 {offsets = [0, 64], sizes = [8, 32], strides = [1, 1]} : vector<8x128xbf16> to vector<8x32xbf16>
      %103 = vector.extract_strided_slice %15 {offsets = [0, 64], sizes = [8, 32], strides = [1, 1]} : vector<8x128xbf16> to vector<8x32xbf16>
      %cst_57 = arith.constant dense<0.000000e+00> : vector<8x8xf32>
      %104 = tpu.matmul %102, %103, %cst_57 {dimension_numbers = #tpu.dot_dimension_numbers<[1], [1], [0], [0], [0, 0, 1, 0], [], []>} : vector<8x32xbf16>, vector<8x32xbf16>, vector<8x8xf32> -> vector<8x8xf32>
      %105 = arith.addf %104, %33 : vector<8x8xf32>
      %c2 = arith.constant 2 : index
      %c0_58 = arith.constant 0 : index
      %c0_59 = arith.constant 0 : index
      %106 = vector.load %arg8[%c2, %c0_58, %c0_59] : memref<4x8x1xf32, #tpu.memory_space<vmem>>, vector<1x8x1xf32>
      %107 = vector.shape_cast %106 : vector<1x8x1xf32> to vector<8x1xf32>
      %cst_60 = arith.constant dense<0xFF800000> : vector<8xf32>
      %108 = vector.multi_reduction <maximumf>, %105, %cst_60 [1] : vector<8x8xf32> to vector<8xf32>
      %109 = vector.shape_cast %108 : vector<8xf32> to vector<8x1xf32>
      %110 = arith.maximumf %107, %109 : vector<8x1xf32>
      %111 = arith.subf %107, %110 : vector<8x1xf32>
      %112 = math.exp %111 : vector<8x1xf32>
      %113 = vector.broadcast %110 : vector<8x1xf32> to vector<8x8xf32>
      %114 = arith.subf %105, %113 : vector<8x8xf32>
      %115 = math.exp %114 : vector<8x8xf32>
      %c2_61 = arith.constant 2 : index
      %c0_62 = arith.constant 0 : index
      %c0_63 = arith.constant 0 : index
      %116 = vector.load %arg9[%c2_61, %c0_62, %c0_63] : memref<4x8x1xf32, #tpu.memory_space<vmem>>, vector<1x8x1xf32>
      %117 = vector.shape_cast %116 : vector<1x8x1xf32> to vector<8x1xf32>
      %118 = arith.mulf %112, %117 : vector<8x1xf32>
      %cst_64 = arith.constant dense<0.000000e+00> : vector<8xf32>
      %119 = vector.multi_reduction <add>, %115, %cst_64 [1] : vector<8x8xf32> to vector<8xf32>
      %120 = vector.shape_cast %119 : vector<8xf32> to vector<8x1xf32>
      %121 = arith.addf %118, %120 : vector<8x1xf32>
      %c2_65 = arith.constant 2 : index
      %c0_66 = arith.constant 0 : index
      %c0_67 = arith.constant 0 : index
      %122 = vector.load %arg9[%c2_65, %c0_66, %c0_67] : memref<4x8x1xf32, #tpu.memory_space<vmem>>, vector<1x8x1xf32>
      %123 = vector.shape_cast %122 : vector<1x8x1xf32> to vector<8x1xf32>
      %124 = vector.shape_cast %121 : vector<8x1xf32> to vector<1x8x1xf32>
      tpu.vector_store %arg9[%c2_65, %c0_66, %c0_67], %124 {strides = array<i32>} : memref<4x8x1xf32, #tpu.memory_space<vmem>>, vector<1x8x1xf32>,
      %c0_68 = arith.constant 0 : index
      %c64 = arith.constant 64 : index
      %125 = vector.load %arg10[%c0_68, %c64] : memref<8x128xf32, #tpu.memory_space<vmem>>, vector<8x32xf32>
      %126 = vector.broadcast %112 : vector<8x1xf32> to vector<8x32xf32>
      %127 = arith.mulf %126, %125 : vector<8x32xf32>
      %128 = arith.truncf %115 : vector<8x8xf32> to vector<8x8xbf16>
      %129 = vector.extract_strided_slice %17 {offsets = [0, 64], sizes = [8, 32], strides = [1, 1]} : vector<8x128xbf16> to vector<8x32xbf16>
      %cst_69 = arith.constant dense<0.000000e+00> : vector<8x32xf32>
      %130 = tpu.matmul %128, %129, %cst_69 {dimension_numbers = #tpu.dot_dimension_numbers<[1], [0], [0], [1], [0, 0, 1, 1], [], []>} : vector<8x8xbf16>, vector<8x32xbf16>, vector<8x32xf32> -> vector<8x32xf32>
      %131 = arith.addf %127, %130 : vector<8x32xf32>
      %c0_70 = arith.constant 0 : index
      %c64_71 = arith.constant 64 : index
      %132 = vector.load %arg10[%c0_70, %c64_71] : memref<8x128xf32, #tpu.memory_space<vmem>>, vector<8x32xf32>
      tpu.vector_store %arg10[%c0_70, %c64_71], %131 {strides = array<i32>} : memref<8x128xf32, #tpu.memory_space<vmem>>, vector<8x32xf32>,
      %c2_72 = arith.constant 2 : index
      %c0_73 = arith.constant 0 : index
      %c0_74 = arith.constant 0 : index
      %133 = vector.load %arg8[%c2_72, %c0_73, %c0_74] : memref<4x8x1xf32, #tpu.memory_space<vmem>>, vector<1x8x1xf32>
      %134 = vector.shape_cast %133 : vector<1x8x1xf32> to vector<8x1xf32>
      %135 = vector.shape_cast %110 : vector<8x1xf32> to vector<1x8x1xf32>
      tpu.vector_store %arg8[%c2_72, %c0_73, %c0_74], %135 {strides = array<i32>} : memref<4x8x1xf32, #tpu.memory_space<vmem>>, vector<1x8x1xf32>,
      %136 = vector.extract_strided_slice %13 {offsets = [0, 96], sizes = [8, 32], strides = [1, 1]} : vector<8x128xbf16> to vector<8x32xbf16>
      %137 = vector.extract_strided_slice %15 {offsets = [0, 96], sizes = [8, 32], strides = [1, 1]} : vector<8x128xbf16> to vector<8x32xbf16>
      %cst_75 = arith.constant dense<0.000000e+00> : vector<8x8xf32>
      %138 = tpu.matmul %136, %137, %cst_75 {dimension_numbers = #tpu.dot_dimension_numbers<[1], [1], [0], [0], [0, 0, 1, 0], [], []>} : vector<8x32xbf16>, vector<8x32xbf16>, vector<8x8xf32> -> vector<8x8xf32>
      %139 = arith.addf %138, %33 : vector<8x8xf32>
      %c3 = arith.constant 3 : index
      %c0_76 = arith.constant 0 : index
      %c0_77 = arith.constant 0 : index
      %140 = vector.load %arg8[%c3, %c0_76, %c0_77] : memref<4x8x1xf32, #tpu.memory_space<vmem>>, vector<1x8x1xf32>
      %141 = vector.shape_cast %140 : vector<1x8x1xf32> to vector<8x1xf32>
      %cst_78 = arith.constant dense<0xFF800000> : vector<8xf32>
      %142 = vector.multi_reduction <maximumf>, %139, %cst_78 [1] : vector<8x8xf32> to vector<8xf32>
      %143 = vector.shape_cast %142 : vector<8xf32> to vector<8x1xf32>
      %144 = arith.maximumf %141, %143 : vector<8x1xf32>
      %145 = arith.subf %141, %144 : vector<8x1xf32>
      %146 = math.exp %145 : vector<8x1xf32>
      %147 = vector.broadcast %144 : vector<8x1xf32> to vector<8x8xf32>
      %148 = arith.subf %139, %147 : vector<8x8xf32>
      %149 = math.exp %148 : vector<8x8xf32>
      %c3_79 = arith.constant 3 : index
      %c0_80 = arith.constant 0 : index
      %c0_81 = arith.constant 0 : index
      %150 = vector.load %arg9[%c3_79, %c0_80, %c0_81] : memref<4x8x1xf32, #tpu.memory_space<vmem>>, vector<1x8x1xf32>
      %151 = vector.shape_cast %150 : vector<1x8x1xf32> to vector<8x1xf32>
      %152 = arith.mulf %146, %151 : vector<8x1xf32>
      %cst_82 = arith.constant dense<0.000000e+00> : vector<8xf32>
      %153 = vector.multi_reduction <add>, %149, %cst_82 [1] : vector<8x8xf32> to vector<8xf32>
      %154 = vector.shape_cast %153 : vector<8xf32> to vector<8x1xf32>
      %155 = arith.addf %152, %154 : vector<8x1xf32>
      %c3_83 = arith.constant 3 : index
      %c0_84 = arith.constant 0 : index
      %c0_85 = arith.constant 0 : index
      %156 = vector.load %arg9[%c3_83, %c0_84, %c0_85] : memref<4x8x1xf32, #tpu.memory_space<vmem>>, vector<1x8x1xf32>
      %157 = vector.shape_cast %156 : vector<1x8x1xf32> to vector<8x1xf32>
      %158 = vector.shape_cast %155 : vector<8x1xf32> to vector<1x8x1xf32>
      tpu.vector_store %arg9[%c3_83, %c0_84, %c0_85], %158 {strides = array<i32>} : memref<4x8x1xf32, #tpu.memory_space<vmem>>, vector<1x8x1xf32>,
      %c0_86 = arith.constant 0 : index
      %c96 = arith.constant 96 : index
      %159 = vector.load %arg10[%c0_86, %c96] : memref<8x128xf32, #tpu.memory_space<vmem>>, vector<8x32xf32>
      %160 = vector.broadcast %146 : vector<8x1xf32> to vector<8x32xf32>
      %161 = arith.mulf %160, %159 : vector<8x32xf32>
      %162 = arith.truncf %149 : vector<8x8xf32> to vector<8x8xbf16>
      %163 = vector.extract_strided_slice %17 {offsets = [0, 96], sizes = [8, 32], strides = [1, 1]} : vector<8x128xbf16> to vector<8x32xbf16>
      %cst_87 = arith.constant dense<0.000000e+00> : vector<8x32xf32>
      %164 = tpu.matmul %162, %163, %cst_87 {dimension_numbers = #tpu.dot_dimension_numbers<[1], [0], [0], [1], [0, 0, 1, 1], [], []>} : vector<8x8xbf16>, vector<8x32xbf16>, vector<8x32xf32> -> vector<8x32xf32>
      %165 = arith.addf %161, %164 : vector<8x32xf32>
      %c0_88 = arith.constant 0 : index
      %c96_89 = arith.constant 96 : index
      %166 = vector.load %arg10[%c0_88, %c96_89] : memref<8x128xf32, #tpu.memory_space<vmem>>, vector<8x32xf32>
      tpu.vector_store %arg10[%c0_88, %c96_89], %165 {strides = array<i32>} : memref<8x128xf32, #tpu.memory_space<vmem>>, vector<8x32xf32>,
      %c3_90 = arith.constant 3 : index
      %c0_91 = arith.constant 0 : index
      %c0_92 = arith.constant 0 : index
      %167 = vector.load %arg8[%c3_90, %c0_91, %c0_92] : memref<4x8x1xf32, #tpu.memory_space<vmem>>, vector<1x8x1xf32>
      %168 = vector.shape_cast %167 : vector<1x8x1xf32> to vector<8x1xf32>
      %169 = vector.shape_cast %144 : vector<8x1xf32> to vector<1x8x1xf32>
      tpu.vector_store %arg8[%c3_90, %c0_91, %c0_92], %169 {strides = array<i32>} : memref<4x8x1xf32, #tpu.memory_space<vmem>>, vector<1x8x1xf32>,
    } else {
    }
    %c0_i32_3 = arith.constant 0 : i32
    %9 = arith.cmpi eq, %arg2, %c0_i32_3 : i32
    %10 = arith.extui %9 : i1 to i32
    %c0_i32_4 = arith.constant 0 : i32
    %11 = arith.cmpi ne, %10, %c0_i32_4 : i32
    scf.if %11 {
      %c0 = arith.constant 0 : index
      %c0_5 = arith.constant 0 : index
      %12 = vector.load %arg10[%c0, %c0_5] : memref<8x128xf32, #tpu.memory_space<vmem>>, vector<8x32xf32>
      %c0_6 = arith.constant 0 : index
      %c0_7 = arith.constant 0 : index
      %c0_8 = arith.constant 0 : index
      %13 = vector.load %arg9[%c0_6, %c0_7, %c0_8] : memref<4x8x1xf32, #tpu.memory_space<vmem>>, vector<1x8x1xf32>
      %14 = vector.shape_cast %13 : vector<1x8x1xf32> to vector<8x1xf32>
      %15 = tpu.reciprocal %14 {approx = true} : vector<8x1xf32> -> vector<8x1xf32>
      %16 = vector.broadcast %15 : vector<8x1xf32> to vector<8x32xf32>
      %17 = arith.mulf %12, %16 : vector<8x32xf32>
      %c0_9 = arith.constant 0 : index
      %c32 = arith.constant 32 : index
      %18 = vector.load %arg10[%c0_9, %c32] : memref<8x128xf32, #tpu.memory_space<vmem>>, vector<8x32xf32>
      %c1 = arith.constant 1 : index
      %c0_10 = arith.constant 0 : index
      %c0_11 = arith.constant 0 : index
      %19 = vector.load %arg9[%c1, %c0_10, %c0_11] : memref<4x8x1xf32, #tpu.memory_space<vmem>>, vector<1x8x1xf32>
      %20 = vector.shape_cast %19 : vector<1x8x1xf32> to vector<8x1xf32>
      %21 = tpu.reciprocal %20 {approx = true} : vector<8x1xf32> -> vector<8x1xf32>
      %22 = vector.broadcast %21 : vector<8x1xf32> to vector<8x32xf32>
      %23 = arith.mulf %18, %22 : vector<8x32xf32>
      %c0_12 = arith.constant 0 : index
      %c64 = arith.constant 64 : index
      %24 = vector.load %arg10[%c0_12, %c64] : memref<8x128xf32, #tpu.memory_space<vmem>>, vector<8x32xf32>
      %c2 = arith.constant 2 : index
      %c0_13 = arith.constant 0 : index
      %c0_14 = arith.constant 0 : index
      %25 = vector.load %arg9[%c2, %c0_13, %c0_14] : memref<4x8x1xf32, #tpu.memory_space<vmem>>, vector<1x8x1xf32>
      %26 = vector.shape_cast %25 : vector<1x8x1xf32> to vector<8x1xf32>
      %27 = tpu.reciprocal %26 {approx = true} : vector<8x1xf32> -> vector<8x1xf32>
      %28 = vector.broadcast %27 : vector<8x1xf32> to vector<8x32xf32>
      %29 = arith.mulf %24, %28 : vector<8x32xf32>
      %c0_15 = arith.constant 0 : index
      %c96 = arith.constant 96 : index
      %30 = vector.load %arg10[%c0_15, %c96] : memref<8x128xf32, #tpu.memory_space<vmem>>, vector<8x32xf32>
      %c3 = arith.constant 3 : index
      %c0_16 = arith.constant 0 : index
      %c0_17 = arith.constant 0 : index
      %31 = vector.load %arg9[%c3, %c0_16, %c0_17] : memref<4x8x1xf32, #tpu.memory_space<vmem>>, vector<1x8x1xf32>
      %32 = vector.shape_cast %31 : vector<1x8x1xf32> to vector<8x1xf32>
      %33 = tpu.reciprocal %32 {approx = true} : vector<8x1xf32> -> vector<8x1xf32>
      %34 = vector.broadcast %33 : vector<8x1xf32> to vector<8x32xf32>
      %35 = arith.mulf %30, %34 : vector<8x32xf32>
      %36 = tpu.concatenate %17, %23, %29, %35 in 1 : vector<8x32xf32>, vector<8x32xf32>, vector<8x32xf32>, vector<8x32xf32> -> vector<8x128xf32>
      %37 = arith.truncf %36 : vector<8x128xf32> to vector<8x128xbf16>
      %c0_18 = arith.constant 0 : index
      %c0_19 = arith.constant 0 : index
      %c0_20 = arith.constant 0 : index
      %38 = vector.load %arg7[%c0_18, %c0_19, %c0_20] : memref<1x8x128xbf16, #tpu.memory_space<vmem>>, vector<1x8x128xbf16>
      %39 = vector.shape_cast %38 : vector<1x8x128xbf16> to vector<8x128xbf16>
      %40 = vector.shape_cast %37 : vector<8x128xbf16> to vector<1x8x128xbf16>
      tpu.vector_store %arg7[%c0_18, %c0_19, %c0_20], %40 {strides = array<i32>} : memref<1x8x128xbf16, #tpu.memory_space<vmem>>, vector<1x8x128xbf16>,
    } else {
    }
    return
  }
  func.func @transform_0(%arg0: i32, %arg1: i32, %arg2: i32) -> (i32, i32, i32) {
    %c0_i32 = arith.constant 0 : i32
    %c0_i32_0 = arith.constant 0 : i32
    return %arg0, %arg1, %c0_i32 : i32, i32, i32
  }
  func.func @transform_1(%arg0: i32, %arg1: i32, %arg2: i32) -> (i32, i32, i32) {
    %c1_i32 = arith.constant 1 : i32
    %c0_i32 = arith.constant 0 : i32
    return %arg0, %arg2, %c1_i32 : i32, i32, i32
  }
  func.func @transform_2(%arg0: i32, %arg1: i32, %arg2: i32) -> (i32, i32, i32) {
    %c2_i32 = arith.constant 2 : i32
    %c0_i32 = arith.constant 0 : i32
    return %arg0, %arg2, %c2_i32 : i32, i32, i32
  }
  func.func @transform_3(%arg0: i32, %arg1: i32, %arg2: i32) -> (i32, i32, i32) {
    %c0_i32 = arith.constant 0 : i32
    %c0_i32_0 = arith.constant 0 : i32
    return %arg0, %c0_i32, %arg2 : i32, i32, i32
  }
  func.func @transform_4(%arg0: i32, %arg1: i32, %arg2: i32) -> (i32, i32, i32) {
    %c0_i32 = arith.constant 0 : i32
    %c0_i32_0 = arith.constant 0 : i32
    return %arg0, %arg1, %c0_i32 : i32, i32, i32
  }
}

module attributes {stable_mosaic.version = 11 : i64} {
  func.func @_linear_kernel(%arg0: i32, %arg1: i32, %arg2: i32, %arg3: memref<16x128xbf16, #tpu.memory_space<vmem>>, %arg4: memref<128x128xbf16, #tpu.memory_space<vmem>>, %arg5: memref<1x128xf32, #tpu.memory_space<vmem>>, %arg6: memref<16x128xbf16, #tpu.memory_space<vmem>>, %arg7: memref<16x128xf32, #tpu.memory_space<vmem>>) attributes {dimension_semantics = [#tpu.dimension_semantics<parallel>, #tpu.dimension_semantics<parallel>, #tpu.dimension_semantics<arbitrary>], iteration_bounds = array<i64: 1, 1, 1>, scalar_prefetch = 0 : i64, scratch_operands = 1 : i64, tpu.core_type = #tpu.core_type<tc>, window_params = [{transform_indices = @transform_0, window_bounds = array<i64: 16, 128>}, {transform_indices = @transform_1, window_bounds = array<i64: 128, 128>}, {transform_indices = @transform_2, window_bounds = array<i64: 1, 128>}, {transform_indices = @transform_3, window_bounds = array<i64: 16, 128>}]} {
    %c0_i32 = arith.constant 0 : i32
    %0 = arith.cmpi eq, %arg2, %c0_i32 : i32
    %1 = arith.extui %0 : i1 to i32
    %c0_i32_0 = arith.constant 0 : i32
    %2 = arith.cmpi ne, %1, %c0_i32_0 : i32
    scf.if %2 {
      %cst_10 = arith.constant 0.000000e+00 : f32
      %12 = vector.broadcast %cst_10 : f32 to vector<16x128xf32>
      %c0_11 = arith.constant 0 : index
      %c0_12 = arith.constant 0 : index
      %13 = vector.load %arg7[%c0_11, %c0_12] : memref<16x128xf32, #tpu.memory_space<vmem>>, vector<16x128xf32>
      tpu.vector_store %arg7[%c0_11, %c0_12], %12 {strides = array<i32>} : memref<16x128xf32, #tpu.memory_space<vmem>>, vector<16x128xf32>,
    } else {
    }
    %c0 = arith.constant 0 : index
    %c0_1 = arith.constant 0 : index
    %3 = vector.load %arg7[%c0, %c0_1] : memref<16x128xf32, #tpu.memory_space<vmem>>, vector<16x128xf32>
    %c0_2 = arith.constant 0 : index
    %c0_3 = arith.constant 0 : index
    %4 = vector.load %arg3[%c0_2, %c0_3] : memref<16x128xbf16, #tpu.memory_space<vmem>>, vector<16x128xbf16>
    %c0_4 = arith.constant 0 : index
    %c0_5 = arith.constant 0 : index
    %5 = vector.load %arg4[%c0_4, %c0_5] : memref<128x128xbf16, #tpu.memory_space<vmem>>, vector<128x128xbf16>
    %cst = arith.constant dense<0.000000e+00> : vector<16x128xf32>
    %6 = tpu.matmul %4, %5, %cst {dimension_numbers = #tpu.dot_dimension_numbers<[1], [0], [0], [1], [0, 0, 1, 1], [], []>} : vector<16x128xbf16>, vector<128x128xbf16>, vector<16x128xf32> -> vector<16x128xf32>
    %7 = arith.addf %3, %6 : vector<16x128xf32>
    %c0_6 = arith.constant 0 : index
    %c0_7 = arith.constant 0 : index
    %8 = vector.load %arg7[%c0_6, %c0_7] : memref<16x128xf32, #tpu.memory_space<vmem>>, vector<16x128xf32>
    tpu.vector_store %arg7[%c0_6, %c0_7], %7 {strides = array<i32>} : memref<16x128xf32, #tpu.memory_space<vmem>>, vector<16x128xf32>,
    %c0_i32_8 = arith.constant 0 : i32
    %9 = arith.cmpi eq, %arg2, %c0_i32_8 : i32
    %10 = arith.extui %9 : i1 to i32
    %c0_i32_9 = arith.constant 0 : i32
    %11 = arith.cmpi ne, %10, %c0_i32_9 : i32
    scf.if %11 {
      %c0_10 = arith.constant 0 : index
      %c0_11 = arith.constant 0 : index
      %12 = vector.load %arg7[%c0_10, %c0_11] : memref<16x128xf32, #tpu.memory_space<vmem>>, vector<16x128xf32>
      %c0_12 = arith.constant 0 : index
      %c0_13 = arith.constant 0 : index
      %13 = vector.load %arg5[%c0_12, %c0_13] : memref<1x128xf32, #tpu.memory_space<vmem>>, vector<1x128xf32>
      %14 = vector.broadcast %13 : vector<1x128xf32> to vector<16x128xf32>
      %15 = arith.addf %12, %14 : vector<16x128xf32>
      %16 = arith.truncf %15 : vector<16x128xf32> to vector<16x128xbf16>
      %c0_14 = arith.constant 0 : index
      %c0_15 = arith.constant 0 : index
      %17 = vector.load %arg6[%c0_14, %c0_15] : memref<16x128xbf16, #tpu.memory_space<vmem>>, vector<16x128xbf16>
      tpu.vector_store %arg6[%c0_14, %c0_15], %16 {strides = array<i32>} : memref<16x128xbf16, #tpu.memory_space<vmem>>, vector<16x128xbf16>,
    } else {
    }
    return
  }
  func.func @transform_0(%arg0: i32, %arg1: i32, %arg2: i32) -> (i32, i32) {
    %c0_i32 = arith.constant 0 : i32
    return %arg0, %arg2 : i32, i32
  }
  func.func @transform_1(%arg0: i32, %arg1: i32, %arg2: i32) -> (i32, i32) {
    %c0_i32 = arith.constant 0 : i32
    return %arg2, %arg1 : i32, i32
  }
  func.func @transform_2(%arg0: i32, %arg1: i32, %arg2: i32) -> (i32, i32) {
    %c0_i32 = arith.constant 0 : i32
    %c0_i32_0 = arith.constant 0 : i32
    return %c0_i32, %arg1 : i32, i32
  }
  func.func @transform_3(%arg0: i32, %arg1: i32, %arg2: i32) -> (i32, i32) {
    %c0_i32 = arith.constant 0 : i32
    return %arg0, %arg1 : i32, i32
  }
}

module attributes {stable_mosaic.version = 11 : i64} {
  func.func @_linear_kernel(%arg0: i32, %arg1: i32, %arg2: i32, %arg3: memref<32x128xbf16, #tpu.memory_space<vmem>>, %arg4: memref<128x384xbf16, #tpu.memory_space<vmem>>, %arg5: memref<1x384xf32, #tpu.memory_space<vmem>>, %arg6: memref<32x384xbf16, #tpu.memory_space<vmem>>, %arg7: memref<32x384xf32, #tpu.memory_space<vmem>>) attributes {dimension_semantics = [#tpu.dimension_semantics<parallel>, #tpu.dimension_semantics<parallel>, #tpu.dimension_semantics<arbitrary>], iteration_bounds = array<i64: 1, 1, 1>, scalar_prefetch = 0 : i64, scratch_operands = 1 : i64, tpu.core_type = #tpu.core_type<tc>, window_params = [{transform_indices = @transform_0, window_bounds = array<i64: 32, 128>}, {transform_indices = @transform_1, window_bounds = array<i64: 128, 384>}, {transform_indices = @transform_2, window_bounds = array<i64: 1, 384>}, {transform_indices = @transform_3, window_bounds = array<i64: 32, 384>}]} {
    %c0_i32 = arith.constant 0 : i32
    %0 = arith.cmpi eq, %arg2, %c0_i32 : i32
    %1 = arith.extui %0 : i1 to i32
    %c0_i32_0 = arith.constant 0 : i32
    %2 = arith.cmpi ne, %1, %c0_i32_0 : i32
    scf.if %2 {
      %cst_10 = arith.constant 0.000000e+00 : f32
      %12 = vector.broadcast %cst_10 : f32 to vector<32x384xf32>
      %c0_11 = arith.constant 0 : index
      %c0_12 = arith.constant 0 : index
      %13 = vector.load %arg7[%c0_11, %c0_12] : memref<32x384xf32, #tpu.memory_space<vmem>>, vector<32x384xf32>
      tpu.vector_store %arg7[%c0_11, %c0_12], %12 {strides = array<i32>} : memref<32x384xf32, #tpu.memory_space<vmem>>, vector<32x384xf32>,
    } else {
    }
    %c0 = arith.constant 0 : index
    %c0_1 = arith.constant 0 : index
    %3 = vector.load %arg7[%c0, %c0_1] : memref<32x384xf32, #tpu.memory_space<vmem>>, vector<32x384xf32>
    %c0_2 = arith.constant 0 : index
    %c0_3 = arith.constant 0 : index
    %4 = vector.load %arg3[%c0_2, %c0_3] : memref<32x128xbf16, #tpu.memory_space<vmem>>, vector<32x128xbf16>
    %c0_4 = arith.constant 0 : index
    %c0_5 = arith.constant 0 : index
    %5 = vector.load %arg4[%c0_4, %c0_5] : memref<128x384xbf16, #tpu.memory_space<vmem>>, vector<128x384xbf16>
    %cst = arith.constant dense<0.000000e+00> : vector<32x384xf32>
    %6 = tpu.matmul %4, %5, %cst {dimension_numbers = #tpu.dot_dimension_numbers<[1], [0], [0], [1], [0, 0, 1, 1], [], []>} : vector<32x128xbf16>, vector<128x384xbf16>, vector<32x384xf32> -> vector<32x384xf32>
    %7 = arith.addf %3, %6 : vector<32x384xf32>
    %c0_6 = arith.constant 0 : index
    %c0_7 = arith.constant 0 : index
    %8 = vector.load %arg7[%c0_6, %c0_7] : memref<32x384xf32, #tpu.memory_space<vmem>>, vector<32x384xf32>
    tpu.vector_store %arg7[%c0_6, %c0_7], %7 {strides = array<i32>} : memref<32x384xf32, #tpu.memory_space<vmem>>, vector<32x384xf32>,
    %c0_i32_8 = arith.constant 0 : i32
    %9 = arith.cmpi eq, %arg2, %c0_i32_8 : i32
    %10 = arith.extui %9 : i1 to i32
    %c0_i32_9 = arith.constant 0 : i32
    %11 = arith.cmpi ne, %10, %c0_i32_9 : i32
    scf.if %11 {
      %c0_10 = arith.constant 0 : index
      %c0_11 = arith.constant 0 : index
      %12 = vector.load %arg7[%c0_10, %c0_11] : memref<32x384xf32, #tpu.memory_space<vmem>>, vector<32x384xf32>
      %c0_12 = arith.constant 0 : index
      %c0_13 = arith.constant 0 : index
      %13 = vector.load %arg5[%c0_12, %c0_13] : memref<1x384xf32, #tpu.memory_space<vmem>>, vector<1x384xf32>
      %14 = vector.broadcast %13 : vector<1x384xf32> to vector<32x384xf32>
      %15 = arith.addf %12, %14 : vector<32x384xf32>
      %16 = arith.truncf %15 : vector<32x384xf32> to vector<32x384xbf16>
      %c0_14 = arith.constant 0 : index
      %c0_15 = arith.constant 0 : index
      %17 = vector.load %arg6[%c0_14, %c0_15] : memref<32x384xbf16, #tpu.memory_space<vmem>>, vector<32x384xbf16>
      tpu.vector_store %arg6[%c0_14, %c0_15], %16 {strides = array<i32>} : memref<32x384xbf16, #tpu.memory_space<vmem>>, vector<32x384xbf16>,
    } else {
    }
    return
  }
  func.func @transform_0(%arg0: i32, %arg1: i32, %arg2: i32) -> (i32, i32) {
    %c0_i32 = arith.constant 0 : i32
    return %arg0, %arg2 : i32, i32
  }
  func.func @transform_1(%arg0: i32, %arg1: i32, %arg2: i32) -> (i32, i32) {
    %c0_i32 = arith.constant 0 : i32
    return %arg2, %arg1 : i32, i32
  }
  func.func @transform_2(%arg0: i32, %arg1: i32, %arg2: i32) -> (i32, i32) {
    %c0_i32 = arith.constant 0 : i32
    %c0_i32_0 = arith.constant 0 : i32
    return %c0_i32, %arg1 : i32, i32
  }
  func.func @transform_3(%arg0: i32, %arg1: i32, %arg2: i32) -> (i32, i32) {
    %c0_i32 = arith.constant 0 : i32
    return %arg0, %arg1 : i32, i32
  }
}

module attributes {stable_mosaic.version = 11 : i64} {
  func.func @_flash_attn_kernel(%arg0: i32, %arg1: i32, %arg2: i32, %arg3: memref<1x16x128xbf16, #tpu.memory_space<vmem>>, %arg4: memref<1x16x128xbf16, #tpu.memory_space<vmem>>, %arg5: memref<1x16x128xbf16, #tpu.memory_space<vmem>>, %arg6: memref<1x1x16xf32, #tpu.memory_space<vmem>>, %arg7: memref<1x16x128xbf16, #tpu.memory_space<vmem>>, %arg8: memref<4x16x1xf32, #tpu.memory_space<vmem>>, %arg9: memref<4x16x1xf32, #tpu.memory_space<vmem>>, %arg10: memref<16x128xf32, #tpu.memory_space<vmem>>) attributes {dimension_semantics = [#tpu.dimension_semantics<parallel>, #tpu.dimension_semantics<parallel>, #tpu.dimension_semantics<arbitrary>], iteration_bounds = array<i64: 2, 1, 1>, scalar_prefetch = 0 : i64, scratch_operands = 3 : i64, tpu.core_type = #tpu.core_type<tc>, window_params = [{transform_indices = @transform_0, window_bounds = array<i64: 1, 16, 128>}, {transform_indices = @transform_1, window_bounds = array<i64: 1, 16, 128>}, {transform_indices = @transform_2, window_bounds = array<i64: 1, 16, 128>}, {transform_indices = @transform_3, window_bounds = array<i64: 1, 1, 16>}, {transform_indices = @transform_4, window_bounds = array<i64: 1, 16, 128>}]} {
    %c0_i32 = arith.constant 0 : i32
    %0 = arith.cmpi eq, %arg2, %c0_i32 : i32
    %1 = arith.extui %0 : i1 to i32
    %c0_i32_0 = arith.constant 0 : i32
    %2 = arith.cmpi ne, %1, %c0_i32_0 : i32
    scf.if %2 {
      %cst_87 = arith.constant 0xFF800000 : f32
      %154 = vector.broadcast %cst_87 : f32 to vector<4x16x1xf32>
      %c0_88 = arith.constant 0 : index
      %c0_89 = arith.constant 0 : index
      %c0_90 = arith.constant 0 : index
      %155 = vector.load %arg8[%c0_88, %c0_89, %c0_90] : memref<4x16x1xf32, #tpu.memory_space<vmem>>, vector<4x16x1xf32>
      tpu.vector_store %arg8[%c0_88, %c0_89, %c0_90], %154 {strides = array<i32>} : memref<4x16x1xf32, #tpu.memory_space<vmem>>, vector<4x16x1xf32>,
      %cst_91 = arith.constant 0.000000e+00 : f32
      %156 = vector.broadcast %cst_91 : f32 to vector<4x16x1xf32>
      %c0_92 = arith.constant 0 : index
      %c0_93 = arith.constant 0 : index
      %c0_94 = arith.constant 0 : index
      %157 = vector.load %arg9[%c0_92, %c0_93, %c0_94] : memref<4x16x1xf32, #tpu.memory_space<vmem>>, vector<4x16x1xf32>
      tpu.vector_store %arg9[%c0_92, %c0_93, %c0_94], %156 {strides = array<i32>} : memref<4x16x1xf32, #tpu.memory_space<vmem>>, vector<4x16x1xf32>,
      %cst_95 = arith.constant 0.000000e+00 : f32
      %158 = vector.broadcast %cst_95 : f32 to vector<16x128xf32>
      %c0_96 = arith.constant 0 : index
      %c0_97 = arith.constant 0 : index
      %159 = vector.load %arg10[%c0_96, %c0_97] : memref<16x128xf32, #tpu.memory_space<vmem>>, vector<16x128xf32>
      tpu.vector_store %arg10[%c0_96, %c0_97], %158 {strides = array<i32>} : memref<16x128xf32, #tpu.memory_space<vmem>>, vector<16x128xf32>,
    } else {
    }
    %c0 = arith.constant 0 : index
    %c0_1 = arith.constant 0 : index
    %c0_2 = arith.constant 0 : index
    %3 = vector.load %arg3[%c0, %c0_1, %c0_2] : memref<1x16x128xbf16, #tpu.memory_space<vmem>>, vector<1x16x128xbf16>
    %4 = vector.shape_cast %3 : vector<1x16x128xbf16> to vector<16x128xbf16>
    %c0_3 = arith.constant 0 : index
    %c0_4 = arith.constant 0 : index
    %c0_5 = arith.constant 0 : index
    %5 = vector.load %arg4[%c0_3, %c0_4, %c0_5] : memref<1x16x128xbf16, #tpu.memory_space<vmem>>, vector<1x16x128xbf16>
    %6 = vector.shape_cast %5 : vector<1x16x128xbf16> to vector<16x128xbf16>
    %c0_6 = arith.constant 0 : index
    %c0_7 = arith.constant 0 : index
    %c0_8 = arith.constant 0 : index
    %7 = vector.load %arg5[%c0_6, %c0_7, %c0_8] : memref<1x16x128xbf16, #tpu.memory_space<vmem>>, vector<1x16x128xbf16>
    %8 = vector.shape_cast %7 : vector<1x16x128xbf16> to vector<16x128xbf16>
    %c0_9 = arith.constant 0 : index
    %c0_10 = arith.constant 0 : index
    %c0_11 = arith.constant 0 : index
    %9 = vector.load %arg6[%c0_9, %c0_10, %c0_11] : memref<1x1x16xf32, #tpu.memory_space<vmem>>, vector<1x1x16xf32>
    %10 = vector.shape_cast %9 : vector<1x1x16xf32> to vector<1x16xf32>
    %11 = vector.extract_strided_slice %4 {offsets = [0, 0], sizes = [16, 32], strides = [1, 1]} : vector<16x128xbf16> to vector<16x32xbf16>
    %12 = vector.extract_strided_slice %6 {offsets = [0, 0], sizes = [16, 32], strides = [1, 1]} : vector<16x128xbf16> to vector<16x32xbf16>
    %cst = arith.constant dense<0.000000e+00> : vector<16x16xf32>
    %13 = tpu.matmul %11, %12, %cst {dimension_numbers = #tpu.dot_dimension_numbers<[1], [1], [0], [0], [0, 0, 1, 0], [], []>} : vector<16x32xbf16>, vector<16x32xbf16>, vector<16x16xf32> -> vector<16x16xf32>
    %14 = vector.broadcast %10 : vector<1x16xf32> to vector<16x16xf32>
    %15 = arith.addf %13, %14 : vector<16x16xf32>
    %c0_12 = arith.constant 0 : index
    %c0_13 = arith.constant 0 : index
    %c0_14 = arith.constant 0 : index
    %16 = vector.load %arg8[%c0_12, %c0_13, %c0_14] : memref<4x16x1xf32, #tpu.memory_space<vmem>>, vector<1x16x1xf32>
    %17 = vector.shape_cast %16 : vector<1x16x1xf32> to vector<16x1xf32>
    %cst_15 = arith.constant dense<0xFF800000> : vector<16xf32>
    %18 = vector.multi_reduction <maximumf>, %15, %cst_15 [1] : vector<16x16xf32> to vector<16xf32>
    %19 = vector.shape_cast %18 : vector<16xf32> to vector<16x1xf32>
    %20 = arith.maximumf %17, %19 : vector<16x1xf32>
    %21 = arith.subf %17, %20 : vector<16x1xf32>
    %22 = math.exp %21 : vector<16x1xf32>
    %23 = vector.broadcast %20 : vector<16x1xf32> to vector<16x16xf32>
    %24 = arith.subf %15, %23 : vector<16x16xf32>
    %25 = math.exp %24 : vector<16x16xf32>
    %c0_16 = arith.constant 0 : index
    %c0_17 = arith.constant 0 : index
    %c0_18 = arith.constant 0 : index
    %26 = vector.load %arg9[%c0_16, %c0_17, %c0_18] : memref<4x16x1xf32, #tpu.memory_space<vmem>>, vector<1x16x1xf32>
    %27 = vector.shape_cast %26 : vector<1x16x1xf32> to vector<16x1xf32>
    %28 = arith.mulf %22, %27 : vector<16x1xf32>
    %cst_19 = arith.constant dense<0.000000e+00> : vector<16xf32>
    %29 = vector.multi_reduction <add>, %25, %cst_19 [1] : vector<16x16xf32> to vector<16xf32>
    %30 = vector.shape_cast %29 : vector<16xf32> to vector<16x1xf32>
    %31 = arith.addf %28, %30 : vector<16x1xf32>
    %c0_20 = arith.constant 0 : index
    %c0_21 = arith.constant 0 : index
    %c0_22 = arith.constant 0 : index
    %32 = vector.load %arg9[%c0_20, %c0_21, %c0_22] : memref<4x16x1xf32, #tpu.memory_space<vmem>>, vector<1x16x1xf32>
    %33 = vector.shape_cast %32 : vector<1x16x1xf32> to vector<16x1xf32>
    %34 = vector.shape_cast %31 : vector<16x1xf32> to vector<1x16x1xf32>
    tpu.vector_store %arg9[%c0_20, %c0_21, %c0_22], %34 {strides = array<i32>} : memref<4x16x1xf32, #tpu.memory_space<vmem>>, vector<1x16x1xf32>,
    %c0_23 = arith.constant 0 : index
    %c0_24 = arith.constant 0 : index
    %35 = vector.load %arg10[%c0_23, %c0_24] : memref<16x128xf32, #tpu.memory_space<vmem>>, vector<16x32xf32>
    %36 = vector.broadcast %22 : vector<16x1xf32> to vector<16x32xf32>
    %37 = arith.mulf %36, %35 : vector<16x32xf32>
    %38 = arith.truncf %25 : vector<16x16xf32> to vector<16x16xbf16>
    %39 = vector.extract_strided_slice %8 {offsets = [0, 0], sizes = [16, 32], strides = [1, 1]} : vector<16x128xbf16> to vector<16x32xbf16>
    %cst_25 = arith.constant dense<0.000000e+00> : vector<16x32xf32>
    %40 = tpu.matmul %38, %39, %cst_25 {dimension_numbers = #tpu.dot_dimension_numbers<[1], [0], [0], [1], [0, 0, 1, 1], [], []>} : vector<16x16xbf16>, vector<16x32xbf16>, vector<16x32xf32> -> vector<16x32xf32>
    %41 = arith.addf %37, %40 : vector<16x32xf32>
    %c0_26 = arith.constant 0 : index
    %c0_27 = arith.constant 0 : index
    %42 = vector.load %arg10[%c0_26, %c0_27] : memref<16x128xf32, #tpu.memory_space<vmem>>, vector<16x32xf32>
    tpu.vector_store %arg10[%c0_26, %c0_27], %41 {strides = array<i32>} : memref<16x128xf32, #tpu.memory_space<vmem>>, vector<16x32xf32>,
    %c0_28 = arith.constant 0 : index
    %c0_29 = arith.constant 0 : index
    %c0_30 = arith.constant 0 : index
    %43 = vector.load %arg8[%c0_28, %c0_29, %c0_30] : memref<4x16x1xf32, #tpu.memory_space<vmem>>, vector<1x16x1xf32>
    %44 = vector.shape_cast %43 : vector<1x16x1xf32> to vector<16x1xf32>
    %45 = vector.shape_cast %20 : vector<16x1xf32> to vector<1x16x1xf32>
    tpu.vector_store %arg8[%c0_28, %c0_29, %c0_30], %45 {strides = array<i32>} : memref<4x16x1xf32, #tpu.memory_space<vmem>>, vector<1x16x1xf32>,
    %46 = vector.extract_strided_slice %4 {offsets = [0, 32], sizes = [16, 32], strides = [1, 1]} : vector<16x128xbf16> to vector<16x32xbf16>
    %47 = vector.extract_strided_slice %6 {offsets = [0, 32], sizes = [16, 32], strides = [1, 1]} : vector<16x128xbf16> to vector<16x32xbf16>
    %cst_31 = arith.constant dense<0.000000e+00> : vector<16x16xf32>
    %48 = tpu.matmul %46, %47, %cst_31 {dimension_numbers = #tpu.dot_dimension_numbers<[1], [1], [0], [0], [0, 0, 1, 0], [], []>} : vector<16x32xbf16>, vector<16x32xbf16>, vector<16x16xf32> -> vector<16x16xf32>
    %49 = vector.broadcast %10 : vector<1x16xf32> to vector<16x16xf32>
    %50 = arith.addf %48, %49 : vector<16x16xf32>
    %c1 = arith.constant 1 : index
    %c0_32 = arith.constant 0 : index
    %c0_33 = arith.constant 0 : index
    %51 = vector.load %arg8[%c1, %c0_32, %c0_33] : memref<4x16x1xf32, #tpu.memory_space<vmem>>, vector<1x16x1xf32>
    %52 = vector.shape_cast %51 : vector<1x16x1xf32> to vector<16x1xf32>
    %cst_34 = arith.constant dense<0xFF800000> : vector<16xf32>
    %53 = vector.multi_reduction <maximumf>, %50, %cst_34 [1] : vector<16x16xf32> to vector<16xf32>
    %54 = vector.shape_cast %53 : vector<16xf32> to vector<16x1xf32>
    %55 = arith.maximumf %52, %54 : vector<16x1xf32>
    %56 = arith.subf %52, %55 : vector<16x1xf32>
    %57 = math.exp %56 : vector<16x1xf32>
    %58 = vector.broadcast %55 : vector<16x1xf32> to vector<16x16xf32>
    %59 = arith.subf %50, %58 : vector<16x16xf32>
    %60 = math.exp %59 : vector<16x16xf32>
    %c1_35 = arith.constant 1 : index
    %c0_36 = arith.constant 0 : index
    %c0_37 = arith.constant 0 : index
    %61 = vector.load %arg9[%c1_35, %c0_36, %c0_37] : memref<4x16x1xf32, #tpu.memory_space<vmem>>, vector<1x16x1xf32>
    %62 = vector.shape_cast %61 : vector<1x16x1xf32> to vector<16x1xf32>
    %63 = arith.mulf %57, %62 : vector<16x1xf32>
    %cst_38 = arith.constant dense<0.000000e+00> : vector<16xf32>
    %64 = vector.multi_reduction <add>, %60, %cst_38 [1] : vector<16x16xf32> to vector<16xf32>
    %65 = vector.shape_cast %64 : vector<16xf32> to vector<16x1xf32>
    %66 = arith.addf %63, %65 : vector<16x1xf32>
    %c1_39 = arith.constant 1 : index
    %c0_40 = arith.constant 0 : index
    %c0_41 = arith.constant 0 : index
    %67 = vector.load %arg9[%c1_39, %c0_40, %c0_41] : memref<4x16x1xf32, #tpu.memory_space<vmem>>, vector<1x16x1xf32>
    %68 = vector.shape_cast %67 : vector<1x16x1xf32> to vector<16x1xf32>
    %69 = vector.shape_cast %66 : vector<16x1xf32> to vector<1x16x1xf32>
    tpu.vector_store %arg9[%c1_39, %c0_40, %c0_41], %69 {strides = array<i32>} : memref<4x16x1xf32, #tpu.memory_space<vmem>>, vector<1x16x1xf32>,
    %c0_42 = arith.constant 0 : index
    %c32 = arith.constant 32 : index
    %70 = vector.load %arg10[%c0_42, %c32] : memref<16x128xf32, #tpu.memory_space<vmem>>, vector<16x32xf32>
    %71 = vector.broadcast %57 : vector<16x1xf32> to vector<16x32xf32>
    %72 = arith.mulf %71, %70 : vector<16x32xf32>
    %73 = arith.truncf %60 : vector<16x16xf32> to vector<16x16xbf16>
    %74 = vector.extract_strided_slice %8 {offsets = [0, 32], sizes = [16, 32], strides = [1, 1]} : vector<16x128xbf16> to vector<16x32xbf16>
    %cst_43 = arith.constant dense<0.000000e+00> : vector<16x32xf32>
    %75 = tpu.matmul %73, %74, %cst_43 {dimension_numbers = #tpu.dot_dimension_numbers<[1], [0], [0], [1], [0, 0, 1, 1], [], []>} : vector<16x16xbf16>, vector<16x32xbf16>, vector<16x32xf32> -> vector<16x32xf32>
    %76 = arith.addf %72, %75 : vector<16x32xf32>
    %c0_44 = arith.constant 0 : index
    %c32_45 = arith.constant 32 : index
    %77 = vector.load %arg10[%c0_44, %c32_45] : memref<16x128xf32, #tpu.memory_space<vmem>>, vector<16x32xf32>
    tpu.vector_store %arg10[%c0_44, %c32_45], %76 {strides = array<i32>} : memref<16x128xf32, #tpu.memory_space<vmem>>, vector<16x32xf32>,
    %c1_46 = arith.constant 1 : index
    %c0_47 = arith.constant 0 : index
    %c0_48 = arith.constant 0 : index
    %78 = vector.load %arg8[%c1_46, %c0_47, %c0_48] : memref<4x16x1xf32, #tpu.memory_space<vmem>>, vector<1x16x1xf32>
    %79 = vector.shape_cast %78 : vector<1x16x1xf32> to vector<16x1xf32>
    %80 = vector.shape_cast %55 : vector<16x1xf32> to vector<1x16x1xf32>
    tpu.vector_store %arg8[%c1_46, %c0_47, %c0_48], %80 {strides = array<i32>} : memref<4x16x1xf32, #tpu.memory_space<vmem>>, vector<1x16x1xf32>,
    %81 = vector.extract_strided_slice %4 {offsets = [0, 64], sizes = [16, 32], strides = [1, 1]} : vector<16x128xbf16> to vector<16x32xbf16>
    %82 = vector.extract_strided_slice %6 {offsets = [0, 64], sizes = [16, 32], strides = [1, 1]} : vector<16x128xbf16> to vector<16x32xbf16>
    %cst_49 = arith.constant dense<0.000000e+00> : vector<16x16xf32>
    %83 = tpu.matmul %81, %82, %cst_49 {dimension_numbers = #tpu.dot_dimension_numbers<[1], [1], [0], [0], [0, 0, 1, 0], [], []>} : vector<16x32xbf16>, vector<16x32xbf16>, vector<16x16xf32> -> vector<16x16xf32>
    %84 = vector.broadcast %10 : vector<1x16xf32> to vector<16x16xf32>
    %85 = arith.addf %83, %84 : vector<16x16xf32>
    %c2 = arith.constant 2 : index
    %c0_50 = arith.constant 0 : index
    %c0_51 = arith.constant 0 : index
    %86 = vector.load %arg8[%c2, %c0_50, %c0_51] : memref<4x16x1xf32, #tpu.memory_space<vmem>>, vector<1x16x1xf32>
    %87 = vector.shape_cast %86 : vector<1x16x1xf32> to vector<16x1xf32>
    %cst_52 = arith.constant dense<0xFF800000> : vector<16xf32>
    %88 = vector.multi_reduction <maximumf>, %85, %cst_52 [1] : vector<16x16xf32> to vector<16xf32>
    %89 = vector.shape_cast %88 : vector<16xf32> to vector<16x1xf32>
    %90 = arith.maximumf %87, %89 : vector<16x1xf32>
    %91 = arith.subf %87, %90 : vector<16x1xf32>
    %92 = math.exp %91 : vector<16x1xf32>
    %93 = vector.broadcast %90 : vector<16x1xf32> to vector<16x16xf32>
    %94 = arith.subf %85, %93 : vector<16x16xf32>
    %95 = math.exp %94 : vector<16x16xf32>
    %c2_53 = arith.constant 2 : index
    %c0_54 = arith.constant 0 : index
    %c0_55 = arith.constant 0 : index
    %96 = vector.load %arg9[%c2_53, %c0_54, %c0_55] : memref<4x16x1xf32, #tpu.memory_space<vmem>>, vector<1x16x1xf32>
    %97 = vector.shape_cast %96 : vector<1x16x1xf32> to vector<16x1xf32>
    %98 = arith.mulf %92, %97 : vector<16x1xf32>
    %cst_56 = arith.constant dense<0.000000e+00> : vector<16xf32>
    %99 = vector.multi_reduction <add>, %95, %cst_56 [1] : vector<16x16xf32> to vector<16xf32>
    %100 = vector.shape_cast %99 : vector<16xf32> to vector<16x1xf32>
    %101 = arith.addf %98, %100 : vector<16x1xf32>
    %c2_57 = arith.constant 2 : index
    %c0_58 = arith.constant 0 : index
    %c0_59 = arith.constant 0 : index
    %102 = vector.load %arg9[%c2_57, %c0_58, %c0_59] : memref<4x16x1xf32, #tpu.memory_space<vmem>>, vector<1x16x1xf32>
    %103 = vector.shape_cast %102 : vector<1x16x1xf32> to vector<16x1xf32>
    %104 = vector.shape_cast %101 : vector<16x1xf32> to vector<1x16x1xf32>
    tpu.vector_store %arg9[%c2_57, %c0_58, %c0_59], %104 {strides = array<i32>} : memref<4x16x1xf32, #tpu.memory_space<vmem>>, vector<1x16x1xf32>,
    %c0_60 = arith.constant 0 : index
    %c64 = arith.constant 64 : index
    %105 = vector.load %arg10[%c0_60, %c64] : memref<16x128xf32, #tpu.memory_space<vmem>>, vector<16x32xf32>
    %106 = vector.broadcast %92 : vector<16x1xf32> to vector<16x32xf32>
    %107 = arith.mulf %106, %105 : vector<16x32xf32>
    %108 = arith.truncf %95 : vector<16x16xf32> to vector<16x16xbf16>
    %109 = vector.extract_strided_slice %8 {offsets = [0, 64], sizes = [16, 32], strides = [1, 1]} : vector<16x128xbf16> to vector<16x32xbf16>
    %cst_61 = arith.constant dense<0.000000e+00> : vector<16x32xf32>
    %110 = tpu.matmul %108, %109, %cst_61 {dimension_numbers = #tpu.dot_dimension_numbers<[1], [0], [0], [1], [0, 0, 1, 1], [], []>} : vector<16x16xbf16>, vector<16x32xbf16>, vector<16x32xf32> -> vector<16x32xf32>
    %111 = arith.addf %107, %110 : vector<16x32xf32>
    %c0_62 = arith.constant 0 : index
    %c64_63 = arith.constant 64 : index
    %112 = vector.load %arg10[%c0_62, %c64_63] : memref<16x128xf32, #tpu.memory_space<vmem>>, vector<16x32xf32>
    tpu.vector_store %arg10[%c0_62, %c64_63], %111 {strides = array<i32>} : memref<16x128xf32, #tpu.memory_space<vmem>>, vector<16x32xf32>,
    %c2_64 = arith.constant 2 : index
    %c0_65 = arith.constant 0 : index
    %c0_66 = arith.constant 0 : index
    %113 = vector.load %arg8[%c2_64, %c0_65, %c0_66] : memref<4x16x1xf32, #tpu.memory_space<vmem>>, vector<1x16x1xf32>
    %114 = vector.shape_cast %113 : vector<1x16x1xf32> to vector<16x1xf32>
    %115 = vector.shape_cast %90 : vector<16x1xf32> to vector<1x16x1xf32>
    tpu.vector_store %arg8[%c2_64, %c0_65, %c0_66], %115 {strides = array<i32>} : memref<4x16x1xf32, #tpu.memory_space<vmem>>, vector<1x16x1xf32>,
    %116 = vector.extract_strided_slice %4 {offsets = [0, 96], sizes = [16, 32], strides = [1, 1]} : vector<16x128xbf16> to vector<16x32xbf16>
    %117 = vector.extract_strided_slice %6 {offsets = [0, 96], sizes = [16, 32], strides = [1, 1]} : vector<16x128xbf16> to vector<16x32xbf16>
    %cst_67 = arith.constant dense<0.000000e+00> : vector<16x16xf32>
    %118 = tpu.matmul %116, %117, %cst_67 {dimension_numbers = #tpu.dot_dimension_numbers<[1], [1], [0], [0], [0, 0, 1, 0], [], []>} : vector<16x32xbf16>, vector<16x32xbf16>, vector<16x16xf32> -> vector<16x16xf32>
    %119 = vector.broadcast %10 : vector<1x16xf32> to vector<16x16xf32>
    %120 = arith.addf %118, %119 : vector<16x16xf32>
    %c3 = arith.constant 3 : index
    %c0_68 = arith.constant 0 : index
    %c0_69 = arith.constant 0 : index
    %121 = vector.load %arg8[%c3, %c0_68, %c0_69] : memref<4x16x1xf32, #tpu.memory_space<vmem>>, vector<1x16x1xf32>
    %122 = vector.shape_cast %121 : vector<1x16x1xf32> to vector<16x1xf32>
    %cst_70 = arith.constant dense<0xFF800000> : vector<16xf32>
    %123 = vector.multi_reduction <maximumf>, %120, %cst_70 [1] : vector<16x16xf32> to vector<16xf32>
    %124 = vector.shape_cast %123 : vector<16xf32> to vector<16x1xf32>
    %125 = arith.maximumf %122, %124 : vector<16x1xf32>
    %126 = arith.subf %122, %125 : vector<16x1xf32>
    %127 = math.exp %126 : vector<16x1xf32>
    %128 = vector.broadcast %125 : vector<16x1xf32> to vector<16x16xf32>
    %129 = arith.subf %120, %128 : vector<16x16xf32>
    %130 = math.exp %129 : vector<16x16xf32>
    %c3_71 = arith.constant 3 : index
    %c0_72 = arith.constant 0 : index
    %c0_73 = arith.constant 0 : index
    %131 = vector.load %arg9[%c3_71, %c0_72, %c0_73] : memref<4x16x1xf32, #tpu.memory_space<vmem>>, vector<1x16x1xf32>
    %132 = vector.shape_cast %131 : vector<1x16x1xf32> to vector<16x1xf32>
    %133 = arith.mulf %127, %132 : vector<16x1xf32>
    %cst_74 = arith.constant dense<0.000000e+00> : vector<16xf32>
    %134 = vector.multi_reduction <add>, %130, %cst_74 [1] : vector<16x16xf32> to vector<16xf32>
    %135 = vector.shape_cast %134 : vector<16xf32> to vector<16x1xf32>
    %136 = arith.addf %133, %135 : vector<16x1xf32>
    %c3_75 = arith.constant 3 : index
    %c0_76 = arith.constant 0 : index
    %c0_77 = arith.constant 0 : index
    %137 = vector.load %arg9[%c3_75, %c0_76, %c0_77] : memref<4x16x1xf32, #tpu.memory_space<vmem>>, vector<1x16x1xf32>
    %138 = vector.shape_cast %137 : vector<1x16x1xf32> to vector<16x1xf32>
    %139 = vector.shape_cast %136 : vector<16x1xf32> to vector<1x16x1xf32>
    tpu.vector_store %arg9[%c3_75, %c0_76, %c0_77], %139 {strides = array<i32>} : memref<4x16x1xf32, #tpu.memory_space<vmem>>, vector<1x16x1xf32>,
    %c0_78 = arith.constant 0 : index
    %c96 = arith.constant 96 : index
    %140 = vector.load %arg10[%c0_78, %c96] : memref<16x128xf32, #tpu.memory_space<vmem>>, vector<16x32xf32>
    %141 = vector.broadcast %127 : vector<16x1xf32> to vector<16x32xf32>
    %142 = arith.mulf %141, %140 : vector<16x32xf32>
    %143 = arith.truncf %130 : vector<16x16xf32> to vector<16x16xbf16>
    %144 = vector.extract_strided_slice %8 {offsets = [0, 96], sizes = [16, 32], strides = [1, 1]} : vector<16x128xbf16> to vector<16x32xbf16>
    %cst_79 = arith.constant dense<0.000000e+00> : vector<16x32xf32>
    %145 = tpu.matmul %143, %144, %cst_79 {dimension_numbers = #tpu.dot_dimension_numbers<[1], [0], [0], [1], [0, 0, 1, 1], [], []>} : vector<16x16xbf16>, vector<16x32xbf16>, vector<16x32xf32> -> vector<16x32xf32>
    %146 = arith.addf %142, %145 : vector<16x32xf32>
    %c0_80 = arith.constant 0 : index
    %c96_81 = arith.constant 96 : index
    %147 = vector.load %arg10[%c0_80, %c96_81] : memref<16x128xf32, #tpu.memory_space<vmem>>, vector<16x32xf32>
    tpu.vector_store %arg10[%c0_80, %c96_81], %146 {strides = array<i32>} : memref<16x128xf32, #tpu.memory_space<vmem>>, vector<16x32xf32>,
    %c3_82 = arith.constant 3 : index
    %c0_83 = arith.constant 0 : index
    %c0_84 = arith.constant 0 : index
    %148 = vector.load %arg8[%c3_82, %c0_83, %c0_84] : memref<4x16x1xf32, #tpu.memory_space<vmem>>, vector<1x16x1xf32>
    %149 = vector.shape_cast %148 : vector<1x16x1xf32> to vector<16x1xf32>
    %150 = vector.shape_cast %125 : vector<16x1xf32> to vector<1x16x1xf32>
    tpu.vector_store %arg8[%c3_82, %c0_83, %c0_84], %150 {strides = array<i32>} : memref<4x16x1xf32, #tpu.memory_space<vmem>>, vector<1x16x1xf32>,
    %c0_i32_85 = arith.constant 0 : i32
    %151 = arith.cmpi eq, %arg2, %c0_i32_85 : i32
    %152 = arith.extui %151 : i1 to i32
    %c0_i32_86 = arith.constant 0 : i32
    %153 = arith.cmpi ne, %152, %c0_i32_86 : i32
    scf.if %153 {
      %c0_87 = arith.constant 0 : index
      %c0_88 = arith.constant 0 : index
      %154 = vector.load %arg10[%c0_87, %c0_88] : memref<16x128xf32, #tpu.memory_space<vmem>>, vector<16x32xf32>
      %c0_89 = arith.constant 0 : index
      %c0_90 = arith.constant 0 : index
      %c0_91 = arith.constant 0 : index
      %155 = vector.load %arg9[%c0_89, %c0_90, %c0_91] : memref<4x16x1xf32, #tpu.memory_space<vmem>>, vector<1x16x1xf32>
      %156 = vector.shape_cast %155 : vector<1x16x1xf32> to vector<16x1xf32>
      %157 = tpu.reciprocal %156 {approx = true} : vector<16x1xf32> -> vector<16x1xf32>
      %158 = vector.broadcast %157 : vector<16x1xf32> to vector<16x32xf32>
      %159 = arith.mulf %154, %158 : vector<16x32xf32>
      %c0_92 = arith.constant 0 : index
      %c32_93 = arith.constant 32 : index
      %160 = vector.load %arg10[%c0_92, %c32_93] : memref<16x128xf32, #tpu.memory_space<vmem>>, vector<16x32xf32>
      %c1_94 = arith.constant 1 : index
      %c0_95 = arith.constant 0 : index
      %c0_96 = arith.constant 0 : index
      %161 = vector.load %arg9[%c1_94, %c0_95, %c0_96] : memref<4x16x1xf32, #tpu.memory_space<vmem>>, vector<1x16x1xf32>
      %162 = vector.shape_cast %161 : vector<1x16x1xf32> to vector<16x1xf32>
      %163 = tpu.reciprocal %162 {approx = true} : vector<16x1xf32> -> vector<16x1xf32>
      %164 = vector.broadcast %163 : vector<16x1xf32> to vector<16x32xf32>
      %165 = arith.mulf %160, %164 : vector<16x32xf32>
      %c0_97 = arith.constant 0 : index
      %c64_98 = arith.constant 64 : index
      %166 = vector.load %arg10[%c0_97, %c64_98] : memref<16x128xf32, #tpu.memory_space<vmem>>, vector<16x32xf32>
      %c2_99 = arith.constant 2 : index
      %c0_100 = arith.constant 0 : index
      %c0_101 = arith.constant 0 : index
      %167 = vector.load %arg9[%c2_99, %c0_100, %c0_101] : memref<4x16x1xf32, #tpu.memory_space<vmem>>, vector<1x16x1xf32>
      %168 = vector.shape_cast %167 : vector<1x16x1xf32> to vector<16x1xf32>
      %169 = tpu.reciprocal %168 {approx = true} : vector<16x1xf32> -> vector<16x1xf32>
      %170 = vector.broadcast %169 : vector<16x1xf32> to vector<16x32xf32>
      %171 = arith.mulf %166, %170 : vector<16x32xf32>
      %c0_102 = arith.constant 0 : index
      %c96_103 = arith.constant 96 : index
      %172 = vector.load %arg10[%c0_102, %c96_103] : memref<16x128xf32, #tpu.memory_space<vmem>>, vector<16x32xf32>
      %c3_104 = arith.constant 3 : index
      %c0_105 = arith.constant 0 : index
      %c0_106 = arith.constant 0 : index
      %173 = vector.load %arg9[%c3_104, %c0_105, %c0_106] : memref<4x16x1xf32, #tpu.memory_space<vmem>>, vector<1x16x1xf32>
      %174 = vector.shape_cast %173 : vector<1x16x1xf32> to vector<16x1xf32>
      %175 = tpu.reciprocal %174 {approx = true} : vector<16x1xf32> -> vector<16x1xf32>
      %176 = vector.broadcast %175 : vector<16x1xf32> to vector<16x32xf32>
      %177 = arith.mulf %172, %176 : vector<16x32xf32>
      %178 = tpu.concatenate %159, %165, %171, %177 in 1 : vector<16x32xf32>, vector<16x32xf32>, vector<16x32xf32>, vector<16x32xf32> -> vector<16x128xf32>
      %179 = arith.truncf %178 : vector<16x128xf32> to vector<16x128xbf16>
      %c0_107 = arith.constant 0 : index
      %c0_108 = arith.constant 0 : index
      %c0_109 = arith.constant 0 : index
      %180 = vector.load %arg7[%c0_107, %c0_108, %c0_109] : memref<1x16x128xbf16, #tpu.memory_space<vmem>>, vector<1x16x128xbf16>
      %181 = vector.shape_cast %180 : vector<1x16x128xbf16> to vector<16x128xbf16>
      %182 = vector.shape_cast %179 : vector<16x128xbf16> to vector<1x16x128xbf16>
      tpu.vector_store %arg7[%c0_107, %c0_108, %c0_109], %182 {strides = array<i32>} : memref<1x16x128xbf16, #tpu.memory_space<vmem>>, vector<1x16x128xbf16>,
    } else {
    }
    return
  }
  func.func @transform_0(%arg0: i32, %arg1: i32, %arg2: i32) -> (i32, i32, i32) {
    %c0_i32 = arith.constant 0 : i32
    %c0_i32_0 = arith.constant 0 : i32
    return %arg0, %arg1, %c0_i32 : i32, i32, i32
  }
  func.func @transform_1(%arg0: i32, %arg1: i32, %arg2: i32) -> (i32, i32, i32) {
    %c1_i32 = arith.constant 1 : i32
    %c0_i32 = arith.constant 0 : i32
    return %arg0, %arg2, %c1_i32 : i32, i32, i32
  }
  func.func @transform_2(%arg0: i32, %arg1: i32, %arg2: i32) -> (i32, i32, i32) {
    %c2_i32 = arith.constant 2 : i32
    %c0_i32 = arith.constant 0 : i32
    return %arg0, %arg2, %c2_i32 : i32, i32, i32
  }
  func.func @transform_3(%arg0: i32, %arg1: i32, %arg2: i32) -> (i32, i32, i32) {
    %c0_i32 = arith.constant 0 : i32
    %c0_i32_0 = arith.constant 0 : i32
    return %arg0, %c0_i32, %arg2 : i32, i32, i32
  }
  func.func @transform_4(%arg0: i32, %arg1: i32, %arg2: i32) -> (i32, i32, i32) {
    %c0_i32 = arith.constant 0 : i32
    %c0_i32_0 = arith.constant 0 : i32
    return %arg0, %arg1, %c0_i32 : i32, i32, i32
  }
}

module attributes {stable_mosaic.version = 11 : i64} {
  func.func @_linear_kernel(%arg0: i32, %arg1: i32, %arg2: i32, %arg3: memref<32x128xbf16, #tpu.memory_space<vmem>>, %arg4: memref<128x128xbf16, #tpu.memory_space<vmem>>, %arg5: memref<1x128xf32, #tpu.memory_space<vmem>>, %arg6: memref<32x128xbf16, #tpu.memory_space<vmem>>, %arg7: memref<32x128xf32, #tpu.memory_space<vmem>>) attributes {dimension_semantics = [#tpu.dimension_semantics<parallel>, #tpu.dimension_semantics<parallel>, #tpu.dimension_semantics<arbitrary>], iteration_bounds = array<i64: 1, 1, 1>, scalar_prefetch = 0 : i64, scratch_operands = 1 : i64, tpu.core_type = #tpu.core_type<tc>, window_params = [{transform_indices = @transform_0, window_bounds = array<i64: 32, 128>}, {transform_indices = @transform_1, window_bounds = array<i64: 128, 128>}, {transform_indices = @transform_2, window_bounds = array<i64: 1, 128>}, {transform_indices = @transform_3, window_bounds = array<i64: 32, 128>}]} {
    %c0_i32 = arith.constant 0 : i32
    %0 = arith.cmpi eq, %arg2, %c0_i32 : i32
    %1 = arith.extui %0 : i1 to i32
    %c0_i32_0 = arith.constant 0 : i32
    %2 = arith.cmpi ne, %1, %c0_i32_0 : i32
    scf.if %2 {
      %cst_10 = arith.constant 0.000000e+00 : f32
      %12 = vector.broadcast %cst_10 : f32 to vector<32x128xf32>
      %c0_11 = arith.constant 0 : index
      %c0_12 = arith.constant 0 : index
      %13 = vector.load %arg7[%c0_11, %c0_12] : memref<32x128xf32, #tpu.memory_space<vmem>>, vector<32x128xf32>
      tpu.vector_store %arg7[%c0_11, %c0_12], %12 {strides = array<i32>} : memref<32x128xf32, #tpu.memory_space<vmem>>, vector<32x128xf32>,
    } else {
    }
    %c0 = arith.constant 0 : index
    %c0_1 = arith.constant 0 : index
    %3 = vector.load %arg7[%c0, %c0_1] : memref<32x128xf32, #tpu.memory_space<vmem>>, vector<32x128xf32>
    %c0_2 = arith.constant 0 : index
    %c0_3 = arith.constant 0 : index
    %4 = vector.load %arg3[%c0_2, %c0_3] : memref<32x128xbf16, #tpu.memory_space<vmem>>, vector<32x128xbf16>
    %c0_4 = arith.constant 0 : index
    %c0_5 = arith.constant 0 : index
    %5 = vector.load %arg4[%c0_4, %c0_5] : memref<128x128xbf16, #tpu.memory_space<vmem>>, vector<128x128xbf16>
    %cst = arith.constant dense<0.000000e+00> : vector<32x128xf32>
    %6 = tpu.matmul %4, %5, %cst {dimension_numbers = #tpu.dot_dimension_numbers<[1], [0], [0], [1], [0, 0, 1, 1], [], []>} : vector<32x128xbf16>, vector<128x128xbf16>, vector<32x128xf32> -> vector<32x128xf32>
    %7 = arith.addf %3, %6 : vector<32x128xf32>
    %c0_6 = arith.constant 0 : index
    %c0_7 = arith.constant 0 : index
    %8 = vector.load %arg7[%c0_6, %c0_7] : memref<32x128xf32, #tpu.memory_space<vmem>>, vector<32x128xf32>
    tpu.vector_store %arg7[%c0_6, %c0_7], %7 {strides = array<i32>} : memref<32x128xf32, #tpu.memory_space<vmem>>, vector<32x128xf32>,
    %c0_i32_8 = arith.constant 0 : i32
    %9 = arith.cmpi eq, %arg2, %c0_i32_8 : i32
    %10 = arith.extui %9 : i1 to i32
    %c0_i32_9 = arith.constant 0 : i32
    %11 = arith.cmpi ne, %10, %c0_i32_9 : i32
    scf.if %11 {
      %c0_10 = arith.constant 0 : index
      %c0_11 = arith.constant 0 : index
      %12 = vector.load %arg7[%c0_10, %c0_11] : memref<32x128xf32, #tpu.memory_space<vmem>>, vector<32x128xf32>
      %c0_12 = arith.constant 0 : index
      %c0_13 = arith.constant 0 : index
      %13 = vector.load %arg5[%c0_12, %c0_13] : memref<1x128xf32, #tpu.memory_space<vmem>>, vector<1x128xf32>
      %14 = vector.broadcast %13 : vector<1x128xf32> to vector<32x128xf32>
      %15 = arith.addf %12, %14 : vector<32x128xf32>
      %16 = arith.truncf %15 : vector<32x128xf32> to vector<32x128xbf16>
      %c0_14 = arith.constant 0 : index
      %c0_15 = arith.constant 0 : index
      %17 = vector.load %arg6[%c0_14, %c0_15] : memref<32x128xbf16, #tpu.memory_space<vmem>>, vector<32x128xbf16>
      tpu.vector_store %arg6[%c0_14, %c0_15], %16 {strides = array<i32>} : memref<32x128xbf16, #tpu.memory_space<vmem>>, vector<32x128xbf16>,
    } else {
    }
    return
  }
  func.func @transform_0(%arg0: i32, %arg1: i32, %arg2: i32) -> (i32, i32) {
    %c0_i32 = arith.constant 0 : i32
    return %arg0, %arg2 : i32, i32
  }
  func.func @transform_1(%arg0: i32, %arg1: i32, %arg2: i32) -> (i32, i32) {
    %c0_i32 = arith.constant 0 : i32
    return %arg2, %arg1 : i32, i32
  }
  func.func @transform_2(%arg0: i32, %arg1: i32, %arg2: i32) -> (i32, i32) {
    %c0_i32 = arith.constant 0 : i32
    %c0_i32_0 = arith.constant 0 : i32
    return %c0_i32, %arg1 : i32, i32
  }
  func.func @transform_3(%arg0: i32, %arg1: i32, %arg2: i32) -> (i32, i32) {
    %c0_i32 = arith.constant 0 : i32
    return %arg0, %arg1 : i32, i32
  }
}

module attributes {stable_mosaic.version = 11 : i64} {
  func.func @_ffn_ln_kernel(%arg0: i32, %arg1: i32, %arg2: memref<32x128xbf16, #tpu.memory_space<vmem>>, %arg3: memref<128x256xbf16, #tpu.memory_space<vmem>>, %arg4: memref<1x256xf32, #tpu.memory_space<vmem>>, %arg5: memref<256x128xbf16, #tpu.memory_space<vmem>>, %arg6: memref<1x128xf32, #tpu.memory_space<vmem>>, %arg7: memref<1x128xf32, #tpu.memory_space<vmem>>, %arg8: memref<1x128xf32, #tpu.memory_space<vmem>>, %arg9: memref<32x128xbf16, #tpu.memory_space<vmem>>, %arg10: memref<32x128xf32, #tpu.memory_space<vmem>>) attributes {dimension_semantics = [#tpu.dimension_semantics<parallel>, #tpu.dimension_semantics<arbitrary>], iteration_bounds = array<i64: 1, 1>, scalar_prefetch = 0 : i64, scratch_operands = 1 : i64, tpu.core_type = #tpu.core_type<tc>, window_params = [{transform_indices = @transform_0, window_bounds = array<i64: 32, 128>}, {transform_indices = @transform_1, window_bounds = array<i64: 128, 256>}, {transform_indices = @transform_2, window_bounds = array<i64: 1, 256>}, {transform_indices = @transform_3, window_bounds = array<i64: 256, 128>}, {pipeline_mode = #tpu.pipeline_mode<synchronous>, transform_indices = @transform_4, window_bounds = array<i64: 1, 128>}, {pipeline_mode = #tpu.pipeline_mode<synchronous>, transform_indices = @transform_5, window_bounds = array<i64: 1, 128>}, {pipeline_mode = #tpu.pipeline_mode<synchronous>, transform_indices = @transform_6, window_bounds = array<i64: 1, 128>}, {transform_indices = @transform_7, window_bounds = array<i64: 32, 128>}]} {
    %c0_i32 = arith.constant 0 : i32
    %0 = arith.cmpi eq, %arg1, %c0_i32 : i32
    %1 = arith.extui %0 : i1 to i32
    %c0_i32_0 = arith.constant 0 : i32
    %2 = arith.cmpi ne, %1, %c0_i32_0 : i32
    scf.if %2 {
      %cst_16 = arith.constant 0.000000e+00 : f32
      %20 = vector.broadcast %cst_16 : f32 to vector<32x128xf32>
      %c0_17 = arith.constant 0 : index
      %c0_18 = arith.constant 0 : index
      %21 = vector.load %arg10[%c0_17, %c0_18] : memref<32x128xf32, #tpu.memory_space<vmem>>, vector<32x128xf32>
      tpu.vector_store %arg10[%c0_17, %c0_18], %20 {strides = array<i32>} : memref<32x128xf32, #tpu.memory_space<vmem>>, vector<32x128xf32>,
    } else {
    }
    %c0 = arith.constant 0 : index
    %c0_1 = arith.constant 0 : index
    %3 = vector.load %arg2[%c0, %c0_1] : memref<32x128xbf16, #tpu.memory_space<vmem>>, vector<32x128xbf16>
    %c0_2 = arith.constant 0 : index
    %c0_3 = arith.constant 0 : index
    %4 = vector.load %arg3[%c0_2, %c0_3] : memref<128x256xbf16, #tpu.memory_space<vmem>>, vector<128x256xbf16>
    %cst = arith.constant dense<0.000000e+00> : vector<32x256xf32>
    %5 = tpu.matmul %3, %4, %cst {dimension_numbers = #tpu.dot_dimension_numbers<[1], [0], [0], [1], [0, 0, 1, 1], [], []>} : vector<32x128xbf16>, vector<128x256xbf16>, vector<32x256xf32> -> vector<32x256xf32>
    %c0_4 = arith.constant 0 : index
    %c0_5 = arith.constant 0 : index
    %6 = vector.load %arg4[%c0_4, %c0_5] : memref<1x256xf32, #tpu.memory_space<vmem>>, vector<1x256xf32>
    %7 = vector.broadcast %6 : vector<1x256xf32> to vector<32x256xf32>
    %8 = arith.addf %5, %7 : vector<32x256xf32>
    %cst_6 = arith.constant 0.000000e+00 : f32
    %9 = vector.broadcast %cst_6 : f32 to vector<32x256xf32>
    %10 = arith.maximumf %8, %9 : vector<32x256xf32>
    %11 = arith.truncf %10 : vector<32x256xf32> to vector<32x256xbf16>
    %c0_7 = arith.constant 0 : index
    %c0_8 = arith.constant 0 : index
    %12 = vector.load %arg10[%c0_7, %c0_8] : memref<32x128xf32, #tpu.memory_space<vmem>>, vector<32x128xf32>
    %c0_9 = arith.constant 0 : index
    %c0_10 = arith.constant 0 : index
    %13 = vector.load %arg5[%c0_9, %c0_10] : memref<256x128xbf16, #tpu.memory_space<vmem>>, vector<256x128xbf16>
    %cst_11 = arith.constant dense<0.000000e+00> : vector<32x128xf32>
    %14 = tpu.matmul %11, %13, %cst_11 {dimension_numbers = #tpu.dot_dimension_numbers<[1], [0], [0], [1], [0, 0, 1, 1], [], []>} : vector<32x256xbf16>, vector<256x128xbf16>, vector<32x128xf32> -> vector<32x128xf32>
    %15 = arith.addf %12, %14 : vector<32x128xf32>
    %c0_12 = arith.constant 0 : index
    %c0_13 = arith.constant 0 : index
    %16 = vector.load %arg10[%c0_12, %c0_13] : memref<32x128xf32, #tpu.memory_space<vmem>>, vector<32x128xf32>
    tpu.vector_store %arg10[%c0_12, %c0_13], %15 {strides = array<i32>} : memref<32x128xf32, #tpu.memory_space<vmem>>, vector<32x128xf32>,
    %c0_i32_14 = arith.constant 0 : i32
    %17 = arith.cmpi eq, %arg1, %c0_i32_14 : i32
    %18 = arith.extui %17 : i1 to i32
    %c0_i32_15 = arith.constant 0 : i32
    %19 = arith.cmpi ne, %18, %c0_i32_15 : i32
    scf.if %19 {
      %c0_16 = arith.constant 0 : index
      %c0_17 = arith.constant 0 : index
      %20 = vector.load %arg10[%c0_16, %c0_17] : memref<32x128xf32, #tpu.memory_space<vmem>>, vector<32x128xf32>
      %c0_18 = arith.constant 0 : index
      %c0_19 = arith.constant 0 : index
      %21 = vector.load %arg6[%c0_18, %c0_19] : memref<1x128xf32, #tpu.memory_space<vmem>>, vector<1x128xf32>
      %22 = vector.broadcast %21 : vector<1x128xf32> to vector<32x128xf32>
      %23 = arith.addf %20, %22 : vector<32x128xf32>
      %24 = arith.extf %3 : vector<32x128xbf16> to vector<32x128xf32>
      %25 = arith.addf %23, %24 : vector<32x128xf32>
      %cst_20 = arith.constant dense<0.000000e+00> : vector<32xf32>
      %26 = vector.multi_reduction <add>, %25, %cst_20 [1] : vector<32x128xf32> to vector<32xf32>
      %27 = vector.shape_cast %26 : vector<32xf32> to vector<32x1xf32>
      %cst_21 = arith.constant 1.280000e+02 : f32
      %28 = vector.broadcast %cst_21 : f32 to vector<32x1xf32>
      %29 = arith.divf %27, %28 : vector<32x1xf32>
      %30 = vector.broadcast %29 : vector<32x1xf32> to vector<32x128xf32>
      %31 = arith.subf %25, %30 : vector<32x128xf32>
      %32 = arith.mulf %31, %31 : vector<32x128xf32>
      %cst_22 = arith.constant dense<0.000000e+00> : vector<32xf32>
      %33 = vector.multi_reduction <add>, %32, %cst_22 [1] : vector<32x128xf32> to vector<32xf32>
      %34 = vector.shape_cast %33 : vector<32xf32> to vector<32x1xf32>
      %cst_23 = arith.constant 1.280000e+02 : f32
      %35 = vector.broadcast %cst_23 : f32 to vector<32x1xf32>
      %36 = arith.divf %34, %35 : vector<32x1xf32>
      %37 = vector.broadcast %29 : vector<32x1xf32> to vector<32x128xf32>
      %38 = arith.subf %25, %37 : vector<32x128xf32>
      %cst_24 = arith.constant 9.99999974E-6 : f32
      %39 = vector.broadcast %cst_24 : f32 to vector<32x1xf32>
      %40 = arith.addf %36, %39 : vector<32x1xf32>
      %41 = math.rsqrt %40 : vector<32x1xf32>
      %42 = vector.broadcast %41 : vector<32x1xf32> to vector<32x128xf32>
      %43 = arith.mulf %38, %42 : vector<32x128xf32>
      %c0_25 = arith.constant 0 : index
      %c0_26 = arith.constant 0 : index
      %44 = vector.load %arg7[%c0_25, %c0_26] : memref<1x128xf32, #tpu.memory_space<vmem>>, vector<1x128xf32>
      %45 = vector.broadcast %44 : vector<1x128xf32> to vector<32x128xf32>
      %46 = arith.mulf %43, %45 : vector<32x128xf32>
      %c0_27 = arith.constant 0 : index
      %c0_28 = arith.constant 0 : index
      %47 = vector.load %arg8[%c0_27, %c0_28] : memref<1x128xf32, #tpu.memory_space<vmem>>, vector<1x128xf32>
      %48 = vector.broadcast %47 : vector<1x128xf32> to vector<32x128xf32>
      %49 = arith.addf %46, %48 : vector<32x128xf32>
      %50 = arith.truncf %49 : vector<32x128xf32> to vector<32x128xbf16>
      %c0_29 = arith.constant 0 : index
      %c0_30 = arith.constant 0 : index
      %51 = vector.load %arg9[%c0_29, %c0_30] : memref<32x128xbf16, #tpu.memory_space<vmem>>, vector<32x128xbf16>
      tpu.vector_store %arg9[%c0_29, %c0_30], %50 {strides = array<i32>} : memref<32x128xbf16, #tpu.memory_space<vmem>>, vector<32x128xbf16>,
    } else {
    }
    return
  }
  func.func @transform_0(%arg0: i32, %arg1: i32) -> (i32, i32) {
    %c0_i32 = arith.constant 0 : i32
    %c0_i32_0 = arith.constant 0 : i32
    return %arg0, %c0_i32 : i32, i32
  }
  func.func @transform_1(%arg0: i32, %arg1: i32) -> (i32, i32) {
    %c0_i32 = arith.constant 0 : i32
    %c0_i32_0 = arith.constant 0 : i32
    return %c0_i32, %arg1 : i32, i32
  }
  func.func @transform_2(%arg0: i32, %arg1: i32) -> (i32, i32) {
    %c0_i32 = arith.constant 0 : i32
    %c0_i32_0 = arith.constant 0 : i32
    return %c0_i32, %arg1 : i32, i32
  }
  func.func @transform_3(%arg0: i32, %arg1: i32) -> (i32, i32) {
    %c0_i32 = arith.constant 0 : i32
    %c0_i32_0 = arith.constant 0 : i32
    return %arg1, %c0_i32 : i32, i32
  }
  func.func @transform_4(%arg0: i32, %arg1: i32) -> (i32, i32) {
    %c0_i32 = arith.constant 0 : i32
    %c0_i32_0 = arith.constant 0 : i32
    %c0_i32_1 = arith.constant 0 : i32
    return %c0_i32, %c0_i32_0 : i32, i32
  }
  func.func @transform_5(%arg0: i32, %arg1: i32) -> (i32, i32) {
    %c0_i32 = arith.constant 0 : i32
    %c0_i32_0 = arith.constant 0 : i32
    %c0_i32_1 = arith.constant 0 : i32
    return %c0_i32, %c0_i32_0 : i32, i32
  }
  func.func @transform_6(%arg0: i32, %arg1: i32) -> (i32, i32) {
    %c0_i32 = arith.constant 0 : i32
    %c0_i32_0 = arith.constant 0 : i32
    %c0_i32_1 = arith.constant 0 : i32
    return %c0_i32, %c0_i32_0 : i32, i32
  }
  func.func @transform_7(%arg0: i32, %arg1: i32) -> (i32, i32) {
    %c0_i32 = arith.constant 0 : i32
    %c0_i32_0 = arith.constant 0 : i32
    return %arg0, %c0_i32 : i32, i32
  }
}

module attributes {stable_mosaic.version = 11 : i64} {
  func.func @_linear_kernel(%arg0: i32, %arg1: i32, %arg2: i32, %arg3: memref<32x128xbf16, #tpu.memory_space<vmem>>, %arg4: memref<128x256xbf16, #tpu.memory_space<vmem>>, %arg5: memref<1x256xf32, #tpu.memory_space<vmem>>, %arg6: memref<32x256xbf16, #tpu.memory_space<vmem>>, %arg7: memref<32x256xf32, #tpu.memory_space<vmem>>) attributes {dimension_semantics = [#tpu.dimension_semantics<parallel>, #tpu.dimension_semantics<parallel>, #tpu.dimension_semantics<arbitrary>], iteration_bounds = array<i64: 1, 1, 1>, scalar_prefetch = 0 : i64, scratch_operands = 1 : i64, tpu.core_type = #tpu.core_type<tc>, window_params = [{transform_indices = @transform_0, window_bounds = array<i64: 32, 128>}, {transform_indices = @transform_1, window_bounds = array<i64: 128, 256>}, {transform_indices = @transform_2, window_bounds = array<i64: 1, 256>}, {transform_indices = @transform_3, window_bounds = array<i64: 32, 256>}]} {
    %c0_i32 = arith.constant 0 : i32
    %0 = arith.cmpi eq, %arg2, %c0_i32 : i32
    %1 = arith.extui %0 : i1 to i32
    %c0_i32_0 = arith.constant 0 : i32
    %2 = arith.cmpi ne, %1, %c0_i32_0 : i32
    scf.if %2 {
      %cst_10 = arith.constant 0.000000e+00 : f32
      %12 = vector.broadcast %cst_10 : f32 to vector<32x256xf32>
      %c0_11 = arith.constant 0 : index
      %c0_12 = arith.constant 0 : index
      %13 = vector.load %arg7[%c0_11, %c0_12] : memref<32x256xf32, #tpu.memory_space<vmem>>, vector<32x256xf32>
      tpu.vector_store %arg7[%c0_11, %c0_12], %12 {strides = array<i32>} : memref<32x256xf32, #tpu.memory_space<vmem>>, vector<32x256xf32>,
    } else {
    }
    %c0 = arith.constant 0 : index
    %c0_1 = arith.constant 0 : index
    %3 = vector.load %arg7[%c0, %c0_1] : memref<32x256xf32, #tpu.memory_space<vmem>>, vector<32x256xf32>
    %c0_2 = arith.constant 0 : index
    %c0_3 = arith.constant 0 : index
    %4 = vector.load %arg3[%c0_2, %c0_3] : memref<32x128xbf16, #tpu.memory_space<vmem>>, vector<32x128xbf16>
    %c0_4 = arith.constant 0 : index
    %c0_5 = arith.constant 0 : index
    %5 = vector.load %arg4[%c0_4, %c0_5] : memref<128x256xbf16, #tpu.memory_space<vmem>>, vector<128x256xbf16>
    %cst = arith.constant dense<0.000000e+00> : vector<32x256xf32>
    %6 = tpu.matmul %4, %5, %cst {dimension_numbers = #tpu.dot_dimension_numbers<[1], [0], [0], [1], [0, 0, 1, 1], [], []>} : vector<32x128xbf16>, vector<128x256xbf16>, vector<32x256xf32> -> vector<32x256xf32>
    %7 = arith.addf %3, %6 : vector<32x256xf32>
    %c0_6 = arith.constant 0 : index
    %c0_7 = arith.constant 0 : index
    %8 = vector.load %arg7[%c0_6, %c0_7] : memref<32x256xf32, #tpu.memory_space<vmem>>, vector<32x256xf32>
    tpu.vector_store %arg7[%c0_6, %c0_7], %7 {strides = array<i32>} : memref<32x256xf32, #tpu.memory_space<vmem>>, vector<32x256xf32>,
    %c0_i32_8 = arith.constant 0 : i32
    %9 = arith.cmpi eq, %arg2, %c0_i32_8 : i32
    %10 = arith.extui %9 : i1 to i32
    %c0_i32_9 = arith.constant 0 : i32
    %11 = arith.cmpi ne, %10, %c0_i32_9 : i32
    scf.if %11 {
      %c0_10 = arith.constant 0 : index
      %c0_11 = arith.constant 0 : index
      %12 = vector.load %arg7[%c0_10, %c0_11] : memref<32x256xf32, #tpu.memory_space<vmem>>, vector<32x256xf32>
      %c0_12 = arith.constant 0 : index
      %c0_13 = arith.constant 0 : index
      %13 = vector.load %arg5[%c0_12, %c0_13] : memref<1x256xf32, #tpu.memory_space<vmem>>, vector<1x256xf32>
      %14 = vector.broadcast %13 : vector<1x256xf32> to vector<32x256xf32>
      %15 = arith.addf %12, %14 : vector<32x256xf32>
      %16 = arith.truncf %15 : vector<32x256xf32> to vector<32x256xbf16>
      %c0_14 = arith.constant 0 : index
      %c0_15 = arith.constant 0 : index
      %17 = vector.load %arg6[%c0_14, %c0_15] : memref<32x256xbf16, #tpu.memory_space<vmem>>, vector<32x256xbf16>
      tpu.vector_store %arg6[%c0_14, %c0_15], %16 {strides = array<i32>} : memref<32x256xbf16, #tpu.memory_space<vmem>>, vector<32x256xbf16>,
    } else {
    }
    return
  }
  func.func @transform_0(%arg0: i32, %arg1: i32, %arg2: i32) -> (i32, i32) {
    %c0_i32 = arith.constant 0 : i32
    return %arg0, %arg2 : i32, i32
  }
  func.func @transform_1(%arg0: i32, %arg1: i32, %arg2: i32) -> (i32, i32) {
    %c0_i32 = arith.constant 0 : i32
    return %arg2, %arg1 : i32, i32
  }
  func.func @transform_2(%arg0: i32, %arg1: i32, %arg2: i32) -> (i32, i32) {
    %c0_i32 = arith.constant 0 : i32
    %c0_i32_0 = arith.constant 0 : i32
    return %c0_i32, %arg1 : i32, i32
  }
  func.func @transform_3(%arg0: i32, %arg1: i32, %arg2: i32) -> (i32, i32) {
    %c0_i32 = arith.constant 0 : i32
    return %arg0, %arg1 : i32, i32
  }
}

module attributes {stable_mosaic.version = 11 : i64} {
  func.func @_flash_attn_kernel(%arg0: i32, %arg1: i32, %arg2: i32, %arg3: memref<1x8x128xbf16, #tpu.memory_space<vmem>>, %arg4: memref<1x16x128xbf16, #tpu.memory_space<vmem>>, %arg5: memref<1x16x128xbf16, #tpu.memory_space<vmem>>, %arg6: memref<1x1x16xf32, #tpu.memory_space<vmem>>, %arg7: memref<1x8x128xbf16, #tpu.memory_space<vmem>>, %arg8: memref<4x8x1xf32, #tpu.memory_space<vmem>>, %arg9: memref<4x8x1xf32, #tpu.memory_space<vmem>>, %arg10: memref<8x128xf32, #tpu.memory_space<vmem>>) attributes {dimension_semantics = [#tpu.dimension_semantics<parallel>, #tpu.dimension_semantics<parallel>, #tpu.dimension_semantics<arbitrary>], iteration_bounds = array<i64: 2, 1, 1>, scalar_prefetch = 0 : i64, scratch_operands = 3 : i64, tpu.core_type = #tpu.core_type<tc>, window_params = [{transform_indices = @transform_0, window_bounds = array<i64: 1, 8, 128>}, {transform_indices = @transform_1, window_bounds = array<i64: 1, 16, 128>}, {transform_indices = @transform_2, window_bounds = array<i64: 1, 16, 128>}, {transform_indices = @transform_3, window_bounds = array<i64: 1, 1, 16>}, {transform_indices = @transform_4, window_bounds = array<i64: 1, 8, 128>}]} {
    %c0_i32 = arith.constant 0 : i32
    %0 = arith.cmpi eq, %arg2, %c0_i32 : i32
    %1 = arith.extui %0 : i1 to i32
    %c0_i32_0 = arith.constant 0 : i32
    %2 = arith.cmpi ne, %1, %c0_i32_0 : i32
    scf.if %2 {
      %cst_87 = arith.constant 0xFF800000 : f32
      %154 = vector.broadcast %cst_87 : f32 to vector<4x8x1xf32>
      %c0_88 = arith.constant 0 : index
      %c0_89 = arith.constant 0 : index
      %c0_90 = arith.constant 0 : index
      %155 = vector.load %arg8[%c0_88, %c0_89, %c0_90] : memref<4x8x1xf32, #tpu.memory_space<vmem>>, vector<4x8x1xf32>
      tpu.vector_store %arg8[%c0_88, %c0_89, %c0_90], %154 {strides = array<i32>} : memref<4x8x1xf32, #tpu.memory_space<vmem>>, vector<4x8x1xf32>,
      %cst_91 = arith.constant 0.000000e+00 : f32
      %156 = vector.broadcast %cst_91 : f32 to vector<4x8x1xf32>
      %c0_92 = arith.constant 0 : index
      %c0_93 = arith.constant 0 : index
      %c0_94 = arith.constant 0 : index
      %157 = vector.load %arg9[%c0_92, %c0_93, %c0_94] : memref<4x8x1xf32, #tpu.memory_space<vmem>>, vector<4x8x1xf32>
      tpu.vector_store %arg9[%c0_92, %c0_93, %c0_94], %156 {strides = array<i32>} : memref<4x8x1xf32, #tpu.memory_space<vmem>>, vector<4x8x1xf32>,
      %cst_95 = arith.constant 0.000000e+00 : f32
      %158 = vector.broadcast %cst_95 : f32 to vector<8x128xf32>
      %c0_96 = arith.constant 0 : index
      %c0_97 = arith.constant 0 : index
      %159 = vector.load %arg10[%c0_96, %c0_97] : memref<8x128xf32, #tpu.memory_space<vmem>>, vector<8x128xf32>
      tpu.vector_store %arg10[%c0_96, %c0_97], %158 {strides = array<i32>} : memref<8x128xf32, #tpu.memory_space<vmem>>, vector<8x128xf32>,
    } else {
    }
    %c0 = arith.constant 0 : index
    %c0_1 = arith.constant 0 : index
    %c0_2 = arith.constant 0 : index
    %3 = vector.load %arg3[%c0, %c0_1, %c0_2] : memref<1x8x128xbf16, #tpu.memory_space<vmem>>, vector<1x8x128xbf16>
    %4 = vector.shape_cast %3 : vector<1x8x128xbf16> to vector<8x128xbf16>
    %c0_3 = arith.constant 0 : index
    %c0_4 = arith.constant 0 : index
    %c0_5 = arith.constant 0 : index
    %5 = vector.load %arg4[%c0_3, %c0_4, %c0_5] : memref<1x16x128xbf16, #tpu.memory_space<vmem>>, vector<1x16x128xbf16>
    %6 = vector.shape_cast %5 : vector<1x16x128xbf16> to vector<16x128xbf16>
    %c0_6 = arith.constant 0 : index
    %c0_7 = arith.constant 0 : index
    %c0_8 = arith.constant 0 : index
    %7 = vector.load %arg5[%c0_6, %c0_7, %c0_8] : memref<1x16x128xbf16, #tpu.memory_space<vmem>>, vector<1x16x128xbf16>
    %8 = vector.shape_cast %7 : vector<1x16x128xbf16> to vector<16x128xbf16>
    %c0_9 = arith.constant 0 : index
    %c0_10 = arith.constant 0 : index
    %c0_11 = arith.constant 0 : index
    %9 = vector.load %arg6[%c0_9, %c0_10, %c0_11] : memref<1x1x16xf32, #tpu.memory_space<vmem>>, vector<1x1x16xf32>
    %10 = vector.shape_cast %9 : vector<1x1x16xf32> to vector<1x16xf32>
    %11 = vector.extract_strided_slice %4 {offsets = [0, 0], sizes = [8, 32], strides = [1, 1]} : vector<8x128xbf16> to vector<8x32xbf16>
    %12 = vector.extract_strided_slice %6 {offsets = [0, 0], sizes = [16, 32], strides = [1, 1]} : vector<16x128xbf16> to vector<16x32xbf16>
    %cst = arith.constant dense<0.000000e+00> : vector<8x16xf32>
    %13 = tpu.matmul %11, %12, %cst {dimension_numbers = #tpu.dot_dimension_numbers<[1], [1], [0], [0], [0, 0, 1, 0], [], []>} : vector<8x32xbf16>, vector<16x32xbf16>, vector<8x16xf32> -> vector<8x16xf32>
    %14 = vector.broadcast %10 : vector<1x16xf32> to vector<8x16xf32>
    %15 = arith.addf %13, %14 : vector<8x16xf32>
    %c0_12 = arith.constant 0 : index
    %c0_13 = arith.constant 0 : index
    %c0_14 = arith.constant 0 : index
    %16 = vector.load %arg8[%c0_12, %c0_13, %c0_14] : memref<4x8x1xf32, #tpu.memory_space<vmem>>, vector<1x8x1xf32>
    %17 = vector.shape_cast %16 : vector<1x8x1xf32> to vector<8x1xf32>
    %cst_15 = arith.constant dense<0xFF800000> : vector<8xf32>
    %18 = vector.multi_reduction <maximumf>, %15, %cst_15 [1] : vector<8x16xf32> to vector<8xf32>
    %19 = vector.shape_cast %18 : vector<8xf32> to vector<8x1xf32>
    %20 = arith.maximumf %17, %19 : vector<8x1xf32>
    %21 = arith.subf %17, %20 : vector<8x1xf32>
    %22 = math.exp %21 : vector<8x1xf32>
    %23 = vector.broadcast %20 : vector<8x1xf32> to vector<8x16xf32>
    %24 = arith.subf %15, %23 : vector<8x16xf32>
    %25 = math.exp %24 : vector<8x16xf32>
    %c0_16 = arith.constant 0 : index
    %c0_17 = arith.constant 0 : index
    %c0_18 = arith.constant 0 : index
    %26 = vector.load %arg9[%c0_16, %c0_17, %c0_18] : memref<4x8x1xf32, #tpu.memory_space<vmem>>, vector<1x8x1xf32>
    %27 = vector.shape_cast %26 : vector<1x8x1xf32> to vector<8x1xf32>
    %28 = arith.mulf %22, %27 : vector<8x1xf32>
    %cst_19 = arith.constant dense<0.000000e+00> : vector<8xf32>
    %29 = vector.multi_reduction <add>, %25, %cst_19 [1] : vector<8x16xf32> to vector<8xf32>
    %30 = vector.shape_cast %29 : vector<8xf32> to vector<8x1xf32>
    %31 = arith.addf %28, %30 : vector<8x1xf32>
    %c0_20 = arith.constant 0 : index
    %c0_21 = arith.constant 0 : index
    %c0_22 = arith.constant 0 : index
    %32 = vector.load %arg9[%c0_20, %c0_21, %c0_22] : memref<4x8x1xf32, #tpu.memory_space<vmem>>, vector<1x8x1xf32>
    %33 = vector.shape_cast %32 : vector<1x8x1xf32> to vector<8x1xf32>
    %34 = vector.shape_cast %31 : vector<8x1xf32> to vector<1x8x1xf32>
    tpu.vector_store %arg9[%c0_20, %c0_21, %c0_22], %34 {strides = array<i32>} : memref<4x8x1xf32, #tpu.memory_space<vmem>>, vector<1x8x1xf32>,
    %c0_23 = arith.constant 0 : index
    %c0_24 = arith.constant 0 : index
    %35 = vector.load %arg10[%c0_23, %c0_24] : memref<8x128xf32, #tpu.memory_space<vmem>>, vector<8x32xf32>
    %36 = vector.broadcast %22 : vector<8x1xf32> to vector<8x32xf32>
    %37 = arith.mulf %36, %35 : vector<8x32xf32>
    %38 = arith.truncf %25 : vector<8x16xf32> to vector<8x16xbf16>
    %39 = vector.extract_strided_slice %8 {offsets = [0, 0], sizes = [16, 32], strides = [1, 1]} : vector<16x128xbf16> to vector<16x32xbf16>
    %cst_25 = arith.constant dense<0.000000e+00> : vector<8x32xf32>
    %40 = tpu.matmul %38, %39, %cst_25 {dimension_numbers = #tpu.dot_dimension_numbers<[1], [0], [0], [1], [0, 0, 1, 1], [], []>} : vector<8x16xbf16>, vector<16x32xbf16>, vector<8x32xf32> -> vector<8x32xf32>
    %41 = arith.addf %37, %40 : vector<8x32xf32>
    %c0_26 = arith.constant 0 : index
    %c0_27 = arith.constant 0 : index
    %42 = vector.load %arg10[%c0_26, %c0_27] : memref<8x128xf32, #tpu.memory_space<vmem>>, vector<8x32xf32>
    tpu.vector_store %arg10[%c0_26, %c0_27], %41 {strides = array<i32>} : memref<8x128xf32, #tpu.memory_space<vmem>>, vector<8x32xf32>,
    %c0_28 = arith.constant 0 : index
    %c0_29 = arith.constant 0 : index
    %c0_30 = arith.constant 0 : index
    %43 = vector.load %arg8[%c0_28, %c0_29, %c0_30] : memref<4x8x1xf32, #tpu.memory_space<vmem>>, vector<1x8x1xf32>
    %44 = vector.shape_cast %43 : vector<1x8x1xf32> to vector<8x1xf32>
    %45 = vector.shape_cast %20 : vector<8x1xf32> to vector<1x8x1xf32>
    tpu.vector_store %arg8[%c0_28, %c0_29, %c0_30], %45 {strides = array<i32>} : memref<4x8x1xf32, #tpu.memory_space<vmem>>, vector<1x8x1xf32>,
    %46 = vector.extract_strided_slice %4 {offsets = [0, 32], sizes = [8, 32], strides = [1, 1]} : vector<8x128xbf16> to vector<8x32xbf16>
    %47 = vector.extract_strided_slice %6 {offsets = [0, 32], sizes = [16, 32], strides = [1, 1]} : vector<16x128xbf16> to vector<16x32xbf16>
    %cst_31 = arith.constant dense<0.000000e+00> : vector<8x16xf32>
    %48 = tpu.matmul %46, %47, %cst_31 {dimension_numbers = #tpu.dot_dimension_numbers<[1], [1], [0], [0], [0, 0, 1, 0], [], []>} : vector<8x32xbf16>, vector<16x32xbf16>, vector<8x16xf32> -> vector<8x16xf32>
    %49 = vector.broadcast %10 : vector<1x16xf32> to vector<8x16xf32>
    %50 = arith.addf %48, %49 : vector<8x16xf32>
    %c1 = arith.constant 1 : index
    %c0_32 = arith.constant 0 : index
    %c0_33 = arith.constant 0 : index
    %51 = vector.load %arg8[%c1, %c0_32, %c0_33] : memref<4x8x1xf32, #tpu.memory_space<vmem>>, vector<1x8x1xf32>
    %52 = vector.shape_cast %51 : vector<1x8x1xf32> to vector<8x1xf32>
    %cst_34 = arith.constant dense<0xFF800000> : vector<8xf32>
    %53 = vector.multi_reduction <maximumf>, %50, %cst_34 [1] : vector<8x16xf32> to vector<8xf32>
    %54 = vector.shape_cast %53 : vector<8xf32> to vector<8x1xf32>
    %55 = arith.maximumf %52, %54 : vector<8x1xf32>
    %56 = arith.subf %52, %55 : vector<8x1xf32>
    %57 = math.exp %56 : vector<8x1xf32>
    %58 = vector.broadcast %55 : vector<8x1xf32> to vector<8x16xf32>
    %59 = arith.subf %50, %58 : vector<8x16xf32>
    %60 = math.exp %59 : vector<8x16xf32>
    %c1_35 = arith.constant 1 : index
    %c0_36 = arith.constant 0 : index
    %c0_37 = arith.constant 0 : index
    %61 = vector.load %arg9[%c1_35, %c0_36, %c0_37] : memref<4x8x1xf32, #tpu.memory_space<vmem>>, vector<1x8x1xf32>
    %62 = vector.shape_cast %61 : vector<1x8x1xf32> to vector<8x1xf32>
    %63 = arith.mulf %57, %62 : vector<8x1xf32>
    %cst_38 = arith.constant dense<0.000000e+00> : vector<8xf32>
    %64 = vector.multi_reduction <add>, %60, %cst_38 [1] : vector<8x16xf32> to vector<8xf32>
    %65 = vector.shape_cast %64 : vector<8xf32> to vector<8x1xf32>
    %66 = arith.addf %63, %65 : vector<8x1xf32>
    %c1_39 = arith.constant 1 : index
    %c0_40 = arith.constant 0 : index
    %c0_41 = arith.constant 0 : index
    %67 = vector.load %arg9[%c1_39, %c0_40, %c0_41] : memref<4x8x1xf32, #tpu.memory_space<vmem>>, vector<1x8x1xf32>
    %68 = vector.shape_cast %67 : vector<1x8x1xf32> to vector<8x1xf32>
    %69 = vector.shape_cast %66 : vector<8x1xf32> to vector<1x8x1xf32>
    tpu.vector_store %arg9[%c1_39, %c0_40, %c0_41], %69 {strides = array<i32>} : memref<4x8x1xf32, #tpu.memory_space<vmem>>, vector<1x8x1xf32>,
    %c0_42 = arith.constant 0 : index
    %c32 = arith.constant 32 : index
    %70 = vector.load %arg10[%c0_42, %c32] : memref<8x128xf32, #tpu.memory_space<vmem>>, vector<8x32xf32>
    %71 = vector.broadcast %57 : vector<8x1xf32> to vector<8x32xf32>
    %72 = arith.mulf %71, %70 : vector<8x32xf32>
    %73 = arith.truncf %60 : vector<8x16xf32> to vector<8x16xbf16>
    %74 = vector.extract_strided_slice %8 {offsets = [0, 32], sizes = [16, 32], strides = [1, 1]} : vector<16x128xbf16> to vector<16x32xbf16>
    %cst_43 = arith.constant dense<0.000000e+00> : vector<8x32xf32>
    %75 = tpu.matmul %73, %74, %cst_43 {dimension_numbers = #tpu.dot_dimension_numbers<[1], [0], [0], [1], [0, 0, 1, 1], [], []>} : vector<8x16xbf16>, vector<16x32xbf16>, vector<8x32xf32> -> vector<8x32xf32>
    %76 = arith.addf %72, %75 : vector<8x32xf32>
    %c0_44 = arith.constant 0 : index
    %c32_45 = arith.constant 32 : index
    %77 = vector.load %arg10[%c0_44, %c32_45] : memref<8x128xf32, #tpu.memory_space<vmem>>, vector<8x32xf32>
    tpu.vector_store %arg10[%c0_44, %c32_45], %76 {strides = array<i32>} : memref<8x128xf32, #tpu.memory_space<vmem>>, vector<8x32xf32>,
    %c1_46 = arith.constant 1 : index
    %c0_47 = arith.constant 0 : index
    %c0_48 = arith.constant 0 : index
    %78 = vector.load %arg8[%c1_46, %c0_47, %c0_48] : memref<4x8x1xf32, #tpu.memory_space<vmem>>, vector<1x8x1xf32>
    %79 = vector.shape_cast %78 : vector<1x8x1xf32> to vector<8x1xf32>
    %80 = vector.shape_cast %55 : vector<8x1xf32> to vector<1x8x1xf32>
    tpu.vector_store %arg8[%c1_46, %c0_47, %c0_48], %80 {strides = array<i32>} : memref<4x8x1xf32, #tpu.memory_space<vmem>>, vector<1x8x1xf32>,
    %81 = vector.extract_strided_slice %4 {offsets = [0, 64], sizes = [8, 32], strides = [1, 1]} : vector<8x128xbf16> to vector<8x32xbf16>
    %82 = vector.extract_strided_slice %6 {offsets = [0, 64], sizes = [16, 32], strides = [1, 1]} : vector<16x128xbf16> to vector<16x32xbf16>
    %cst_49 = arith.constant dense<0.000000e+00> : vector<8x16xf32>
    %83 = tpu.matmul %81, %82, %cst_49 {dimension_numbers = #tpu.dot_dimension_numbers<[1], [1], [0], [0], [0, 0, 1, 0], [], []>} : vector<8x32xbf16>, vector<16x32xbf16>, vector<8x16xf32> -> vector<8x16xf32>
    %84 = vector.broadcast %10 : vector<1x16xf32> to vector<8x16xf32>
    %85 = arith.addf %83, %84 : vector<8x16xf32>
    %c2 = arith.constant 2 : index
    %c0_50 = arith.constant 0 : index
    %c0_51 = arith.constant 0 : index
    %86 = vector.load %arg8[%c2, %c0_50, %c0_51] : memref<4x8x1xf32, #tpu.memory_space<vmem>>, vector<1x8x1xf32>
    %87 = vector.shape_cast %86 : vector<1x8x1xf32> to vector<8x1xf32>
    %cst_52 = arith.constant dense<0xFF800000> : vector<8xf32>
    %88 = vector.multi_reduction <maximumf>, %85, %cst_52 [1] : vector<8x16xf32> to vector<8xf32>
    %89 = vector.shape_cast %88 : vector<8xf32> to vector<8x1xf32>
    %90 = arith.maximumf %87, %89 : vector<8x1xf32>
    %91 = arith.subf %87, %90 : vector<8x1xf32>
    %92 = math.exp %91 : vector<8x1xf32>
    %93 = vector.broadcast %90 : vector<8x1xf32> to vector<8x16xf32>
    %94 = arith.subf %85, %93 : vector<8x16xf32>
    %95 = math.exp %94 : vector<8x16xf32>
    %c2_53 = arith.constant 2 : index
    %c0_54 = arith.constant 0 : index
    %c0_55 = arith.constant 0 : index
    %96 = vector.load %arg9[%c2_53, %c0_54, %c0_55] : memref<4x8x1xf32, #tpu.memory_space<vmem>>, vector<1x8x1xf32>
    %97 = vector.shape_cast %96 : vector<1x8x1xf32> to vector<8x1xf32>
    %98 = arith.mulf %92, %97 : vector<8x1xf32>
    %cst_56 = arith.constant dense<0.000000e+00> : vector<8xf32>
    %99 = vector.multi_reduction <add>, %95, %cst_56 [1] : vector<8x16xf32> to vector<8xf32>
    %100 = vector.shape_cast %99 : vector<8xf32> to vector<8x1xf32>
    %101 = arith.addf %98, %100 : vector<8x1xf32>
    %c2_57 = arith.constant 2 : index
    %c0_58 = arith.constant 0 : index
    %c0_59 = arith.constant 0 : index
    %102 = vector.load %arg9[%c2_57, %c0_58, %c0_59] : memref<4x8x1xf32, #tpu.memory_space<vmem>>, vector<1x8x1xf32>
    %103 = vector.shape_cast %102 : vector<1x8x1xf32> to vector<8x1xf32>
    %104 = vector.shape_cast %101 : vector<8x1xf32> to vector<1x8x1xf32>
    tpu.vector_store %arg9[%c2_57, %c0_58, %c0_59], %104 {strides = array<i32>} : memref<4x8x1xf32, #tpu.memory_space<vmem>>, vector<1x8x1xf32>,
    %c0_60 = arith.constant 0 : index
    %c64 = arith.constant 64 : index
    %105 = vector.load %arg10[%c0_60, %c64] : memref<8x128xf32, #tpu.memory_space<vmem>>, vector<8x32xf32>
    %106 = vector.broadcast %92 : vector<8x1xf32> to vector<8x32xf32>
    %107 = arith.mulf %106, %105 : vector<8x32xf32>
    %108 = arith.truncf %95 : vector<8x16xf32> to vector<8x16xbf16>
    %109 = vector.extract_strided_slice %8 {offsets = [0, 64], sizes = [16, 32], strides = [1, 1]} : vector<16x128xbf16> to vector<16x32xbf16>
    %cst_61 = arith.constant dense<0.000000e+00> : vector<8x32xf32>
    %110 = tpu.matmul %108, %109, %cst_61 {dimension_numbers = #tpu.dot_dimension_numbers<[1], [0], [0], [1], [0, 0, 1, 1], [], []>} : vector<8x16xbf16>, vector<16x32xbf16>, vector<8x32xf32> -> vector<8x32xf32>
    %111 = arith.addf %107, %110 : vector<8x32xf32>
    %c0_62 = arith.constant 0 : index
    %c64_63 = arith.constant 64 : index
    %112 = vector.load %arg10[%c0_62, %c64_63] : memref<8x128xf32, #tpu.memory_space<vmem>>, vector<8x32xf32>
    tpu.vector_store %arg10[%c0_62, %c64_63], %111 {strides = array<i32>} : memref<8x128xf32, #tpu.memory_space<vmem>>, vector<8x32xf32>,
    %c2_64 = arith.constant 2 : index
    %c0_65 = arith.constant 0 : index
    %c0_66 = arith.constant 0 : index
    %113 = vector.load %arg8[%c2_64, %c0_65, %c0_66] : memref<4x8x1xf32, #tpu.memory_space<vmem>>, vector<1x8x1xf32>
    %114 = vector.shape_cast %113 : vector<1x8x1xf32> to vector<8x1xf32>
    %115 = vector.shape_cast %90 : vector<8x1xf32> to vector<1x8x1xf32>
    tpu.vector_store %arg8[%c2_64, %c0_65, %c0_66], %115 {strides = array<i32>} : memref<4x8x1xf32, #tpu.memory_space<vmem>>, vector<1x8x1xf32>,
    %116 = vector.extract_strided_slice %4 {offsets = [0, 96], sizes = [8, 32], strides = [1, 1]} : vector<8x128xbf16> to vector<8x32xbf16>
    %117 = vector.extract_strided_slice %6 {offsets = [0, 96], sizes = [16, 32], strides = [1, 1]} : vector<16x128xbf16> to vector<16x32xbf16>
    %cst_67 = arith.constant dense<0.000000e+00> : vector<8x16xf32>
    %118 = tpu.matmul %116, %117, %cst_67 {dimension_numbers = #tpu.dot_dimension_numbers<[1], [1], [0], [0], [0, 0, 1, 0], [], []>} : vector<8x32xbf16>, vector<16x32xbf16>, vector<8x16xf32> -> vector<8x16xf32>
    %119 = vector.broadcast %10 : vector<1x16xf32> to vector<8x16xf32>
    %120 = arith.addf %118, %119 : vector<8x16xf32>
    %c3 = arith.constant 3 : index
    %c0_68 = arith.constant 0 : index
    %c0_69 = arith.constant 0 : index
    %121 = vector.load %arg8[%c3, %c0_68, %c0_69] : memref<4x8x1xf32, #tpu.memory_space<vmem>>, vector<1x8x1xf32>
    %122 = vector.shape_cast %121 : vector<1x8x1xf32> to vector<8x1xf32>
    %cst_70 = arith.constant dense<0xFF800000> : vector<8xf32>
    %123 = vector.multi_reduction <maximumf>, %120, %cst_70 [1] : vector<8x16xf32> to vector<8xf32>
    %124 = vector.shape_cast %123 : vector<8xf32> to vector<8x1xf32>
    %125 = arith.maximumf %122, %124 : vector<8x1xf32>
    %126 = arith.subf %122, %125 : vector<8x1xf32>
    %127 = math.exp %126 : vector<8x1xf32>
    %128 = vector.broadcast %125 : vector<8x1xf32> to vector<8x16xf32>
    %129 = arith.subf %120, %128 : vector<8x16xf32>
    %130 = math.exp %129 : vector<8x16xf32>
    %c3_71 = arith.constant 3 : index
    %c0_72 = arith.constant 0 : index
    %c0_73 = arith.constant 0 : index
    %131 = vector.load %arg9[%c3_71, %c0_72, %c0_73] : memref<4x8x1xf32, #tpu.memory_space<vmem>>, vector<1x8x1xf32>
    %132 = vector.shape_cast %131 : vector<1x8x1xf32> to vector<8x1xf32>
    %133 = arith.mulf %127, %132 : vector<8x1xf32>
    %cst_74 = arith.constant dense<0.000000e+00> : vector<8xf32>
    %134 = vector.multi_reduction <add>, %130, %cst_74 [1] : vector<8x16xf32> to vector<8xf32>
    %135 = vector.shape_cast %134 : vector<8xf32> to vector<8x1xf32>
    %136 = arith.addf %133, %135 : vector<8x1xf32>
    %c3_75 = arith.constant 3 : index
    %c0_76 = arith.constant 0 : index
    %c0_77 = arith.constant 0 : index
    %137 = vector.load %arg9[%c3_75, %c0_76, %c0_77] : memref<4x8x1xf32, #tpu.memory_space<vmem>>, vector<1x8x1xf32>
    %138 = vector.shape_cast %137 : vector<1x8x1xf32> to vector<8x1xf32>
    %139 = vector.shape_cast %136 : vector<8x1xf32> to vector<1x8x1xf32>
    tpu.vector_store %arg9[%c3_75, %c0_76, %c0_77], %139 {strides = array<i32>} : memref<4x8x1xf32, #tpu.memory_space<vmem>>, vector<1x8x1xf32>,
    %c0_78 = arith.constant 0 : index
    %c96 = arith.constant 96 : index
    %140 = vector.load %arg10[%c0_78, %c96] : memref<8x128xf32, #tpu.memory_space<vmem>>, vector<8x32xf32>
    %141 = vector.broadcast %127 : vector<8x1xf32> to vector<8x32xf32>
    %142 = arith.mulf %141, %140 : vector<8x32xf32>
    %143 = arith.truncf %130 : vector<8x16xf32> to vector<8x16xbf16>
    %144 = vector.extract_strided_slice %8 {offsets = [0, 96], sizes = [16, 32], strides = [1, 1]} : vector<16x128xbf16> to vector<16x32xbf16>
    %cst_79 = arith.constant dense<0.000000e+00> : vector<8x32xf32>
    %145 = tpu.matmul %143, %144, %cst_79 {dimension_numbers = #tpu.dot_dimension_numbers<[1], [0], [0], [1], [0, 0, 1, 1], [], []>} : vector<8x16xbf16>, vector<16x32xbf16>, vector<8x32xf32> -> vector<8x32xf32>
    %146 = arith.addf %142, %145 : vector<8x32xf32>
    %c0_80 = arith.constant 0 : index
    %c96_81 = arith.constant 96 : index
    %147 = vector.load %arg10[%c0_80, %c96_81] : memref<8x128xf32, #tpu.memory_space<vmem>>, vector<8x32xf32>
    tpu.vector_store %arg10[%c0_80, %c96_81], %146 {strides = array<i32>} : memref<8x128xf32, #tpu.memory_space<vmem>>, vector<8x32xf32>,
    %c3_82 = arith.constant 3 : index
    %c0_83 = arith.constant 0 : index
    %c0_84 = arith.constant 0 : index
    %148 = vector.load %arg8[%c3_82, %c0_83, %c0_84] : memref<4x8x1xf32, #tpu.memory_space<vmem>>, vector<1x8x1xf32>
    %149 = vector.shape_cast %148 : vector<1x8x1xf32> to vector<8x1xf32>
    %150 = vector.shape_cast %125 : vector<8x1xf32> to vector<1x8x1xf32>
    tpu.vector_store %arg8[%c3_82, %c0_83, %c0_84], %150 {strides = array<i32>} : memref<4x8x1xf32, #tpu.memory_space<vmem>>, vector<1x8x1xf32>,
    %c0_i32_85 = arith.constant 0 : i32
    %151 = arith.cmpi eq, %arg2, %c0_i32_85 : i32
    %152 = arith.extui %151 : i1 to i32
    %c0_i32_86 = arith.constant 0 : i32
    %153 = arith.cmpi ne, %152, %c0_i32_86 : i32
    scf.if %153 {
      %c0_87 = arith.constant 0 : index
      %c0_88 = arith.constant 0 : index
      %154 = vector.load %arg10[%c0_87, %c0_88] : memref<8x128xf32, #tpu.memory_space<vmem>>, vector<8x32xf32>
      %c0_89 = arith.constant 0 : index
      %c0_90 = arith.constant 0 : index
      %c0_91 = arith.constant 0 : index
      %155 = vector.load %arg9[%c0_89, %c0_90, %c0_91] : memref<4x8x1xf32, #tpu.memory_space<vmem>>, vector<1x8x1xf32>
      %156 = vector.shape_cast %155 : vector<1x8x1xf32> to vector<8x1xf32>
      %157 = tpu.reciprocal %156 {approx = true} : vector<8x1xf32> -> vector<8x1xf32>
      %158 = vector.broadcast %157 : vector<8x1xf32> to vector<8x32xf32>
      %159 = arith.mulf %154, %158 : vector<8x32xf32>
      %c0_92 = arith.constant 0 : index
      %c32_93 = arith.constant 32 : index
      %160 = vector.load %arg10[%c0_92, %c32_93] : memref<8x128xf32, #tpu.memory_space<vmem>>, vector<8x32xf32>
      %c1_94 = arith.constant 1 : index
      %c0_95 = arith.constant 0 : index
      %c0_96 = arith.constant 0 : index
      %161 = vector.load %arg9[%c1_94, %c0_95, %c0_96] : memref<4x8x1xf32, #tpu.memory_space<vmem>>, vector<1x8x1xf32>
      %162 = vector.shape_cast %161 : vector<1x8x1xf32> to vector<8x1xf32>
      %163 = tpu.reciprocal %162 {approx = true} : vector<8x1xf32> -> vector<8x1xf32>
      %164 = vector.broadcast %163 : vector<8x1xf32> to vector<8x32xf32>
      %165 = arith.mulf %160, %164 : vector<8x32xf32>
      %c0_97 = arith.constant 0 : index
      %c64_98 = arith.constant 64 : index
      %166 = vector.load %arg10[%c0_97, %c64_98] : memref<8x128xf32, #tpu.memory_space<vmem>>, vector<8x32xf32>
      %c2_99 = arith.constant 2 : index
      %c0_100 = arith.constant 0 : index
      %c0_101 = arith.constant 0 : index
      %167 = vector.load %arg9[%c2_99, %c0_100, %c0_101] : memref<4x8x1xf32, #tpu.memory_space<vmem>>, vector<1x8x1xf32>
      %168 = vector.shape_cast %167 : vector<1x8x1xf32> to vector<8x1xf32>
      %169 = tpu.reciprocal %168 {approx = true} : vector<8x1xf32> -> vector<8x1xf32>
      %170 = vector.broadcast %169 : vector<8x1xf32> to vector<8x32xf32>
      %171 = arith.mulf %166, %170 : vector<8x32xf32>
      %c0_102 = arith.constant 0 : index
      %c96_103 = arith.constant 96 : index
      %172 = vector.load %arg10[%c0_102, %c96_103] : memref<8x128xf32, #tpu.memory_space<vmem>>, vector<8x32xf32>
      %c3_104 = arith.constant 3 : index
      %c0_105 = arith.constant 0 : index
      %c0_106 = arith.constant 0 : index
      %173 = vector.load %arg9[%c3_104, %c0_105, %c0_106] : memref<4x8x1xf32, #tpu.memory_space<vmem>>, vector<1x8x1xf32>
      %174 = vector.shape_cast %173 : vector<1x8x1xf32> to vector<8x1xf32>
      %175 = tpu.reciprocal %174 {approx = true} : vector<8x1xf32> -> vector<8x1xf32>
      %176 = vector.broadcast %175 : vector<8x1xf32> to vector<8x32xf32>
      %177 = arith.mulf %172, %176 : vector<8x32xf32>
      %178 = tpu.concatenate %159, %165, %171, %177 in 1 : vector<8x32xf32>, vector<8x32xf32>, vector<8x32xf32>, vector<8x32xf32> -> vector<8x128xf32>
      %179 = arith.truncf %178 : vector<8x128xf32> to vector<8x128xbf16>
      %c0_107 = arith.constant 0 : index
      %c0_108 = arith.constant 0 : index
      %c0_109 = arith.constant 0 : index
      %180 = vector.load %arg7[%c0_107, %c0_108, %c0_109] : memref<1x8x128xbf16, #tpu.memory_space<vmem>>, vector<1x8x128xbf16>
      %181 = vector.shape_cast %180 : vector<1x8x128xbf16> to vector<8x128xbf16>
      %182 = vector.shape_cast %179 : vector<8x128xbf16> to vector<1x8x128xbf16>
      tpu.vector_store %arg7[%c0_107, %c0_108, %c0_109], %182 {strides = array<i32>} : memref<1x8x128xbf16, #tpu.memory_space<vmem>>, vector<1x8x128xbf16>,
    } else {
    }
    return
  }
  func.func @transform_0(%arg0: i32, %arg1: i32, %arg2: i32) -> (i32, i32, i32) {
    %c0_i32 = arith.constant 0 : i32
    %c0_i32_0 = arith.constant 0 : i32
    return %arg0, %arg1, %c0_i32 : i32, i32, i32
  }
  func.func @transform_1(%arg0: i32, %arg1: i32, %arg2: i32) -> (i32, i32, i32) {
    %c0_i32 = arith.constant 0 : i32
    %c0_i32_0 = arith.constant 0 : i32
    return %arg0, %arg2, %c0_i32 : i32, i32, i32
  }
  func.func @transform_2(%arg0: i32, %arg1: i32, %arg2: i32) -> (i32, i32, i32) {
    %c1_i32 = arith.constant 1 : i32
    %c0_i32 = arith.constant 0 : i32
    return %arg0, %arg2, %c1_i32 : i32, i32, i32
  }
  func.func @transform_3(%arg0: i32, %arg1: i32, %arg2: i32) -> (i32, i32, i32) {
    %c0_i32 = arith.constant 0 : i32
    %c0_i32_0 = arith.constant 0 : i32
    return %arg0, %c0_i32, %arg2 : i32, i32, i32
  }
  func.func @transform_4(%arg0: i32, %arg1: i32, %arg2: i32) -> (i32, i32, i32) {
    %c0_i32 = arith.constant 0 : i32
    %c0_i32_0 = arith.constant 0 : i32
    return %arg0, %arg1, %c0_i32 : i32, i32, i32
  }
}

module attributes {stable_mosaic.version = 11 : i64} {
  func.func @_linear_kernel(%arg0: i32, %arg1: i32, %arg2: i32, %arg3: memref<16x128xbf16, #tpu.memory_space<vmem>>, %arg4: memref<128x128xbf16, #tpu.memory_space<vmem>>, %arg5: memref<1x128xf32, #tpu.memory_space<vmem>>, %arg6: memref<16x128xbf16, #tpu.memory_space<vmem>>, %arg7: memref<16x128xf32, #tpu.memory_space<vmem>>) attributes {dimension_semantics = [#tpu.dimension_semantics<parallel>, #tpu.dimension_semantics<parallel>, #tpu.dimension_semantics<arbitrary>], iteration_bounds = array<i64: 1, 1, 1>, scalar_prefetch = 0 : i64, scratch_operands = 1 : i64, tpu.core_type = #tpu.core_type<tc>, window_params = [{transform_indices = @transform_0, window_bounds = array<i64: 16, 128>}, {transform_indices = @transform_1, window_bounds = array<i64: 128, 128>}, {transform_indices = @transform_2, window_bounds = array<i64: 1, 128>}, {transform_indices = @transform_3, window_bounds = array<i64: 16, 128>}]} {
    %c0_i32 = arith.constant 0 : i32
    %0 = arith.cmpi eq, %arg2, %c0_i32 : i32
    %1 = arith.extui %0 : i1 to i32
    %c0_i32_0 = arith.constant 0 : i32
    %2 = arith.cmpi ne, %1, %c0_i32_0 : i32
    scf.if %2 {
      %cst_10 = arith.constant 0.000000e+00 : f32
      %12 = vector.broadcast %cst_10 : f32 to vector<16x128xf32>
      %c0_11 = arith.constant 0 : index
      %c0_12 = arith.constant 0 : index
      %13 = vector.load %arg7[%c0_11, %c0_12] : memref<16x128xf32, #tpu.memory_space<vmem>>, vector<16x128xf32>
      tpu.vector_store %arg7[%c0_11, %c0_12], %12 {strides = array<i32>} : memref<16x128xf32, #tpu.memory_space<vmem>>, vector<16x128xf32>,
    } else {
    }
    %c0 = arith.constant 0 : index
    %c0_1 = arith.constant 0 : index
    %3 = vector.load %arg7[%c0, %c0_1] : memref<16x128xf32, #tpu.memory_space<vmem>>, vector<16x128xf32>
    %c0_2 = arith.constant 0 : index
    %c0_3 = arith.constant 0 : index
    %4 = vector.load %arg3[%c0_2, %c0_3] : memref<16x128xbf16, #tpu.memory_space<vmem>>, vector<16x128xbf16>
    %c0_4 = arith.constant 0 : index
    %c0_5 = arith.constant 0 : index
    %5 = vector.load %arg4[%c0_4, %c0_5] : memref<128x128xbf16, #tpu.memory_space<vmem>>, vector<128x128xbf16>
    %cst = arith.constant dense<0.000000e+00> : vector<16x128xf32>
    %6 = tpu.matmul %4, %5, %cst {dimension_numbers = #tpu.dot_dimension_numbers<[1], [0], [0], [1], [0, 0, 1, 1], [], []>} : vector<16x128xbf16>, vector<128x128xbf16>, vector<16x128xf32> -> vector<16x128xf32>
    %7 = arith.addf %3, %6 : vector<16x128xf32>
    %c0_6 = arith.constant 0 : index
    %c0_7 = arith.constant 0 : index
    %8 = vector.load %arg7[%c0_6, %c0_7] : memref<16x128xf32, #tpu.memory_space<vmem>>, vector<16x128xf32>
    tpu.vector_store %arg7[%c0_6, %c0_7], %7 {strides = array<i32>} : memref<16x128xf32, #tpu.memory_space<vmem>>, vector<16x128xf32>,
    %c0_i32_8 = arith.constant 0 : i32
    %9 = arith.cmpi eq, %arg2, %c0_i32_8 : i32
    %10 = arith.extui %9 : i1 to i32
    %c0_i32_9 = arith.constant 0 : i32
    %11 = arith.cmpi ne, %10, %c0_i32_9 : i32
    scf.if %11 {
      %c0_10 = arith.constant 0 : index
      %c0_11 = arith.constant 0 : index
      %12 = vector.load %arg7[%c0_10, %c0_11] : memref<16x128xf32, #tpu.memory_space<vmem>>, vector<16x128xf32>
      %c0_12 = arith.constant 0 : index
      %c0_13 = arith.constant 0 : index
      %13 = vector.load %arg5[%c0_12, %c0_13] : memref<1x128xf32, #tpu.memory_space<vmem>>, vector<1x128xf32>
      %14 = vector.broadcast %13 : vector<1x128xf32> to vector<16x128xf32>
      %15 = arith.addf %12, %14 : vector<16x128xf32>
      %16 = math.tanh %15 : vector<16x128xf32>
      %17 = arith.truncf %16 : vector<16x128xf32> to vector<16x128xbf16>
      %c0_14 = arith.constant 0 : index
      %c0_15 = arith.constant 0 : index
      %18 = vector.load %arg6[%c0_14, %c0_15] : memref<16x128xbf16, #tpu.memory_space<vmem>>, vector<16x128xbf16>
      tpu.vector_store %arg6[%c0_14, %c0_15], %17 {strides = array<i32>} : memref<16x128xbf16, #tpu.memory_space<vmem>>, vector<16x128xbf16>,
    } else {
    }
    return
  }
  func.func @transform_0(%arg0: i32, %arg1: i32, %arg2: i32) -> (i32, i32) {
    %c0_i32 = arith.constant 0 : i32
    return %arg0, %arg2 : i32, i32
  }
  func.func @transform_1(%arg0: i32, %arg1: i32, %arg2: i32) -> (i32, i32) {
    %c0_i32 = arith.constant 0 : i32
    return %arg2, %arg1 : i32, i32
  }
  func.func @transform_2(%arg0: i32, %arg1: i32, %arg2: i32) -> (i32, i32) {
    %c0_i32 = arith.constant 0 : i32
    %c0_i32_0 = arith.constant 0 : i32
    return %c0_i32, %arg1 : i32, i32
  }
  func.func @transform_3(%arg0: i32, %arg1: i32, %arg2: i32) -> (i32, i32) {
    %c0_i32 = arith.constant 0 : i32
    return %arg0, %arg1 : i32, i32
  }
}

module attributes {stable_mosaic.version = 11 : i64} {
  func.func @_ffn_ln_kernel(%arg0: i32, %arg1: i32, %arg2: memref<16x128xbf16, #tpu.memory_space<vmem>>, %arg3: memref<128x256xbf16, #tpu.memory_space<vmem>>, %arg4: memref<1x256xf32, #tpu.memory_space<vmem>>, %arg5: memref<256x128xbf16, #tpu.memory_space<vmem>>, %arg6: memref<1x128xf32, #tpu.memory_space<vmem>>, %arg7: memref<1x128xf32, #tpu.memory_space<vmem>>, %arg8: memref<1x128xf32, #tpu.memory_space<vmem>>, %arg9: memref<16x128xbf16, #tpu.memory_space<vmem>>, %arg10: memref<16x128xf32, #tpu.memory_space<vmem>>) attributes {dimension_semantics = [#tpu.dimension_semantics<parallel>, #tpu.dimension_semantics<arbitrary>], iteration_bounds = array<i64: 1, 1>, scalar_prefetch = 0 : i64, scratch_operands = 1 : i64, tpu.core_type = #tpu.core_type<tc>, window_params = [{transform_indices = @transform_0, window_bounds = array<i64: 16, 128>}, {transform_indices = @transform_1, window_bounds = array<i64: 128, 256>}, {transform_indices = @transform_2, window_bounds = array<i64: 1, 256>}, {transform_indices = @transform_3, window_bounds = array<i64: 256, 128>}, {pipeline_mode = #tpu.pipeline_mode<synchronous>, transform_indices = @transform_4, window_bounds = array<i64: 1, 128>}, {pipeline_mode = #tpu.pipeline_mode<synchronous>, transform_indices = @transform_5, window_bounds = array<i64: 1, 128>}, {pipeline_mode = #tpu.pipeline_mode<synchronous>, transform_indices = @transform_6, window_bounds = array<i64: 1, 128>}, {transform_indices = @transform_7, window_bounds = array<i64: 16, 128>}]} {
    %c0_i32 = arith.constant 0 : i32
    %0 = arith.cmpi eq, %arg1, %c0_i32 : i32
    %1 = arith.extui %0 : i1 to i32
    %c0_i32_0 = arith.constant 0 : i32
    %2 = arith.cmpi ne, %1, %c0_i32_0 : i32
    scf.if %2 {
      %cst_16 = arith.constant 0.000000e+00 : f32
      %20 = vector.broadcast %cst_16 : f32 to vector<16x128xf32>
      %c0_17 = arith.constant 0 : index
      %c0_18 = arith.constant 0 : index
      %21 = vector.load %arg10[%c0_17, %c0_18] : memref<16x128xf32, #tpu.memory_space<vmem>>, vector<16x128xf32>
      tpu.vector_store %arg10[%c0_17, %c0_18], %20 {strides = array<i32>} : memref<16x128xf32, #tpu.memory_space<vmem>>, vector<16x128xf32>,
    } else {
    }
    %c0 = arith.constant 0 : index
    %c0_1 = arith.constant 0 : index
    %3 = vector.load %arg2[%c0, %c0_1] : memref<16x128xbf16, #tpu.memory_space<vmem>>, vector<16x128xbf16>
    %c0_2 = arith.constant 0 : index
    %c0_3 = arith.constant 0 : index
    %4 = vector.load %arg3[%c0_2, %c0_3] : memref<128x256xbf16, #tpu.memory_space<vmem>>, vector<128x256xbf16>
    %cst = arith.constant dense<0.000000e+00> : vector<16x256xf32>
    %5 = tpu.matmul %3, %4, %cst {dimension_numbers = #tpu.dot_dimension_numbers<[1], [0], [0], [1], [0, 0, 1, 1], [], []>} : vector<16x128xbf16>, vector<128x256xbf16>, vector<16x256xf32> -> vector<16x256xf32>
    %c0_4 = arith.constant 0 : index
    %c0_5 = arith.constant 0 : index
    %6 = vector.load %arg4[%c0_4, %c0_5] : memref<1x256xf32, #tpu.memory_space<vmem>>, vector<1x256xf32>
    %7 = vector.broadcast %6 : vector<1x256xf32> to vector<16x256xf32>
    %8 = arith.addf %5, %7 : vector<16x256xf32>
    %cst_6 = arith.constant 0.000000e+00 : f32
    %9 = vector.broadcast %cst_6 : f32 to vector<16x256xf32>
    %10 = arith.maximumf %8, %9 : vector<16x256xf32>
    %11 = arith.truncf %10 : vector<16x256xf32> to vector<16x256xbf16>
    %c0_7 = arith.constant 0 : index
    %c0_8 = arith.constant 0 : index
    %12 = vector.load %arg10[%c0_7, %c0_8] : memref<16x128xf32, #tpu.memory_space<vmem>>, vector<16x128xf32>
    %c0_9 = arith.constant 0 : index
    %c0_10 = arith.constant 0 : index
    %13 = vector.load %arg5[%c0_9, %c0_10] : memref<256x128xbf16, #tpu.memory_space<vmem>>, vector<256x128xbf16>
    %cst_11 = arith.constant dense<0.000000e+00> : vector<16x128xf32>
    %14 = tpu.matmul %11, %13, %cst_11 {dimension_numbers = #tpu.dot_dimension_numbers<[1], [0], [0], [1], [0, 0, 1, 1], [], []>} : vector<16x256xbf16>, vector<256x128xbf16>, vector<16x128xf32> -> vector<16x128xf32>
    %15 = arith.addf %12, %14 : vector<16x128xf32>
    %c0_12 = arith.constant 0 : index
    %c0_13 = arith.constant 0 : index
    %16 = vector.load %arg10[%c0_12, %c0_13] : memref<16x128xf32, #tpu.memory_space<vmem>>, vector<16x128xf32>
    tpu.vector_store %arg10[%c0_12, %c0_13], %15 {strides = array<i32>} : memref<16x128xf32, #tpu.memory_space<vmem>>, vector<16x128xf32>,
    %c0_i32_14 = arith.constant 0 : i32
    %17 = arith.cmpi eq, %arg1, %c0_i32_14 : i32
    %18 = arith.extui %17 : i1 to i32
    %c0_i32_15 = arith.constant 0 : i32
    %19 = arith.cmpi ne, %18, %c0_i32_15 : i32
    scf.if %19 {
      %c0_16 = arith.constant 0 : index
      %c0_17 = arith.constant 0 : index
      %20 = vector.load %arg10[%c0_16, %c0_17] : memref<16x128xf32, #tpu.memory_space<vmem>>, vector<16x128xf32>
      %c0_18 = arith.constant 0 : index
      %c0_19 = arith.constant 0 : index
      %21 = vector.load %arg6[%c0_18, %c0_19] : memref<1x128xf32, #tpu.memory_space<vmem>>, vector<1x128xf32>
      %22 = vector.broadcast %21 : vector<1x128xf32> to vector<16x128xf32>
      %23 = arith.addf %20, %22 : vector<16x128xf32>
      %24 = arith.extf %3 : vector<16x128xbf16> to vector<16x128xf32>
      %25 = arith.addf %23, %24 : vector<16x128xf32>
      %cst_20 = arith.constant dense<0.000000e+00> : vector<16xf32>
      %26 = vector.multi_reduction <add>, %25, %cst_20 [1] : vector<16x128xf32> to vector<16xf32>
      %27 = vector.shape_cast %26 : vector<16xf32> to vector<16x1xf32>
      %cst_21 = arith.constant 1.280000e+02 : f32
      %28 = vector.broadcast %cst_21 : f32 to vector<16x1xf32>
      %29 = arith.divf %27, %28 : vector<16x1xf32>
      %30 = vector.broadcast %29 : vector<16x1xf32> to vector<16x128xf32>
      %31 = arith.subf %25, %30 : vector<16x128xf32>
      %32 = arith.mulf %31, %31 : vector<16x128xf32>
      %cst_22 = arith.constant dense<0.000000e+00> : vector<16xf32>
      %33 = vector.multi_reduction <add>, %32, %cst_22 [1] : vector<16x128xf32> to vector<16xf32>
      %34 = vector.shape_cast %33 : vector<16xf32> to vector<16x1xf32>
      %cst_23 = arith.constant 1.280000e+02 : f32
      %35 = vector.broadcast %cst_23 : f32 to vector<16x1xf32>
      %36 = arith.divf %34, %35 : vector<16x1xf32>
      %37 = vector.broadcast %29 : vector<16x1xf32> to vector<16x128xf32>
      %38 = arith.subf %25, %37 : vector<16x128xf32>
      %cst_24 = arith.constant 9.99999974E-6 : f32
      %39 = vector.broadcast %cst_24 : f32 to vector<16x1xf32>
      %40 = arith.addf %36, %39 : vector<16x1xf32>
      %41 = math.rsqrt %40 : vector<16x1xf32>
      %42 = vector.broadcast %41 : vector<16x1xf32> to vector<16x128xf32>
      %43 = arith.mulf %38, %42 : vector<16x128xf32>
      %c0_25 = arith.constant 0 : index
      %c0_26 = arith.constant 0 : index
      %44 = vector.load %arg7[%c0_25, %c0_26] : memref<1x128xf32, #tpu.memory_space<vmem>>, vector<1x128xf32>
      %45 = vector.broadcast %44 : vector<1x128xf32> to vector<16x128xf32>
      %46 = arith.mulf %43, %45 : vector<16x128xf32>
      %c0_27 = arith.constant 0 : index
      %c0_28 = arith.constant 0 : index
      %47 = vector.load %arg8[%c0_27, %c0_28] : memref<1x128xf32, #tpu.memory_space<vmem>>, vector<1x128xf32>
      %48 = vector.broadcast %47 : vector<1x128xf32> to vector<16x128xf32>
      %49 = arith.addf %46, %48 : vector<16x128xf32>
      %50 = arith.truncf %49 : vector<16x128xf32> to vector<16x128xbf16>
      %c0_29 = arith.constant 0 : index
      %c0_30 = arith.constant 0 : index
      %51 = vector.load %arg9[%c0_29, %c0_30] : memref<16x128xbf16, #tpu.memory_space<vmem>>, vector<16x128xbf16>
      tpu.vector_store %arg9[%c0_29, %c0_30], %50 {strides = array<i32>} : memref<16x128xbf16, #tpu.memory_space<vmem>>, vector<16x128xbf16>,
    } else {
    }
    return
  }
  func.func @transform_0(%arg0: i32, %arg1: i32) -> (i32, i32) {
    %c0_i32 = arith.constant 0 : i32
    %c0_i32_0 = arith.constant 0 : i32
    return %arg0, %c0_i32 : i32, i32
  }
  func.func @transform_1(%arg0: i32, %arg1: i32) -> (i32, i32) {
    %c0_i32 = arith.constant 0 : i32
    %c0_i32_0 = arith.constant 0 : i32
    return %c0_i32, %arg1 : i32, i32
  }
  func.func @transform_2(%arg0: i32, %arg1: i32) -> (i32, i32) {
    %c0_i32 = arith.constant 0 : i32
    %c0_i32_0 = arith.constant 0 : i32
    return %c0_i32, %arg1 : i32, i32
  }
  func.func @transform_3(%arg0: i32, %arg1: i32) -> (i32, i32) {
    %c0_i32 = arith.constant 0 : i32
    %c0_i32_0 = arith.constant 0 : i32
    return %arg1, %c0_i32 : i32, i32
  }
  func.func @transform_4(%arg0: i32, %arg1: i32) -> (i32, i32) {
    %c0_i32 = arith.constant 0 : i32
    %c0_i32_0 = arith.constant 0 : i32
    %c0_i32_1 = arith.constant 0 : i32
    return %c0_i32, %c0_i32_0 : i32, i32
  }
  func.func @transform_5(%arg0: i32, %arg1: i32) -> (i32, i32) {
    %c0_i32 = arith.constant 0 : i32
    %c0_i32_0 = arith.constant 0 : i32
    %c0_i32_1 = arith.constant 0 : i32
    return %c0_i32, %c0_i32_0 : i32, i32
  }
  func.func @transform_6(%arg0: i32, %arg1: i32) -> (i32, i32) {
    %c0_i32 = arith.constant 0 : i32
    %c0_i32_0 = arith.constant 0 : i32
    %c0_i32_1 = arith.constant 0 : i32
    return %c0_i32, %c0_i32_0 : i32, i32
  }
  func.func @transform_7(%arg0: i32, %arg1: i32) -> (i32, i32) {
    %c0_i32 = arith.constant 0 : i32
    %c0_i32_0 = arith.constant 0 : i32
    return %arg0, %c0_i32 : i32, i32
  }
}

module attributes {stable_mosaic.version = 11 : i64} {
  func.func @_lmce_kernel(%arg0: i32, %arg1: i32, %arg2: memref<16x128xbf16, #tpu.memory_space<vmem>>, %arg3: memref<128x256xbf16, #tpu.memory_space<vmem>>, %arg4: memref<16x1xi32, #tpu.memory_space<vmem>>, %arg5: memref<16x1xf32, #tpu.memory_space<vmem>>, %arg6: memref<16x1xf32, #tpu.memory_space<vmem>>, %arg7: memref<16x1xf32, #tpu.memory_space<vmem>>, %arg8: memref<16x1xf32, #tpu.memory_space<vmem>>) attributes {dimension_semantics = [#tpu.dimension_semantics<parallel>, #tpu.dimension_semantics<arbitrary>], iteration_bounds = array<i64: 1, 1>, scalar_prefetch = 0 : i64, scratch_operands = 3 : i64, tpu.core_type = #tpu.core_type<tc>, window_params = [{transform_indices = @transform_0, window_bounds = array<i64: 16, 128>}, {transform_indices = @transform_1, window_bounds = array<i64: 128, 256>}, {transform_indices = @transform_2, window_bounds = array<i64: 16, 1>}, {transform_indices = @transform_3, window_bounds = array<i64: 16, 1>}]} {
    %c0_i32 = arith.constant 0 : i32
    %0 = arith.cmpi eq, %arg1, %c0_i32 : i32
    %1 = arith.extui %0 : i1 to i32
    %c0_i32_0 = arith.constant 0 : i32
    %2 = arith.cmpi ne, %1, %c0_i32_0 : i32
    scf.if %2 {
      %cst_26 = arith.constant 0xFF800000 : f32
      %40 = vector.broadcast %cst_26 : f32 to vector<16x1xf32>
      %c0_27 = arith.constant 0 : index
      %c0_28 = arith.constant 0 : index
      %41 = vector.load %arg6[%c0_27, %c0_28] : memref<16x1xf32, #tpu.memory_space<vmem>>, vector<16x1xf32>
      tpu.vector_store %arg6[%c0_27, %c0_28], %40 {strides = array<i32>} : memref<16x1xf32, #tpu.memory_space<vmem>>, vector<16x1xf32>,
      %cst_29 = arith.constant 0.000000e+00 : f32
      %42 = vector.broadcast %cst_29 : f32 to vector<16x1xf32>
      %c0_30 = arith.constant 0 : index
      %c0_31 = arith.constant 0 : index
      %43 = vector.load %arg7[%c0_30, %c0_31] : memref<16x1xf32, #tpu.memory_space<vmem>>, vector<16x1xf32>
      tpu.vector_store %arg7[%c0_30, %c0_31], %42 {strides = array<i32>} : memref<16x1xf32, #tpu.memory_space<vmem>>, vector<16x1xf32>,
      %cst_32 = arith.constant 0.000000e+00 : f32
      %44 = vector.broadcast %cst_32 : f32 to vector<16x1xf32>
      %c0_33 = arith.constant 0 : index
      %c0_34 = arith.constant 0 : index
      %45 = vector.load %arg8[%c0_33, %c0_34] : memref<16x1xf32, #tpu.memory_space<vmem>>, vector<16x1xf32>
      tpu.vector_store %arg8[%c0_33, %c0_34], %44 {strides = array<i32>} : memref<16x1xf32, #tpu.memory_space<vmem>>, vector<16x1xf32>,
    } else {
    }
    %c0 = arith.constant 0 : index
    %c0_1 = arith.constant 0 : index
    %3 = vector.load %arg2[%c0, %c0_1] : memref<16x128xbf16, #tpu.memory_space<vmem>>, vector<16x128xbf16>
    %c0_2 = arith.constant 0 : index
    %c0_3 = arith.constant 0 : index
    %4 = vector.load %arg3[%c0_2, %c0_3] : memref<128x256xbf16, #tpu.memory_space<vmem>>, vector<128x256xbf16>
    %cst = arith.constant dense<0.000000e+00> : vector<16x256xf32>
    %5 = tpu.matmul %3, %4, %cst {dimension_numbers = #tpu.dot_dimension_numbers<[1], [0], [0], [1], [0, 0, 1, 1], [], []>} : vector<16x128xbf16>, vector<128x256xbf16>, vector<16x256xf32> -> vector<16x256xf32>
    %c256_i32 = arith.constant 256 : i32
    %6 = arith.muli %arg1, %c256_i32 : i32
    %7 = tpu.iota {dimensions = array<i32: 1>} : vector<16x256xi32>
    %8 = vector.broadcast %6 : i32 to vector<16x256xi32>
    %9 = arith.addi %8, %7 : vector<16x256xi32>
    %c0_4 = arith.constant 0 : index
    %c0_5 = arith.constant 0 : index
    %10 = vector.load %arg8[%c0_4, %c0_5] : memref<16x1xf32, #tpu.memory_space<vmem>>, vector<16x1xf32>
    %c0_6 = arith.constant 0 : index
    %c0_7 = arith.constant 0 : index
    %11 = vector.load %arg4[%c0_6, %c0_7] : memref<16x1xi32, #tpu.memory_space<vmem>>, vector<16x1xi32>
    %12 = vector.broadcast %11 : vector<16x1xi32> to vector<16x256xi32>
    %13 = arith.cmpi eq, %9, %12 : vector<16x256xi32>
    %cst_8 = arith.constant 0.000000e+00 : f32
    %14 = vector.broadcast %cst_8 : f32 to vector<16x256xf32>
    %15 = arith.select %13, %5, %14 : vector<16x256xi1>, vector<16x256xf32>
    %cst_9 = arith.constant dense<0.000000e+00> : vector<16xf32>
    %16 = vector.multi_reduction <add>, %15, %cst_9 [1] : vector<16x256xf32> to vector<16xf32>
    %17 = vector.shape_cast %16 : vector<16xf32> to vector<16x1xf32>
    %18 = arith.addf %10, %17 : vector<16x1xf32>
    %c0_10 = arith.constant 0 : index
    %c0_11 = arith.constant 0 : index
    %19 = vector.load %arg8[%c0_10, %c0_11] : memref<16x1xf32, #tpu.memory_space<vmem>>, vector<16x1xf32>
    tpu.vector_store %arg8[%c0_10, %c0_11], %18 {strides = array<i32>} : memref<16x1xf32, #tpu.memory_space<vmem>>, vector<16x1xf32>,
    %c0_12 = arith.constant 0 : index
    %c0_13 = arith.constant 0 : index
    %20 = vector.load %arg6[%c0_12, %c0_13] : memref<16x1xf32, #tpu.memory_space<vmem>>, vector<16x1xf32>
    %cst_14 = arith.constant dense<0xFF800000> : vector<16xf32>
    %21 = vector.multi_reduction <maximumf>, %5, %cst_14 [1] : vector<16x256xf32> to vector<16xf32>
    %22 = vector.shape_cast %21 : vector<16xf32> to vector<16x1xf32>
    %23 = arith.maximumf %20, %22 : vector<16x1xf32>
    %c0_15 = arith.constant 0 : index
    %c0_16 = arith.constant 0 : index
    %24 = vector.load %arg7[%c0_15, %c0_16] : memref<16x1xf32, #tpu.memory_space<vmem>>, vector<16x1xf32>
    %c0_17 = arith.constant 0 : index
    %c0_18 = arith.constant 0 : index
    %25 = vector.load %arg6[%c0_17, %c0_18] : memref<16x1xf32, #tpu.memory_space<vmem>>, vector<16x1xf32>
    %26 = arith.subf %25, %23 : vector<16x1xf32>
    %27 = math.exp %26 : vector<16x1xf32>
    %28 = arith.mulf %24, %27 : vector<16x1xf32>
    %29 = vector.broadcast %23 : vector<16x1xf32> to vector<16x256xf32>
    %30 = arith.subf %5, %29 : vector<16x256xf32>
    %31 = math.exp %30 : vector<16x256xf32>
    %cst_19 = arith.constant dense<0.000000e+00> : vector<16xf32>
    %32 = vector.multi_reduction <add>, %31, %cst_19 [1] : vector<16x256xf32> to vector<16xf32>
    %33 = vector.shape_cast %32 : vector<16xf32> to vector<16x1xf32>
    %34 = arith.addf %28, %33 : vector<16x1xf32>
    %c0_20 = arith.constant 0 : index
    %c0_21 = arith.constant 0 : index
    %35 = vector.load %arg7[%c0_20, %c0_21] : memref<16x1xf32, #tpu.memory_space<vmem>>, vector<16x1xf32>
    tpu.vector_store %arg7[%c0_20, %c0_21], %34 {strides = array<i32>} : memref<16x1xf32, #tpu.memory_space<vmem>>, vector<16x1xf32>,
    %c0_22 = arith.constant 0 : index
    %c0_23 = arith.constant 0 : index
    %36 = vector.load %arg6[%c0_22, %c0_23] : memref<16x1xf32, #tpu.memory_space<vmem>>, vector<16x1xf32>
    tpu.vector_store %arg6[%c0_22, %c0_23], %23 {strides = array<i32>} : memref<16x1xf32, #tpu.memory_space<vmem>>, vector<16x1xf32>,
    %c0_i32_24 = arith.constant 0 : i32
    %37 = arith.cmpi eq, %arg1, %c0_i32_24 : i32
    %38 = arith.extui %37 : i1 to i32
    %c0_i32_25 = arith.constant 0 : i32
    %39 = arith.cmpi ne, %38, %c0_i32_25 : i32
    scf.if %39 {
      %c0_26 = arith.constant 0 : index
      %c0_27 = arith.constant 0 : index
      %40 = vector.load %arg6[%c0_26, %c0_27] : memref<16x1xf32, #tpu.memory_space<vmem>>, vector<16x1xf32>
      %c0_28 = arith.constant 0 : index
      %c0_29 = arith.constant 0 : index
      %41 = vector.load %arg7[%c0_28, %c0_29] : memref<16x1xf32, #tpu.memory_space<vmem>>, vector<16x1xf32>
      %42 = math.log %41 : vector<16x1xf32>
      %43 = arith.addf %40, %42 : vector<16x1xf32>
      %c0_30 = arith.constant 0 : index
      %c0_31 = arith.constant 0 : index
      %44 = vector.load %arg8[%c0_30, %c0_31] : memref<16x1xf32, #tpu.memory_space<vmem>>, vector<16x1xf32>
      %45 = arith.subf %43, %44 : vector<16x1xf32>
      %c0_32 = arith.constant 0 : index
      %c0_33 = arith.constant 0 : index
      %46 = vector.load %arg5[%c0_32, %c0_33] : memref<16x1xf32, #tpu.memory_space<vmem>>, vector<16x1xf32>
      tpu.vector_store %arg5[%c0_32, %c0_33], %45 {strides = array<i32>} : memref<16x1xf32, #tpu.memory_space<vmem>>, vector<16x1xf32>,
    } else {
    }
    return
  }
  func.func @transform_0(%arg0: i32, %arg1: i32) -> (i32, i32) {
    %c0_i32 = arith.constant 0 : i32
    %c0_i32_0 = arith.constant 0 : i32
    return %arg0, %c0_i32 : i32, i32
  }
  func.func @transform_1(%arg0: i32, %arg1: i32) -> (i32, i32) {
    %c0_i32 = arith.constant 0 : i32
    %c0_i32_0 = arith.constant 0 : i32
    return %c0_i32, %arg1 : i32, i32
  }
  func.func @transform_2(%arg0: i32, %arg1: i32) -> (i32, i32) {
    %c0_i32 = arith.constant 0 : i32
    %c0_i32_0 = arith.constant 0 : i32
    return %arg0, %c0_i32 : i32, i32
  }
  func.func @transform_3(%arg0: i32, %arg1: i32) -> (i32, i32) {
    %c0_i32 = arith.constant 0 : i32
    %c0_i32_0 = arith.constant 0 : i32
    return %arg0, %c0_i32 : i32, i32
  }
}

</mosaic_0001>

<llo_original>
// kernel: refine_seq2seq_forward.19
$region0: #{refine_seq2seq_forward.19}
  #allocation0 [shape = 'u32[]', space=smem, size = 0x4, offset = 0x4, fixed_abs, tag = 'smem constant byte address 0x4 - core index']
  #allocation1 [shape = 'u32[144,128]{1,0:T(1,128)}', space=vmem, size = 0x12000, scoped, tag = 'internal scratch']
  %s0 = inlined_call_operand.vmem [shape: bf16[32,128], index: 0, kind: input, shape index: {}]
  %s1 = inlined_call_operand.vmem [shape: bf16[32,128], index: 1, kind: input, shape index: {}]
  %s2 = inlined_call_operand.vmem [shape: f32[1,128], index: 2, kind: input, shape index: {}]
  %s3 = inlined_call_operand.vmem [shape: f32[1,128], index: 3, kind: input, shape index: {}]
  %s4 = inlined_call_operand.vmem [shape: bf16[32,128], index: 4, kind: output, shape index: {}]
  %s5 = sld [smem:[#allocation0]]
  $region26: #{refine_seq2seq_forward.19} parent=0
    _
  %s7 = ssub.s32 1, %s5
  %s8 = scalar_select 0, %s7, %s5
  // Predicated region
  $region2: #{refine_seq2seq_forward.19} parent=0 // pred_check
    _
  $region3: #{refine_seq2seq_forward.19} parent=0 // pred_check_branch
    %10 = sbr.rel (0) target = $region5
  $region4: #{refine_seq2seq_forward.19} parent=0 // pred_region
    _
  $region5: #{refine_seq2seq_forward.19} parent=0 // pred_fallthru
    _
  // Predicated region
  $region6: #{refine_seq2seq_forward.19} parent=0 // pred_check
    _
  $region7: #{refine_seq2seq_forward.19} parent=0 // pred_check_branch
    %12 = sbr.rel (0) target = $region9
  $region8: #{refine_seq2seq_forward.19} parent=0 // pred_region
    _
  $region9: #{refine_seq2seq_forward.19} parent=0 // pred_fallthru
    _
  // Predicated region
  $region10: #{refine_seq2seq_forward.19} parent=0 // pred_check
    _
  $region11: #{refine_seq2seq_forward.19} parent=0 // pred_check_branch
    %14 = sbr.rel (0) target = $region13
  $region12: #{refine_seq2seq_forward.19} parent=0 // pred_region
    _
  $region13: #{refine_seq2seq_forward.19} parent=0 // pred_fallthru
    _
  // Predicated region
  $region14: #{refine_seq2seq_forward.19} parent=0 // pred_check
    _
  $region15: #{refine_seq2seq_forward.19} parent=0 // pred_check_branch
    %16 = sbr.rel (0) target = $region17
  $region16: #{refine_seq2seq_forward.19} parent=0 // pred_region
    _
  $region17: #{refine_seq2seq_forward.19} parent=0 // pred_fallthru
    _
  %v17 = vld [vmem:[%s0] sm:$0xf]
  %v18 = vld [vmem:[%s0 + $0x4] sm:$0xf]
  %v19 = vld [vmem:[%s0 + $0x8] sm:$0xf]
  %v20 = vld [vmem:[%s0 + $0xc] sm:$0xf]
  %v21 = vunpack.c.l.bf16 %v17
  %v22 = vunpack.c.l.bf16 %v18
  %v23 = vunpack.c.l.bf16 %v19
  %v24 = vunpack.c.l.bf16 %v20
  %v25 = vld [vmem:[%s1] sm:$0xf]
  %v26 = vld [vmem:[%s1 + $0x4] sm:$0xf]
  %v27 = vld [vmem:[%s1 + $0x8] sm:$0xf]
  %v28 = vld [vmem:[%s1 + $0xc] sm:$0xf]
  %v29 = vunpack.c.l.bf16 %v25
  %v30 = vunpack.c.l.bf16 %v26
  %v31 = vunpack.c.l.bf16 %v27
  %v32 = vunpack.c.l.bf16 %v28
  %v33 = vadd.f32 %v21, %v29
  %v34 = vadd.f32 %v22, %v30
  %v35 = vadd.f32 %v23, %v31
  %v36 = vadd.f32 %v24, %v32
  %37 = vadd.xlane.f32.xlu0 %v33
  %v38 = vpop.xlane.xlu0 %37
  %39 = vadd.xlane.f32.xlu0 %v34
  %v40 = vpop.xlane.xlu0 %39
  %41 = vadd.xlane.f32.xlu0 %v35
  %v42 = vpop.xlane.xlu0 %41
  %43 = vadd.xlane.f32.xlu0 %v36
  %v44 = vpop.xlane.xlu0 %43
  %v45 = vrcp.pop 128.0
  %v46 = vmul.f32 %v38, %v45
  %v47 = vmul.f32 %v40, %v45
  %v48 = vmul.f32 %v42, %v45
  %v49 = vmul.f32 %v44, %v45
  %v50 = vsub.f32 %v33, %v46
  %v51 = vsub.f32 %v34, %v47
  %v52 = vsub.f32 %v35, %v48
  %v53 = vsub.f32 %v36, %v49
  %v54 = vmul.f32 %v50, %v50
  %v55 = vmul.f32 %v51, %v51
  %v56 = vmul.f32 %v52, %v52
  %v57 = vmul.f32 %v53, %v53
  %58 = vadd.xlane.f32.xlu0 %v54
  %v59 = vpop.xlane.xlu0 %58
  %60 = vadd.xlane.f32.xlu0 %v55
  %v61 = vpop.xlane.xlu0 %60
  %62 = vadd.xlane.f32.xlu0 %v56
  %v63 = vpop.xlane.xlu0 %62
  %64 = vadd.xlane.f32.xlu0 %v57
  %v65 = vpop.xlane.xlu0 %64
  %v66 = vmul.f32 %v59, %v45
  %v67 = vmul.f32 %v61, %v45
  %v68 = vmul.f32 %v63, %v45
  %v69 = vmul.f32 %v65, %v45
  %v70 = vadd.f32 %v66, 1e-05
  %v71 = vadd.f32 %v67, 1e-05
  %v72 = vadd.f32 %v68, 1e-05
  %v73 = vadd.f32 %v69, 1e-05
  %v74 = vrsqrt.pop %v70
  %v75 = vrsqrt.pop %v71
  %v76 = vrsqrt.pop %v72
  %v77 = vrsqrt.pop %v73
  %v78 = vmul.f32 %v50, %v74
  %v79 = vmul.f32 %v51, %v75
  %v80 = vmul.f32 %v52, %v76
  %v81 = vmul.f32 %v53, %v77
  %v82 = vld [vmem:[%s2] sm:$0x1]
  %v84 = vlaneseq
  %v85 = vshrl.u32 %v84, 7
  %v86 = vsub.s32 0, %v85
  %v87 = vrot.slane %v82, %v86
  %v89 = vmul.f32 %v78, %v87
  %v90 = vmul.f32 %v79, %v87
  %v91 = vmul.f32 %v80, %v87
  %v92 = vmul.f32 %v81, %v87
  %v93 = vld [vmem:[%s3] sm:$0x1]
  %v95 = vlaneseq
  %v96 = vshrl.u32 %v95, 7
  %v97 = vsub.s32 0, %v96
  %v98 = vrot.slane %v93, %v97
  %v100 = vadd.f32 %v89, %v98
  %v101 = vadd.f32 %v90, %v98
  %v102 = vadd.f32 %v91, %v98
  %v103 = vadd.f32 %v92, %v98
  %v104 = vpack.c.bf16 %v101, %v100
  %v105 = vpack.c.bf16 %v103, %v102
  %v108 = vunpack.c.l.b16 %v104
  %v109 = vunpack.c.h.b16 %v104
  %v110 = vunpack.c.l.b16 %v105
  %v111 = vunpack.c.h.b16 %v105
  %v112 = vpack.c.b16 %v108, %v108
  %v113 = vpack.c.b16 %v109, %v109
  %v114 = vpack.c.b16 %v110, %v110
  %v115 = vpack.c.b16 %v111, %v111
  %120 = vst [vmem:[%s4] sm:$0xf] %v112
  %121 = vst [vmem:[%s4 + $0x4] sm:$0xf] %v113
  %122 = vst [vmem:[%s4 + $0x8] sm:$0xf] %v114
  %123 = vst [vmem:[%s4 + $0xc] sm:$0xf] %v115
  // Predicated region
  $region18: #{refine_seq2seq_forward.19} parent=0 // pred_check
    _
  $region19: #{refine_seq2seq_forward.19} parent=0 // pred_check_branch
    %125 = sbr.rel (0) target = $region21
  $region20: #{refine_seq2seq_forward.19} parent=0 // pred_region
    _
  $region21: #{refine_seq2seq_forward.19} parent=0 // pred_fallthru
    _
  // Predicated region
  $region22: #{refine_seq2seq_forward.19} parent=0 // pred_check
    _
  $region23: #{refine_seq2seq_forward.19} parent=0 // pred_check_branch
    %127 = sbr.rel (0) target = $region25
  $region24: #{refine_seq2seq_forward.19} parent=0 // pred_region
    _
  $region25: #{refine_seq2seq_forward.19} parent=0 // pred_fallthru
    _

// kernel: refine_seq2seq_forward.25
$region0: #{refine_seq2seq_forward.25}
  #allocation0 [shape = 'u32[]', space=smem, size = 0x4, offset = 0x4, fixed_abs, tag = 'smem constant byte address 0x4 - core index']
  #allocation1 [shape = 'u32[144,128]{1,0:T(1,128)}', space=vmem, size = 0x12000, scoped, tag = 'internal scratch']
  %s0 = inlined_call_operand.vmem [shape: bf16[16,128], index: 0, kind: input, shape index: {}]
  %s1 = inlined_call_operand.vmem [shape: bf16[16,128], index: 1, kind: input, shape index: {}]
  %s2 = inlined_call_operand.vmem [shape: f32[1,128], index: 2, kind: input, shape index: {}]
  %s3 = inlined_call_operand.vmem [shape: f32[1,128], index: 3, kind: input, shape index: {}]
  %s4 = inlined_call_operand.vmem [shape: bf16[16,128], index: 4, kind: output, shape index: {}]
  %s5 = sld [smem:[#allocation0]]
  $region26: #{refine_seq2seq_forward.25} parent=0
    _
  %s7 = ssub.s32 1, %s5
  %s8 = scalar_select 0, %s7, %s5
  // Predicated region
  $region2: #{refine_seq2seq_forward.25} parent=0 // pred_check
    _
  $region3: #{refine_seq2seq_forward.25} parent=0 // pred_check_branch
    %10 = sbr.rel (0) target = $region5
  $region4: #{refine_seq2seq_forward.25} parent=0 // pred_region
    _
  $region5: #{refine_seq2seq_forward.25} parent=0 // pred_fallthru
    _
  // Predicated region
  $region6: #{refine_seq2seq_forward.25} parent=0 // pred_check
    _
  $region7: #{refine_seq2seq_forward.25} parent=0 // pred_check_branch
    %12 = sbr.rel (0) target = $region9
  $region8: #{refine_seq2seq_forward.25} parent=0 // pred_region
    _
  $region9: #{refine_seq2seq_forward.25} parent=0 // pred_fallthru
    _
  // Predicated region
  $region10: #{refine_seq2seq_forward.25} parent=0 // pred_check
    _
  $region11: #{refine_seq2seq_forward.25} parent=0 // pred_check_branch
    %14 = sbr.rel (0) target = $region13
  $region12: #{refine_seq2seq_forward.25} parent=0 // pred_region
    _
  $region13: #{refine_seq2seq_forward.25} parent=0 // pred_fallthru
    _
  // Predicated region
  $region14: #{refine_seq2seq_forward.25} parent=0 // pred_check
    _
  $region15: #{refine_seq2seq_forward.25} parent=0 // pred_check_branch
    %16 = sbr.rel (0) target = $region17
  $region16: #{refine_seq2seq_forward.25} parent=0 // pred_region
    _
  $region17: #{refine_seq2seq_forward.25} parent=0 // pred_fallthru
    _
  %v17 = vld [vmem:[%s0] sm:$0xf]
  %v18 = vld [vmem:[%s0 + $0x4] sm:$0xf]
  %v19 = vunpack.c.l.bf16 %v17
  %v20 = vunpack.c.l.bf16 %v18
  %v21 = vld [vmem:[%s1] sm:$0xf]
  %v22 = vld [vmem:[%s1 + $0x4] sm:$0xf]
  %v23 = vunpack.c.l.bf16 %v21
  %v24 = vunpack.c.l.bf16 %v22
  %v25 = vadd.f32 %v19, %v23
  %v26 = vadd.f32 %v20, %v24
  %27 = vadd.xlane.f32.xlu0 %v25
  %v28 = vpop.xlane.xlu0 %27
  %29 = vadd.xlane.f32.xlu0 %v26
  %v30 = vpop.xlane.xlu0 %29
  %v31 = vrcp.pop 128.0
  %v32 = vmul.f32 %v28, %v31
  %v33 = vmul.f32 %v30, %v31
  %v34 = vsub.f32 %v25, %v32
  %v35 = vsub.f32 %v26, %v33
  %v36 = vmul.f32 %v34, %v34
  %v37 = vmul.f32 %v35, %v35
  %38 = vadd.xlane.f32.xlu0 %v36
  %v39 = vpop.xlane.xlu0 %38
  %40 = vadd.xlane.f32.xlu0 %v37
  %v41 = vpop.xlane.xlu0 %40
  %v42 = vmul.f32 %v39, %v31
  %v43 = vmul.f32 %v41, %v31
  %v44 = vadd.f32 %v42, 1e-05
  %v45 = vadd.f32 %v43, 1e-05
  %v46 = vrsqrt.pop %v44
  %v47 = vrsqrt.pop %v45
  %v48 = vmul.f32 %v34, %v46
  %v49 = vmul.f32 %v35, %v47
  %v50 = vld [vmem:[%s2] sm:$0x1]
  %v52 = vlaneseq
  %v53 = vshrl.u32 %v52, 7
  %v54 = vsub.s32 0, %v53
  %v55 = vrot.slane %v50, %v54
  %v57 = vmul.f32 %v48, %v55
  %v58 = vmul.f32 %v49, %v55
  %v59 = vld [vmem:[%s3] sm:$0x1]
  %v61 = vlaneseq
  %v62 = vshrl.u32 %v61, 7
  %v63 = vsub.s32 0, %v62
  %v64 = vrot.slane %v59, %v63
  %v66 = vadd.f32 %v57, %v64
  %v67 = vadd.f32 %v58, %v64
  %v68 = vpack.c.bf16 %v67, %v66
  %v70 = vunpack.c.l.b16 %v68
  %v71 = vunpack.c.h.b16 %v68
  %v72 = vpack.c.b16 %v70, %v70
  %v73 = vpack.c.b16 %v71, %v71
  %76 = vst [vmem:[%s4] sm:$0xf] %v72
  %77 = vst [vmem:[%s4 + $0x4] sm:$0xf] %v73
  // Predicated region
  $region18: #{refine_seq2seq_forward.25} parent=0 // pred_check
    _
  $region19: #{refine_seq2seq_forward.25} parent=0 // pred_check_branch
    %79 = sbr.rel (0) target = $region21
  $region20: #{refine_seq2seq_forward.25} parent=0 // pred_region
    _
  $region21: #{refine_seq2seq_forward.25} parent=0 // pred_fallthru
    _
  // Predicated region
  $region22: #{refine_seq2seq_forward.25} parent=0 // pred_check
    _
  $region23: #{refine_seq2seq_forward.25} parent=0 // pred_check_branch
    %81 = sbr.rel (0) target = $region25
  $region24: #{refine_seq2seq_forward.25} parent=0 // pred_region
    _
  $region25: #{refine_seq2seq_forward.25} parent=0 // pred_fallthru
    _

// kernel: refine_seq2seq_forward.26
$region0: #{refine_seq2seq_forward.26}
  #allocation0 [shape = 'u32[]', space=smem, size = 0x4, offset = 0x4, fixed_abs, tag = 'smem constant byte address 0x4 - core index']
  #allocation1 [shape = 'u32[144,128]{1,0:T(1,128)}', space=vmem, size = 0x12000, scoped, tag = 'internal scratch']
  #allocation2 [shape = 'f32[16,384]{1,0:T(8,128)}', space=vmem, size = 0x6000, scoped, tag = 'scratch operand']
  %s0 = inlined_call_operand.vmem [shape: bf16[16,128], index: 0, kind: input, shape index: {}]
  %s1 = inlined_call_operand.vmem [shape: bf16[128,384], index: 1, kind: input, shape index: {}]
  %s2 = inlined_call_operand.vmem [shape: f32[1,384], index: 2, kind: input, shape index: {}]
  %s3 = inlined_call_operand.vmem [shape: bf16[16,384], index: 3, kind: output, shape index: {}]
  %s4 = sld [smem:[#allocation0]]
  $region30: #{refine_seq2seq_forward.26} parent=0
    _
  %s6 = ssub.s32 1, %s4
  %s7 = scalar_select 0, %s6, %s4
  // Predicated region
  $region2: #{refine_seq2seq_forward.26} parent=0 // pred_check
    _
  $region3: #{refine_seq2seq_forward.26} parent=0 // pred_check_branch
    %9 = sbr.rel (0) target = $region5
  $region4: #{refine_seq2seq_forward.26} parent=0 // pred_region
    _
  $region5: #{refine_seq2seq_forward.26} parent=0 // pred_fallthru
    _
  // Predicated region
  $region6: #{refine_seq2seq_forward.26} parent=0 // pred_check
    _
  $region7: #{refine_seq2seq_forward.26} parent=0 // pred_check_branch
    %11 = sbr.rel (0) target = $region9
  $region8: #{refine_seq2seq_forward.26} parent=0 // pred_region
    _
  $region9: #{refine_seq2seq_forward.26} parent=0 // pred_fallthru
    _
  // Predicated region
  $region10: #{refine_seq2seq_forward.26} parent=0 // pred_check
    _
  $region11: #{refine_seq2seq_forward.26} parent=0 // pred_check_branch
    %13 = sbr.rel (0) target = $region13
  $region12: #{refine_seq2seq_forward.26} parent=0 // pred_region
    _
  $region13: #{refine_seq2seq_forward.26} parent=0 // pred_fallthru
    _
  %p15 = scmp.eq.s32.totalorder 0, 0
  // Predicated region
  $region14: #{refine_seq2seq_forward.26} parent=0 // pred_check
    %p16 = pneg %p15
  $region15: #{refine_seq2seq_forward.26} parent=0 // pred_check_branch
    %18 = sbr.rel (%p16) target = $region17
  $region16: #{refine_seq2seq_forward.26} parent=0 // pred_region
    %19 = vst [vmem:[#allocation2] sm:$0xff] 0.0
    %20 = vst [vmem:[#allocation2 + $0x8] sm:$0xff] 0.0
    %21 = vst [vmem:[#allocation2 + $0x10] sm:$0xff] 0.0
    %22 = vst [vmem:[#allocation2 + $0x18] sm:$0xff] 0.0
    %23 = vst [vmem:[#allocation2 + $0x20] sm:$0xff] 0.0
    %24 = vst [vmem:[#allocation2 + $0x28] sm:$0xff] 0.0
  $region17: #{refine_seq2seq_forward.26} parent=0 // pred_fallthru
    _
  %v25 = vld [vmem:[#allocation2] sm:$0xff]
  %v26 = vld [vmem:[#allocation2 + $0x8] sm:$0xff]
  %v27 = vld [vmem:[#allocation2 + $0x10] sm:$0xff]
  %v28 = vld [vmem:[#allocation2 + $0x18] sm:$0xff]
  %v29 = vld [vmem:[#allocation2 + $0x20] sm:$0xff]
  %v30 = vld [vmem:[#allocation2 + $0x28] sm:$0xff]
  %v31 = vld [vmem:[%s0] sm:$0xf]
  %v32 = vld [vmem:[%s0 + $0x4] sm:$0xf]
  %v33 = vld [vmem:[%s1] sm:$0xff]
  %v34 = vld [vmem:[%s1 + $0x8] sm:$0xf]
  %v35 = vld [vmem:[%s1 + $0xc] sm:$0xff]
  %v36 = vld [vmem:[%s1 + $0x14] sm:$0xf]
  %v37 = vld [vmem:[%s1 + $0x18] sm:$0xff]
  %v38 = vld [vmem:[%s1 + $0x20] sm:$0xf]
  %v39 = vld [vmem:[%s1 + $0x24] sm:$0xff]
  %v40 = vld [vmem:[%s1 + $0x2c] sm:$0xf]
  %v41 = vld [vmem:[%s1 + $0x30] sm:$0xff]
  %v42 = vld [vmem:[%s1 + $0x38] sm:$0xf]
  %v43 = vld [vmem:[%s1 + $0x3c] sm:$0xff]
  %v44 = vld [vmem:[%s1 + $0x44] sm:$0xf]
  %v45 = vld [vmem:[%s1 + $0x48] sm:$0xff]
  %v46 = vld [vmem:[%s1 + $0x50] sm:$0xf]
  %v47 = vld [vmem:[%s1 + $0x54] sm:$0xff]
  %v48 = vld [vmem:[%s1 + $0x5c] sm:$0xf]
  %v49 = vld [vmem:[%s1 + $0x60] sm:$0xff]
  %v50 = vld [vmem:[%s1 + $0x68] sm:$0xf]
  %v51 = vld [vmem:[%s1 + $0x6c] sm:$0xff]
  %v52 = vld [vmem:[%s1 + $0x74] sm:$0xf]
  %v53 = vld [vmem:[%s1 + $0x78] sm:$0xff]
  %v54 = vld [vmem:[%s1 + $0x80] sm:$0xf]
  %v55 = vld [vmem:[%s1 + $0x84] sm:$0xff]
  %v56 = vld [vmem:[%s1 + $0x8c] sm:$0xf]
  %v57 = vld [vmem:[%s1 + $0x90] sm:$0xff]
  %v58 = vld [vmem:[%s1 + $0x98] sm:$0xf]
  %v59 = vld [vmem:[%s1 + $0x9c] sm:$0xff]
  %v60 = vld [vmem:[%s1 + $0xa4] sm:$0xf]
  %v61 = vld [vmem:[%s1 + $0xa8] sm:$0xff]
  %v62 = vld [vmem:[%s1 + $0xb0] sm:$0xf]
  %v63 = vld [vmem:[%s1 + $0xb4] sm:$0xff]
  %v64 = vld [vmem:[%s1 + $0xbc] sm:$0xf]
  %v67 = vunpack.c.l.b16 %v31
  %v68 = vunpack.c.l.b16 %v32
  %v69 = vpack.c.b16 %v68, %v67
  %v103 = vunpack.c.l.b16 %v33
  %v104 = vunpack.c.h.b16 %v33
  %v105 = vunpack.c.l.b16 %v34
  %v106 = vunpack.c.l.b16 %v35
  %v107 = vunpack.c.h.b16 %v35
  %v108 = vunpack.c.l.b16 %v36
  %v109 = vunpack.c.l.b16 %v37
  %v110 = vunpack.c.h.b16 %v37
  %v111 = vunpack.c.l.b16 %v38
  %v112 = vunpack.c.l.b16 %v39
  %v113 = vunpack.c.h.b16 %v39
  %v114 = vunpack.c.l.b16 %v40
  %v115 = vunpack.c.l.b16 %v41
  %v116 = vunpack.c.h.b16 %v41
  %v117 = vunpack.c.l.b16 %v42
  %v118 = vunpack.c.l.b16 %v43
  %v119 = vunpack.c.h.b16 %v43
  %v120 = vunpack.c.l.b16 %v44
  %v121 = vunpack.c.l.b16 %v45
  %v122 = vunpack.c.h.b16 %v45
  %v123 = vunpack.c.l.b16 %v46
  %v124 = vunpack.c.l.b16 %v47
  %v125 = vunpack.c.h.b16 %v47
  %v126 = vunpack.c.l.b16 %v48
  %v127 = vunpack.c.l.b16 %v49
  %v128 = vunpack.c.h.b16 %v49
  %v129 = vunpack.c.l.b16 %v50
  %v130 = vunpack.c.l.b16 %v51
  %v131 = vunpack.c.h.b16 %v51
  %v132 = vunpack.c.l.b16 %v52
  %v133 = vunpack.c.l.b16 %v53
  %v134 = vunpack.c.h.b16 %v53
  %v135 = vunpack.c.l.b16 %v54
  %v136 = vunpack.c.l.b16 %v55
  %v137 = vunpack.c.h.b16 %v55
  %v138 = vunpack.c.l.b16 %v56
  %v139 = vunpack.c.l.b16 %v57
  %v140 = vunpack.c.h.b16 %v57
  %v141 = vunpack.c.l.b16 %v58
  %v142 = vunpack.c.l.b16 %v59
  %v143 = vunpack.c.h.b16 %v59
  %v144 = vunpack.c.l.b16 %v60
  %v145 = vunpack.c.l.b16 %v61
  %v146 = vunpack.c.h.b16 %v61
  %v147 = vunpack.c.l.b16 %v62
  %v148 = vunpack.c.l.b16 %v63
  %v149 = vunpack.c.h.b16 %v63
  %v150 = vunpack.c.l.b16 %v64
  %v151 = vpack.c.b16 %v106, %v103
  %v152 = vpack.c.b16 %v107, %v104
  %v153 = vpack.c.b16 %v108, %v105
  %v154 = vpack.c.b16 %v112, %v109
  %v155 = vpack.c.b16 %v113, %v110
  %v156 = vpack.c.b16 %v114, %v111
  %v157 = vpack.c.b16 %v118, %v115
  %v158 = vpack.c.b16 %v119, %v116
  %v159 = vpack.c.b16 %v120, %v117
  %v160 = vpack.c.b16 %v124, %v121
  %v161 = vpack.c.b16 %v125, %v122
  %v162 = vpack.c.b16 %v126, %v123
  %v163 = vpack.c.b16 %v130, %v127
  %v164 = vpack.c.b16 %v131, %v128
  %v165 = vpack.c.b16 %v132, %v129
  %v166 = vpack.c.b16 %v136, %v133
  %v167 = vpack.c.b16 %v137, %v134
  %v168 = vpack.c.b16 %v138, %v135
  %v169 = vpack.c.b16 %v142, %v139
  %v170 = vpack.c.b16 %v143, %v140
  %v171 = vpack.c.b16 %v144, %v141
  %v172 = vpack.c.b16 %v148, %v145
  %v173 = vpack.c.b16 %v149, %v146
  %v174 = vpack.c.b16 %v150, %v147
  %199 = vmatprep.subr.bf16.mxu0 %v152
  %200 = vmatpush1.bf16.msra.mxu0 %v151
  %201 = vmatprep.subr.bf16.mxu0 %v155
  %202 = vmatpush1.bf16.msra.mxu0 %v154
  %203 = vmatprep.subr.bf16.mxu0 %v158
  %204 = vmatpush1.bf16.msra.mxu0 %v157
  %205 = vmatprep.subr.bf16.mxu0 %v161
  %206 = vmatpush1.bf16.msra.mxu0 %v160
  %207 = vmatprep.subr.bf16.mxu0 %v164
  %208 = vmatpush1.bf16.msra.mxu0 %v163
  %209 = vmatprep.subr.bf16.mxu0 %v167
  %210 = vmatpush1.bf16.msra.mxu0 %v166
  %211 = vmatprep.subr.bf16.mxu0 %v170
  %212 = vmatpush1.bf16.msra.mxu0 %v169
  %213 = vmatprep.subr.bf16.mxu0 %v173
  %214 = vmatpush1.bf16.msra.mxu0 %v172
  %215 = vmatprep.subr.bf16.mxu0 0
  %216 = vmatpush1.bf16.msra.mxu0 0
  %217 = vmatprep.subr.bf16.mxu0 0
  %218 = vmatpush1.bf16.msra.mxu0 0
  %219 = vmatprep.subr.bf16.mxu0 0
  %220 = vmatpush1.bf16.msra.mxu0 0
  %221 = vmatprep.subr.bf16.mxu0 0
  %222 = vmatpush1.bf16.msra.mxu0 0
  %223 = vmatprep.subr.bf16.mxu0 0
  %224 = vmatpush1.bf16.msra.mxu0 0
  %225 = vmatprep.subr.bf16.mxu0 0
  %226 = vmatpush1.bf16.msra.mxu0 0
  %227 = vmatprep.subr.bf16.mxu0 0
  %228 = vmatpush1.bf16.msra.mxu0 0
  %229 = vmatprep.subr.bf16.mxu0 0
  %230 = vmatpush1.bf16.msra.mxu0 0
  %231 = vmatprep.mubr.bf16.mxu0 0
  %232 = vmatmul.mubr.bf16.gmra.mrb[0].mxu0 %v69
  %v233 = vpop.f32.mrb[0].mxu0
  %v234 = vadd.f32 0.0, %v233
  %v235 = vpop.f32.mrb[0].mxu0
  %v236 = vadd.f32 0.0, %v235
  %v237 = vpop.f32.mrb[0].mxu0
  %v238 = vadd.f32 0.0, %v237
  %v239 = vpop.f32.mrb[0].mxu0
  %v240 = vadd.f32 0.0, %v239
  %241 = vdwg.mxu0
  %242 = vmatprep.subr.bf16.mxu0 0
  %243 = vmatpush1.bf16.msra.mxu0 %v153
  %244 = vmatprep.subr.bf16.mxu0 0
  %245 = vmatpush1.bf16.msra.mxu0 %v156
  %246 = vmatprep.subr.bf16.mxu0 0
  %247 = vmatpush1.bf16.msra.mxu0 %v159
  %248 = vmatprep.subr.bf16.mxu0 0
  %249 = vmatpush1.bf16.msra.mxu0 %v162
  %250 = vmatprep.subr.bf16.mxu0 0
  %251 = vmatpush1.bf16.msra.mxu0 %v165
  %252 = vmatprep.subr.bf16.mxu0 0
  %253 = vmatpush1.bf16.msra.mxu0 %v168
  %254 = vmatprep.subr.bf16.mxu0 0
  %255 = vmatpush1.bf16.msra.mxu0 %v171
  %256 = vmatprep.subr.bf16.mxu0 0
  %257 = vmatpush1.bf16.msra.mxu0 %v174
  %258 = vmatprep.subr.bf16.mxu0 0
  %259 = vmatpush1.bf16.msra.mxu0 0
  %260 = vmatprep.subr.bf16.mxu0 0
  %261 = vmatpush1.bf16.msra.mxu0 0
  %262 = vmatprep.subr.bf16.mxu0 0
  %263 = vmatpush1.bf16.msra.mxu0 0
  %264 = vmatprep.subr.bf16.mxu0 0
  %265 = vmatpush1.bf16.msra.mxu0 0
  %266 = vmatprep.subr.bf16.mxu0 0
  %267 = vmatpush1.bf16.msra.mxu0 0
  %268 = vmatprep.subr.bf16.mxu0 0
  %269 = vmatpush1.bf16.msra.mxu0 0
  %270 = vmatprep.subr.bf16.mxu0 0
  %271 = vmatpush1.bf16.msra.mxu0 0
  %272 = vmatprep.subr.bf16.mxu0 0
  %273 = vmatpush1.bf16.msra.mxu0 0
  %274 = vmatprep.mubr.bf16.mxu0 0
  %275 = vmatmul.mubr.bf16.gmra.mrb[0].mxu0 %v69
  %v276 = vpop.f32.mrb[0].mxu0
  %v277 = vadd.f32 0.0, %v276
  %v278 = vpop.f32.mrb[0].mxu0
  %v279 = vpop.f32.mrb[0].mxu0
  %v280 = vadd.f32 0.0, %v279
  %v281 = vpop.f32.mrb[0].mxu0
  %282 = vdwg.mxu0
  %v283 = vadd.f32 %v25, %v234
  %v284 = vadd.f32 %v26, %v236
  %v285 = vadd.f32 %v27, %v277
  %v286 = vadd.f32 %v28, %v238
  %v287 = vadd.f32 %v29, %v240
  %v288 = vadd.f32 %v30, %v280
  %289 = vst [vmem:[#allocation2] sm:$0xff] %v283
  %290 = vst [vmem:[#allocation2 + $0x8] sm:$0xff] %v284
  %291 = vst [vmem:[#allocation2 + $0x10] sm:$0xff] %v285
  %292 = vst [vmem:[#allocation2 + $0x18] sm:$0xff] %v286
  %293 = vst [vmem:[#allocation2 + $0x20] sm:$0xff] %v287
  %294 = vst [vmem:[#allocation2 + $0x28] sm:$0xff] %v288
  // Predicated region
  $region18: #{refine_seq2seq_forward.26} parent=0 // pred_check
    %p295 = pneg %p15
  $region19: #{refine_seq2seq_forward.26} parent=0 // pred_check_branch
    %297 = sbr.rel (%p295) target = $region21
  $region20: #{refine_seq2seq_forward.26} parent=0 // pred_region
    %v298 = vld [vmem:[#allocation2] sm:$0xff]
    %v299 = vld [vmem:[#allocation2 + $0x8] sm:$0xff]
    %v300 = vld [vmem:[#allocation2 + $0x10] sm:$0xff]
    %v301 = vld [vmem:[#allocation2 + $0x18] sm:$0xff]
    %v302 = vld [vmem:[#allocation2 + $0x20] sm:$0xff]
    %v303 = vld [vmem:[#allocation2 + $0x28] sm:$0xff]
    %v304 = vld [vmem:[%s2] sm:$0x7]
    %v306 = vlaneseq
    %v307 = vshrl.u32 %v306, 7
    %v308 = vsub.s32 0, %v307
    %v309 = vrot.slane %v304, %v308
    %v310 = vlaneseq
    %v311 = vshrl.u32 %v310, 7
    %v312 = vsub.s32 1, %v311
    %v313 = vrot.slane %v304, %v312
    %v314 = vlaneseq
    %v315 = vshrl.u32 %v314, 7
    %v316 = vsub.s32 2, %v315
    %v317 = vrot.slane %v304, %v316
    %v321 = vadd.f32 %v298, %v309
    %v322 = vadd.f32 %v299, %v313
    %v323 = vadd.f32 %v300, %v317
    %v324 = vadd.f32 %v301, %v309
    %v325 = vadd.f32 %v302, %v313
    %v326 = vadd.f32 %v303, %v317
    %v327 = vpack.c.bf16 %v324, %v321
    %v328 = vpack.c.bf16 %v325, %v322
    %v329 = vpack.c.bf16 %v326, %v323
    %v333 = vunpack.c.l.b16 %v327
    %v334 = vunpack.c.l.b16 %v328
    %v335 = vunpack.c.l.b16 %v329
    %v336 = vunpack.c.h.b16 %v327
    %v337 = vunpack.c.h.b16 %v328
    %v338 = vunpack.c.h.b16 %v329
    %v339 = vpack.c.b16 %v334, %v333
    %v340 = vpack.c.b16 %v335, %v335
    %v341 = vpack.c.b16 %v337, %v336
    %v342 = vpack.c.b16 %v338, %v338
    %347 = vst [vmem:[%s3] sm:$0xff] %v339
    %348 = vst [vmem:[%s3 + $0x8] sm:$0xf] %v340
    %349 = vst [vmem:[%s3 + $0xc] sm:$0xff] %v341
    %350 = vst [vmem:[%s3 + $0x14] sm:$0xf] %v342
  $region21: #{refine_seq2seq_forward.26} parent=0 // pred_fallthru
    _
  // Predicated region
  $region22: #{refine_seq2seq_forward.26} parent=0 // pred_check
    _
  $region23: #{refine_seq2seq_forward.26} parent=0 // pred_check_branch
    %352 = sbr.rel (0) target = $region25
  $region24: #{refine_seq2seq_forward.26} parent=0 // pred_region
    _
  $region25: #{refine_seq2seq_forward.26} parent=0 // pred_fallthru
    _
  // Predicated region
  $region26: #{refine_seq2seq_forward.26} parent=0 // pred_check
    _
  $region27: #{refine_seq2seq_forward.26} parent=0 // pred_check_branch
    %354 = sbr.rel (0) target = $region29
  $region28: #{refine_seq2seq_forward.26} parent=0 // pred_region
    _
  $region29: #{refine_seq2seq_forward.26} parent=0 // pred_fallthru
    _

// kernel: refine_seq2seq_forward.27
$region0: #{refine_seq2seq_forward.27}
  #allocation0 [shape = 'u32[]', space=smem, size = 0x4, offset = 0x4, fixed_abs, tag = 'smem constant byte address 0x4 - core index']
  #allocation1 [shape = 'u32[144,128]{1,0:T(1,128)}', space=vmem, size = 0x12000, scoped, tag = 'internal scratch']
  #allocation2 [shape = 'f32[4,8,1]{2,1,0:T(8,128)}', space=vmem, size = 0x4000, scoped, tag = 'scratch operand']
  #allocation3 [shape = 'f32[4,8,1]{2,1,0:T(8,128)}', space=vmem, size = 0x4000, scoped, tag = 'scratch operand']
  #allocation4 [shape = 'f32[8,128]{1,0:T(8,128)}', space=vmem, size = 0x1000, scoped, tag = 'scratch operand']
  %s0 = inlined_call_operand.vmem [shape: bf16[2,8,384], index: 0, kind: input, shape index: {}, may-alias: {0,1,2}]
  %s1 = inlined_call_operand.vmem [shape: bf16[2,8,384], index: 1, kind: input, shape index: {}, may-alias: {0,1,2}]
  %s2 = inlined_call_operand.vmem [shape: bf16[2,8,384], index: 2, kind: input, shape index: {}, may-alias: {0,1,2}]
  %s3 = inlined_call_operand.vmem [shape: f32[2,1,8], index: 3, kind: input, shape index: {}]
  %s4 = inlined_call_operand.vmem [shape: bf16[2,8,128], index: 4, kind: output, shape index: {}]
  %s5 = sld [smem:[#allocation0]]
  $region61: #{refine_seq2seq_forward.27} parent=0
    _
  %s7 = ssub.s32 1, %s5
  %s8 = scalar_select 0, %s7, %s5
  loop: start=0, step=1, limit=4
  $region2: #{refine_seq2seq_forward.27} parent=0 // loop_pre_header
    _
  $region3: #{refine_seq2seq_forward.27} parent=0 // loop_header
    %s10 = sphi 0, %s14
    %p11 = scmp.ge.s32.totalorder %s10, 4
    %s17 = sphi 0, %s36
    %s18 = sphi 0, %s32
    %s19 = sphi 0, %s28
    %s20 = sphi 0, %s17
    %s21 = sphi 0, %s18
    %s22 = sphi 0, %s19
    %s23 = sphi 0, %s20
    %s24 = sphi 0, %s21
    %s25 = sphi 0, %s22
    %s41 = sphi 0, %s43
    %s44 = sphi 0, %s41
    %s45 = sphi 0, %s44
    %s61 = sphi 0, %s45
    %s69 = sphi 0, %s71
    %s72 = sphi 0, %s69
    %s73 = sphi 0, %s72
    %s89 = sphi 0, %s73
    %s97 = sphi 0, %s99
    %s100 = sphi 0, %s97
    %s101 = sphi 0, %s100
    %s117 = sphi 0, %s101
    %s125 = sphi 0, %s127
    %s128 = sphi 0, %s125
    %s129 = sphi 0, %s128
    %s145 = sphi 0, %s129
    %s153 = sphi 0, %s155
    %s156 = sphi 0, %s153
    %s157 = sphi 0, %s156
    %s173 = sphi 0, %s157
  $region4: #{refine_seq2seq_forward.27} parent=0 // loop_header_branch
    %13 = sbr.rel (%p11) target = $region8
  $region5: #{refine_seq2seq_forward.27} parent=0 // loop_body
    %s15 = ssub.s32 %s10, 1
    %s16 = ssub.s32 %s10, 2
    %s26 = sadd.s32 1, %s19
    %p27 = scmp.ge.s32.totalorder %s26, 1
    %s28 = scalar_select %p27, 0, %s26
    %s29 = sadd.s32 1, %s18
    %s30 = scalar_select %p27, %s29, %s18
    %p31 = scmp.ge.s32.totalorder %s30, 1
    %s32 = scalar_select %p31, 0, %s30
    %s33 = sadd.s32 1, %s17
    %s34 = scalar_select %p31, %s33, %s17
    %p35 = scmp.ge.s32.totalorder %s34, 2
    %s36 = scalar_select %p35, 0, %s34
    %s37 = ssub.s32 %s17, %s36
    %s38 = ssub.s32 %s18, %s32
    %s39 = sor.u32 %s37, %s38
    %p40 = scmp.eq.s32.totalorder %s39, 0
    %s42 = sadd.s32 %s41, 1
    %s43 = scalar_select %p40, %s41, %s42
    %p46 = pneg %p40
    %p47 = scmp.eq.s32.totalorder %s10, 1
    %p48 = por %p46, %p47
    %p49 = scmp.ne.s32.totalorder %s41, %s44
    %p50 = scmp.eq.s32.totalorder %s10, 0
    %p51 = por %p49, %p50
    %p52 = scmp.ne.s32.totalorder %s41, %s44
    %p53 = scmp.eq.s32.totalorder %s15, 1
    %p54 = por %p52, %p53
    %p55 = scmp.ne.s32.totalorder %s44, %s45
    %p56 = scmp.eq.s32.totalorder %s15, 0
    %p57 = por %p55, %p56
    %p58 = scmp.ne.s32.totalorder %s44, %s45
    %p59 = scmp.eq.s32.totalorder %s16, 1
    %p60 = por %p58, %p59
    %p62 = scmp.ne.s32.totalorder %s45, %s61
    %p63 = scmp.eq.s32.totalorder %s16, 0
    %p64 = por %p62, %p63
    %s65 = ssub.s32 %s17, %s36
    %s66 = ssub.s32 %s19, %s28
    %s67 = sor.u32 %s65, %s66
    %p68 = scmp.eq.s32.totalorder %s67, 0
    %s70 = sadd.s32 %s69, 1
    %s71 = scalar_select %p68, %s69, %s70
    %p74 = pneg %p68
    %p75 = scmp.eq.s32.totalorder %s10, 1
    %p76 = por %p74, %p75
    %p77 = scmp.ne.s32.totalorder %s69, %s72
    %p78 = scmp.eq.s32.totalorder %s10, 0
    %p79 = por %p77, %p78
    %p80 = scmp.ne.s32.totalorder %s69, %s72
    %p81 = scmp.eq.s32.totalorder %s15, 1
    %p82 = por %p80, %p81
    %p83 = scmp.ne.s32.totalorder %s72, %s73
    %p84 = scmp.eq.s32.totalorder %s15, 0
    %p85 = por %p83, %p84
    %p86 = scmp.ne.s32.totalorder %s72, %s73
    %p87 = scmp.eq.s32.totalorder %s16, 1
    %p88 = por %p86, %p87
    %p90 = scmp.ne.s32.totalorder %s73, %s89
    %p91 = scmp.eq.s32.totalorder %s16, 0
    %p92 = por %p90, %p91
    %s93 = ssub.s32 %s17, %s36
    %s94 = ssub.s32 %s19, %s28
    %s95 = sor.u32 %s93, %s94
    %p96 = scmp.eq.s32.totalorder %s95, 0
    %s98 = sadd.s32 %s97, 1
    %s99 = scalar_select %p96, %s97, %s98
    %p102 = pneg %p96
    %p103 = scmp.eq.s32.totalorder %s10, 1
    %p104 = por %p102, %p103
    %p105 = scmp.ne.s32.totalorder %s97, %s100
    %p106 = scmp.eq.s32.totalorder %s10, 0
    %p107 = por %p105, %p106
    %p108 = scmp.ne.s32.totalorder %s97, %s100
    %p109 = scmp.eq.s32.totalorder %s15, 1
    %p110 = por %p108, %p109
    %p111 = scmp.ne.s32.totalorder %s100, %s101
    %p112 = scmp.eq.s32.totalorder %s15, 0
    %p113 = por %p111, %p112
    %p114 = scmp.ne.s32.totalorder %s100, %s101
    %p115 = scmp.eq.s32.totalorder %s16, 1
    %p116 = por %p114, %p115
    %p118 = scmp.ne.s32.totalorder %s101, %s117
    %p119 = scmp.eq.s32.totalorder %s16, 0
    %p120 = por %p118, %p119
    %s121 = ssub.s32 %s17, %s36
    %s122 = ssub.s32 %s19, %s28
    %s123 = sor.u32 %s121, %s122
    %p124 = scmp.eq.s32.totalorder %s123, 0
    %s126 = sadd.s32 %s125, 1
    %s127 = scalar_select %p124, %s125, %s126
    %p130 = pneg %p124
    %p131 = scmp.eq.s32.totalorder %s10, 1
    %p132 = por %p130, %p131
    %p133 = scmp.ne.s32.totalorder %s125, %s128
    %p134 = scmp.eq.s32.totalorder %s10, 0
    %p135 = por %p133, %p134
    %p136 = scmp.ne.s32.totalorder %s125, %s128
    %p137 = scmp.eq.s32.totalorder %s15, 1
    %p138 = por %p136, %p137
    %p139 = scmp.ne.s32.totalorder %s128, %s129
    %p140 = scmp.eq.s32.totalorder %s15, 0
    %p141 = por %p139, %p140
    %p142 = scmp.ne.s32.totalorder %s128, %s129
    %p143 = scmp.eq.s32.totalorder %s16, 1
    %p144 = por %p142, %p143
    %p146 = scmp.ne.s32.totalorder %s129, %s145
    %p147 = scmp.eq.s32.totalorder %s16, 0
    %p148 = por %p146, %p147
    %s149 = ssub.s32 %s17, %s36
    %s150 = ssub.s32 %s18, %s32
    %s151 = sor.u32 %s149, %s150
    %p152 = scmp.eq.s32.totalorder %s151, 0
    %s154 = sadd.s32 %s153, 1
    %s155 = scalar_select %p152, %s153, %s154
    %p158 = pneg %p152
    %p159 = scmp.eq.s32.totalorder %s10, 1
    %p160 = por %p158, %p159
    %p161 = scmp.ne.s32.totalorder %s153, %s156
    %p162 = scmp.eq.s32.totalorder %s10, 0
    %p163 = por %p161, %p162
    %p164 = scmp.ne.s32.totalorder %s153, %s156
    %p165 = scmp.eq.s32.totalorder %s15, 1
    %p166 = por %p164, %p165
    %p167 = scmp.ne.s32.totalorder %s156, %s157
    %p168 = scmp.eq.s32.totalorder %s15, 0
    %p169 = por %p167, %p168
    %p170 = scmp.ne.s32.totalorder %s156, %s157
    %p171 = scmp.eq.s32.totalorder %s16, 1
    %p172 = por %p170, %p171
    %p174 = scmp.ne.s32.totalorder %s157, %s173
    %p175 = scmp.eq.s32.totalorder %s16, 0
    %p176 = por %p174, %p175
    %p177 = scmp.le.s32.totalorder 1, %s10
    %p178 = scmp.lt.s32.totalorder %s10, 3
    %p179 = pnand %p177, %p178
    %p180 = pneg %p179
    // Predicated region
    $region9: #{refine_seq2seq_forward.27} parent=5 // pred_check
      _
    $region10: #{refine_seq2seq_forward.27} parent=5 // pred_check_branch
      %182 = sbr.rel (%p179) target = $region12
    $region11: #{refine_seq2seq_forward.27} parent=5 // pred_region
      %s183 = ssub.s32 %s10, 1
    $region12: #{refine_seq2seq_forward.27} parent=5 // pred_fallthru
      _
    %p184 = scmp.lt.s32.totalorder %s10, 2
    // Predicated region
    $region13: #{refine_seq2seq_forward.27} parent=5 // pred_check
      %p185 = pneg %p184
    $region14: #{refine_seq2seq_forward.27} parent=5 // pred_check_branch
      %187 = sbr.rel (%p185) target = $region16
    $region15: #{refine_seq2seq_forward.27} parent=5 // pred_region
      // Predicated region
      $region17: #{refine_seq2seq_forward.27} parent=15 // pred_check
        %p188 = pneg %p51
      $region18: #{refine_seq2seq_forward.27} parent=15 // pred_check_branch
        %190 = sbr.rel (%p188) target = $region20
      $region19: #{refine_seq2seq_forward.27} parent=15 // pred_region
        %p191 = scmp.lt.s32.totalorder %s17, 1
        %s192 = scalar_select %p191, %s17, 1
        %p193 = scmp.lt.s32.totalorder %s18, 0
        %s194 = scalar_select %p193, %s18, 0
        %s195 = smul.addr %s194, 3
        %s196 = smul.addr %s192, 3
        %s197 = sadd.s32 %s195, %s196
        %s198 = smul.addr %s197, 4
        %s199 = scalar_lea.vmem %s0, %s198
      $region20: #{refine_seq2seq_forward.27} parent=15 // pred_fallthru
        _
      // Predicated region
      $region21: #{refine_seq2seq_forward.27} parent=15 // pred_check
        %p200 = pneg %p79
      $region22: #{refine_seq2seq_forward.27} parent=15 // pred_check_branch
        %202 = sbr.rel (%p200) target = $region24
      $region23: #{refine_seq2seq_forward.27} parent=15 // pred_region
        %p203 = scmp.lt.s32.totalorder %s17, 1
        %s204 = scalar_select %p203, %s17, 1
        %p205 = scmp.lt.s32.totalorder %s19, 0
        %s206 = scalar_select %p205, %s19, 0
        %s207 = smul.addr %s206, 3
        %s208 = sadd.s32 1, %s207
        %s209 = smul.addr %s204, 3
        %s210 = sadd.s32 %s208, %s209
        %s211 = smul.addr %s210, 4
        %s212 = scalar_lea.vmem %s1, %s211
      $region24: #{refine_seq2seq_forward.27} parent=15 // pred_fallthru
        _
      // Predicated region
      $region25: #{refine_seq2seq_forward.27} parent=15 // pred_check
        %p213 = pneg %p107
      $region26: #{refine_seq2seq_forward.27} parent=15 // pred_check_branch
        %215 = sbr.rel (%p213) target = $region28
      $region27: #{refine_seq2seq_forward.27} parent=15 // pred_region
        %p216 = scmp.lt.s32.totalorder %s17, 1
        %s217 = scalar_select %p216, %s17, 1
        %p218 = scmp.lt.s32.totalorder %s19, 0
        %s219 = scalar_select %p218, %s19, 0
        %s220 = smul.addr %s219, 3
        %s221 = sadd.s32 2, %s220
        %s222 = smul.addr %s217, 3
        %s223 = sadd.s32 %s221, %s222
        %s224 = smul.addr %s223, 4
        %s225 = scalar_lea.vmem %s2, %s224
      $region28: #{refine_seq2seq_forward.27} parent=15 // pred_fallthru
        _
      // Predicated region
      $region29: #{refine_seq2seq_forward.27} parent=15 // pred_check
        %p226 = pneg %p135
      $region30: #{refine_seq2seq_forward.27} parent=15 // pred_check_branch
        %228 = sbr.rel (%p226) target = $region32
      $region31: #{refine_seq2seq_forward.27} parent=15 // pred_region
        %p229 = scmp.lt.s32.totalorder %s17, 1
        %s230 = scalar_select %p229, %s17, 1
        %p231 = scmp.lt.s32.totalorder %s19, 0
        %s232 = scalar_select %p231, %s19, 0
        %s233 = sadd.s32 %s232, %s230
        %s234 = scalar_lea.vmem %s3, %s233
      $region32: #{refine_seq2seq_forward.27} parent=15 // pred_fallthru
        _
    $region16: #{refine_seq2seq_forward.27} parent=5 // pred_fallthru
      _
    %p235 = scmp.le.s32.totalorder 1, %s10
    %p236 = scmp.lt.s32.totalorder %s10, 3
    %p237 = pnand %p235, %p236
    %p238 = pneg %p237
    // Predicated region
    $region33: #{refine_seq2seq_forward.27} parent=5 // pred_check
      _
    $region34: #{refine_seq2seq_forward.27} parent=5 // pred_check_branch
      %240 = sbr.rel (%p237) target = $region36
    $region35: #{refine_seq2seq_forward.27} parent=5 // pred_region
      %s241 = ssub.s32 %s10, 1
      %p242 = scmp.lt.s32.totalorder %s20, 1
      %s243 = scalar_select %p242, %s20, 1
      %p244 = scmp.lt.s32.totalorder %s21, 0
      %s245 = scalar_select %p244, %s21, 0
      %s246 = smul.addr %s245, 3
      %s247 = smul.addr %s243, 3
      %s248 = sadd.s32 %s246, %s247
      %s249 = smul.addr %s248, 4
      %s250 = scalar_lea.vmem %s0, %s249
      %p251 = pneg %p57
      %p252 = pneg %p54
      %p253 = scmp.lt.s32.totalorder %s20, 1
      %s254 = scalar_select %p253, %s20, 1
      %p255 = scmp.lt.s32.totalorder %s22, 0
      %s256 = scalar_select %p255, %s22, 0
      %s257 = smul.addr %s256, 3
      %s258 = sadd.s32 1, %s257
      %s259 = smul.addr %s254, 3
      %s260 = sadd.s32 %s258, %s259
      %s261 = smul.addr %s260, 4
      %s262 = scalar_lea.vmem %s1, %s261
      %p263 = pneg %p85
      %p264 = pneg %p82
      %p265 = scmp.lt.s32.totalorder %s20, 1
      %s266 = scalar_select %p265, %s20, 1
      %p267 = scmp.lt.s32.totalorder %s22, 0
      %s268 = scalar_select %p267, %s22, 0
      %s269 = smul.addr %s268, 3
      %s270 = sadd.s32 2, %s269
      %s271 = smul.addr %s266, 3
      %s272 = sadd.s32 %s270, %s271
      %s273 = smul.addr %s272, 4
      %s274 = scalar_lea.vmem %s2, %s273
      %p275 = pneg %p113
      %p276 = pneg %p110
      %p277 = scmp.lt.s32.totalorder %s20, 1
      %s278 = scalar_select %p277, %s20, 1
      %p279 = scmp.lt.s32.totalorder %s22, 0
      %s280 = scalar_select %p279, %s22, 0
      %s281 = sadd.s32 %s280, %s278
      %s282 = scalar_lea.vmem %s3, %s281
      %p283 = pneg %p141
      %p284 = pneg %p138
      %p285 = pneg %p169
      %p286 = pneg %p166
      %p287 = scmp.lt.s32.totalorder %s20, 1
      %s288 = scalar_select %p287, %s20, 1
      %p289 = scmp.lt.s32.totalorder %s21, 0
      %s290 = scalar_select %p289, %s21, 0
      %s291 = sadd.s32 %s290, %s288
      %s292 = smul.addr %s291, 4
      %s293 = scalar_lea.vmem %s4, %s292
      %p294 = scmp.lt.s32.totalorder %s20, 1
      %s295 = scalar_select %p294, %s20, 1
      %p296 = scmp.lt.s32.totalorder %s21, 0
      %s297 = scalar_select %p296, %s21, 0
      %s298 = smul.addr %s297, 3
      %s299 = smul.addr %s295, 3
      %s300 = sadd.s32 %s298, %s299
      %s301 = smul.addr %s300, 4
      %s302 = scalar_lea.vmem %s0, %s301
      %p303 = scmp.lt.s32.totalorder %s20, 1
      %s304 = scalar_select %p303, %s20, 1
      %p305 = scmp.lt.s32.totalorder %s22, 0
      %s306 = scalar_select %p305, %s22, 0
      %s307 = smul.addr %s306, 3
      %s308 = sadd.s32 1, %s307
      %s309 = smul.addr %s304, 3
      %s310 = sadd.s32 %s308, %s309
      %s311 = smul.addr %s310, 4
      %s312 = scalar_lea.vmem %s1, %s311
      %p313 = scmp.lt.s32.totalorder %s20, 1
      %s314 = scalar_select %p313, %s20, 1
      %p315 = scmp.lt.s32.totalorder %s22, 0
      %s316 = scalar_select %p315, %s22, 0
      %s317 = smul.addr %s316, 3
      %s318 = sadd.s32 2, %s317
      %s319 = smul.addr %s314, 3
      %s320 = sadd.s32 %s318, %s319
      %s321 = smul.addr %s320, 4
      %s322 = scalar_lea.vmem %s2, %s321
      %p323 = scmp.lt.s32.totalorder %s20, 1
      %s324 = scalar_select %p323, %s20, 1
      %p325 = scmp.lt.s32.totalorder %s22, 0
      %s326 = scalar_select %p325, %s22, 0
      %s327 = sadd.s32 %s326, %s324
      %s328 = scalar_lea.vmem %s3, %s327
      %p329 = scmp.lt.s32.totalorder %s20, 1
      %s330 = scalar_select %p329, %s20, 1
      %p331 = scmp.lt.s32.totalorder %s21, 0
      %s332 = scalar_select %p331, %s21, 0
      %s333 = sadd.s32 %s332, %s330
      %s334 = smul.addr %s333, 4
      %s335 = scalar_lea.vmem %s4, %s334
      %p337 = scmp.eq.s32.totalorder %s22, 0
      // Predicated region
      $region37: #{refine_seq2seq_forward.27} parent=35 // pred_check
        %p338 = pneg %p337
      $region38: #{refine_seq2seq_forward.27} parent=35 // pred_check_branch
        %340 = sbr.rel (%p338) target = $region40
      $region39: #{refine_seq2seq_forward.27} parent=35 // pred_region
        %vm341 = vcmask 7168
        %342 = vst.msk [vmem:[#allocation2] sm:$0xff] %vm341, -inf
        %343 = vst.msk [vmem:[#allocation2 + $0x8] sm:$0xff] %vm341, -inf
        %344 = vst.msk [vmem:[#allocation2 + $0x10] sm:$0xff] %vm341, -inf
        %345 = vst.msk [vmem:[#allocation2 + $0x18] sm:$0xff] %vm341, -inf
        %346 = vst.msk [vmem:[#allocation3] sm:$0xff] %vm341, 0.0
        %347 = vst.msk [vmem:[#allocation3 + $0x8] sm:$0xff] %vm341, 0.0
        %348 = vst.msk [vmem:[#allocation3 + $0x10] sm:$0xff] %vm341, 0.0
        %349 = vst.msk [vmem:[#allocation3 + $0x18] sm:$0xff] %vm341, 0.0
        %350 = vst [vmem:[#allocation4] sm:$0xff] 0.0
      $region40: #{refine_seq2seq_forward.27} parent=35 // pred_fallthru
        _
      %s351 = smul.u32 %s22, 8
      %s352 = smul.u32 %s21, 8
      %s353 = sadd.s32 %s352, 7
      %p354 = scmp.le.s32.totalorder %s351, %s353
      // Predicated region
      $region41: #{refine_seq2seq_forward.27} parent=35 // pred_check
        %p355 = pneg %p354
      $region42: #{refine_seq2seq_forward.27} parent=35 // pred_check_branch
        %357 = sbr.rel (%p355) target = $region44
      $region43: #{refine_seq2seq_forward.27} parent=35 // pred_region
        %v358 = vld [vmem:[%s302] sm:$0xf]
        %v359 = vld [vmem:[%s312] sm:$0xf]
        %v360 = vld [vmem:[%s322] sm:$0xf]
        %v361 = vld [vmem:[%s328] sm:$0x1]
        %v362 = vlaneseq
        %v363 = vshrl.u32 %v362, 7
        %v364 = vstv %s352
        %v365 = vadd.s32 %v364, %v363
        %v366 = vlaneseq
        %v367 = vand.u32 %v366, 127
        %v368 = vstv %s351
        %v369 = vadd.s32 %v368, %v367
        %vm370 = vcmp.ge.s32.totalorder %v365, %v369
        %v371 = vsel %vm370, 0.0, -10000.0
        %v373 = vlaneseq
        %v374 = vshrl.u32 %v373, 7
        %v375 = vsub.s32 0, %v374
        %v376 = vrot.slane %v361, %v375
        %v378 = vadd.f32 %v376, %v371
        %vm379 = vcmask 261120
        %v381 = vsel %vm379, %v358, 0
        %v384 = vsel %vm379, %v359, 0
        %386 = vmatprep.subr.bf16.mxu0 0
        %387 = vmatpush1.bf16.xpose.msra.mxu0 %v384
        %388 = vmatprep.subr.bf16.mxu0 0
        %389 = vmatpush1.bf16.xpose.msra.mxu0 0
        %390 = vmatprep.subr.bf16.mxu0 0
        %391 = vmatpush1.bf16.xpose.msra.mxu0 0
        %392 = vmatprep.subr.bf16.mxu0 0
        %393 = vmatpush1.bf16.xpose.msra.mxu0 0
        %394 = vmatprep.subr.bf16.mxu0 0
        %395 = vmatpush1.bf16.xpose.msra.mxu0 0
        %396 = vmatprep.subr.bf16.mxu0 0
        %397 = vmatpush1.bf16.xpose.msra.mxu0 0
        %398 = vmatprep.subr.bf16.mxu0 0
        %399 = vmatpush1.bf16.xpose.msra.mxu0 0
        %400 = vmatprep.subr.bf16.mxu0 0
        %401 = vmatpush1.bf16.xpose.msra.mxu0 0
        %402 = vmatprep.subr.bf16.mxu0 0
        %403 = vmatpush1.bf16.xpose.msra.mxu0 0
        %404 = vmatprep.subr.bf16.mxu0 0
        %405 = vmatpush1.bf16.xpose.msra.mxu0 0
        %406 = vmatprep.subr.bf16.mxu0 0
        %407 = vmatpush1.bf16.xpose.msra.mxu0 0
        %408 = vmatprep.subr.bf16.mxu0 0
        %409 = vmatpush1.bf16.xpose.msra.mxu0 0
        %410 = vmatprep.subr.bf16.mxu0 0
        %411 = vmatpush1.bf16.xpose.msra.mxu0 0
        %412 = vmatprep.subr.bf16.mxu0 0
        %413 = vmatpush1.bf16.xpose.msra.mxu0 0
        %414 = vmatprep.subr.bf16.mxu0 0
        %415 = vmatpush1.bf16.xpose.msra.mxu0 0
        %416 = vmatprep.subr.bf16.mxu0 0
        %417 = vmatpush1.bf16.xpose.msra.mxu0 0
        %418 = vmatprep.mubr.bf16.mxu0 0
        %419 = vmatmul.mubr.bf16.gmra.mrb[0].mxu0 %v381
        %v420 = vpop.f32.mrb[0].mxu0
        %v421 = vadd.f32 %v378, %v420
        %v422 = vpop.f32.mrb[0].mxu0
        %v423 = vpop.f32.mrb[0].mxu0
        %v424 = vpop.f32.mrb[0].mxu0
        %425 = vdwg.mxu0
        %v426 = vld [vmem:[#allocation2] sm:$0xff]
        %vm427 = vcmask 64512
        %v428 = vsel %vm427, %v421, -inf
        %429 = vmax.xlane.f32.xlu0 %v428
        %v430 = vpop.xlane.xlu0 %429
        %v431 = vmax.f32 %v426, %v430
        %v432 = vsub.f32 %v426, %v431
        %v433 = vmul.f32 %v432, 1.442695
        %v434 = vpow.pop %v433
        %436 = vset.pattern.permute.xlu0 0
        %437 = vperm.xlu0 %436, %v431
        %v438 = vpop.permute.xlu0 %437
        %v440 = vsub.f32 %v421, %v438
        %v441 = vmul.f32 %v440, 1.442695
        %v442 = vpow.pop %v441
        %v443 = vld [vmem:[#allocation3] sm:$0xff]
        %v444 = vmul.f32 %v434, %v443
        %v445 = vsel %vm427, %v442, 0.0
        %446 = vadd.xlane.f32.xlu0 %v445
        %v447 = vpop.xlane.xlu0 %446
        %v448 = vadd.f32 %v444, %v447
        %vm449 = vcmask 7168
        %450 = vst.msk [vmem:[#allocation3] sm:$0xff] %vm449, %v448
        %v451 = vld [vmem:[#allocation4] sm:$0xff]
        %453 = vset.pattern.permute.xlu0 0
        %454 = vperm.xlu0 %453, %v434
        %v455 = vpop.permute.xlu0 %454
        %v457 = vmul.f32 %v455, %v451
        %v458 = vpack.c.bf16 %v442, %v442
        %v460 = vsel %vm427, %v458, 0
        %vm462 = vcmask 1043456
        %v464 = vsel %vm462, %v360, 0
        %466 = vmatprep.subr.bf16.mxu0 0
        %467 = vmatpush1.bf16.msra.mxu0 %v464
        %468 = vmatprep.subr.bf16.mxu0 0
        %469 = vmatpush1.bf16.msra.mxu0 0
        %470 = vmatprep.subr.bf16.mxu0 0
        %471 = vmatpush1.bf16.msra.mxu0 0
        %472 = vmatprep.subr.bf16.mxu0 0
        %473 = vmatpush1.bf16.msra.mxu0 0
        %474 = vmatprep.subr.bf16.mxu0 0
        %475 = vmatpush1.bf16.msra.mxu0 0
        %476 = vmatprep.subr.bf16.mxu0 0
        %477 = vmatpush1.bf16.msra.mxu0 0
        %478 = vmatprep.subr.bf16.mxu0 0
        %479 = vmatpush1.bf16.msra.mxu0 0
        %480 = vmatprep.subr.bf16.mxu0 0
        %481 = vmatpush1.bf16.msra.mxu0 0
        %482 = vmatprep.subr.bf16.mxu0 0
        %483 = vmatpush1.bf16.msra.mxu0 0
        %484 = vmatprep.subr.bf16.mxu0 0
        %485 = vmatpush1.bf16.msra.mxu0 0
        %486 = vmatprep.subr.bf16.mxu0 0
        %487 = vmatpush1.bf16.msra.mxu0 0
        %488 = vmatprep.subr.bf16.mxu0 0
        %489 = vmatpush1.bf16.msra.mxu0 0
        %490 = vmatprep.subr.bf16.mxu0 0
        %491 = vmatpush1.bf16.msra.mxu0 0
        %492 = vmatprep.subr.bf16.mxu0 0
        %493 = vmatpush1.bf16.msra.mxu0 0
        %494 = vmatprep.subr.bf16.mxu0 0
        %495 = vmatpush1.bf16.msra.mxu0 0
        %496 = vmatprep.subr.bf16.mxu0 0
        %497 = vmatpush1.bf16.msra.mxu0 0
        %498 = vmatprep.mubr.bf16.mxu0 0
        %499 = vmatmul.mubr.bf16.gmra.mrb[0].mxu0 %v460
        %v500 = vpop.f32.mrb[0].mxu0
        %v501 = vadd.f32 0.0, %v500
        %v502 = vpop.f32.mrb[0].mxu0
        %v503 = vpop.f32.mrb[0].mxu0
        %v504 = vpop.f32.mrb[0].mxu0
        %505 = vdwg.mxu0
        %v506 = vadd.f32 %v457, %v501
        %507 = vst.msk [vmem:[#allocation4] sm:$0xff] %vm379, %v506
        %508 = vst.msk [vmem:[#allocation2] sm:$0xff] %vm449, %v431
        %v510 = vunpack.c.l.b16 %v358
        %v511 = vpack.c.b16 %v510, %v510
        %512 = vrot.lane.b32.xlu0 %v511, 96
        %v513 = vpop.permute.xlu0 %512
        %v515 = vunpack.c.l.b16 %v359
        %v516 = vpack.c.b16 %v515, %v515
        %517 = vrot.lane.b32.xlu0 %v516, 96
        %v518 = vpop.permute.xlu0 %517
        %v520 = vsel %vm379, %v513, 0
        %v523 = vsel %vm379, %v518, 0
        %525 = vmatprep.subr.bf16.mxu0 0
        %526 = vmatpush1.bf16.xpose.msra.mxu0 %v523
        %527 = vmatprep.subr.bf16.mxu0 0
        %528 = vmatpush1.bf16.xpose.msra.mxu0 0
        %529 = vmatprep.subr.bf16.mxu0 0
        %530 = vmatpush1.bf16.xpose.msra.mxu0 0
        %531 = vmatprep.subr.bf16.mxu0 0
        %532 = vmatpush1.bf16.xpose.msra.mxu0 0
        %533 = vmatprep.subr.bf16.mxu0 0
        %534 = vmatpush1.bf16.xpose.msra.mxu0 0
        %535 = vmatprep.subr.bf16.mxu0 0
        %536 = vmatpush1.bf16.xpose.msra.mxu0 0
        %537 = vmatprep.subr.bf16.mxu0 0
        %538 = vmatpush1.bf16.xpose.msra.mxu0 0
        %539 = vmatprep.subr.bf16.mxu0 0
        %540 = vmatpush1.bf16.xpose.msra.mxu0 0
        %541 = vmatprep.subr.bf16.mxu0 0
        %542 = vmatpush1.bf16.xpose.msra.mxu0 0
        %543 = vmatprep.subr.bf16.mxu0 0
        %544 = vmatpush1.bf16.xpose.msra.mxu0 0
        %545 = vmatprep.subr.bf16.mxu0 0
        %546 = vmatpush1.bf16.xpose.msra.mxu0 0
        %547 = vmatprep.subr.bf16.mxu0 0
        %548 = vmatpush1.bf16.xpose.msra.mxu0 0
        %549 = vmatprep.subr.bf16.mxu0 0
        %550 = vmatpush1.bf16.xpose.msra.mxu0 0
        %551 = vmatprep.subr.bf16.mxu0 0
        %552 = vmatpush1.bf16.xpose.msra.mxu0 0
        %553 = vmatprep.subr.bf16.mxu0 0
        %554 = vmatpush1.bf16.xpose.msra.mxu0 0
        %555 = vmatprep.subr.bf16.mxu0 0
        %556 = vmatpush1.bf16.xpose.msra.mxu0 0
        %557 = vmatprep.mubr.bf16.mxu0 0
        %558 = vmatmul.mubr.bf16.gmra.mrb[0].mxu0 %v520
        %v559 = vpop.f32.mrb[0].mxu0
        %v560 = vadd.f32 %v378, %v559
        %v561 = vpop.f32.mrb[0].mxu0
        %v562 = vpop.f32.mrb[0].mxu0
        %v563 = vpop.f32.mrb[0].mxu0
        %564 = vdwg.mxu0
        %s565 = scalar_lea.vmem [#allocation2], 8
        %v566 = vld [vmem:[%s565] sm:$0xff]
        %v567 = vsel %vm427, %v560, -inf
        %568 = vmax.xlane.f32.xlu0 %v567
        %v569 = vpop.xlane.xlu0 %568
        %v570 = vmax.f32 %v566, %v569
        %v571 = vsub.f32 %v566, %v570
        %v572 = vmul.f32 %v571, 1.442695
        %v573 = vpow.pop %v572
        %575 = vset.pattern.permute.xlu0 0
        %576 = vperm.xlu0 %575, %v570
        %v577 = vpop.permute.xlu0 %576
        %v579 = vsub.f32 %v560, %v577
        %v580 = vmul.f32 %v579, 1.442695
        %v581 = vpow.pop %v580
        %s582 = scalar_lea.vmem [#allocation3], 8
        %v583 = vld [vmem:[%s582] sm:$0xff]
        %v584 = vmul.f32 %v573, %v583
        %v585 = vsel %vm427, %v581, 0.0
        %586 = vadd.xlane.f32.xlu0 %v585
        %v587 = vpop.xlane.xlu0 %586
        %v588 = vadd.f32 %v584, %v587
        %589 = vst.msk [vmem:[%s582] sm:$0xff] %vm449, %v588
        %v590 = vld [vmem:[#allocation4] sm:$0xff]
        %592 = vset.pattern.permute.xlu0 0
        %593 = vperm.xlu0 %592, %v573
        %v594 = vpop.permute.xlu0 %593
        %v596 = vmul.f32 %v594, %v590
        %v597 = vpack.c.bf16 %v581, %v581
        %v599 = vunpack.c.l.b16 %v360
        %v600 = vpack.c.b16 %v599, %v599
        %601 = vrot.lane.b32.xlu0 %v600, 96
        %v602 = vpop.permute.xlu0 %601
        %v604 = vsel %vm427, %v597, 0
        %v607 = vsel %vm462, %v602, 0
        %609 = vmatprep.subr.bf16.mxu0 0
        %610 = vmatpush1.bf16.msra.mxu0 %v607
        %611 = vmatprep.subr.bf16.mxu0 0
        %612 = vmatpush1.bf16.msra.mxu0 0
        %613 = vmatprep.subr.bf16.mxu0 0
        %614 = vmatpush1.bf16.msra.mxu0 0
        %615 = vmatprep.subr.bf16.mxu0 0
        %616 = vmatpush1.bf16.msra.mxu0 0
        %617 = vmatprep.subr.bf16.mxu0 0
        %618 = vmatpush1.bf16.msra.mxu0 0
        %619 = vmatprep.subr.bf16.mxu0 0
        %620 = vmatpush1.bf16.msra.mxu0 0
        %621 = vmatprep.subr.bf16.mxu0 0
        %622 = vmatpush1.bf16.msra.mxu0 0
        %623 = vmatprep.subr.bf16.mxu0 0
        %624 = vmatpush1.bf16.msra.mxu0 0
        %625 = vmatprep.subr.bf16.mxu0 0
        %626 = vmatpush1.bf16.msra.mxu0 0
        %627 = vmatprep.subr.bf16.mxu0 0
        %628 = vmatpush1.bf16.msra.mxu0 0
        %629 = vmatprep.subr.bf16.mxu0 0
        %630 = vmatpush1.bf16.msra.mxu0 0
        %631 = vmatprep.subr.bf16.mxu0 0
        %632 = vmatpush1.bf16.msra.mxu0 0
        %633 = vmatprep.subr.bf16.mxu0 0
        %634 = vmatpush1.bf16.msra.mxu0 0
        %635 = vmatprep.subr.bf16.mxu0 0
        %636 = vmatpush1.bf16.msra.mxu0 0
        %637 = vmatprep.subr.bf16.mxu0 0
        %638 = vmatpush1.bf16.msra.mxu0 0
        %639 = vmatprep.subr.bf16.mxu0 0
        %640 = vmatpush1.bf16.msra.mxu0 0
        %641 = vmatprep.mubr.bf16.mxu0 0
        %642 = vmatmul.mubr.bf16.gmra.mrb[0].mxu0 %v604
        %v643 = vpop.f32.mrb[0].mxu0
        %v644 = vadd.f32 0.0, %v643
        %v645 = vpop.f32.mrb[0].mxu0
        %v646 = vpop.f32.mrb[0].mxu0
        %v647 = vpop.f32.mrb[0].mxu0
        %648 = vdwg.mxu0
        %650 = vrot.lane.b32.xlu0 %v644, 32
        %v651 = vpop.permute.xlu0 %650
        %v653 = vadd.f32 %v596, %v651
        %vm654 = vcmask 523520
        %655 = vst.msk [vmem:[#allocation4] sm:$0xff] %vm654, %v653
        %656 = vst.msk [vmem:[%s565] sm:$0xff] %vm449, %v570
        %657 = vrot.lane.b32.xlu0 %v511, 64
        %v658 = vpop.permute.xlu0 %657
        %659 = vrot.lane.b32.xlu0 %v516, 64
        %v660 = vpop.permute.xlu0 %659
        %v662 = vsel %vm379, %v658, 0
        %v665 = vsel %vm379, %v660, 0
        %667 = vmatprep.subr.bf16.mxu0 0
        %668 = vmatpush1.bf16.xpose.msra.mxu0 %v665
        %669 = vmatprep.subr.bf16.mxu0 0
        %670 = vmatpush1.bf16.xpose.msra.mxu0 0
        %671 = vmatprep.subr.bf16.mxu0 0
        %672 = vmatpush1.bf16.xpose.msra.mxu0 0
        %673 = vmatprep.subr.bf16.mxu0 0
        %674 = vmatpush1.bf16.xpose.msra.mxu0 0
        %675 = vmatprep.subr.bf16.mxu0 0
        %676 = vmatpush1.bf16.xpose.msra.mxu0 0
        %677 = vmatprep.subr.bf16.mxu0 0
        %678 = vmatpush1.bf16.xpose.msra.mxu0 0
        %679 = vmatprep.subr.bf16.mxu0 0
        %680 = vmatpush1.bf16.xpose.msra.mxu0 0
        %681 = vmatprep.subr.bf16.mxu0 0
        %682 = vmatpush1.bf16.xpose.msra.mxu0 0
        %683 = vmatprep.subr.bf16.mxu0 0
        %684 = vmatpush1.bf16.xpose.msra.mxu0 0
        %685 = vmatprep.subr.bf16.mxu0 0
        %686 = vmatpush1.bf16.xpose.msra.mxu0 0
        %687 = vmatprep.subr.bf16.mxu0 0
        %688 = vmatpush1.bf16.xpose.msra.mxu0 0
        %689 = vmatprep.subr.bf16.mxu0 0
        %690 = vmatpush1.bf16.xpose.msra.mxu0 0
        %691 = vmatprep.subr.bf16.mxu0 0
        %692 = vmatpush1.bf16.xpose.msra.mxu0 0
        %693 = vmatprep.subr.bf16.mxu0 0
        %694 = vmatpush1.bf16.xpose.msra.mxu0 0
        %695 = vmatprep.subr.bf16.mxu0 0
        %696 = vmatpush1.bf16.xpose.msra.mxu0 0
        %697 = vmatprep.subr.bf16.mxu0 0
        %698 = vmatpush1.bf16.xpose.msra.mxu0 0
        %699 = vmatprep.mubr.bf16.mxu0 0
        %700 = vmatmul.mubr.bf16.gmra.mrb[0].mxu0 %v662
        %v701 = vpop.f32.mrb[0].mxu0
        %v702 = vadd.f32 %v378, %v701
        %v703 = vpop.f32.mrb[0].mxu0
        %v704 = vpop.f32.mrb[0].mxu0
        %v705 = vpop.f32.mrb[0].mxu0
        %706 = vdwg.mxu0
        %s707 = scalar_lea.vmem [#allocation2], 16
        %v708 = vld [vmem:[%s707] sm:$0xff]
        %v709 = vsel %vm427, %v702, -inf
        %710 = vmax.xlane.f32.xlu0 %v709
        %v711 = vpop.xlane.xlu0 %710
        %v712 = vmax.f32 %v708, %v711
        %v713 = vsub.f32 %v708, %v712
        %v714 = vmul.f32 %v713, 1.442695
        %v715 = vpow.pop %v714
        %717 = vset.pattern.permute.xlu0 0
        %718 = vperm.xlu0 %717, %v712
        %v719 = vpop.permute.xlu0 %718
        %v721 = vsub.f32 %v702, %v719
        %v722 = vmul.f32 %v721, 1.442695
        %v723 = vpow.pop %v722
        %s724 = scalar_lea.vmem [#allocation3], 16
        %v725 = vld [vmem:[%s724] sm:$0xff]
        %v726 = vmul.f32 %v715, %v725
        %v727 = vsel %vm427, %v723, 0.0
        %728 = vadd.xlane.f32.xlu0 %v727
        %v729 = vpop.xlane.xlu0 %728
        %v730 = vadd.f32 %v726, %v729
        %731 = vst.msk [vmem:[%s724] sm:$0xff] %vm449, %v730
        %v732 = vld [vmem:[#allocation4] sm:$0xff]
        %734 = vset.pattern.permute.xlu0 0
        %735 = vperm.xlu0 %734, %v715
        %v736 = vpop.permute.xlu0 %735
        %v738 = vmul.f32 %v736, %v732
        %v739 = vpack.c.bf16 %v723, %v723
        %740 = vrot.lane.b32.xlu0 %v600, 64
        %v741 = vpop.permute.xlu0 %740
        %v743 = vsel %vm427, %v739, 0
        %v746 = vsel %vm462, %v741, 0
        %748 = vmatprep.subr.bf16.mxu0 0
        %749 = vmatpush1.bf16.msra.mxu0 %v746
        %750 = vmatprep.subr.bf16.mxu0 0
        %751 = vmatpush1.bf16.msra.mxu0 0
        %752 = vmatprep.subr.bf16.mxu0 0
        %753 = vmatpush1.bf16.msra.mxu0 0
        %754 = vmatprep.subr.bf16.mxu0 0
        %755 = vmatpush1.bf16.msra.mxu0 0
        %756 = vmatprep.subr.bf16.mxu0 0
        %757 = vmatpush1.bf16.msra.mxu0 0
        %758 = vmatprep.subr.bf16.mxu0 0
        %759 = vmatpush1.bf16.msra.mxu0 0
        %760 = vmatprep.subr.bf16.mxu0 0
        %761 = vmatpush1.bf16.msra.mxu0 0
        %762 = vmatprep.subr.bf16.mxu0 0
        %763 = vmatpush1.bf16.msra.mxu0 0
        %764 = vmatprep.subr.bf16.mxu0 0
        %765 = vmatpush1.bf16.msra.mxu0 0
        %766 = vmatprep.subr.bf16.mxu0 0
        %767 = vmatpush1.bf16.msra.mxu0 0
        %768 = vmatprep.subr.bf16.mxu0 0
        %769 = vmatpush1.bf16.msra.mxu0 0
        %770 = vmatprep.subr.bf16.mxu0 0
        %771 = vmatpush1.bf16.msra.mxu0 0
        %772 = vmatprep.subr.bf16.mxu0 0
        %773 = vmatpush1.bf16.msra.mxu0 0
        %774 = vmatprep.subr.bf16.mxu0 0
        %775 = vmatpush1.bf16.msra.mxu0 0
        %776 = vmatprep.subr.bf16.mxu0 0
        %777 = vmatpush1.bf16.msra.mxu0 0
        %778 = vmatprep.subr.bf16.mxu0 0
        %779 = vmatpush1.bf16.msra.mxu0 0
        %780 = vmatprep.mubr.bf16.mxu0 0
        %781 = vmatmul.mubr.bf16.gmra.mrb[0].mxu0 %v743
        %v782 = vpop.f32.mrb[0].mxu0
        %v783 = vadd.f32 0.0, %v782
        %v784 = vpop.f32.mrb[0].mxu0
        %v785 = vpop.f32.mrb[0].mxu0
        %v786 = vpop.f32.mrb[0].mxu0
        %787 = vdwg.mxu0
        %789 = vrot.lane.b32.xlu0 %v783, 64
        %v790 = vpop.permute.xlu0 %789
        %v792 = vadd.f32 %v738, %v790
        %vm793 = vcmask 785920
        %794 = vst.msk [vmem:[#allocation4] sm:$0xff] %vm793, %v792
        %795 = vst.msk [vmem:[%s707] sm:$0xff] %vm449, %v712
        %796 = vrot.lane.b32.xlu0 %v511, 32
        %v797 = vpop.permute.xlu0 %796
        %798 = vrot.lane.b32.xlu0 %v516, 32
        %v799 = vpop.permute.xlu0 %798
        %v801 = vsel %vm379, %v797, 0
        %v804 = vsel %vm379, %v799, 0
        %806 = vmatprep.subr.bf16.mxu0 0
        %807 = vmatpush1.bf16.xpose.msra.mxu0 %v804
        %808 = vmatprep.subr.bf16.mxu0 0
        %809 = vmatpush1.bf16.xpose.msra.mxu0 0
        %810 = vmatprep.subr.bf16.mxu0 0
        %811 = vmatpush1.bf16.xpose.msra.mxu0 0
        %812 = vmatprep.subr.bf16.mxu0 0
        %813 = vmatpush1.bf16.xpose.msra.mxu0 0
        %814 = vmatprep.subr.bf16.mxu0 0
        %815 = vmatpush1.bf16.xpose.msra.mxu0 0
        %816 = vmatprep.subr.bf16.mxu0 0
        %817 = vmatpush1.bf16.xpose.msra.mxu0 0
        %818 = vmatprep.subr.bf16.mxu0 0
        %819 = vmatpush1.bf16.xpose.msra.mxu0 0
        %820 = vmatprep.subr.bf16.mxu0 0
        %821 = vmatpush1.bf16.xpose.msra.mxu0 0
        %822 = vmatprep.subr.bf16.mxu0 0
        %823 = vmatpush1.bf16.xpose.msra.mxu0 0
        %824 = vmatprep.subr.bf16.mxu0 0
        %825 = vmatpush1.bf16.xpose.msra.mxu0 0
        %826 = vmatprep.subr.bf16.mxu0 0
        %827 = vmatpush1.bf16.xpose.msra.mxu0 0
        %828 = vmatprep.subr.bf16.mxu0 0
        %829 = vmatpush1.bf16.xpose.msra.mxu0 0
        %830 = vmatprep.subr.bf16.mxu0 0
        %831 = vmatpush1.bf16.xpose.msra.mxu0 0
        %832 = vmatprep.subr.bf16.mxu0 0
        %833 = vmatpush1.bf16.xpose.msra.mxu0 0
        %834 = vmatprep.subr.bf16.mxu0 0
        %835 = vmatpush1.bf16.xpose.msra.mxu0 0
        %836 = vmatprep.subr.bf16.mxu0 0
        %837 = vmatpush1.bf16.xpose.msra.mxu0 0
        %838 = vmatprep.mubr.bf16.mxu0 0
        %839 = vmatmul.mubr.bf16.gmra.mrb[0].mxu0 %v801
        %v840 = vpop.f32.mrb[0].mxu0
        %v841 = vadd.f32 %v378, %v840
        %v842 = vpop.f32.mrb[0].mxu0
        %v843 = vpop.f32.mrb[0].mxu0
        %v844 = vpop.f32.mrb[0].mxu0
        %845 = vdwg.mxu0
        %s846 = scalar_lea.vmem [#allocation2], 24
        %v847 = vld [vmem:[%s846] sm:$0xff]
        %v848 = vsel %vm427, %v841, -inf
        %849 = vmax.xlane.f32.xlu0 %v848
        %v850 = vpop.xlane.xlu0 %849
        %v851 = vmax.f32 %v847, %v850
        %v852 = vsub.f32 %v847, %v851
        %v853 = vmul.f32 %v852, 1.442695
        %v854 = vpow.pop %v853
        %856 = vset.pattern.permute.xlu0 0
        %857 = vperm.xlu0 %856, %v851
        %v858 = vpop.permute.xlu0 %857
        %v860 = vsub.f32 %v841, %v858
        %v861 = vmul.f32 %v860, 1.442695
        %v862 = vpow.pop %v861
        %s863 = scalar_lea.vmem [#allocation3], 24
        %v864 = vld [vmem:[%s863] sm:$0xff]
        %v865 = vmul.f32 %v854, %v864
        %v866 = vsel %vm427, %v862, 0.0
        %867 = vadd.xlane.f32.xlu0 %v866
        %v868 = vpop.xlane.xlu0 %867
        %v869 = vadd.f32 %v865, %v868
        %870 = vst.msk [vmem:[%s863] sm:$0xff] %vm449, %v869
        %v871 = vld [vmem:[#allocation4] sm:$0xff]
        %873 = vset.pattern.permute.xlu0 0
        %874 = vperm.xlu0 %873, %v854
        %v875 = vpop.permute.xlu0 %874
        %v877 = vmul.f32 %v875, %v871
        %v878 = vpack.c.bf16 %v862, %v862
        %879 = vrot.lane.b32.xlu0 %v600, 32
        %v880 = vpop.permute.xlu0 %879
        %v882 = vsel %vm427, %v878, 0
        %v885 = vsel %vm462, %v880, 0
        %887 = vmatprep.subr.bf16.mxu0 0
        %888 = vmatpush1.bf16.msra.mxu0 %v885
        %889 = vmatprep.subr.bf16.mxu0 0
        %890 = vmatpush1.bf16.msra.mxu0 0
        %891 = vmatprep.subr.bf16.mxu0 0
        %892 = vmatpush1.bf16.msra.mxu0 0
        %893 = vmatprep.subr.bf16.mxu0 0
        %894 = vmatpush1.bf16.msra.mxu0 0
        %895 = vmatprep.subr.bf16.mxu0 0
        %896 = vmatpush1.bf16.msra.mxu0 0
        %897 = vmatprep.subr.bf16.mxu0 0
        %898 = vmatpush1.bf16.msra.mxu0 0
        %899 = vmatprep.subr.bf16.mxu0 0
        %900 = vmatpush1.bf16.msra.mxu0 0
        %901 = vmatprep.subr.bf16.mxu0 0
        %902 = vmatpush1.bf16.msra.mxu0 0
        %903 = vmatprep.subr.bf16.mxu0 0
        %904 = vmatpush1.bf16.msra.mxu0 0
        %905 = vmatprep.subr.bf16.mxu0 0
        %906 = vmatpush1.bf16.msra.mxu0 0
        %907 = vmatprep.subr.bf16.mxu0 0
        %908 = vmatpush1.bf16.msra.mxu0 0
        %909 = vmatprep.subr.bf16.mxu0 0
        %910 = vmatpush1.bf16.msra.mxu0 0
        %911 = vmatprep.subr.bf16.mxu0 0
        %912 = vmatpush1.bf16.msra.mxu0 0
        %913 = vmatprep.subr.bf16.mxu0 0
        %914 = vmatpush1.bf16.msra.mxu0 0
        %915 = vmatprep.subr.bf16.mxu0 0
        %916 = vmatpush1.bf16.msra.mxu0 0
        %917 = vmatprep.subr.bf16.mxu0 0
        %918 = vmatpush1.bf16.msra.mxu0 0
        %919 = vmatprep.mubr.bf16.mxu0 0
        %920 = vmatmul.mubr.bf16.gmra.mrb[0].mxu0 %v882
        %v921 = vpop.f32.mrb[0].mxu0
        %v922 = vadd.f32 0.0, %v921
        %v923 = vpop.f32.mrb[0].mxu0
        %v924 = vpop.f32.mrb[0].mxu0
        %v925 = vpop.f32.mrb[0].mxu0
        %926 = vdwg.mxu0
        %928 = vrot.lane.b32.xlu0 %v922, 96
        %v929 = vpop.permute.xlu0 %928
        %v931 = vadd.f32 %v877, %v929
        %vm932 = vcmask 1048320
        %933 = vst.msk [vmem:[#allocation4] sm:$0xff] %vm932, %v931
        %934 = vst.msk [vmem:[%s846] sm:$0xff] %vm449, %v851
      $region44: #{refine_seq2seq_forward.27} parent=35 // pred_fallthru
        _
      // Predicated region
      $region45: #{refine_seq2seq_forward.27} parent=35 // pred_check
        %p935 = pneg %p337
      $region46: #{refine_seq2seq_forward.27} parent=35 // pred_check_branch
        %937 = sbr.rel (%p935) target = $region48
      $region47: #{refine_seq2seq_forward.27} parent=35 // pred_region
        %v938 = vld [vmem:[#allocation4] sm:$0xff]
        %v939 = vld [vmem:[#allocation3] sm:$0xff]
        %v940 = vrcp.pop %v939
        %942 = vset.pattern.permute.xlu0 0
        %943 = vperm.xlu0 %942, %v940
        %v944 = vpop.permute.xlu0 %943
        %v946 = vmul.f32 %v938, %v944
        %s947 = scalar_lea.vmem [#allocation3], 8
        %v948 = vld [vmem:[%s947] sm:$0xff]
        %v949 = vrcp.pop %v948
        %951 = vset.pattern.permute.xlu0 0
        %952 = vperm.xlu0 %951, %v949
        %v953 = vpop.permute.xlu0 %952
        %v955 = vmul.f32 %v938, %v953
        %s956 = scalar_lea.vmem [#allocation3], 16
        %v957 = vld [vmem:[%s956] sm:$0xff]
        %v958 = vrcp.pop %v957
        %960 = vset.pattern.permute.xlu0 0
        %961 = vperm.xlu0 %960, %v958
        %v962 = vpop.permute.xlu0 %961
        %v964 = vmul.f32 %v938, %v962
        %s965 = scalar_lea.vmem [#allocation3], 24
        %v966 = vld [vmem:[%s965] sm:$0xff]
        %v967 = vrcp.pop %v966
        %969 = vset.pattern.permute.xlu0 0
        %970 = vperm.xlu0 %969, %v967
        %v971 = vpop.permute.xlu0 %970
        %v973 = vmul.f32 %v938, %v971
        %vm974 = vcmask 261120
        %v975 = vsel %vm974, %v946, %v955
        %vm976 = vcmask 523264
        %v977 = vsel %vm976, %v975, %v964
        %vm978 = vcmask 785408
        %v979 = vsel %vm978, %v977, %v973
        %v980 = vpack.c.bf16 %v979, %v979
        %981 = vst [vmem:[%s335] sm:$0xf] %v980
      $region48: #{refine_seq2seq_forward.27} parent=35 // pred_fallthru
        _
      %p982 = scmp.lt.s32.totalorder %s20, 1
      %s983 = scalar_select %p982, %s20, 1
      %p984 = scmp.lt.s32.totalorder %s21, 0
      %s985 = scalar_select %p984, %s21, 0
      %s986 = sadd.s32 %s985, %s983
      %s987 = smul.addr %s986, 4
      %s988 = scalar_lea.vmem %s4, %s987
      // Predicated region
      $region49: #{refine_seq2seq_forward.27} parent=35 // pred_check
        %p989 = pneg %p166
      $region50: #{refine_seq2seq_forward.27} parent=35 // pred_check_branch
        %991 = sbr.rel (%p989) target = $region52
      $region51: #{refine_seq2seq_forward.27} parent=35 // pred_region
        _
      $region52: #{refine_seq2seq_forward.27} parent=35 // pred_fallthru
        _
    $region36: #{refine_seq2seq_forward.27} parent=5 // pred_fallthru
      _
    %p992 = scmp.le.s32.totalorder 2, %s10
    // Predicated region
    $region53: #{refine_seq2seq_forward.27} parent=5 // pred_check
      %p993 = pneg %p992
    $region54: #{refine_seq2seq_forward.27} parent=5 // pred_check_branch
      %995 = sbr.rel (%p993) target = $region56
    $region55: #{refine_seq2seq_forward.27} parent=5 // pred_region
      %s996 = ssub.s32 %s10, 2
      // Predicated region
      $region57: #{refine_seq2seq_forward.27} parent=55 // pred_check
        %p997 = pneg %p172
      $region58: #{refine_seq2seq_forward.27} parent=55 // pred_check_branch
        %999 = sbr.rel (%p997) target = $region60
      $region59: #{refine_seq2seq_forward.27} parent=55 // pred_region
        %p1000 = scmp.lt.s32.totalorder %s23, 1
        %s1001 = scalar_select %p1000, %s23, 1
        %p1002 = scmp.lt.s32.totalorder %s24, 0
        %s1003 = scalar_select %p1002, %s24, 0
        %s1004 = sadd.s32 %s1003, %s1001
        %s1005 = smul.addr %s1004, 4
        %s1006 = scalar_lea.vmem %s4, %s1005
      $region60: #{refine_seq2seq_forward.27} parent=55 // pred_fallthru
        _
    $region56: #{refine_seq2seq_forward.27} parent=5 // pred_fallthru
      _
  $region6: #{refine_seq2seq_forward.27} parent=0 // loop_footer
    %s14 = sadd.s32 1, %s10
  $region7: #{refine_seq2seq_forward.27} parent=0 // loop_footer_branch
    %9 = sbr.rel target = $region3
  $region8: #{refine_seq2seq_forward.27} parent=0 // loop_exit
    _

// kernel: refine_seq2seq_forward.28
$region0: #{refine_seq2seq_forward.28}
  #allocation0 [shape = 'u32[]', space=smem, size = 0x4, offset = 0x4, fixed_abs, tag = 'smem constant byte address 0x4 - core index']
  #allocation1 [shape = 'u32[144,128]{1,0:T(1,128)}', space=vmem, size = 0x12000, scoped, tag = 'internal scratch']
  #allocation2 [shape = 'f32[16,128]{1,0:T(8,128)}', space=vmem, size = 0x2000, scoped, tag = 'scratch operand']
  %s0 = inlined_call_operand.vmem [shape: bf16[16,128], index: 0, kind: input, shape index: {}]
  %s1 = inlined_call_operand.vmem [shape: bf16[128,128], index: 1, kind: input, shape index: {}]
  %s2 = inlined_call_operand.vmem [shape: f32[1,128], index: 2, kind: input, shape index: {}]
  %s3 = inlined_call_operand.vmem [shape: bf16[16,128], index: 3, kind: output, shape index: {}]
  %s4 = sld [smem:[#allocation0]]
  $region30: #{refine_seq2seq_forward.28} parent=0
    _
  %s6 = ssub.s32 1, %s4
  %s7 = scalar_select 0, %s6, %s4
  // Predicated region
  $region2: #{refine_seq2seq_forward.28} parent=0 // pred_check
    _
  $region3: #{refine_seq2seq_forward.28} parent=0 // pred_check_branch
    %9 = sbr.rel (0) target = $region5
  $region4: #{refine_seq2seq_forward.28} parent=0 // pred_region
    _
  $region5: #{refine_seq2seq_forward.28} parent=0 // pred_fallthru
    _
  // Predicated region
  $region6: #{refine_seq2seq_forward.28} parent=0 // pred_check
    _
  $region7: #{refine_seq2seq_forward.28} parent=0 // pred_check_branch
    %11 = sbr.rel (0) target = $region9
  $region8: #{refine_seq2seq_forward.28} parent=0 // pred_region
    _
  $region9: #{refine_seq2seq_forward.28} parent=0 // pred_fallthru
    _
  // Predicated region
  $region10: #{refine_seq2seq_forward.28} parent=0 // pred_check
    _
  $region11: #{refine_seq2seq_forward.28} parent=0 // pred_check_branch
    %13 = sbr.rel (0) target = $region13
  $region12: #{refine_seq2seq_forward.28} parent=0 // pred_region
    _
  $region13: #{refine_seq2seq_forward.28} parent=0 // pred_fallthru
    _
  %p15 = scmp.eq.s32.totalorder 0, 0
  // Predicated region
  $region14: #{refine_seq2seq_forward.28} parent=0 // pred_check
    %p16 = pneg %p15
  $region15: #{refine_seq2seq_forward.28} parent=0 // pred_check_branch
    %18 = sbr.rel (%p16) target = $region17
  $region16: #{refine_seq2seq_forward.28} parent=0 // pred_region
    %19 = vst [vmem:[#allocation2] sm:$0xff] 0.0
    %20 = vst [vmem:[#allocation2 + $0x8] sm:$0xff] 0.0
  $region17: #{refine_seq2seq_forward.28} parent=0 // pred_fallthru
    _
  %v21 = vld [vmem:[#allocation2] sm:$0xff]
  %v22 = vld [vmem:[#allocation2 + $0x8] sm:$0xff]
  %v23 = vld [vmem:[%s0] sm:$0xf]
  %v24 = vld [vmem:[%s0 + $0x4] sm:$0xf]
  %v25 = vld [vmem:[%s1] sm:$0xf]
  %v26 = vld [vmem:[%s1 + $0x4] sm:$0xf]
  %v27 = vld [vmem:[%s1 + $0x8] sm:$0xf]
  %v28 = vld [vmem:[%s1 + $0xc] sm:$0xf]
  %v29 = vld [vmem:[%s1 + $0x10] sm:$0xf]
  %v30 = vld [vmem:[%s1 + $0x14] sm:$0xf]
  %v31 = vld [vmem:[%s1 + $0x18] sm:$0xf]
  %v32 = vld [vmem:[%s1 + $0x1c] sm:$0xf]
  %v33 = vld [vmem:[%s1 + $0x20] sm:$0xf]
  %v34 = vld [vmem:[%s1 + $0x24] sm:$0xf]
  %v35 = vld [vmem:[%s1 + $0x28] sm:$0xf]
  %v36 = vld [vmem:[%s1 + $0x2c] sm:$0xf]
  %v37 = vld [vmem:[%s1 + $0x30] sm:$0xf]
  %v38 = vld [vmem:[%s1 + $0x34] sm:$0xf]
  %v39 = vld [vmem:[%s1 + $0x38] sm:$0xf]
  %v40 = vld [vmem:[%s1 + $0x3c] sm:$0xf]
  %v43 = vunpack.c.l.b16 %v23
  %v44 = vunpack.c.l.b16 %v24
  %v45 = vpack.c.b16 %v44, %v43
  %v63 = vunpack.c.l.b16 %v25
  %v64 = vunpack.c.l.b16 %v26
  %v65 = vunpack.c.l.b16 %v27
  %v66 = vunpack.c.l.b16 %v28
  %v67 = vunpack.c.l.b16 %v29
  %v68 = vunpack.c.l.b16 %v30
  %v69 = vunpack.c.l.b16 %v31
  %v70 = vunpack.c.l.b16 %v32
  %v71 = vunpack.c.l.b16 %v33
  %v72 = vunpack.c.l.b16 %v34
  %v73 = vunpack.c.l.b16 %v35
  %v74 = vunpack.c.l.b16 %v36
  %v75 = vunpack.c.l.b16 %v37
  %v76 = vunpack.c.l.b16 %v38
  %v77 = vunpack.c.l.b16 %v39
  %v78 = vunpack.c.l.b16 %v40
  %v79 = vpack.c.b16 %v64, %v63
  %v80 = vpack.c.b16 %v66, %v65
  %v81 = vpack.c.b16 %v68, %v67
  %v82 = vpack.c.b16 %v70, %v69
  %v83 = vpack.c.b16 %v72, %v71
  %v84 = vpack.c.b16 %v74, %v73
  %v85 = vpack.c.b16 %v76, %v75
  %v86 = vpack.c.b16 %v78, %v77
  %95 = vmatprep.subr.bf16.mxu0 0
  %96 = vmatpush1.bf16.msra.mxu0 %v79
  %97 = vmatprep.subr.bf16.mxu0 0
  %98 = vmatpush1.bf16.msra.mxu0 %v80
  %99 = vmatprep.subr.bf16.mxu0 0
  %100 = vmatpush1.bf16.msra.mxu0 %v81
  %101 = vmatprep.subr.bf16.mxu0 0
  %102 = vmatpush1.bf16.msra.mxu0 %v82
  %103 = vmatprep.subr.bf16.mxu0 0
  %104 = vmatpush1.bf16.msra.mxu0 %v83
  %105 = vmatprep.subr.bf16.mxu0 0
  %106 = vmatpush1.bf16.msra.mxu0 %v84
  %107 = vmatprep.subr.bf16.mxu0 0
  %108 = vmatpush1.bf16.msra.mxu0 %v85
  %109 = vmatprep.subr.bf16.mxu0 0
  %110 = vmatpush1.bf16.msra.mxu0 %v86
  %111 = vmatprep.subr.bf16.mxu0 0
  %112 = vmatpush1.bf16.msra.mxu0 0
  %113 = vmatprep.subr.bf16.mxu0 0
  %114 = vmatpush1.bf16.msra.mxu0 0
  %115 = vmatprep.subr.bf16.mxu0 0
  %116 = vmatpush1.bf16.msra.mxu0 0
  %117 = vmatprep.subr.bf16.mxu0 0
  %118 = vmatpush1.bf16.msra.mxu0 0
  %119 = vmatprep.subr.bf16.mxu0 0
  %120 = vmatpush1.bf16.msra.mxu0 0
  %121 = vmatprep.subr.bf16.mxu0 0
  %122 = vmatpush1.bf16.msra.mxu0 0
  %123 = vmatprep.subr.bf16.mxu0 0
  %124 = vmatpush1.bf16.msra.mxu0 0
  %125 = vmatprep.subr.bf16.mxu0 0
  %126 = vmatpush1.bf16.msra.mxu0 0
  %127 = vmatprep.mubr.bf16.mxu0 0
  %128 = vmatmul.mubr.bf16.gmra.mrb[0].mxu0 %v45
  %v129 = vpop.f32.mrb[0].mxu0
  %v130 = vadd.f32 0.0, %v129
  %v131 = vpop.f32.mrb[0].mxu0
  %v132 = vpop.f32.mrb[0].mxu0
  %v133 = vadd.f32 0.0, %v132
  %v134 = vpop.f32.mrb[0].mxu0
  %135 = vdwg.mxu0
  %v136 = vadd.f32 %v21, %v130
  %v137 = vadd.f32 %v22, %v133
  %138 = vst [vmem:[#allocation2] sm:$0xff] %v136
  %139 = vst [vmem:[#allocation2 + $0x8] sm:$0xff] %v137
  // Predicated region
  $region18: #{refine_seq2seq_forward.28} parent=0 // pred_check
    %p140 = pneg %p15
  $region19: #{refine_seq2seq_forward.28} parent=0 // pred_check_branch
    %142 = sbr.rel (%p140) target = $region21
  $region20: #{refine_seq2seq_forward.28} parent=0 // pred_region
    %v143 = vld [vmem:[#allocation2] sm:$0xff]
    %v144 = vld [vmem:[#allocation2 + $0x8] sm:$0xff]
    %v145 = vld [vmem:[%s2] sm:$0x1]
    %v147 = vlaneseq
    %v148 = vshrl.u32 %v147, 7
    %v149 = vsub.s32 0, %v148
    %v150 = vrot.slane %v145, %v149
    %v152 = vadd.f32 %v143, %v150
    %v153 = vadd.f32 %v144, %v150
    %v154 = vpack.c.bf16 %v153, %v152
    %v156 = vunpack.c.l.b16 %v154
    %v157 = vunpack.c.h.b16 %v154
    %v158 = vpack.c.b16 %v156, %v156
    %v159 = vpack.c.b16 %v157, %v157
    %162 = vst [vmem:[%s3] sm:$0xf] %v158
    %163 = vst [vmem:[%s3 + $0x4] sm:$0xf] %v159
  $region21: #{refine_seq2seq_forward.28} parent=0 // pred_fallthru
    _
  // Predicated region
  $region22: #{refine_seq2seq_forward.28} parent=0 // pred_check
    _
  $region23: #{refine_seq2seq_forward.28} parent=0 // pred_check_branch
    %165 = sbr.rel (0) target = $region25
  $region24: #{refine_seq2seq_forward.28} parent=0 // pred_region
    _
  $region25: #{refine_seq2seq_forward.28} parent=0 // pred_fallthru
    _
  // Predicated region
  $region26: #{refine_seq2seq_forward.28} parent=0 // pred_check
    _
  $region27: #{refine_seq2seq_forward.28} parent=0 // pred_check_branch
    %167 = sbr.rel (0) target = $region29
  $region28: #{refine_seq2seq_forward.28} parent=0 // pred_region
    _
  $region29: #{refine_seq2seq_forward.28} parent=0 // pred_fallthru
    _

// kernel: refine_seq2seq_forward.20
$region0: #{refine_seq2seq_forward.20}
  #allocation0 [shape = 'u32[]', space=smem, size = 0x4, offset = 0x4, fixed_abs, tag = 'smem constant byte address 0x4 - core index']
  #allocation1 [shape = 'u32[144,128]{1,0:T(1,128)}', space=vmem, size = 0x12000, scoped, tag = 'internal scratch']
  #allocation2 [shape = 'f32[32,384]{1,0:T(8,128)}', space=vmem, size = 0xc000, scoped, tag = 'scratch operand']
  %s0 = inlined_call_operand.vmem [shape: bf16[32,128], index: 0, kind: input, shape index: {}]
  %s1 = inlined_call_operand.vmem [shape: bf16[128,384], index: 1, kind: input, shape index: {}]
  %s2 = inlined_call_operand.vmem [shape: f32[1,384], index: 2, kind: input, shape index: {}]
  %s3 = inlined_call_operand.vmem [shape: bf16[32,384], index: 3, kind: output, shape index: {}]
  %s4 = sld [smem:[#allocation0]]
  $region30: #{refine_seq2seq_forward.20} parent=0
    _
  %s6 = ssub.s32 1, %s4
  %s7 = scalar_select 0, %s6, %s4
  // Predicated region
  $region2: #{refine_seq2seq_forward.20} parent=0 // pred_check
    _
  $region3: #{refine_seq2seq_forward.20} parent=0 // pred_check_branch
    %9 = sbr.rel (0) target = $region5
  $region4: #{refine_seq2seq_forward.20} parent=0 // pred_region
    _
  $region5: #{refine_seq2seq_forward.20} parent=0 // pred_fallthru
    _
  // Predicated region
  $region6: #{refine_seq2seq_forward.20} parent=0 // pred_check
    _
  $region7: #{refine_seq2seq_forward.20} parent=0 // pred_check_branch
    %11 = sbr.rel (0) target = $region9
  $region8: #{refine_seq2seq_forward.20} parent=0 // pred_region
    _
  $region9: #{refine_seq2seq_forward.20} parent=0 // pred_fallthru
    _
  // Predicated region
  $region10: #{refine_seq2seq_forward.20} parent=0 // pred_check
    _
  $region11: #{refine_seq2seq_forward.20} parent=0 // pred_check_branch
    %13 = sbr.rel (0) target = $region13
  $region12: #{refine_seq2seq_forward.20} parent=0 // pred_region
    _
  $region13: #{refine_seq2seq_forward.20} parent=0 // pred_fallthru
    _
  %p15 = scmp.eq.s32.totalorder 0, 0
  // Predicated region
  $region14: #{refine_seq2seq_forward.20} parent=0 // pred_check
    %p16 = pneg %p15
  $region15: #{refine_seq2seq_forward.20} parent=0 // pred_check_branch
    %18 = sbr.rel (%p16) target = $region17
  $region16: #{refine_seq2seq_forward.20} parent=0 // pred_region
    %19 = vst [vmem:[#allocation2] sm:$0xff] 0.0
    %20 = vst [vmem:[#allocation2 + $0x8] sm:$0xff] 0.0
    %21 = vst [vmem:[#allocation2 + $0x10] sm:$0xff] 0.0
    %22 = vst [vmem:[#allocation2 + $0x18] sm:$0xff] 0.0
    %23 = vst [vmem:[#allocation2 + $0x20] sm:$0xff] 0.0
    %24 = vst [vmem:[#allocation2 + $0x28] sm:$0xff] 0.0
    %25 = vst [vmem:[#allocation2 + $0x30] sm:$0xff] 0.0
    %26 = vst [vmem:[#allocation2 + $0x38] sm:$0xff] 0.0
    %27 = vst [vmem:[#allocation2 + $0x40] sm:$0xff] 0.0
    %28 = vst [vmem:[#allocation2 + $0x48] sm:$0xff] 0.0
    %29 = vst [vmem:[#allocation2 + $0x50] sm:$0xff] 0.0
    %30 = vst [vmem:[#allocation2 + $0x58] sm:$0xff] 0.0
  $region17: #{refine_seq2seq_forward.20} parent=0 // pred_fallthru
    _
  %v31 = vld [vmem:[#allocation2] sm:$0xff]
  %v32 = vld [vmem:[#allocation2 + $0x8] sm:$0xff]
  %v33 = vld [vmem:[#allocation2 + $0x10] sm:$0xff]
  %v34 = vld [vmem:[#allocation2 + $0x18] sm:$0xff]
  %v35 = vld [vmem:[#allocation2 + $0x20] sm:$0xff]
  %v36 = vld [vmem:[#allocation2 + $0x28] sm:$0xff]
  %v37 = vld [vmem:[#allocation2 + $0x30] sm:$0xff]
  %v38 = vld [vmem:[#allocation2 + $0x38] sm:$0xff]
  %v39 = vld [vmem:[#allocation2 + $0x40] sm:$0xff]
  %v40 = vld [vmem:[#allocation2 + $0x48] sm:$0xff]
  %v41 = vld [vmem:[#allocation2 + $0x50] sm:$0xff]
  %v42 = vld [vmem:[#allocation2 + $0x58] sm:$0xff]
  %v43 = vld [vmem:[%s0] sm:$0xf]
  %v44 = vld [vmem:[%s0 + $0x4] sm:$0xf]
  %v45 = vld [vmem:[%s0 + $0x8] sm:$0xf]
  %v46 = vld [vmem:[%s0 + $0xc] sm:$0xf]
  %v47 = vld [vmem:[%s1] sm:$0xff]
  %v48 = vld [vmem:[%s1 + $0x8] sm:$0xf]
  %v49 = vld [vmem:[%s1 + $0xc] sm:$0xff]
  %v50 = vld [vmem:[%s1 + $0x14] sm:$0xf]
  %v51 = vld [vmem:[%s1 + $0x18] sm:$0xff]
  %v52 = vld [vmem:[%s1 + $0x20] sm:$0xf]
  %v53 = vld [vmem:[%s1 + $0x24] sm:$0xff]
  %v54 = vld [vmem:[%s1 + $0x2c] sm:$0xf]
  %v55 = vld [vmem:[%s1 + $0x30] sm:$0xff]
  %v56 = vld [vmem:[%s1 + $0x38] sm:$0xf]
  %v57 = vld [vmem:[%s1 + $0x3c] sm:$0xff]
  %v58 = vld [vmem:[%s1 + $0x44] sm:$0xf]
  %v59 = vld [vmem:[%s1 + $0x48] sm:$0xff]
  %v60 = vld [vmem:[%s1 + $0x50] sm:$0xf]
  %v61 = vld [vmem:[%s1 + $0x54] sm:$0xff]
  %v62 = vld [vmem:[%s1 + $0x5c] sm:$0xf]
  %v63 = vld [vmem:[%s1 + $0x60] sm:$0xff]
  %v64 = vld [vmem:[%s1 + $0x68] sm:$0xf]
  %v65 = vld [vmem:[%s1 + $0x6c] sm:$0xff]
  %v66 = vld [vmem:[%s1 + $0x74] sm:$0xf]
  %v67 = vld [vmem:[%s1 + $0x78] sm:$0xff]
  %v68 = vld [vmem:[%s1 + $0x80] sm:$0xf]
  %v69 = vld [vmem:[%s1 + $0x84] sm:$0xff]
  %v70 = vld [vmem:[%s1 + $0x8c] sm:$0xf]
  %v71 = vld [vmem:[%s1 + $0x90] sm:$0xff]
  %v72 = vld [vmem:[%s1 + $0x98] sm:$0xf]
  %v73 = vld [vmem:[%s1 + $0x9c] sm:$0xff]
  %v74 = vld [vmem:[%s1 + $0xa4] sm:$0xf]
  %v75 = vld [vmem:[%s1 + $0xa8] sm:$0xff]
  %v76 = vld [vmem:[%s1 + $0xb0] sm:$0xf]
  %v77 = vld [vmem:[%s1 + $0xb4] sm:$0xff]
  %v78 = vld [vmem:[%s1 + $0xbc] sm:$0xf]
  %v83 = vunpack.c.l.b16 %v43
  %v84 = vunpack.c.l.b16 %v44
  %v85 = vunpack.c.l.b16 %v45
  %v86 = vunpack.c.l.b16 %v46
  %v87 = vpack.c.b16 %v84, %v83
  %v88 = vpack.c.b16 %v86, %v85
  %v123 = vunpack.c.l.b16 %v47
  %v124 = vunpack.c.h.b16 %v47
  %v125 = vunpack.c.l.b16 %v48
  %v126 = vunpack.c.l.b16 %v49
  %v127 = vunpack.c.h.b16 %v49
  %v128 = vunpack.c.l.b16 %v50
  %v129 = vunpack.c.l.b16 %v51
  %v130 = vunpack.c.h.b16 %v51
  %v131 = vunpack.c.l.b16 %v52
  %v132 = vunpack.c.l.b16 %v53
  %v133 = vunpack.c.h.b16 %v53
  %v134 = vunpack.c.l.b16 %v54
  %v135 = vunpack.c.l.b16 %v55
  %v136 = vunpack.c.h.b16 %v55
  %v137 = vunpack.c.l.b16 %v56
  %v138 = vunpack.c.l.b16 %v57
  %v139 = vunpack.c.h.b16 %v57
  %v140 = vunpack.c.l.b16 %v58
  %v141 = vunpack.c.l.b16 %v59
  %v142 = vunpack.c.h.b16 %v59
  %v143 = vunpack.c.l.b16 %v60
  %v144 = vunpack.c.l.b16 %v61
  %v145 = vunpack.c.h.b16 %v61
  %v146 = vunpack.c.l.b16 %v62
  %v147 = vunpack.c.l.b16 %v63
  %v148 = vunpack.c.h.b16 %v63
  %v149 = vunpack.c.l.b16 %v64
  %v150 = vunpack.c.l.b16 %v65
  %v151 = vunpack.c.h.b16 %v65
  %v152 = vunpack.c.l.b16 %v66
  %v153 = vunpack.c.l.b16 %v67
  %v154 = vunpack.c.h.b16 %v67
  %v155 = vunpack.c.l.b16 %v68
  %v156 = vunpack.c.l.b16 %v69
  %v157 = vunpack.c.h.b16 %v69
  %v158 = vunpack.c.l.b16 %v70
  %v159 = vunpack.c.l.b16 %v71
  %v160 = vunpack.c.h.b16 %v71
  %v161 = vunpack.c.l.b16 %v72
  %v162 = vunpack.c.l.b16 %v73
  %v163 = vunpack.c.h.b16 %v73
  %v164 = vunpack.c.l.b16 %v74
  %v165 = vunpack.c.l.b16 %v75
  %v166 = vunpack.c.h.b16 %v75
  %v167 = vunpack.c.l.b16 %v76
  %v168 = vunpack.c.l.b16 %v77
  %v169 = vunpack.c.h.b16 %v77
  %v170 = vunpack.c.l.b16 %v78
  %v171 = vpack.c.b16 %v126, %v123
  %v172 = vpack.c.b16 %v127, %v124
  %v173 = vpack.c.b16 %v128, %v125
  %v174 = vpack.c.b16 %v132, %v129
  %v175 = vpack.c.b16 %v133, %v130
  %v176 = vpack.c.b16 %v134, %v131
  %v177 = vpack.c.b16 %v138, %v135
  %v178 = vpack.c.b16 %v139, %v136
  %v179 = vpack.c.b16 %v140, %v137
  %v180 = vpack.c.b16 %v144, %v141
  %v181 = vpack.c.b16 %v145, %v142
  %v182 = vpack.c.b16 %v146, %v143
  %v183 = vpack.c.b16 %v150, %v147
  %v184 = vpack.c.b16 %v151, %v148
  %v185 = vpack.c.b16 %v152, %v149
  %v186 = vpack.c.b16 %v156, %v153
  %v187 = vpack.c.b16 %v157, %v154
  %v188 = vpack.c.b16 %v158, %v155
  %v189 = vpack.c.b16 %v162, %v159
  %v190 = vpack.c.b16 %v163, %v160
  %v191 = vpack.c.b16 %v164, %v161
  %v192 = vpack.c.b16 %v168, %v165
  %v193 = vpack.c.b16 %v169, %v166
  %v194 = vpack.c.b16 %v170, %v167
  %219 = vmatprep.subr.bf16.mxu0 %v172
  %220 = vmatpush1.bf16.msra.mxu0 %v171
  %221 = vmatprep.subr.bf16.mxu0 %v175
  %222 = vmatpush1.bf16.msra.mxu0 %v174
  %223 = vmatprep.subr.bf16.mxu0 %v178
  %224 = vmatpush1.bf16.msra.mxu0 %v177
  %225 = vmatprep.subr.bf16.mxu0 %v181
  %226 = vmatpush1.bf16.msra.mxu0 %v180
  %227 = vmatprep.subr.bf16.mxu0 %v184
  %228 = vmatpush1.bf16.msra.mxu0 %v183
  %229 = vmatprep.subr.bf16.mxu0 %v187
  %230 = vmatpush1.bf16.msra.mxu0 %v186
  %231 = vmatprep.subr.bf16.mxu0 %v190
  %232 = vmatpush1.bf16.msra.mxu0 %v189
  %233 = vmatprep.subr.bf16.mxu0 %v193
  %234 = vmatpush1.bf16.msra.mxu0 %v192
  %235 = vmatprep.subr.bf16.mxu0 0
  %236 = vmatpush1.bf16.msra.mxu0 0
  %237 = vmatprep.subr.bf16.mxu0 0
  %238 = vmatpush1.bf16.msra.mxu0 0
  %239 = vmatprep.subr.bf16.mxu0 0
  %240 = vmatpush1.bf16.msra.mxu0 0
  %241 = vmatprep.subr.bf16.mxu0 0
  %242 = vmatpush1.bf16.msra.mxu0 0
  %243 = vmatprep.subr.bf16.mxu0 0
  %244 = vmatpush1.bf16.msra.mxu0 0
  %245 = vmatprep.subr.bf16.mxu0 0
  %246 = vmatpush1.bf16.msra.mxu0 0
  %247 = vmatprep.subr.bf16.mxu0 0
  %248 = vmatpush1.bf16.msra.mxu0 0
  %249 = vmatprep.subr.bf16.mxu0 0
  %250 = vmatpush1.bf16.msra.mxu0 0
  %251 = vmatprep.mubr.bf16.mxu0 0
  %252 = vmatmul.mubr.bf16.gmra.mrb[0].mxu0 %v87
  %v253 = vpop.f32.mrb[0].mxu0
  %v254 = vadd.f32 0.0, %v253
  %v255 = vpop.f32.mrb[0].mxu0
  %v256 = vadd.f32 0.0, %v255
  %v257 = vpop.f32.mrb[0].mxu0
  %v258 = vadd.f32 0.0, %v257
  %v259 = vpop.f32.mrb[0].mxu0
  %v260 = vadd.f32 0.0, %v259
  %261 = vmatprep.mubr.bf16.mxu0 0
  %262 = vmatmul.mubr.bf16.gmra.mrb[0].mxu0 %v88
  %v263 = vpop.f32.mrb[0].mxu0
  %v264 = vadd.f32 0.0, %v263
  %v265 = vpop.f32.mrb[0].mxu0
  %v266 = vadd.f32 0.0, %v265
  %v267 = vpop.f32.mrb[0].mxu0
  %v268 = vadd.f32 0.0, %v267
  %v269 = vpop.f32.mrb[0].mxu0
  %v270 = vadd.f32 0.0, %v269
  %271 = vdwg.mxu0
  %272 = vmatprep.subr.bf16.mxu0 0
  %273 = vmatpush1.bf16.msra.mxu0 %v173
  %274 = vmatprep.subr.bf16.mxu0 0
  %275 = vmatpush1.bf16.msra.mxu0 %v176
  %276 = vmatprep.subr.bf16.mxu0 0
  %277 = vmatpush1.bf16.msra.mxu0 %v179
  %278 = vmatprep.subr.bf16.mxu0 0
  %279 = vmatpush1.bf16.msra.mxu0 %v182
  %280 = vmatprep.subr.bf16.mxu0 0
  %281 = vmatpush1.bf16.msra.mxu0 %v185
  %282 = vmatprep.subr.bf16.mxu0 0
  %283 = vmatpush1.bf16.msra.mxu0 %v188
  %284 = vmatprep.subr.bf16.mxu0 0
  %285 = vmatpush1.bf16.msra.mxu0 %v191
  %286 = vmatprep.subr.bf16.mxu0 0
  %287 = vmatpush1.bf16.msra.mxu0 %v194
  %288 = vmatprep.subr.bf16.mxu0 0
  %289 = vmatpush1.bf16.msra.mxu0 0
  %290 = vmatprep.subr.bf16.mxu0 0
  %291 = vmatpush1.bf16.msra.mxu0 0
  %292 = vmatprep.subr.bf16.mxu0 0
  %293 = vmatpush1.bf16.msra.mxu0 0
  %294 = vmatprep.subr.bf16.mxu0 0
  %295 = vmatpush1.bf16.msra.mxu0 0
  %296 = vmatprep.subr.bf16.mxu0 0
  %297 = vmatpush1.bf16.msra.mxu0 0
  %298 = vmatprep.subr.bf16.mxu0 0
  %299 = vmatpush1.bf16.msra.mxu0 0
  %300 = vmatprep.subr.bf16.mxu0 0
  %301 = vmatpush1.bf16.msra.mxu0 0
  %302 = vmatprep.subr.bf16.mxu0 0
  %303 = vmatpush1.bf16.msra.mxu0 0
  %304 = vmatprep.mubr.bf16.mxu0 0
  %305 = vmatmul.mubr.bf16.gmra.mrb[0].mxu0 %v87
  %v306 = vpop.f32.mrb[0].mxu0
  %v307 = vadd.f32 0.0, %v306
  %v308 = vpop.f32.mrb[0].mxu0
  %v309 = vpop.f32.mrb[0].mxu0
  %v310 = vadd.f32 0.0, %v309
  %v311 = vpop.f32.mrb[0].mxu0
  %312 = vmatprep.mubr.bf16.mxu0 0
  %313 = vmatmul.mubr.bf16.gmra.mrb[0].mxu0 %v88
  %v314 = vpop.f32.mrb[0].mxu0
  %v315 = vadd.f32 0.0, %v314
  %v316 = vpop.f32.mrb[0].mxu0
  %v317 = vpop.f32.mrb[0].mxu0
  %v318 = vadd.f32 0.0, %v317
  %v319 = vpop.f32.mrb[0].mxu0
  %320 = vdwg.mxu0
  %v321 = vadd.f32 %v31, %v254
  %v322 = vadd.f32 %v32, %v256
  %v323 = vadd.f32 %v33, %v307
  %v324 = vadd.f32 %v34, %v258
  %v325 = vadd.f32 %v35, %v260
  %v326 = vadd.f32 %v36, %v310
  %v327 = vadd.f32 %v37, %v264
  %v328 = vadd.f32 %v38, %v266
  %v329 = vadd.f32 %v39, %v315
  %v330 = vadd.f32 %v40, %v268
  %v331 = vadd.f32 %v41, %v270
  %v332 = vadd.f32 %v42, %v318
  %333 = vst [vmem:[#allocation2] sm:$0xff] %v321
  %334 = vst [vmem:[#allocation2 + $0x8] sm:$0xff] %v322
  %335 = vst [vmem:[#allocation2 + $0x10] sm:$0xff] %v323
  %336 = vst [vmem:[#allocation2 + $0x18] sm:$0xff] %v324
  %337 = vst [vmem:[#allocation2 + $0x20] sm:$0xff] %v325
  %338 = vst [vmem:[#allocation2 + $0x28] sm:$0xff] %v326
  %339 = vst [vmem:[#allocation2 + $0x30] sm:$0xff] %v327
  %340 = vst [vmem:[#allocation2 + $0x38] sm:$0xff] %v328
  %341 = vst [vmem:[#allocation2 + $0x40] sm:$0xff] %v329
  %342 = vst [vmem:[#allocation2 + $0x48] sm:$0xff] %v330
  %343 = vst [vmem:[#allocation2 + $0x50] sm:$0xff] %v331
  %344 = vst [vmem:[#allocation2 + $0x58] sm:$0xff] %v332
  // Predicated region
  $region18: #{refine_seq2seq_forward.20} parent=0 // pred_check
    %p345 = pneg %p15
  $region19: #{refine_seq2seq_forward.20} parent=0 // pred_check_branch
    %347 = sbr.rel (%p345) target = $region21
  $region20: #{refine_seq2seq_forward.20} parent=0 // pred_region
    %v348 = vld [vmem:[#allocation2] sm:$0xff]
    %v349 = vld [vmem:[#allocation2 + $0x8] sm:$0xff]
    %v350 = vld [vmem:[#allocation2 + $0x10] sm:$0xff]
    %v351 = vld [vmem:[#allocation2 + $0x18] sm:$0xff]
    %v352 = vld [vmem:[#allocation2 + $0x20] sm:$0xff]
    %v353 = vld [vmem:[#allocation2 + $0x28] sm:$0xff]
    %v354 = vld [vmem:[#allocation2 + $0x30] sm:$0xff]
    %v355 = vld [vmem:[#allocation2 + $0x38] sm:$0xff]
    %v356 = vld [vmem:[#allocation2 + $0x40] sm:$0xff]
    %v357 = vld [vmem:[#allocation2 + $0x48] sm:$0xff]
    %v358 = vld [vmem:[#allocation2 + $0x50] sm:$0xff]
    %v359 = vld [vmem:[#allocation2 + $0x58] sm:$0xff]
    %v360 = vld [vmem:[%s2] sm:$0x7]
    %v362 = vlaneseq
    %v363 = vshrl.u32 %v362, 7
    %v364 = vsub.s32 0, %v363
    %v365 = vrot.slane %v360, %v364
    %v366 = vlaneseq
    %v367 = vshrl.u32 %v366, 7
    %v368 = vsub.s32 1, %v367
    %v369 = vrot.slane %v360, %v368
    %v370 = vlaneseq
    %v371 = vshrl.u32 %v370, 7
    %v372 = vsub.s32 2, %v371
    %v373 = vrot.slane %v360, %v372
    %v377 = vadd.f32 %v348, %v365
    %v378 = vadd.f32 %v349, %v369
    %v379 = vadd.f32 %v350, %v373
    %v380 = vadd.f32 %v351, %v365
    %v381 = vadd.f32 %v352, %v369
    %v382 = vadd.f32 %v353, %v373
    %v383 = vadd.f32 %v354, %v365
    %v384 = vadd.f32 %v355, %v369
    %v385 = vadd.f32 %v356, %v373
    %v386 = vadd.f32 %v357, %v365
    %v387 = vadd.f32 %v358, %v369
    %v388 = vadd.f32 %v359, %v373
    %v389 = vpack.c.bf16 %v380, %v377
    %v390 = vpack.c.bf16 %v381, %v378
    %v391 = vpack.c.bf16 %v382, %v379
    %v392 = vpack.c.bf16 %v386, %v383
    %v393 = vpack.c.bf16 %v387, %v384
    %v394 = vpack.c.bf16 %v388, %v385
    %v401 = vunpack.c.l.b16 %v389
    %v402 = vunpack.c.l.b16 %v390
    %v403 = vunpack.c.l.b16 %v391
    %v404 = vunpack.c.h.b16 %v389
    %v405 = vunpack.c.h.b16 %v390
    %v406 = vunpack.c.h.b16 %v391
    %v407 = vunpack.c.l.b16 %v392
    %v408 = vunpack.c.l.b16 %v393
    %v409 = vunpack.c.l.b16 %v394
    %v410 = vunpack.c.h.b16 %v392
    %v411 = vunpack.c.h.b16 %v393
    %v412 = vunpack.c.h.b16 %v394
    %v413 = vpack.c.b16 %v402, %v401
    %v414 = vpack.c.b16 %v403, %v403
    %v415 = vpack.c.b16 %v405, %v404
    %v416 = vpack.c.b16 %v406, %v406
    %v417 = vpack.c.b16 %v408, %v407
    %v418 = vpack.c.b16 %v409, %v409
    %v419 = vpack.c.b16 %v411, %v410
    %v420 = vpack.c.b16 %v412, %v412
    %429 = vst [vmem:[%s3] sm:$0xff] %v413
    %430 = vst [vmem:[%s3 + $0x8] sm:$0xf] %v414
    %431 = vst [vmem:[%s3 + $0xc] sm:$0xff] %v415
    %432 = vst [vmem:[%s3 + $0x14] sm:$0xf] %v416
    %433 = vst [vmem:[%s3 + $0x18] sm:$0xff] %v417
    %434 = vst [vmem:[%s3 + $0x20] sm:$0xf] %v418
    %435 = vst [vmem:[%s3 + $0x24] sm:$0xff] %v419
    %436 = vst [vmem:[%s3 + $0x2c] sm:$0xf] %v420
  $region21: #{refine_seq2seq_forward.20} parent=0 // pred_fallthru
    _
  // Predicated region
  $region22: #{refine_seq2seq_forward.20} parent=0 // pred_check
    _
  $region23: #{refine_seq2seq_forward.20} parent=0 // pred_check_branch
    %438 = sbr.rel (0) target = $region25
  $region24: #{refine_seq2seq_forward.20} parent=0 // pred_region
    _
  $region25: #{refine_seq2seq_forward.20} parent=0 // pred_fallthru
    _
  // Predicated region
  $region26: #{refine_seq2seq_forward.20} parent=0 // pred_check
    _
  $region27: #{refine_seq2seq_forward.20} parent=0 // pred_check_branch
    %440 = sbr.rel (0) target = $region29
  $region28: #{refine_seq2seq_forward.20} parent=0 // pred_region
    _
  $region29: #{refine_seq2seq_forward.20} parent=0 // pred_fallthru
    _

// kernel: refine_seq2seq_forward.22
$region0: #{refine_seq2seq_forward.22}
  #allocation0 [shape = 'u32[]', space=smem, size = 0x4, offset = 0x4, fixed_abs, tag = 'smem constant byte address 0x4 - core index']
  #allocation1 [shape = 'u32[144,128]{1,0:T(1,128)}', space=vmem, size = 0x12000, scoped, tag = 'internal scratch']
  #allocation2 [shape = 'f32[32,128]{1,0:T(8,128)}', space=vmem, size = 0x4000, scoped, tag = 'scratch operand']
  %s0 = inlined_call_operand.vmem [shape: bf16[32,128], index: 0, kind: input, shape index: {}]
  %s1 = inlined_call_operand.vmem [shape: bf16[128,128], index: 1, kind: input, shape index: {}]
  %s2 = inlined_call_operand.vmem [shape: f32[1,128], index: 2, kind: input, shape index: {}]
  %s3 = inlined_call_operand.vmem [shape: bf16[32,128], index: 3, kind: output, shape index: {}]
  %s4 = sld [smem:[#allocation0]]
  $region30: #{refine_seq2seq_forward.22} parent=0
    _
  %s6 = ssub.s32 1, %s4
  %s7 = scalar_select 0, %s6, %s4
  // Predicated region
  $region2: #{refine_seq2seq_forward.22} parent=0 // pred_check
    _
  $region3: #{refine_seq2seq_forward.22} parent=0 // pred_check_branch
    %9 = sbr.rel (0) target = $region5
  $region4: #{refine_seq2seq_forward.22} parent=0 // pred_region
    _
  $region5: #{refine_seq2seq_forward.22} parent=0 // pred_fallthru
    _
  // Predicated region
  $region6: #{refine_seq2seq_forward.22} parent=0 // pred_check
    _
  $region7: #{refine_seq2seq_forward.22} parent=0 // pred_check_branch
    %11 = sbr.rel (0) target = $region9
  $region8: #{refine_seq2seq_forward.22} parent=0 // pred_region
    _
  $region9: #{refine_seq2seq_forward.22} parent=0 // pred_fallthru
    _
  // Predicated region
  $region10: #{refine_seq2seq_forward.22} parent=0 // pred_check
    _
  $region11: #{refine_seq2seq_forward.22} parent=0 // pred_check_branch
    %13 = sbr.rel (0) target = $region13
  $region12: #{refine_seq2seq_forward.22} parent=0 // pred_region
    _
  $region13: #{refine_seq2seq_forward.22} parent=0 // pred_fallthru
    _
  %p15 = scmp.eq.s32.totalorder 0, 0
  // Predicated region
  $region14: #{refine_seq2seq_forward.22} parent=0 // pred_check
    %p16 = pneg %p15
  $region15: #{refine_seq2seq_forward.22} parent=0 // pred_check_branch
    %18 = sbr.rel (%p16) target = $region17
  $region16: #{refine_seq2seq_forward.22} parent=0 // pred_region
    %19 = vst [vmem:[#allocation2] sm:$0xff] 0.0
    %20 = vst [vmem:[#allocation2 + $0x8] sm:$0xff] 0.0
    %21 = vst [vmem:[#allocation2 + $0x10] sm:$0xff] 0.0
    %22 = vst [vmem:[#allocation2 + $0x18] sm:$0xff] 0.0
  $region17: #{refine_seq2seq_forward.22} parent=0 // pred_fallthru
    _
  %v23 = vld [vmem:[#allocation2] sm:$0xff]
  %v24 = vld [vmem:[#allocation2 + $0x8] sm:$0xff]
  %v25 = vld [vmem:[#allocation2 + $0x10] sm:$0xff]
  %v26 = vld [vmem:[#allocation2 + $0x18] sm:$0xff]
  %v27 = vld [vmem:[%s0] sm:$0xf]
  %v28 = vld [vmem:[%s0 + $0x4] sm:$0xf]
  %v29 = vld [vmem:[%s0 + $0x8] sm:$0xf]
  %v30 = vld [vmem:[%s0 + $0xc] sm:$0xf]
  %v31 = vld [vmem:[%s1] sm:$0xf]
  %v32 = vld [vmem:[%s1 + $0x4] sm:$0xf]
  %v33 = vld [vmem:[%s1 + $0x8] sm:$0xf]
  %v34 = vld [vmem:[%s1 + $0xc] sm:$0xf]
  %v35 = vld [vmem:[%s1 + $0x10] sm:$0xf]
  %v36 = vld [vmem:[%s1 + $0x14] sm:$0xf]
  %v37 = vld [vmem:[%s1 + $0x18] sm:$0xf]
  %v38 = vld [vmem:[%s1 + $0x1c] sm:$0xf]
  %v39 = vld [vmem:[%s1 + $0x20] sm:$0xf]
  %v40 = vld [vmem:[%s1 + $0x24] sm:$0xf]
  %v41 = vld [vmem:[%s1 + $0x28] sm:$0xf]
  %v42 = vld [vmem:[%s1 + $0x2c] sm:$0xf]
  %v43 = vld [vmem:[%s1 + $0x30] sm:$0xf]
  %v44 = vld [vmem:[%s1 + $0x34] sm:$0xf]
  %v45 = vld [vmem:[%s1 + $0x38] sm:$0xf]
  %v46 = vld [vmem:[%s1 + $0x3c] sm:$0xf]
  %v51 = vunpack.c.l.b16 %v27
  %v52 = vunpack.c.l.b16 %v28
  %v53 = vunpack.c.l.b16 %v29
  %v54 = vunpack.c.l.b16 %v30
  %v55 = vpack.c.b16 %v52, %v51
  %v56 = vpack.c.b16 %v54, %v53
  %v75 = vunpack.c.l.b16 %v31
  %v76 = vunpack.c.l.b16 %v32
  %v77 = vunpack.c.l.b16 %v33
  %v78 = vunpack.c.l.b16 %v34
  %v79 = vunpack.c.l.b16 %v35
  %v80 = vunpack.c.l.b16 %v36
  %v81 = vunpack.c.l.b16 %v37
  %v82 = vunpack.c.l.b16 %v38
  %v83 = vunpack.c.l.b16 %v39
  %v84 = vunpack.c.l.b16 %v40
  %v85 = vunpack.c.l.b16 %v41
  %v86 = vunpack.c.l.b16 %v42
  %v87 = vunpack.c.l.b16 %v43
  %v88 = vunpack.c.l.b16 %v44
  %v89 = vunpack.c.l.b16 %v45
  %v90 = vunpack.c.l.b16 %v46
  %v91 = vpack.c.b16 %v76, %v75
  %v92 = vpack.c.b16 %v78, %v77
  %v93 = vpack.c.b16 %v80, %v79
  %v94 = vpack.c.b16 %v82, %v81
  %v95 = vpack.c.b16 %v84, %v83
  %v96 = vpack.c.b16 %v86, %v85
  %v97 = vpack.c.b16 %v88, %v87
  %v98 = vpack.c.b16 %v90, %v89
  %107 = vmatprep.subr.bf16.mxu0 0
  %108 = vmatpush1.bf16.msra.mxu0 %v91
  %109 = vmatprep.subr.bf16.mxu0 0
  %110 = vmatpush1.bf16.msra.mxu0 %v92
  %111 = vmatprep.subr.bf16.mxu0 0
  %112 = vmatpush1.bf16.msra.mxu0 %v93
  %113 = vmatprep.subr.bf16.mxu0 0
  %114 = vmatpush1.bf16.msra.mxu0 %v94
  %115 = vmatprep.subr.bf16.mxu0 0
  %116 = vmatpush1.bf16.msra.mxu0 %v95
  %117 = vmatprep.subr.bf16.mxu0 0
  %118 = vmatpush1.bf16.msra.mxu0 %v96
  %119 = vmatprep.subr.bf16.mxu0 0
  %120 = vmatpush1.bf16.msra.mxu0 %v97
  %121 = vmatprep.subr.bf16.mxu0 0
  %122 = vmatpush1.bf16.msra.mxu0 %v98
  %123 = vmatprep.subr.bf16.mxu0 0
  %124 = vmatpush1.bf16.msra.mxu0 0
  %125 = vmatprep.subr.bf16.mxu0 0
  %126 = vmatpush1.bf16.msra.mxu0 0
  %127 = vmatprep.subr.bf16.mxu0 0
  %128 = vmatpush1.bf16.msra.mxu0 0
  %129 = vmatprep.subr.bf16.mxu0 0
  %130 = vmatpush1.bf16.msra.mxu0 0
  %131 = vmatprep.subr.bf16.mxu0 0
  %132 = vmatpush1.bf16.msra.mxu0 0
  %133 = vmatprep.subr.bf16.mxu0 0
  %134 = vmatpush1.bf16.msra.mxu0 0
  %135 = vmatprep.subr.bf16.mxu0 0
  %136 = vmatpush1.bf16.msra.mxu0 0
  %137 = vmatprep.subr.bf16.mxu0 0
  %138 = vmatpush1.bf16.msra.mxu0 0
  %139 = vmatprep.mubr.bf16.mxu0 0
  %140 = vmatmul.mubr.bf16.gmra.mrb[0].mxu0 %v55
  %v141 = vpop.f32.mrb[0].mxu0
  %v142 = vadd.f32 0.0, %v141
  %v143 = vpop.f32.mrb[0].mxu0
  %v144 = vpop.f32.mrb[0].mxu0
  %v145 = vadd.f32 0.0, %v144
  %v146 = vpop.f32.mrb[0].mxu0
  %147 = vmatprep.mubr.bf16.mxu0 0
  %148 = vmatmul.mubr.bf16.gmra.mrb[0].mxu0 %v56
  %v149 = vpop.f32.mrb[0].mxu0
  %v150 = vadd.f32 0.0, %v149
  %v151 = vpop.f32.mrb[0].mxu0
  %v152 = vpop.f32.mrb[0].mxu0
  %v153 = vadd.f32 0.0, %v152
  %v154 = vpop.f32.mrb[0].mxu0
  %155 = vdwg.mxu0
  %v156 = vadd.f32 %v23, %v142
  %v157 = vadd.f32 %v24, %v145
  %v158 = vadd.f32 %v25, %v150
  %v159 = vadd.f32 %v26, %v153
  %160 = vst [vmem:[#allocation2] sm:$0xff] %v156
  %161 = vst [vmem:[#allocation2 + $0x8] sm:$0xff] %v157
  %162 = vst [vmem:[#allocation2 + $0x10] sm:$0xff] %v158
  %163 = vst [vmem:[#allocation2 + $0x18] sm:$0xff] %v159
  // Predicated region
  $region18: #{refine_seq2seq_forward.22} parent=0 // pred_check
    %p164 = pneg %p15
  $region19: #{refine_seq2seq_forward.22} parent=0 // pred_check_branch
    %166 = sbr.rel (%p164) target = $region21
  $region20: #{refine_seq2seq_forward.22} parent=0 // pred_region
    %v167 = vld [vmem:[#allocation2] sm:$0xff]
    %v168 = vld [vmem:[#allocation2 + $0x8] sm:$0xff]
    %v169 = vld [vmem:[#allocation2 + $0x10] sm:$0xff]
    %v170 = vld [vmem:[#allocation2 + $0x18] sm:$0xff]
    %v171 = vld [vmem:[%s2] sm:$0x1]
    %v173 = vlaneseq
    %v174 = vshrl.u32 %v173, 7
    %v175 = vsub.s32 0, %v174
    %v176 = vrot.slane %v171, %v175
    %v178 = vadd.f32 %v167, %v176
    %v179 = vadd.f32 %v168, %v176
    %v180 = vadd.f32 %v169, %v176
    %v181 = vadd.f32 %v170, %v176
    %v182 = vpack.c.bf16 %v179, %v178
    %v183 = vpack.c.bf16 %v181, %v180
    %v186 = vunpack.c.l.b16 %v182
    %v187 = vunpack.c.h.b16 %v182
    %v188 = vunpack.c.l.b16 %v183
    %v189 = vunpack.c.h.b16 %v183
    %v190 = vpack.c.b16 %v186, %v186
    %v191 = vpack.c.b16 %v187, %v187
    %v192 = vpack.c.b16 %v188, %v188
    %v193 = vpack.c.b16 %v189, %v189
    %198 = vst [vmem:[%s3] sm:$0xf] %v190
    %199 = vst [vmem:[%s3 + $0x4] sm:$0xf] %v191
    %200 = vst [vmem:[%s3 + $0x8] sm:$0xf] %v192
    %201 = vst [vmem:[%s3 + $0xc] sm:$0xf] %v193
  $region21: #{refine_seq2seq_forward.22} parent=0 // pred_fallthru
    _
  // Predicated region
  $region22: #{refine_seq2seq_forward.22} parent=0 // pred_check
    _
  $region23: #{refine_seq2seq_forward.22} parent=0 // pred_check_branch
    %203 = sbr.rel (0) target = $region25
  $region24: #{refine_seq2seq_forward.22} parent=0 // pred_region
    _
  $region25: #{refine_seq2seq_forward.22} parent=0 // pred_fallthru
    _
  // Predicated region
  $region26: #{refine_seq2seq_forward.22} parent=0 // pred_check
    _
  $region27: #{refine_seq2seq_forward.22} parent=0 // pred_check_branch
    %205 = sbr.rel (0) target = $region29
  $region28: #{refine_seq2seq_forward.22} parent=0 // pred_region
    _
  $region29: #{refine_seq2seq_forward.22} parent=0 // pred_fallthru
    _

// kernel: refine_seq2seq_forward.21
$region0: #{refine_seq2seq_forward.21}
  #allocation0 [shape = 'u32[]', space=smem, size = 0x4, offset = 0x4, fixed_abs, tag = 'smem constant byte address 0x4 - core index']
  #allocation1 [shape = 'u32[144,128]{1,0:T(1,128)}', space=vmem, size = 0x12000, scoped, tag = 'internal scratch']
  #allocation2 [shape = 'f32[4,16,1]{2,1,0:T(8,128)}', space=vmem, size = 0x8000, scoped, tag = 'scratch operand']
  #allocation3 [shape = 'f32[4,16,1]{2,1,0:T(8,128)}', space=vmem, size = 0x8000, scoped, tag = 'scratch operand']
  #allocation4 [shape = 'f32[16,128]{1,0:T(8,128)}', space=vmem, size = 0x2000, scoped, tag = 'scratch operand']
  %s0 = inlined_call_operand.vmem [shape: bf16[2,16,384], index: 0, kind: input, shape index: {}, may-alias: {0,1,2}]
  %s1 = inlined_call_operand.vmem [shape: bf16[2,16,384], index: 1, kind: input, shape index: {}, may-alias: {0,1,2}]
  %s2 = inlined_call_operand.vmem [shape: bf16[2,16,384], index: 2, kind: input, shape index: {}, may-alias: {0,1,2}]
  %s3 = inlined_call_operand.vmem [shape: f32[2,1,16], index: 3, kind: input, shape index: {}]
  %s4 = inlined_call_operand.vmem [shape: bf16[2,16,128], index: 4, kind: output, shape index: {}]
  %s5 = sld [smem:[#allocation0]]
  $region180: #{refine_seq2seq_forward.21} parent=0
    _
  %s7 = ssub.s32 1, %s5
  %s8 = scalar_select 0, %s7, %s5
  $region1: #{refine_seq2seq_forward.21} parent=0
    #allocation5 [shape = 'u8[8192]{0}', space=vmem, size = 0x2000, scoped, tag = 'input window, operand 0']
    #allocation6 [shape = 'u8[8192]{0}', space=vmem, size = 0x2000, scoped, tag = 'input window, operand 1']
    #allocation7 [shape = 'u8[8192]{0}', space=vmem, size = 0x2000, scoped, tag = 'input window, operand 2']
    loop: start=0, step=1, limit=4
    $region2: #{refine_seq2seq_forward.21} parent=1 // loop_pre_header
      _
    $region3: #{refine_seq2seq_forward.21} parent=1 // loop_header
      %s10 = sphi 0, %s14
      %p11 = scmp.ge.s32.totalorder %s10, 4
      %s17 = sphi 0, %s36
      %s18 = sphi 0, %s32
      %s19 = sphi 0, %s28
      %s20 = sphi 0, %s17
      %s21 = sphi 0, %s18
      %s22 = sphi 0, %s19
      %s23 = sphi 0, %s20
      %s24 = sphi 0, %s21
      %s25 = sphi 0, %s22
      %s41 = sphi 0, %s43
      %s44 = sphi 0, %s41
      %s45 = sphi 0, %s44
      %s61 = sphi 0, %s45
      %s69 = sphi 0, %s71
      %s72 = sphi 0, %s69
      %s73 = sphi 0, %s72
      %s89 = sphi 0, %s73
      %s97 = sphi 0, %s99
      %s100 = sphi 0, %s97
      %s101 = sphi 0, %s100
      %s117 = sphi 0, %s101
      %s125 = sphi 0, %s127
      %s128 = sphi 0, %s125
      %s129 = sphi 0, %s128
      %s145 = sphi 0, %s129
      %s153 = sphi 0, %s155
      %s156 = sphi 0, %s153
      %s157 = sphi 0, %s156
      %s173 = sphi 0, %s157
    $region4: #{refine_seq2seq_forward.21} parent=1 // loop_header_branch
      %13 = sbr.rel (%p11) target = $region8
    $region5: #{refine_seq2seq_forward.21} parent=1 // loop_body
      %s15 = ssub.s32 %s10, 1
      %s16 = ssub.s32 %s10, 2
      %s26 = sadd.s32 1, %s19
      %p27 = scmp.ge.s32.totalorder %s26, 1
      %s28 = scalar_select %p27, 0, %s26
      %s29 = sadd.s32 1, %s18
      %s30 = scalar_select %p27, %s29, %s18
      %p31 = scmp.ge.s32.totalorder %s30, 1
      %s32 = scalar_select %p31, 0, %s30
      %s33 = sadd.s32 1, %s17
      %s34 = scalar_select %p31, %s33, %s17
      %p35 = scmp.ge.s32.totalorder %s34, 2
      %s36 = scalar_select %p35, 0, %s34
      %s37 = ssub.s32 %s17, %s36
      %s38 = ssub.s32 %s18, %s32
      %s39 = sor.u32 %s37, %s38
      %p40 = scmp.eq.s32.totalorder %s39, 0
      %s42 = sadd.s32 %s41, 1
      %s43 = scalar_select %p40, %s41, %s42
      %p46 = pneg %p40
      %p47 = scmp.eq.s32.totalorder %s10, 1
      %p48 = por %p46, %p47
      %p49 = scmp.ne.s32.totalorder %s41, %s44
      %p50 = scmp.eq.s32.totalorder %s10, 0
      %p51 = por %p49, %p50
      %p52 = scmp.ne.s32.totalorder %s41, %s44
      %p53 = scmp.eq.s32.totalorder %s15, 1
      %p54 = por %p52, %p53
      %p55 = scmp.ne.s32.totalorder %s44, %s45
      %p56 = scmp.eq.s32.totalorder %s15, 0
      %p57 = por %p55, %p56
      %p58 = scmp.ne.s32.totalorder %s44, %s45
      %p59 = scmp.eq.s32.totalorder %s16, 1
      %p60 = por %p58, %p59
      %p62 = scmp.ne.s32.totalorder %s45, %s61
      %p63 = scmp.eq.s32.totalorder %s16, 0
      %p64 = por %p62, %p63
      %s65 = ssub.s32 %s17, %s36
      %s66 = ssub.s32 %s19, %s28
      %s67 = sor.u32 %s65, %s66
      %p68 = scmp.eq.s32.totalorder %s67, 0
      %s70 = sadd.s32 %s69, 1
      %s71 = scalar_select %p68, %s69, %s70
      %p74 = pneg %p68
      %p75 = scmp.eq.s32.totalorder %s10, 1
      %p76 = por %p74, %p75
      %p77 = scmp.ne.s32.totalorder %s69, %s72
      %p78 = scmp.eq.s32.totalorder %s10, 0
      %p79 = por %p77, %p78
      %p80 = scmp.ne.s32.totalorder %s69, %s72
      %p81 = scmp.eq.s32.totalorder %s15, 1
      %p82 = por %p80, %p81
      %p83 = scmp.ne.s32.totalorder %s72, %s73
      %p84 = scmp.eq.s32.totalorder %s15, 0
      %p85 = por %p83, %p84
      %p86 = scmp.ne.s32.totalorder %s72, %s73
      %p87 = scmp.eq.s32.totalorder %s16, 1
      %p88 = por %p86, %p87
      %p90 = scmp.ne.s32.totalorder %s73, %s89
      %p91 = scmp.eq.s32.totalorder %s16, 0
      %p92 = por %p90, %p91
      %s93 = ssub.s32 %s17, %s36
      %s94 = ssub.s32 %s19, %s28
      %s95 = sor.u32 %s93, %s94
      %p96 = scmp.eq.s32.totalorder %s95, 0
      %s98 = sadd.s32 %s97, 1
      %s99 = scalar_select %p96, %s97, %s98
      %p102 = pneg %p96
      %p103 = scmp.eq.s32.totalorder %s10, 1
      %p104 = por %p102, %p103
      %p105 = scmp.ne.s32.totalorder %s97, %s100
      %p106 = scmp.eq.s32.totalorder %s10, 0
      %p107 = por %p105, %p106
      %p108 = scmp.ne.s32.totalorder %s97, %s100
      %p109 = scmp.eq.s32.totalorder %s15, 1
      %p110 = por %p108, %p109
      %p111 = scmp.ne.s32.totalorder %s100, %s101
      %p112 = scmp.eq.s32.totalorder %s15, 0
      %p113 = por %p111, %p112
      %p114 = scmp.ne.s32.totalorder %s100, %s101
      %p115 = scmp.eq.s32.totalorder %s16, 1
      %p116 = por %p114, %p115
      %p118 = scmp.ne.s32.totalorder %s101, %s117
      %p119 = scmp.eq.s32.totalorder %s16, 0
      %p120 = por %p118, %p119
      %s121 = ssub.s32 %s17, %s36
      %s122 = ssub.s32 %s19, %s28
      %s123 = sor.u32 %s121, %s122
      %p124 = scmp.eq.s32.totalorder %s123, 0
      %s126 = sadd.s32 %s125, 1
      %s127 = scalar_select %p124, %s125, %s126
      %p130 = pneg %p124
      %p131 = scmp.eq.s32.totalorder %s10, 1
      %p132 = por %p130, %p131
      %p133 = scmp.ne.s32.totalorder %s125, %s128
      %p134 = scmp.eq.s32.totalorder %s10, 0
      %p135 = por %p133, %p134
      %p136 = scmp.ne.s32.totalorder %s125, %s128
      %p137 = scmp.eq.s32.totalorder %s15, 1
      %p138 = por %p136, %p137
      %p139 = scmp.ne.s32.totalorder %s128, %s129
      %p140 = scmp.eq.s32.totalorder %s15, 0
      %p141 = por %p139, %p140
      %p142 = scmp.ne.s32.totalorder %s128, %s129
      %p143 = scmp.eq.s32.totalorder %s16, 1
      %p144 = por %p142, %p143
      %p146 = scmp.ne.s32.totalorder %s129, %s145
      %p147 = scmp.eq.s32.totalorder %s16, 0
      %p148 = por %p146, %p147
      %s149 = ssub.s32 %s17, %s36
      %s150 = ssub.s32 %s18, %s32
      %s151 = sor.u32 %s149, %s150
      %p152 = scmp.eq.s32.totalorder %s151, 0
      %s154 = sadd.s32 %s153, 1
      %s155 = scalar_select %p152, %s153, %s154
      %p158 = pneg %p152
      %p159 = scmp.eq.s32.totalorder %s10, 1
      %p160 = por %p158, %p159
      %p161 = scmp.ne.s32.totalorder %s153, %s156
      %p162 = scmp.eq.s32.totalorder %s10, 0
      %p163 = por %p161, %p162
      %p164 = scmp.ne.s32.totalorder %s153, %s156
      %p165 = scmp.eq.s32.totalorder %s15, 1
      %p166 = por %p164, %p165
      %p167 = scmp.ne.s32.totalorder %s156, %s157
      %p168 = scmp.eq.s32.totalorder %s15, 0
      %p169 = por %p167, %p168
      %p170 = scmp.ne.s32.totalorder %s156, %s157
      %p171 = scmp.eq.s32.totalorder %s16, 1
      %p172 = por %p170, %p171
      %p174 = scmp.ne.s32.totalorder %s157, %s173
      %p175 = scmp.eq.s32.totalorder %s16, 0
      %p176 = por %p174, %p175
      %p177 = scmp.le.s32.totalorder 1, %s10
      %p178 = scmp.lt.s32.totalorder %s10, 3
      %p179 = pnand %p177, %p178
      %p180 = pneg %p179
      // Predicated region
      $region9: #{refine_seq2seq_forward.21} parent=5 // pred_check
        _
      $region10: #{refine_seq2seq_forward.21} parent=5 // pred_check_branch
        %182 = sbr.rel (%p179) target = $region12
      $region11: #{refine_seq2seq_forward.21} parent=5 // pred_region
        %s183 = ssub.s32 %s10, 1
      $region12: #{refine_seq2seq_forward.21} parent=5 // pred_fallthru
        _
      %p184 = scmp.lt.s32.totalorder %s10, 2
      // Predicated region
      $region13: #{refine_seq2seq_forward.21} parent=5 // pred_check
        %p185 = pneg %p184
      $region14: #{refine_seq2seq_forward.21} parent=5 // pred_check_branch
        %187 = sbr.rel (%p185) target = $region16
      $region15: #{refine_seq2seq_forward.21} parent=5 // pred_region
        // Predicated region
        $region17: #{refine_seq2seq_forward.21} parent=15 // pred_check
          %p188 = pneg %p51
        $region18: #{refine_seq2seq_forward.21} parent=15 // pred_check_branch
          %190 = sbr.rel (%p188) target = $region20
        $region19: #{refine_seq2seq_forward.21} parent=15 // pred_region
          %s191 = sand.u32 %s41, 1
          %s192 = sand.u32 %s41, 1
          %s193 = smul.addr %s192, 8
          %s194 = scalar_lea.vmem [#allocation5], %s193
          %s195 = smul.u32 2, %s18
          %s196 = smul.addr %s195, 3
          %s197 = smul.addr %s17, 6
          %s198 = sadd.s32 %s196, %s197
          %s199 = smul.addr %s198, 4
          %s200 = scalar_lea.vmem %s0, %s199
          // Predicated region
          $region21: #{refine_seq2seq_forward.21} parent=19 // pred_check
            _
          $region22: #{refine_seq2seq_forward.21} parent=19 // pred_check_branch
            %202 = sbr.rel (0) target = $region24
          $region23: #{refine_seq2seq_forward.21} parent=19 // pred_region
            // Predicated region
            $region25: #{refine_seq2seq_forward.21} parent=23 // pred_check
              _
            $region26: #{refine_seq2seq_forward.21} parent=23 // pred_check_branch
              %204 = sbr.rel target = $region28
            $region27: #{refine_seq2seq_forward.21} parent=23 // pred_region
              // Predicated region
              $region40: #{refine_seq2seq_forward.21} parent=27 // pred_check
                _
              $region41: #{refine_seq2seq_forward.21} parent=27 // pred_check_branch
                %221 = sbr.rel (0) target = $region43
              $region42: #{refine_seq2seq_forward.21} parent=27 // pred_region
                loop: start=0, step=1, limit=1
                $region44: #{refine_seq2seq_forward.21} parent=42 // loop_pre_header
                  _
                $region45: #{refine_seq2seq_forward.21} parent=42 // loop_header
                  %s223 = sphi 0, %s227
                  %p224 = scmp.ge.s32.totalorder %s223, 1
                  %s228 = sphi %s200, %s200
                  %s229 = sphi %s194, %s194
                $region46: #{refine_seq2seq_forward.21} parent=42 // loop_header_branch
                  %226 = sbr.rel (%p224) target = $region50
                $region47: #{refine_seq2seq_forward.21} parent=42 // loop_body
                  _
                $region48: #{refine_seq2seq_forward.21} parent=42 // loop_footer
                  %s227 = sadd.s32 1, %s223
                $region49: #{refine_seq2seq_forward.21} parent=42 // loop_footer_branch
                  %222 = sbr.rel target = $region45
                $region50: #{refine_seq2seq_forward.21} parent=42 // loop_exit
                  _
                loop: start=0, step=1, limit=1
                $region51: #{refine_seq2seq_forward.21} parent=42 // loop_pre_header
                  _
                $region52: #{refine_seq2seq_forward.21} parent=42 // loop_header
                  %s232 = sphi 0, %s236
                  %p233 = scmp.ge.s32.totalorder %s232, 1
                  %s237 = sphi %s200, %s200
                  %s238 = sphi %s194, %s194
                $region53: #{refine_seq2seq_forward.21} parent=42 // loop_header_branch
                  %235 = sbr.rel (%p233) target = $region57
                $region54: #{refine_seq2seq_forward.21} parent=42 // loop_body
                  %v239 = vld [vmem:[%s237] sm:$0xf]
                  %240 = vst [vmem:[%s238] sm:$0xf] %v239
                  %v241 = vld [vmem:[%s237 + $0xc] sm:$0xf]
                  %242 = vst [vmem:[%s238 + $0x4] sm:$0xf] %v241
                $region55: #{refine_seq2seq_forward.21} parent=42 // loop_footer
                  %s236 = sadd.s32 1, %s232
                $region56: #{refine_seq2seq_forward.21} parent=42 // loop_footer_branch
                  %231 = sbr.rel target = $region52
                $region57: #{refine_seq2seq_forward.21} parent=42 // loop_exit
                  _
              $region43: #{refine_seq2seq_forward.21} parent=27 // pred_fallthru
                _
            $region28: #{refine_seq2seq_forward.21} parent=23 // pred_fallthru
              _
            // Predicated region
            $region29: #{refine_seq2seq_forward.21} parent=23 // pred_check
              _
            $region30: #{refine_seq2seq_forward.21} parent=23 // pred_check_branch
              %206 = sbr.rel (0) target = $region32
            $region31: #{refine_seq2seq_forward.21} parent=23 // pred_region
              loop: start=0, step=1, limit=1
              $region33: #{refine_seq2seq_forward.21} parent=31 // loop_pre_header
                _
              $region34: #{refine_seq2seq_forward.21} parent=31 // loop_header
                %s209 = sphi 0, %s213
                %p210 = scmp.ge.s32.totalorder %s209, 1
                %s214 = sphi %s200, %s200
                %s215 = sphi %s194, %s194
              $region35: #{refine_seq2seq_forward.21} parent=31 // loop_header_branch
                %212 = sbr.rel (%p210) target = $region39
              $region36: #{refine_seq2seq_forward.21} parent=31 // loop_body
                %v216 = vld [vmem:[%s214] sm:$0xf]
                %217 = vst [vmem:[%s215] sm:$0xf] %v216
                %v218 = vld [vmem:[%s214 + $0xc] sm:$0xf]
                %219 = vst [vmem:[%s215 + $0x4] sm:$0xf] %v218
              $region37: #{refine_seq2seq_forward.21} parent=31 // loop_footer
                %s213 = sadd.s32 1, %s209
              $region38: #{refine_seq2seq_forward.21} parent=31 // loop_footer_branch
                %208 = sbr.rel target = $region34
              $region39: #{refine_seq2seq_forward.21} parent=31 // loop_exit
                _
            $region32: #{refine_seq2seq_forward.21} parent=23 // pred_fallthru
              _
          $region24: #{refine_seq2seq_forward.21} parent=19 // pred_fallthru
            _
          %243 = vnop
        $region20: #{refine_seq2seq_forward.21} parent=15 // pred_fallthru
          _
        // Predicated region
        $region58: #{refine_seq2seq_forward.21} parent=15 // pred_check
          %p244 = pneg %p79
        $region59: #{refine_seq2seq_forward.21} parent=15 // pred_check_branch
          %246 = sbr.rel (%p244) target = $region61
        $region60: #{refine_seq2seq_forward.21} parent=15 // pred_region
          %s247 = sand.u32 %s69, 1
          %s248 = sand.u32 %s69, 1
          %s249 = smul.addr %s248, 8
          %s250 = scalar_lea.vmem [#allocation6], %s249
          %s251 = smul.u32 2, %s19
          %s252 = smul.addr %s251, 3
          %s253 = sadd.s32 1, %s252
          %s254 = smul.addr %s17, 6
          %s255 = sadd.s32 %s253, %s254
          %s256 = smul.addr %s255, 4
          %s257 = scalar_lea.vmem %s1, %s256
          // Predicated region
          $region62: #{refine_seq2seq_forward.21} parent=60 // pred_check
            _
          $region63: #{refine_seq2seq_forward.21} parent=60 // pred_check_branch
            %259 = sbr.rel (0) target = $region65
          $region64: #{refine_seq2seq_forward.21} parent=60 // pred_region
            // Predicated region
            $region66: #{refine_seq2seq_forward.21} parent=64 // pred_check
              _
            $region67: #{refine_seq2seq_forward.21} parent=64 // pred_check_branch
              %261 = sbr.rel target = $region69
            $region68: #{refine_seq2seq_forward.21} parent=64 // pred_region
              // Predicated region
              $region81: #{refine_seq2seq_forward.21} parent=68 // pred_check
                _
              $region82: #{refine_seq2seq_forward.21} parent=68 // pred_check_branch
                %278 = sbr.rel (0) target = $region84
              $region83: #{refine_seq2seq_forward.21} parent=68 // pred_region
                loop: start=0, step=1, limit=1
                $region85: #{refine_seq2seq_forward.21} parent=83 // loop_pre_header
                  _
                $region86: #{refine_seq2seq_forward.21} parent=83 // loop_header
                  %s280 = sphi 0, %s284
                  %p281 = scmp.ge.s32.totalorder %s280, 1
                  %s285 = sphi %s257, %s257
                  %s286 = sphi %s250, %s250
                $region87: #{refine_seq2seq_forward.21} parent=83 // loop_header_branch
                  %283 = sbr.rel (%p281) target = $region91
                $region88: #{refine_seq2seq_forward.21} parent=83 // loop_body
                  _
                $region89: #{refine_seq2seq_forward.21} parent=83 // loop_footer
                  %s284 = sadd.s32 1, %s280
                $region90: #{refine_seq2seq_forward.21} parent=83 // loop_footer_branch
                  %279 = sbr.rel target = $region86
                $region91: #{refine_seq2seq_forward.21} parent=83 // loop_exit
                  _
                loop: start=0, step=1, limit=1
                $region92: #{refine_seq2seq_forward.21} parent=83 // loop_pre_header
                  _
                $region93: #{refine_seq2seq_forward.21} parent=83 // loop_header
                  %s289 = sphi 0, %s293
                  %p290 = scmp.ge.s32.totalorder %s289, 1
                  %s294 = sphi %s257, %s257
                  %s295 = sphi %s250, %s250
                $region94: #{refine_seq2seq_forward.21} parent=83 // loop_header_branch
                  %292 = sbr.rel (%p290) target = $region98
                $region95: #{refine_seq2seq_forward.21} parent=83 // loop_body
                  %v296 = vld [vmem:[%s294] sm:$0xf]
                  %297 = vst [vmem:[%s295] sm:$0xf] %v296
                  %v298 = vld [vmem:[%s294 + $0xc] sm:$0xf]
                  %299 = vst [vmem:[%s295 + $0x4] sm:$0xf] %v298
                $region96: #{refine_seq2seq_forward.21} parent=83 // loop_footer
                  %s293 = sadd.s32 1, %s289
                $region97: #{refine_seq2seq_forward.21} parent=83 // loop_footer_branch
                  %288 = sbr.rel target = $region93
                $region98: #{refine_seq2seq_forward.21} parent=83 // loop_exit
                  _
              $region84: #{refine_seq2seq_forward.21} parent=68 // pred_fallthru
                _
            $region69: #{refine_seq2seq_forward.21} parent=64 // pred_fallthru
              _
            // Predicated region
            $region70: #{refine_seq2seq_forward.21} parent=64 // pred_check
              _
            $region71: #{refine_seq2seq_forward.21} parent=64 // pred_check_branch
              %263 = sbr.rel (0) target = $region73
            $region72: #{refine_seq2seq_forward.21} parent=64 // pred_region
              loop: start=0, step=1, limit=1
              $region74: #{refine_seq2seq_forward.21} parent=72 // loop_pre_header
                _
              $region75: #{refine_seq2seq_forward.21} parent=72 // loop_header
                %s266 = sphi 0, %s270
                %p267 = scmp.ge.s32.totalorder %s266, 1
                %s271 = sphi %s257, %s257
                %s272 = sphi %s250, %s250
              $region76: #{refine_seq2seq_forward.21} parent=72 // loop_header_branch
                %269 = sbr.rel (%p267) target = $region80
              $region77: #{refine_seq2seq_forward.21} parent=72 // loop_body
                %v273 = vld [vmem:[%s271] sm:$0xf]
                %274 = vst [vmem:[%s272] sm:$0xf] %v273
                %v275 = vld [vmem:[%s271 + $0xc] sm:$0xf]
                %276 = vst [vmem:[%s272 + $0x4] sm:$0xf] %v275
              $region78: #{refine_seq2seq_forward.21} parent=72 // loop_footer
                %s270 = sadd.s32 1, %s266
              $region79: #{refine_seq2seq_forward.21} parent=72 // loop_footer_branch
                %265 = sbr.rel target = $region75
              $region80: #{refine_seq2seq_forward.21} parent=72 // loop_exit
                _
            $region73: #{refine_seq2seq_forward.21} parent=64 // pred_fallthru
              _
          $region65: #{refine_seq2seq_forward.21} parent=60 // pred_fallthru
            _
          %300 = vnop
        $region61: #{refine_seq2seq_forward.21} parent=15 // pred_fallthru
          _
        // Predicated region
        $region99: #{refine_seq2seq_forward.21} parent=15 // pred_check
          %p301 = pneg %p107
        $region100: #{refine_seq2seq_forward.21} parent=15 // pred_check_branch
          %303 = sbr.rel (%p301) target = $region102
        $region101: #{refine_seq2seq_forward.21} parent=15 // pred_region
          %s304 = sand.u32 %s97, 1
          %s305 = sand.u32 %s97, 1
          %s306 = smul.addr %s305, 8
          %s307 = scalar_lea.vmem [#allocation7], %s306
          %s308 = smul.u32 2, %s19
          %s309 = smul.addr %s308, 3
          %s310 = sadd.s32 2, %s309
          %s311 = smul.addr %s17, 6
          %s312 = sadd.s32 %s310, %s311
          %s313 = smul.addr %s312, 4
          %s314 = scalar_lea.vmem %s2, %s313
          // Predicated region
          $region103: #{refine_seq2seq_forward.21} parent=101 // pred_check
            _
          $region104: #{refine_seq2seq_forward.21} parent=101 // pred_check_branch
            %316 = sbr.rel (0) target = $region106
          $region105: #{refine_seq2seq_forward.21} parent=101 // pred_region
            // Predicated region
            $region107: #{refine_seq2seq_forward.21} parent=105 // pred_check
              _
            $region108: #{refine_seq2seq_forward.21} parent=105 // pred_check_branch
              %318 = sbr.rel target = $region110
            $region109: #{refine_seq2seq_forward.21} parent=105 // pred_region
              // Predicated region
              $region122: #{refine_seq2seq_forward.21} parent=109 // pred_check
                _
              $region123: #{refine_seq2seq_forward.21} parent=109 // pred_check_branch
                %335 = sbr.rel (0) target = $region125
              $region124: #{refine_seq2seq_forward.21} parent=109 // pred_region
                loop: start=0, step=1, limit=1
                $region126: #{refine_seq2seq_forward.21} parent=124 // loop_pre_header
                  _
                $region127: #{refine_seq2seq_forward.21} parent=124 // loop_header
                  %s337 = sphi 0, %s341
                  %p338 = scmp.ge.s32.totalorder %s337, 1
                  %s342 = sphi %s314, %s314
                  %s343 = sphi %s307, %s307
                $region128: #{refine_seq2seq_forward.21} parent=124 // loop_header_branch
                  %340 = sbr.rel (%p338) target = $region132
                $region129: #{refine_seq2seq_forward.21} parent=124 // loop_body
                  _
                $region130: #{refine_seq2seq_forward.21} parent=124 // loop_footer
                  %s341 = sadd.s32 1, %s337
                $region131: #{refine_seq2seq_forward.21} parent=124 // loop_footer_branch
                  %336 = sbr.rel target = $region127
                $region132: #{refine_seq2seq_forward.21} parent=124 // loop_exit
                  _
                loop: start=0, step=1, limit=1
                $region133: #{refine_seq2seq_forward.21} parent=124 // loop_pre_header
                  _
                $region134: #{refine_seq2seq_forward.21} parent=124 // loop_header
                  %s346 = sphi 0, %s350
                  %p347 = scmp.ge.s32.totalorder %s346, 1
                  %s351 = sphi %s314, %s314
                  %s352 = sphi %s307, %s307
                $region135: #{refine_seq2seq_forward.21} parent=124 // loop_header_branch
                  %349 = sbr.rel (%p347) target = $region139
                $region136: #{refine_seq2seq_forward.21} parent=124 // loop_body
                  %v353 = vld [vmem:[%s351] sm:$0xf]
                  %354 = vst [vmem:[%s352] sm:$0xf] %v353
                  %v355 = vld [vmem:[%s351 + $0xc] sm:$0xf]
                  %356 = vst [vmem:[%s352 + $0x4] sm:$0xf] %v355
                $region137: #{refine_seq2seq_forward.21} parent=124 // loop_footer
                  %s350 = sadd.s32 1, %s346
                $region138: #{refine_seq2seq_forward.21} parent=124 // loop_footer_branch
                  %345 = sbr.rel target = $region134
                $region139: #{refine_seq2seq_forward.21} parent=124 // loop_exit
                  _
              $region125: #{refine_seq2seq_forward.21} parent=109 // pred_fallthru
                _
            $region110: #{refine_seq2seq_forward.21} parent=105 // pred_fallthru
              _
            // Predicated region
            $region111: #{refine_seq2seq_forward.21} parent=105 // pred_check
              _
            $region112: #{refine_seq2seq_forward.21} parent=105 // pred_check_branch
              %320 = sbr.rel (0) target = $region114
            $region113: #{refine_seq2seq_forward.21} parent=105 // pred_region
              loop: start=0, step=1, limit=1
              $region115: #{refine_seq2seq_forward.21} parent=113 // loop_pre_header
                _
              $region116: #{refine_seq2seq_forward.21} parent=113 // loop_header
                %s323 = sphi 0, %s327
                %p324 = scmp.ge.s32.totalorder %s323, 1
                %s328 = sphi %s314, %s314
                %s329 = sphi %s307, %s307
              $region117: #{refine_seq2seq_forward.21} parent=113 // loop_header_branch
                %326 = sbr.rel (%p324) target = $region121
              $region118: #{refine_seq2seq_forward.21} parent=113 // loop_body
                %v330 = vld [vmem:[%s328] sm:$0xf]
                %331 = vst [vmem:[%s329] sm:$0xf] %v330
                %v332 = vld [vmem:[%s328 + $0xc] sm:$0xf]
                %333 = vst [vmem:[%s329 + $0x4] sm:$0xf] %v332
              $region119: #{refine_seq2seq_forward.21} parent=113 // loop_footer
                %s327 = sadd.s32 1, %s323
              $region120: #{refine_seq2seq_forward.21} parent=113 // loop_footer_branch
                %322 = sbr.rel target = $region116
              $region121: #{refine_seq2seq_forward.21} parent=113 // loop_exit
                _
            $region114: #{refine_seq2seq_forward.21} parent=105 // pred_fallthru
              _
          $region106: #{refine_seq2seq_forward.21} parent=101 // pred_fallthru
            _
          %357 = vnop
        $region102: #{refine_seq2seq_forward.21} parent=15 // pred_fallthru
          _
        // Predicated region
        $region140: #{refine_seq2seq_forward.21} parent=15 // pred_check
          %p358 = pneg %p135
        $region141: #{refine_seq2seq_forward.21} parent=15 // pred_check_branch
          %360 = sbr.rel (%p358) target = $region143
        $region142: #{refine_seq2seq_forward.21} parent=15 // pred_region
          %p361 = scmp.lt.s32.totalorder %s17, 1
          %s362 = scalar_select %p361, %s17, 1
          %p363 = scmp.lt.s32.totalorder %s19, 0
          %s364 = scalar_select %p363, %s19, 0
          %s365 = sadd.s32 %s364, %s362
          %s366 = scalar_lea.vmem %s3, %s365
        $region143: #{refine_seq2seq_forward.21} parent=15 // pred_fallthru
          _
      $region16: #{refine_seq2seq_forward.21} parent=5 // pred_fallthru
        _
      %p367 = scmp.le.s32.totalorder 1, %s10
      %p368 = scmp.lt.s32.totalorder %s10, 3
      %p369 = pnand %p367, %p368
      %p370 = pneg %p369
      // Predicated region
      $region144: #{refine_seq2seq_forward.21} parent=5 // pred_check
        _
      $region145: #{refine_seq2seq_forward.21} parent=5 // pred_check_branch
        %372 = sbr.rel (%p369) target = $region147
      $region146: #{refine_seq2seq_forward.21} parent=5 // pred_region
        %s373 = ssub.s32 %s10, 1
        %s374 = sand.u32 %s44, 1
        %s375 = sand.u32 %s44, 1
        %s376 = smul.addr %s375, 8
        %s377 = scalar_lea.vmem [#allocation5], %s376
        // Predicated region
        $region148: #{refine_seq2seq_forward.21} parent=146 // pred_check
          %p378 = pneg %p57
        $region149: #{refine_seq2seq_forward.21} parent=146 // pred_check_branch
          %380 = sbr.rel (%p378) target = $region151
        $region150: #{refine_seq2seq_forward.21} parent=146 // pred_region
          _
        $region151: #{refine_seq2seq_forward.21} parent=146 // pred_fallthru
          _
        %s381 = sand.u32 %s72, 1
        %s382 = sand.u32 %s72, 1
        %s383 = smul.addr %s382, 8
        %s384 = scalar_lea.vmem [#allocation6], %s383
        // Predicated region
        $region152: #{refine_seq2seq_forward.21} parent=146 // pred_check
          %p385 = pneg %p85
        $region153: #{refine_seq2seq_forward.21} parent=146 // pred_check_branch
          %387 = sbr.rel (%p385) target = $region155
        $region154: #{refine_seq2seq_forward.21} parent=146 // pred_region
          _
        $region155: #{refine_seq2seq_forward.21} parent=146 // pred_fallthru
          _
        %s388 = sand.u32 %s100, 1
        %s389 = sand.u32 %s100, 1
        %s390 = smul.addr %s389, 8
        %s391 = scalar_lea.vmem [#allocation7], %s390
        // Predicated region
        $region156: #{refine_seq2seq_forward.21} parent=146 // pred_check
          %p392 = pneg %p113
        $region157: #{refine_seq2seq_forward.21} parent=146 // pred_check_branch
          %394 = sbr.rel (%p392) target = $region159
        $region158: #{refine_seq2seq_forward.21} parent=146 // pred_region
          _
        $region159: #{refine_seq2seq_forward.21} parent=146 // pred_fallthru
          _
        %s395 = sand.u32 %s44, 1
        %s396 = sand.u32 %s44, 1
        %s397 = smul.addr %s396, 8
        %s398 = scalar_lea.vmem [#allocation5], %s397
        %p399 = pneg %p57
        %p400 = pneg %p54
        %s401 = sand.u32 %s72, 1
        %s402 = sand.u32 %s72, 1
        %s403 = smul.addr %s402, 8
        %s404 = scalar_lea.vmem [#allocation6], %s403
        %p405 = pneg %p85
        %p406 = pneg %p82
        %s407 = sand.u32 %s100, 1
        %s408 = sand.u32 %s100, 1
        %s409 = smul.addr %s408, 8
        %s410 = scalar_lea.vmem [#allocation7], %s409
        %p411 = pneg %p113
        %p412 = pneg %p110
        %p413 = scmp.lt.s32.totalorder %s20, 1
        %s414 = scalar_select %p413, %s20, 1
        %p415 = scmp.lt.s32.totalorder %s22, 0
        %s416 = scalar_select %p415, %s22, 0
        %s417 = sadd.s32 %s416, %s414
        %s418 = scalar_lea.vmem %s3, %s417
        %p419 = pneg %p141
        %p420 = pneg %p138
        %p421 = pneg %p169
        %p422 = pneg %p166
        %s423 = smul.u32 2, %s21
        %p424 = scmp.lt.s32.totalorder %s20, 1
        %s425 = scalar_select %p424, %s20, 1
        %p426 = scmp.lt.s32.totalorder %s423, 1
        %s427 = scalar_select %p426, %s423, 1
        %s428 = smul.addr %s425, 2
        %s429 = sadd.s32 %s427, %s428
        %s430 = smul.addr %s429, 4
        %s431 = scalar_lea.vmem %s4, %s430
        %s432 = smul.u32 2, %s21
        %s433 = smul.u32 2, %s22
        %s434 = smul.u32 2, %s22
        %p435 = scmp.lt.s32.totalorder %s20, 1
        %s436 = scalar_select %p435, %s20, 1
        %p437 = scmp.lt.s32.totalorder %s22, 0
        %s438 = scalar_select %p437, %s22, 0
        %s439 = sadd.s32 %s438, %s436
        %s440 = scalar_lea.vmem %s3, %s439
        %s441 = smul.u32 2, %s21
        %p442 = scmp.lt.s32.totalorder %s20, 1
        %s443 = scalar_select %p442, %s20, 1
        %p444 = scmp.lt.s32.totalorder %s441, 1
        %s445 = scalar_select %p444, %s441, 1
        %s446 = smul.addr %s443, 2
        %s447 = sadd.s32 %s445, %s446
        %s448 = smul.addr %s447, 4
        %s449 = scalar_lea.vmem %s4, %s448
        %s450 = smul.u32 2, %s21
        %p452 = scmp.eq.s32.totalorder %s22, 0
        // Predicated region
        $region160: #{refine_seq2seq_forward.21} parent=146 // pred_check
          %p453 = pneg %p452
        $region161: #{refine_seq2seq_forward.21} parent=146 // pred_check_branch
          %455 = sbr.rel (%p453) target = $region163
        $region162: #{refine_seq2seq_forward.21} parent=146 // pred_region
          %vm456 = vcmask 7168
          %457 = vst.msk [vmem:[#allocation2] sm:$0xff] %vm456, -inf
          %458 = vst.msk [vmem:[#allocation2 + $0x8] sm:$0xff] %vm456, -inf
          %459 = vst.msk [vmem:[#allocation2 + $0x10] sm:$0xff] %vm456, -inf
          %460 = vst.msk [vmem:[#allocation2 + $0x18] sm:$0xff] %vm456, -inf
          %461 = vst.msk [vmem:[#allocation2 + $0x20] sm:$0xff] %vm456, -inf
          %462 = vst.msk [vmem:[#allocation2 + $0x28] sm:$0xff] %vm456, -inf
          %463 = vst.msk [vmem:[#allocation2 + $0x30] sm:$0xff] %vm456, -inf
          %464 = vst.msk [vmem:[#allocation2 + $0x38] sm:$0xff] %vm456, -inf
          %465 = vst.msk [vmem:[#allocation3] sm:$0xff] %vm456, 0.0
          %466 = vst.msk [vmem:[#allocation3 + $0x8] sm:$0xff] %vm456, 0.0
          %467 = vst.msk [vmem:[#allocation3 + $0x10] sm:$0xff] %vm456, 0.0
          %468 = vst.msk [vmem:[#allocation3 + $0x18] sm:$0xff] %vm456, 0.0
          %469 = vst.msk [vmem:[#allocation3 + $0x20] sm:$0xff] %vm456, 0.0
          %470 = vst.msk [vmem:[#allocation3 + $0x28] sm:$0xff] %vm456, 0.0
          %471 = vst.msk [vmem:[#allocation3 + $0x30] sm:$0xff] %vm456, 0.0
          %472 = vst.msk [vmem:[#allocation3 + $0x38] sm:$0xff] %vm456, 0.0
          %473 = vst [vmem:[#allocation4] sm:$0xff] 0.0
          %474 = vst [vmem:[#allocation4 + $0x8] sm:$0xff] 0.0
        $region163: #{refine_seq2seq_forward.21} parent=146 // pred_fallthru
          _
        %v475 = vld [vmem:[%s377] sm:$0xf]
        %v476 = vld [vmem:[%s377 + $0x4] sm:$0xf]
        %v477 = vld [vmem:[%s384] sm:$0xf]
        %v478 = vld [vmem:[%s384 + $0x4] sm:$0xf]
        %v479 = vld [vmem:[%s391] sm:$0xf]
        %v480 = vld [vmem:[%s391 + $0x4] sm:$0xf]
        %v481 = vld [vmem:[%s440] sm:$0x1]
        %v483 = vlaneseq
        %v484 = vshrl.u32 %v483, 7
        %v485 = vsub.s32 0, %v484
        %v486 = vrot.slane %v481, %v485
        %v490 = vunpack.c.l.b16 %v475
        %v491 = vunpack.c.l.b16 %v476
        %v492 = vpack.c.b16 %v491, %v490
        %v495 = vunpack.c.l.b16 %v477
        %v496 = vunpack.c.l.b16 %v478
        %v497 = vpack.c.b16 %v496, %v495
        %vm498 = vcmask 261120
        %v500 = vsel %vm498, %v492, 0
        %v503 = vsel %vm498, %v497, 0
        %505 = vmatprep.subr.bf16.mxu0 0
        %506 = vmatpush1.bf16.xpose.msra.mxu0 %v503
        %507 = vmatprep.subr.bf16.mxu0 0
        %508 = vmatpush1.bf16.xpose.msra.mxu0 0
        %509 = vmatprep.subr.bf16.mxu0 0
        %510 = vmatpush1.bf16.xpose.msra.mxu0 0
        %511 = vmatprep.subr.bf16.mxu0 0
        %512 = vmatpush1.bf16.xpose.msra.mxu0 0
        %513 = vmatprep.subr.bf16.mxu0 0
        %514 = vmatpush1.bf16.xpose.msra.mxu0 0
        %515 = vmatprep.subr.bf16.mxu0 0
        %516 = vmatpush1.bf16.xpose.msra.mxu0 0
        %517 = vmatprep.subr.bf16.mxu0 0
        %518 = vmatpush1.bf16.xpose.msra.mxu0 0
        %519 = vmatprep.subr.bf16.mxu0 0
        %520 = vmatpush1.bf16.xpose.msra.mxu0 0
        %521 = vmatprep.subr.bf16.mxu0 0
        %522 = vmatpush1.bf16.xpose.msra.mxu0 0
        %523 = vmatprep.subr.bf16.mxu0 0
        %524 = vmatpush1.bf16.xpose.msra.mxu0 0
        %525 = vmatprep.subr.bf16.mxu0 0
        %526 = vmatpush1.bf16.xpose.msra.mxu0 0
        %527 = vmatprep.subr.bf16.mxu0 0
        %528 = vmatpush1.bf16.xpose.msra.mxu0 0
        %529 = vmatprep.subr.bf16.mxu0 0
        %530 = vmatpush1.bf16.xpose.msra.mxu0 0
        %531 = vmatprep.subr.bf16.mxu0 0
        %532 = vmatpush1.bf16.xpose.msra.mxu0 0
        %533 = vmatprep.subr.bf16.mxu0 0
        %534 = vmatpush1.bf16.xpose.msra.mxu0 0
        %535 = vmatprep.subr.bf16.mxu0 0
        %536 = vmatpush1.bf16.xpose.msra.mxu0 0
        %537 = vmatprep.mubr.bf16.mxu0 0
        %538 = vmatmul.mubr.bf16.gmra.mrb[0].mxu0 %v500
        %v539 = vpop.f32.mrb[0].mxu0
        %v540 = vadd.f32 %v486, %v539
        %v541 = vpop.f32.mrb[0].mxu0
        %v542 = vpop.f32.mrb[0].mxu0
        %v543 = vadd.f32 %v486, %v542
        %v544 = vpop.f32.mrb[0].mxu0
        %545 = vdwg.mxu0
        %v546 = vld [vmem:[#allocation2] sm:$0xff]
        %v547 = vld [vmem:[#allocation2 + $0x8] sm:$0xff]
        %vm548 = vcmask 130048
        %v549 = vsel %vm548, %v540, -inf
        %550 = vmax.xlane.f32.xlu0 %v549
        %v551 = vpop.xlane.xlu0 %550
        %v552 = vsel %vm548, %v543, -inf
        %553 = vmax.xlane.f32.xlu0 %v552
        %v554 = vpop.xlane.xlu0 %553
        %v555 = vmax.f32 %v546, %v551
        %v556 = vmax.f32 %v547, %v554
        %v557 = vsub.f32 %v546, %v555
        %v558 = vsub.f32 %v547, %v556
        %v559 = vmul.f32 %v557, 1.442695
        %v560 = vpow.pop %v559
        %v561 = vmul.f32 %v558, 1.442695
        %v562 = vpow.pop %v561
        %564 = vset.pattern.permute.xlu0 0
        %565 = vperm.xlu0 %564, %v555
        %v566 = vpop.permute.xlu0 %565
        %569 = vset.pattern.permute.xlu0 0
        %570 = vperm.xlu0 %569, %v556
        %v571 = vpop.permute.xlu0 %570
        %v573 = vsub.f32 %v540, %v566
        %v574 = vsub.f32 %v543, %v571
        %v575 = vmul.f32 %v573, 1.442695
        %v576 = vpow.pop %v575
        %v577 = vmul.f32 %v574, 1.442695
        %v578 = vpow.pop %v577
        %v579 = vld [vmem:[#allocation3] sm:$0xff]
        %v580 = vld [vmem:[#allocation3 + $0x8] sm:$0xff]
        %v581 = vmul.f32 %v560, %v579
        %v582 = vmul.f32 %v562, %v580
        %v583 = vsel %vm548, %v576, 0.0
        %584 = vadd.xlane.f32.xlu0 %v583
        %v585 = vpop.xlane.xlu0 %584
        %v586 = vsel %vm548, %v578, 0.0
        %587 = vadd.xlane.f32.xlu0 %v586
        %v588 = vpop.xlane.xlu0 %587
        %v589 = vadd.f32 %v581, %v585
        %v590 = vadd.f32 %v582, %v588
        %vm591 = vcmask 7168
        %592 = vst.msk [vmem:[#allocation3] sm:$0xff] %vm591, %v589
        %593 = vst.msk [vmem:[#allocation3 + $0x8] sm:$0xff] %vm591, %v590
        %v594 = vld [vmem:[#allocation4] sm:$0xff]
        %v595 = vld [vmem:[#allocation4 + $0x8] sm:$0xff]
        %597 = vset.pattern.permute.xlu0 0
        %598 = vperm.xlu0 %597, %v560
        %v599 = vpop.permute.xlu0 %598
        %602 = vset.pattern.permute.xlu0 0
        %603 = vperm.xlu0 %602, %v562
        %v604 = vpop.permute.xlu0 %603
        %v606 = vmul.f32 %v599, %v594
        %v607 = vmul.f32 %v604, %v595
        %v608 = vpack.c.bf16 %v578, %v576
        %v611 = vunpack.c.l.b16 %v479
        %v612 = vunpack.c.l.b16 %v480
        %v613 = vpack.c.b16 %v612, %v611
        %v616 = vsel %vm548, %v608, 0
        %618 = vmatprep.subr.bf16.mxu0 0
        %619 = vmatpush1.bf16.msra.mxu0 %v613
        %620 = vmatprep.subr.bf16.mxu0 0
        %621 = vmatpush1.bf16.msra.mxu0 0
        %622 = vmatprep.subr.bf16.mxu0 0
        %623 = vmatpush1.bf16.msra.mxu0 0
        %624 = vmatprep.subr.bf16.mxu0 0
        %625 = vmatpush1.bf16.msra.mxu0 0
        %626 = vmatprep.subr.bf16.mxu0 0
        %627 = vmatpush1.bf16.msra.mxu0 0
        %628 = vmatprep.subr.bf16.mxu0 0
        %629 = vmatpush1.bf16.msra.mxu0 0
        %630 = vmatprep.subr.bf16.mxu0 0
        %631 = vmatpush1.bf16.msra.mxu0 0
        %632 = vmatprep.subr.bf16.mxu0 0
        %633 = vmatpush1.bf16.msra.mxu0 0
        %634 = vmatprep.subr.bf16.mxu0 0
        %635 = vmatpush1.bf16.msra.mxu0 0
        %636 = vmatprep.subr.bf16.mxu0 0
        %637 = vmatpush1.bf16.msra.mxu0 0
        %638 = vmatprep.subr.bf16.mxu0 0
        %639 = vmatpush1.bf16.msra.mxu0 0
        %640 = vmatprep.subr.bf16.mxu0 0
        %641 = vmatpush1.bf16.msra.mxu0 0
        %642 = vmatprep.subr.bf16.mxu0 0
        %643 = vmatpush1.bf16.msra.mxu0 0
        %644 = vmatprep.subr.bf16.mxu0 0
        %645 = vmatpush1.bf16.msra.mxu0 0
        %646 = vmatprep.subr.bf16.mxu0 0
        %647 = vmatpush1.bf16.msra.mxu0 0
        %648 = vmatprep.subr.bf16.mxu0 0
        %649 = vmatpush1.bf16.msra.mxu0 0
        %650 = vmatprep.mubr.bf16.mxu0 0
        %651 = vmatmul.mubr.bf16.gmra.mrb[0].mxu0 %v616
        %v652 = vpop.f32.mrb[0].mxu0
        %v653 = vadd.f32 0.0, %v652
        %v654 = vpop.f32.mrb[0].mxu0
        %v655 = vpop.f32.mrb[0].mxu0
        %v656 = vadd.f32 0.0, %v655
        %v657 = vpop.f32.mrb[0].mxu0
        %658 = vdwg.mxu0
        %v659 = vadd.f32 %v606, %v653
        %v660 = vadd.f32 %v607, %v656
        %661 = vst.msk [vmem:[#allocation4] sm:$0xff] %vm498, %v659
        %662 = vst.msk [vmem:[#allocation4 + $0x8] sm:$0xff] %vm498, %v660
        %663 = vst.msk [vmem:[#allocation2] sm:$0xff] %vm591, %v555
        %664 = vst.msk [vmem:[#allocation2 + $0x8] sm:$0xff] %vm591, %v556
        %665 = vrot.lane.b32.xlu0 %v492, 96
        %v666 = vpop.permute.xlu0 %665
        %667 = vrot.lane.b32.xlu0 %v497, 96
        %v668 = vpop.permute.xlu0 %667
        %v670 = vsel %vm498, %v666, 0
        %v673 = vsel %vm498, %v668, 0
        %675 = vmatprep.subr.bf16.mxu0 0
        %676 = vmatpush1.bf16.xpose.msra.mxu0 %v673
        %677 = vmatprep.subr.bf16.mxu0 0
        %678 = vmatpush1.bf16.xpose.msra.mxu0 0
        %679 = vmatprep.subr.bf16.mxu0 0
        %680 = vmatpush1.bf16.xpose.msra.mxu0 0
        %681 = vmatprep.subr.bf16.mxu0 0
        %682 = vmatpush1.bf16.xpose.msra.mxu0 0
        %683 = vmatprep.subr.bf16.mxu0 0
        %684 = vmatpush1.bf16.xpose.msra.mxu0 0
        %685 = vmatprep.subr.bf16.mxu0 0
        %686 = vmatpush1.bf16.xpose.msra.mxu0 0
        %687 = vmatprep.subr.bf16.mxu0 0
        %688 = vmatpush1.bf16.xpose.msra.mxu0 0
        %689 = vmatprep.subr.bf16.mxu0 0
        %690 = vmatpush1.bf16.xpose.msra.mxu0 0
        %691 = vmatprep.subr.bf16.mxu0 0
        %692 = vmatpush1.bf16.xpose.msra.mxu0 0
        %693 = vmatprep.subr.bf16.mxu0 0
        %694 = vmatpush1.bf16.xpose.msra.mxu0 0
        %695 = vmatprep.subr.bf16.mxu0 0
        %696 = vmatpush1.bf16.xpose.msra.mxu0 0
        %697 = vmatprep.subr.bf16.mxu0 0
        %698 = vmatpush1.bf16.xpose.msra.mxu0 0
        %699 = vmatprep.subr.bf16.mxu0 0
        %700 = vmatpush1.bf16.xpose.msra.mxu0 0
        %701 = vmatprep.subr.bf16.mxu0 0
        %702 = vmatpush1.bf16.xpose.msra.mxu0 0
        %703 = vmatprep.subr.bf16.mxu0 0
        %704 = vmatpush1.bf16.xpose.msra.mxu0 0
        %705 = vmatprep.subr.bf16.mxu0 0
        %706 = vmatpush1.bf16.xpose.msra.mxu0 0
        %707 = vmatprep.mubr.bf16.mxu0 0
        %708 = vmatmul.mubr.bf16.gmra.mrb[0].mxu0 %v670
        %v709 = vpop.f32.mrb[0].mxu0
        %v710 = vadd.f32 %v486, %v709
        %v711 = vpop.f32.mrb[0].mxu0
        %v712 = vpop.f32.mrb[0].mxu0
        %v713 = vadd.f32 %v486, %v712
        %v714 = vpop.f32.mrb[0].mxu0
        %715 = vdwg.mxu0
        %s716 = scalar_lea.vmem [#allocation2], 16
        %v717 = vld [vmem:[%s716] sm:$0xff]
        %v718 = vld [vmem:[%s716 + $0x8] sm:$0xff]
        %v719 = vsel %vm548, %v710, -inf
        %720 = vmax.xlane.f32.xlu0 %v719
        %v721 = vpop.xlane.xlu0 %720
        %v722 = vsel %vm548, %v713, -inf
        %723 = vmax.xlane.f32.xlu0 %v722
        %v724 = vpop.xlane.xlu0 %723
        %v725 = vmax.f32 %v717, %v721
        %v726 = vmax.f32 %v718, %v724
        %v727 = vsub.f32 %v717, %v725
        %v728 = vsub.f32 %v718, %v726
        %v729 = vmul.f32 %v727, 1.442695
        %v730 = vpow.pop %v729
        %v731 = vmul.f32 %v728, 1.442695
        %v732 = vpow.pop %v731
        %734 = vset.pattern.permute.xlu0 0
        %735 = vperm.xlu0 %734, %v725
        %v736 = vpop.permute.xlu0 %735
        %739 = vset.pattern.permute.xlu0 0
        %740 = vperm.xlu0 %739, %v726
        %v741 = vpop.permute.xlu0 %740
        %v743 = vsub.f32 %v710, %v736
        %v744 = vsub.f32 %v713, %v741
        %v745 = vmul.f32 %v743, 1.442695
        %v746 = vpow.pop %v745
        %v747 = vmul.f32 %v744, 1.442695
        %v748 = vpow.pop %v747
        %s749 = scalar_lea.vmem [#allocation3], 16
        %v750 = vld [vmem:[%s749] sm:$0xff]
        %v751 = vld [vmem:[%s749 + $0x8] sm:$0xff]
        %v752 = vmul.f32 %v730, %v750
        %v753 = vmul.f32 %v732, %v751
        %v754 = vsel %vm548, %v746, 0.0
        %755 = vadd.xlane.f32.xlu0 %v754
        %v756 = vpop.xlane.xlu0 %755
        %v757 = vsel %vm548, %v748, 0.0
        %758 = vadd.xlane.f32.xlu0 %v757
        %v759 = vpop.xlane.xlu0 %758
        %v760 = vadd.f32 %v752, %v756
        %v761 = vadd.f32 %v753, %v759
        %762 = vst.msk [vmem:[%s749] sm:$0xff] %vm591, %v760
        %763 = vst.msk [vmem:[%s749 + $0x8] sm:$0xff] %vm591, %v761
        %v764 = vld [vmem:[#allocation4] sm:$0xff]
        %v765 = vld [vmem:[#allocation4 + $0x8] sm:$0xff]
        %767 = vset.pattern.permute.xlu0 0
        %768 = vperm.xlu0 %767, %v730
        %v769 = vpop.permute.xlu0 %768
        %772 = vset.pattern.permute.xlu0 0
        %773 = vperm.xlu0 %772, %v732
        %v774 = vpop.permute.xlu0 %773
        %v776 = vmul.f32 %v769, %v764
        %v777 = vmul.f32 %v774, %v765
        %v778 = vpack.c.bf16 %v748, %v746
        %779 = vrot.lane.b32.xlu0 %v613, 96
        %v780 = vpop.permute.xlu0 %779
        %v783 = vsel %vm548, %v778, 0
        %785 = vmatprep.subr.bf16.mxu0 0
        %786 = vmatpush1.bf16.msra.mxu0 %v780
        %787 = vmatprep.subr.bf16.mxu0 0
        %788 = vmatpush1.bf16.msra.mxu0 0
        %789 = vmatprep.subr.bf16.mxu0 0
        %790 = vmatpush1.bf16.msra.mxu0 0
        %791 = vmatprep.subr.bf16.mxu0 0
        %792 = vmatpush1.bf16.msra.mxu0 0
        %793 = vmatprep.subr.bf16.mxu0 0
        %794 = vmatpush1.bf16.msra.mxu0 0
        %795 = vmatprep.subr.bf16.mxu0 0
        %796 = vmatpush1.bf16.msra.mxu0 0
        %797 = vmatprep.subr.bf16.mxu0 0
        %798 = vmatpush1.bf16.msra.mxu0 0
        %799 = vmatprep.subr.bf16.mxu0 0
        %800 = vmatpush1.bf16.msra.mxu0 0
        %801 = vmatprep.subr.bf16.mxu0 0
        %802 = vmatpush1.bf16.msra.mxu0 0
        %803 = vmatprep.subr.bf16.mxu0 0
        %804 = vmatpush1.bf16.msra.mxu0 0
        %805 = vmatprep.subr.bf16.mxu0 0
        %806 = vmatpush1.bf16.msra.mxu0 0
        %807 = vmatprep.subr.bf16.mxu0 0
        %808 = vmatpush1.bf16.msra.mxu0 0
        %809 = vmatprep.subr.bf16.mxu0 0
        %810 = vmatpush1.bf16.msra.mxu0 0
        %811 = vmatprep.subr.bf16.mxu0 0
        %812 = vmatpush1.bf16.msra.mxu0 0
        %813 = vmatprep.subr.bf16.mxu0 0
        %814 = vmatpush1.bf16.msra.mxu0 0
        %815 = vmatprep.subr.bf16.mxu0 0
        %816 = vmatpush1.bf16.msra.mxu0 0
        %817 = vmatprep.mubr.bf16.mxu0 0
        %818 = vmatmul.mubr.bf16.gmra.mrb[0].mxu0 %v783
        %v819 = vpop.f32.mrb[0].mxu0
        %v820 = vadd.f32 0.0, %v819
        %v821 = vpop.f32.mrb[0].mxu0
        %v822 = vpop.f32.mrb[0].mxu0
        %v823 = vadd.f32 0.0, %v822
        %v824 = vpop.f32.mrb[0].mxu0
        %825 = vdwg.mxu0
        %828 = vrot.lane.b32.xlu0 %v820, 32
        %v829 = vpop.permute.xlu0 %828
        %830 = vrot.lane.b32.xlu0 %v823, 32
        %v831 = vpop.permute.xlu0 %830
        %v834 = vadd.f32 %v776, %v829
        %v835 = vadd.f32 %v777, %v831
        %vm836 = vcmask 523520
        %837 = vst.msk [vmem:[#allocation4] sm:$0xff] %vm836, %v834
        %838 = vst.msk [vmem:[#allocation4 + $0x8] sm:$0xff] %vm836, %v835
        %839 = vst.msk [vmem:[%s716] sm:$0xff] %vm591, %v725
        %840 = vst.msk [vmem:[%s716 + $0x8] sm:$0xff] %vm591, %v726
        %841 = vrot.lane.b32.xlu0 %v492, 64
        %v842 = vpop.permute.xlu0 %841
        %843 = vrot.lane.b32.xlu0 %v497, 64
        %v844 = vpop.permute.xlu0 %843
        %v846 = vsel %vm498, %v842, 0
        %v849 = vsel %vm498, %v844, 0
        %851 = vmatprep.subr.bf16.mxu0 0
        %852 = vmatpush1.bf16.xpose.msra.mxu0 %v849
        %853 = vmatprep.subr.bf16.mxu0 0
        %854 = vmatpush1.bf16.xpose.msra.mxu0 0
        %855 = vmatprep.subr.bf16.mxu0 0
        %856 = vmatpush1.bf16.xpose.msra.mxu0 0
        %857 = vmatprep.subr.bf16.mxu0 0
        %858 = vmatpush1.bf16.xpose.msra.mxu0 0
        %859 = vmatprep.subr.bf16.mxu0 0
        %860 = vmatpush1.bf16.xpose.msra.mxu0 0
        %861 = vmatprep.subr.bf16.mxu0 0
        %862 = vmatpush1.bf16.xpose.msra.mxu0 0
        %863 = vmatprep.subr.bf16.mxu0 0
        %864 = vmatpush1.bf16.xpose.msra.mxu0 0
        %865 = vmatprep.subr.bf16.mxu0 0
        %866 = vmatpush1.bf16.xpose.msra.mxu0 0
        %867 = vmatprep.subr.bf16.mxu0 0
        %868 = vmatpush1.bf16.xpose.msra.mxu0 0
        %869 = vmatprep.subr.bf16.mxu0 0
        %870 = vmatpush1.bf16.xpose.msra.mxu0 0
        %871 = vmatprep.subr.bf16.mxu0 0
        %872 = vmatpush1.bf16.xpose.msra.mxu0 0
        %873 = vmatprep.subr.bf16.mxu0 0
        %874 = vmatpush1.bf16.xpose.msra.mxu0 0
        %875 = vmatprep.subr.bf16.mxu0 0
        %876 = vmatpush1.bf16.xpose.msra.mxu0 0
        %877 = vmatprep.subr.bf16.mxu0 0
        %878 = vmatpush1.bf16.xpose.msra.mxu0 0
        %879 = vmatprep.subr.bf16.mxu0 0
        %880 = vmatpush1.bf16.xpose.msra.mxu0 0
        %881 = vmatprep.subr.bf16.mxu0 0
        %882 = vmatpush1.bf16.xpose.msra.mxu0 0
        %883 = vmatprep.mubr.bf16.mxu0 0
        %884 = vmatmul.mubr.bf16.gmra.mrb[0].mxu0 %v846
        %v885 = vpop.f32.mrb[0].mxu0
        %v886 = vadd.f32 %v486, %v885
        %v887 = vpop.f32.mrb[0].mxu0
        %v888 = vpop.f32.mrb[0].mxu0
        %v889 = vadd.f32 %v486, %v888
        %v890 = vpop.f32.mrb[0].mxu0
        %891 = vdwg.mxu0
        %s892 = scalar_lea.vmem [#allocation2], 32
        %v893 = vld [vmem:[%s892] sm:$0xff]
        %v894 = vld [vmem:[%s892 + $0x8] sm:$0xff]
        %v895 = vsel %vm548, %v886, -inf
        %896 = vmax.xlane.f32.xlu0 %v895
        %v897 = vpop.xlane.xlu0 %896
        %v898 = vsel %vm548, %v889, -inf
        %899 = vmax.xlane.f32.xlu0 %v898
        %v900 = vpop.xlane.xlu0 %899
        %v901 = vmax.f32 %v893, %v897
        %v902 = vmax.f32 %v894, %v900
        %v903 = vsub.f32 %v893, %v901
        %v904 = vsub.f32 %v894, %v902
        %v905 = vmul.f32 %v903, 1.442695
        %v906 = vpow.pop %v905
        %v907 = vmul.f32 %v904, 1.442695
        %v908 = vpow.pop %v907
        %910 = vset.pattern.permute.xlu0 0
        %911 = vperm.xlu0 %910, %v901
        %v912 = vpop.permute.xlu0 %911
        %915 = vset.pattern.permute.xlu0 0
        %916 = vperm.xlu0 %915, %v902
        %v917 = vpop.permute.xlu0 %916
        %v919 = vsub.f32 %v886, %v912
        %v920 = vsub.f32 %v889, %v917
        %v921 = vmul.f32 %v919, 1.442695
        %v922 = vpow.pop %v921
        %v923 = vmul.f32 %v920, 1.442695
        %v924 = vpow.pop %v923
        %s925 = scalar_lea.vmem [#allocation3], 32
        %v926 = vld [vmem:[%s925] sm:$0xff]
        %v927 = vld [vmem:[%s925 + $0x8] sm:$0xff]
        %v928 = vmul.f32 %v906, %v926
        %v929 = vmul.f32 %v908, %v927
        %v930 = vsel %vm548, %v922, 0.0
        %931 = vadd.xlane.f32.xlu0 %v930
        %v932 = vpop.xlane.xlu0 %931
        %v933 = vsel %vm548, %v924, 0.0
        %934 = vadd.xlane.f32.xlu0 %v933
        %v935 = vpop.xlane.xlu0 %934
        %v936 = vadd.f32 %v928, %v932
        %v937 = vadd.f32 %v929, %v935
        %938 = vst.msk [vmem:[%s925] sm:$0xff] %vm591, %v936
        %939 = vst.msk [vmem:[%s925 + $0x8] sm:$0xff] %vm591, %v937
        %v940 = vld [vmem:[#allocation4] sm:$0xff]
        %v941 = vld [vmem:[#allocation4 + $0x8] sm:$0xff]
        %943 = vset.pattern.permute.xlu0 0
        %944 = vperm.xlu0 %943, %v906
        %v945 = vpop.permute.xlu0 %944
        %948 = vset.pattern.permute.xlu0 0
        %949 = vperm.xlu0 %948, %v908
        %v950 = vpop.permute.xlu0 %949
        %v952 = vmul.f32 %v945, %v940
        %v953 = vmul.f32 %v950, %v941
        %v954 = vpack.c.bf16 %v924, %v922
        %955 = vrot.lane.b32.xlu0 %v613, 64
        %v956 = vpop.permute.xlu0 %955
        %v959 = vsel %vm548, %v954, 0
        %961 = vmatprep.subr.bf16.mxu0 0
        %962 = vmatpush1.bf16.msra.mxu0 %v956
        %963 = vmatprep.subr.bf16.mxu0 0
        %964 = vmatpush1.bf16.msra.mxu0 0
        %965 = vmatprep.subr.bf16.mxu0 0
        %966 = vmatpush1.bf16.msra.mxu0 0
        %967 = vmatprep.subr.bf16.mxu0 0
        %968 = vmatpush1.bf16.msra.mxu0 0
        %969 = vmatprep.subr.bf16.mxu0 0
        %970 = vmatpush1.bf16.msra.mxu0 0
        %971 = vmatprep.subr.bf16.mxu0 0
        %972 = vmatpush1.bf16.msra.mxu0 0
        %973 = vmatprep.subr.bf16.mxu0 0
        %974 = vmatpush1.bf16.msra.mxu0 0
        %975 = vmatprep.subr.bf16.mxu0 0
        %976 = vmatpush1.bf16.msra.mxu0 0
        %977 = vmatprep.subr.bf16.mxu0 0
        %978 = vmatpush1.bf16.msra.mxu0 0
        %979 = vmatprep.subr.bf16.mxu0 0
        %980 = vmatpush1.bf16.msra.mxu0 0
        %981 = vmatprep.subr.bf16.mxu0 0
        %982 = vmatpush1.bf16.msra.mxu0 0
        %983 = vmatprep.subr.bf16.mxu0 0
        %984 = vmatpush1.bf16.msra.mxu0 0
        %985 = vmatprep.subr.bf16.mxu0 0
        %986 = vmatpush1.bf16.msra.mxu0 0
        %987 = vmatprep.subr.bf16.mxu0 0
        %988 = vmatpush1.bf16.msra.mxu0 0
        %989 = vmatprep.subr.bf16.mxu0 0
        %990 = vmatpush1.bf16.msra.mxu0 0
        %991 = vmatprep.subr.bf16.mxu0 0
        %992 = vmatpush1.bf16.msra.mxu0 0
        %993 = vmatprep.mubr.bf16.mxu0 0
        %994 = vmatmul.mubr.bf16.gmra.mrb[0].mxu0 %v959
        %v995 = vpop.f32.mrb[0].mxu0
        %v996 = vadd.f32 0.0, %v995
        %v997 = vpop.f32.mrb[0].mxu0
        %v998 = vpop.f32.mrb[0].mxu0
        %v999 = vadd.f32 0.0, %v998
        %v1000 = vpop.f32.mrb[0].mxu0
        %1001 = vdwg.mxu0
        %1004 = vrot.lane.b32.xlu0 %v996, 64
        %v1005 = vpop.permute.xlu0 %1004
        %1006 = vrot.lane.b32.xlu0 %v999, 64
        %v1007 = vpop.permute.xlu0 %1006
        %v1010 = vadd.f32 %v952, %v1005
        %v1011 = vadd.f32 %v953, %v1007
        %vm1012 = vcmask 785920
        %1013 = vst.msk [vmem:[#allocation4] sm:$0xff] %vm1012, %v1010
        %1014 = vst.msk [vmem:[#allocation4 + $0x8] sm:$0xff] %vm1012, %v1011
        %1015 = vst.msk [vmem:[%s892] sm:$0xff] %vm591, %v901
        %1016 = vst.msk [vmem:[%s892 + $0x8] sm:$0xff] %vm591, %v902
        %1017 = vrot.lane.b32.xlu0 %v492, 32
        %v1018 = vpop.permute.xlu0 %1017
        %1019 = vrot.lane.b32.xlu0 %v497, 32
        %v1020 = vpop.permute.xlu0 %1019
        %v1022 = vsel %vm498, %v1018, 0
        %v1025 = vsel %vm498, %v1020, 0
        %1027 = vmatprep.subr.bf16.mxu0 0
        %1028 = vmatpush1.bf16.xpose.msra.mxu0 %v1025
        %1029 = vmatprep.subr.bf16.mxu0 0
        %1030 = vmatpush1.bf16.xpose.msra.mxu0 0
        %1031 = vmatprep.subr.bf16.mxu0 0
        %1032 = vmatpush1.bf16.xpose.msra.mxu0 0
        %1033 = vmatprep.subr.bf16.mxu0 0
        %1034 = vmatpush1.bf16.xpose.msra.mxu0 0
        %1035 = vmatprep.subr.bf16.mxu0 0
        %1036 = vmatpush1.bf16.xpose.msra.mxu0 0
        %1037 = vmatprep.subr.bf16.mxu0 0
        %1038 = vmatpush1.bf16.xpose.msra.mxu0 0
        %1039 = vmatprep.subr.bf16.mxu0 0
        %1040 = vmatpush1.bf16.xpose.msra.mxu0 0
        %1041 = vmatprep.subr.bf16.mxu0 0
        %1042 = vmatpush1.bf16.xpose.msra.mxu0 0
        %1043 = vmatprep.subr.bf16.mxu0 0
        %1044 = vmatpush1.bf16.xpose.msra.mxu0 0
        %1045 = vmatprep.subr.bf16.mxu0 0
        %1046 = vmatpush1.bf16.xpose.msra.mxu0 0
        %1047 = vmatprep.subr.bf16.mxu0 0
        %1048 = vmatpush1.bf16.xpose.msra.mxu0 0
        %1049 = vmatprep.subr.bf16.mxu0 0
        %1050 = vmatpush1.bf16.xpose.msra.mxu0 0
        %1051 = vmatprep.subr.bf16.mxu0 0
        %1052 = vmatpush1.bf16.xpose.msra.mxu0 0
        %1053 = vmatprep.subr.bf16.mxu0 0
        %1054 = vmatpush1.bf16.xpose.msra.mxu0 0
        %1055 = vmatprep.subr.bf16.mxu0 0
        %1056 = vmatpush1.bf16.xpose.msra.mxu0 0
        %1057 = vmatprep.subr.bf16.mxu0 0
        %1058 = vmatpush1.bf16.xpose.msra.mxu0 0
        %1059 = vmatprep.mubr.bf16.mxu0 0
        %1060 = vmatmul.mubr.bf16.gmra.mrb[0].mxu0 %v1022
        %v1061 = vpop.f32.mrb[0].mxu0
        %v1062 = vadd.f32 %v486, %v1061
        %v1063 = vpop.f32.mrb[0].mxu0
        %v1064 = vpop.f32.mrb[0].mxu0
        %v1065 = vadd.f32 %v486, %v1064
        %v1066 = vpop.f32.mrb[0].mxu0
        %1067 = vdwg.mxu0
        %s1068 = scalar_lea.vmem [#allocation2], 48
        %v1069 = vld [vmem:[%s1068] sm:$0xff]
        %v1070 = vld [vmem:[%s1068 + $0x8] sm:$0xff]
        %v1071 = vsel %vm548, %v1062, -inf
        %1072 = vmax.xlane.f32.xlu0 %v1071
        %v1073 = vpop.xlane.xlu0 %1072
        %v1074 = vsel %vm548, %v1065, -inf
        %1075 = vmax.xlane.f32.xlu0 %v1074
        %v1076 = vpop.xlane.xlu0 %1075
        %v1077 = vmax.f32 %v1069, %v1073
        %v1078 = vmax.f32 %v1070, %v1076
        %v1079 = vsub.f32 %v1069, %v1077
        %v1080 = vsub.f32 %v1070, %v1078
        %v1081 = vmul.f32 %v1079, 1.442695
        %v1082 = vpow.pop %v1081
        %v1083 = vmul.f32 %v1080, 1.442695
        %v1084 = vpow.pop %v1083
        %1086 = vset.pattern.permute.xlu0 0
        %1087 = vperm.xlu0 %1086, %v1077
        %v1088 = vpop.permute.xlu0 %1087
        %1091 = vset.pattern.permute.xlu0 0
        %1092 = vperm.xlu0 %1091, %v1078
        %v1093 = vpop.permute.xlu0 %1092
        %v1095 = vsub.f32 %v1062, %v1088
        %v1096 = vsub.f32 %v1065, %v1093
        %v1097 = vmul.f32 %v1095, 1.442695
        %v1098 = vpow.pop %v1097
        %v1099 = vmul.f32 %v1096, 1.442695
        %v1100 = vpow.pop %v1099
        %s1101 = scalar_lea.vmem [#allocation3], 48
        %v1102 = vld [vmem:[%s1101] sm:$0xff]
        %v1103 = vld [vmem:[%s1101 + $0x8] sm:$0xff]
        %v1104 = vmul.f32 %v1082, %v1102
        %v1105 = vmul.f32 %v1084, %v1103
        %v1106 = vsel %vm548, %v1098, 0.0
        %1107 = vadd.xlane.f32.xlu0 %v1106
        %v1108 = vpop.xlane.xlu0 %1107
        %v1109 = vsel %vm548, %v1100, 0.0
        %1110 = vadd.xlane.f32.xlu0 %v1109
        %v1111 = vpop.xlane.xlu0 %1110
        %v1112 = vadd.f32 %v1104, %v1108
        %v1113 = vadd.f32 %v1105, %v1111
        %1114 = vst.msk [vmem:[%s1101] sm:$0xff] %vm591, %v1112
        %1115 = vst.msk [vmem:[%s1101 + $0x8] sm:$0xff] %vm591, %v1113
        %v1116 = vld [vmem:[#allocation4] sm:$0xff]
        %v1117 = vld [vmem:[#allocation4 + $0x8] sm:$0xff]
        %1119 = vset.pattern.permute.xlu0 0
        %1120 = vperm.xlu0 %1119, %v1082
        %v1121 = vpop.permute.xlu0 %1120
        %1124 = vset.pattern.permute.xlu0 0
        %1125 = vperm.xlu0 %1124, %v1084
        %v1126 = vpop.permute.xlu0 %1125
        %v1128 = vmul.f32 %v1121, %v1116
        %v1129 = vmul.f32 %v1126, %v1117
        %v1130 = vpack.c.bf16 %v1100, %v1098
        %1131 = vrot.lane.b32.xlu0 %v613, 32
        %v1132 = vpop.permute.xlu0 %1131
        %v1135 = vsel %vm548, %v1130, 0
        %1137 = vmatprep.subr.bf16.mxu0 0
        %1138 = vmatpush1.bf16.msra.mxu0 %v1132
        %1139 = vmatprep.subr.bf16.mxu0 0
        %1140 = vmatpush1.bf16.msra.mxu0 0
        %1141 = vmatprep.subr.bf16.mxu0 0
        %1142 = vmatpush1.bf16.msra.mxu0 0
        %1143 = vmatprep.subr.bf16.mxu0 0
        %1144 = vmatpush1.bf16.msra.mxu0 0
        %1145 = vmatprep.subr.bf16.mxu0 0
        %1146 = vmatpush1.bf16.msra.mxu0 0
        %1147 = vmatprep.subr.bf16.mxu0 0
        %1148 = vmatpush1.bf16.msra.mxu0 0
        %1149 = vmatprep.subr.bf16.mxu0 0
        %1150 = vmatpush1.bf16.msra.mxu0 0
        %1151 = vmatprep.subr.bf16.mxu0 0
        %1152 = vmatpush1.bf16.msra.mxu0 0
        %1153 = vmatprep.subr.bf16.mxu0 0
        %1154 = vmatpush1.bf16.msra.mxu0 0
        %1155 = vmatprep.subr.bf16.mxu0 0
        %1156 = vmatpush1.bf16.msra.mxu0 0
        %1157 = vmatprep.subr.bf16.mxu0 0
        %1158 = vmatpush1.bf16.msra.mxu0 0
        %1159 = vmatprep.subr.bf16.mxu0 0
        %1160 = vmatpush1.bf16.msra.mxu0 0
        %1161 = vmatprep.subr.bf16.mxu0 0
        %1162 = vmatpush1.bf16.msra.mxu0 0
        %1163 = vmatprep.subr.bf16.mxu0 0
        %1164 = vmatpush1.bf16.msra.mxu0 0
        %1165 = vmatprep.subr.bf16.mxu0 0
        %1166 = vmatpush1.bf16.msra.mxu0 0
        %1167 = vmatprep.subr.bf16.mxu0 0
        %1168 = vmatpush1.bf16.msra.mxu0 0
        %1169 = vmatprep.mubr.bf16.mxu0 0
        %1170 = vmatmul.mubr.bf16.gmra.mrb[0].mxu0 %v1135
        %v1171 = vpop.f32.mrb[0].mxu0
        %v1172 = vadd.f32 0.0, %v1171
        %v1173 = vpop.f32.mrb[0].mxu0
        %v1174 = vpop.f32.mrb[0].mxu0
        %v1175 = vadd.f32 0.0, %v1174
        %v1176 = vpop.f32.mrb[0].mxu0
        %1177 = vdwg.mxu0
        %1180 = vrot.lane.b32.xlu0 %v1172, 96
        %v1181 = vpop.permute.xlu0 %1180
        %1182 = vrot.lane.b32.xlu0 %v1175, 96
        %v1183 = vpop.permute.xlu0 %1182
        %v1186 = vadd.f32 %v1128, %v1181
        %v1187 = vadd.f32 %v1129, %v1183
        %vm1188 = vcmask 1048320
        %1189 = vst.msk [vmem:[#allocation4] sm:$0xff] %vm1188, %v1186
        %1190 = vst.msk [vmem:[#allocation4 + $0x8] sm:$0xff] %vm1188, %v1187
        %1191 = vst.msk [vmem:[%s1068] sm:$0xff] %vm591, %v1077
        %1192 = vst.msk [vmem:[%s1068 + $0x8] sm:$0xff] %vm591, %v1078
        // Predicated region
        $region164: #{refine_seq2seq_forward.21} parent=146 // pred_check
          %p1193 = pneg %p452
        $region165: #{refine_seq2seq_forward.21} parent=146 // pred_check_branch
          %1195 = sbr.rel (%p1193) target = $region167
        $region166: #{refine_seq2seq_forward.21} parent=146 // pred_region
          %v1196 = vld [vmem:[#allocation4] sm:$0xff]
          %v1197 = vld [vmem:[#allocation4 + $0x8] sm:$0xff]
          %v1198 = vld [vmem:[#allocation3] sm:$0xff]
          %v1199 = vld [vmem:[#allocation3 + $0x8] sm:$0xff]
          %v1200 = vrcp.pop %v1198
          %v1201 = vrcp.pop %v1199
          %1203 = vset.pattern.permute.xlu0 0
          %1204 = vperm.xlu0 %1203, %v1200
          %v1205 = vpop.permute.xlu0 %1204
          %1208 = vset.pattern.permute.xlu0 0
          %1209 = vperm.xlu0 %1208, %v1201
          %v1210 = vpop.permute.xlu0 %1209
          %v1212 = vmul.f32 %v1196, %v1205
          %v1213 = vmul.f32 %v1197, %v1210
          %v1214 = vld [vmem:[%s749] sm:$0xff]
          %v1215 = vld [vmem:[%s749 + $0x8] sm:$0xff]
          %v1216 = vrcp.pop %v1214
          %v1217 = vrcp.pop %v1215
          %1219 = vset.pattern.permute.xlu0 0
          %1220 = vperm.xlu0 %1219, %v1216
          %v1221 = vpop.permute.xlu0 %1220
          %1224 = vset.pattern.permute.xlu0 0
          %1225 = vperm.xlu0 %1224, %v1217
          %v1226 = vpop.permute.xlu0 %1225
          %v1228 = vmul.f32 %v1196, %v1221
          %v1229 = vmul.f32 %v1197, %v1226
          %v1230 = vld [vmem:[%s925] sm:$0xff]
          %v1231 = vld [vmem:[%s925 + $0x8] sm:$0xff]
          %v1232 = vrcp.pop %v1230
          %v1233 = vrcp.pop %v1231
          %1235 = vset.pattern.permute.xlu0 0
          %1236 = vperm.xlu0 %1235, %v1232
          %v1237 = vpop.permute.xlu0 %1236
          %1240 = vset.pattern.permute.xlu0 0
          %1241 = vperm.xlu0 %1240, %v1233
          %v1242 = vpop.permute.xlu0 %1241
          %v1244 = vmul.f32 %v1196, %v1237
          %v1245 = vmul.f32 %v1197, %v1242
          %v1246 = vld [vmem:[%s1101] sm:$0xff]
          %v1247 = vld [vmem:[%s1101 + $0x8] sm:$0xff]
          %v1248 = vrcp.pop %v1246
          %v1249 = vrcp.pop %v1247
          %1251 = vset.pattern.permute.xlu0 0
          %1252 = vperm.xlu0 %1251, %v1248
          %v1253 = vpop.permute.xlu0 %1252
          %1256 = vset.pattern.permute.xlu0 0
          %1257 = vperm.xlu0 %1256, %v1249
          %v1258 = vpop.permute.xlu0 %1257
          %v1260 = vmul.f32 %v1196, %v1253
          %v1261 = vmul.f32 %v1197, %v1258
          %v1262 = vsel %vm498, %v1212, %v1228
          %v1263 = vsel %vm498, %v1213, %v1229
          %vm1264 = vcmask 523264
          %v1265 = vsel %vm1264, %v1262, %v1244
          %v1266 = vsel %vm1264, %v1263, %v1245
          %vm1267 = vcmask 785408
          %v1268 = vsel %vm1267, %v1265, %v1260
          %v1269 = vsel %vm1267, %v1266, %v1261
          %v1270 = vpack.c.bf16 %v1269, %v1268
          %v1272 = vunpack.c.l.b16 %v1270
          %v1273 = vunpack.c.h.b16 %v1270
          %v1274 = vpack.c.b16 %v1272, %v1272
          %v1275 = vpack.c.b16 %v1273, %v1273
          %1278 = vst [vmem:[%s449] sm:$0xf] %v1274
          %1279 = vst [vmem:[%s449 + $0x4] sm:$0xf] %v1275
        $region167: #{refine_seq2seq_forward.21} parent=146 // pred_fallthru
          _
        %s1280 = smul.u32 2, %s21
        %p1281 = scmp.lt.s32.totalorder %s20, 1
        %s1282 = scalar_select %p1281, %s20, 1
        %p1283 = scmp.lt.s32.totalorder %s1280, 1
        %s1284 = scalar_select %p1283, %s1280, 1
        %s1285 = smul.addr %s1282, 2
        %s1286 = sadd.s32 %s1284, %s1285
        %s1287 = smul.addr %s1286, 4
        %s1288 = scalar_lea.vmem %s4, %s1287
        // Predicated region
        $region168: #{refine_seq2seq_forward.21} parent=146 // pred_check
          %p1289 = pneg %p166
        $region169: #{refine_seq2seq_forward.21} parent=146 // pred_check_branch
          %1291 = sbr.rel (%p1289) target = $region171
        $region170: #{refine_seq2seq_forward.21} parent=146 // pred_region
          %s1292 = smul.u32 2, %s21
        $region171: #{refine_seq2seq_forward.21} parent=146 // pred_fallthru
          _
      $region147: #{refine_seq2seq_forward.21} parent=5 // pred_fallthru
        _
      %p1293 = scmp.le.s32.totalorder 2, %s10
      // Predicated region
      $region172: #{refine_seq2seq_forward.21} parent=5 // pred_check
        %p1294 = pneg %p1293
      $region173: #{refine_seq2seq_forward.21} parent=5 // pred_check_branch
        %1296 = sbr.rel (%p1294) target = $region175
      $region174: #{refine_seq2seq_forward.21} parent=5 // pred_region
        %s1297 = ssub.s32 %s10, 2
        // Predicated region
        $region176: #{refine_seq2seq_forward.21} parent=174 // pred_check
          %p1298 = pneg %p172
        $region177: #{refine_seq2seq_forward.21} parent=174 // pred_check_branch
          %1300 = sbr.rel (%p1298) target = $region179
        $region178: #{refine_seq2seq_forward.21} parent=174 // pred_region
          %s1301 = smul.u32 2, %s24
          %p1302 = scmp.lt.s32.totalorder %s23, 1
          %s1303 = scalar_select %p1302, %s23, 1
          %p1304 = scmp.lt.s32.totalorder %s1301, 1
          %s1305 = scalar_select %p1304, %s1301, 1
          %s1306 = smul.addr %s1303, 2
          %s1307 = sadd.s32 %s1305, %s1306
          %s1308 = smul.addr %s1307, 4
          %s1309 = scalar_lea.vmem %s4, %s1308
        $region179: #{refine_seq2seq_forward.21} parent=174 // pred_fallthru
          _
      $region175: #{refine_seq2seq_forward.21} parent=5 // pred_fallthru
        _
    $region6: #{refine_seq2seq_forward.21} parent=1 // loop_footer
      %s14 = sadd.s32 1, %s10
    $region7: #{refine_seq2seq_forward.21} parent=1 // loop_footer_branch
      %9 = sbr.rel target = $region3
    $region8: #{refine_seq2seq_forward.21} parent=1 // loop_exit
      _

// kernel: refine_seq2seq_forward.24
$region0: #{refine_seq2seq_forward.24}
  #allocation0 [shape = 'u32[]', space=smem, size = 0x4, offset = 0x4, fixed_abs, tag = 'smem constant byte address 0x4 - core index']
  #allocation1 [shape = 'u32[144,128]{1,0:T(1,128)}', space=vmem, size = 0x12000, scoped, tag = 'internal scratch']
  #allocation2 [shape = 'f32[32,128]{1,0:T(8,128)}', space=vmem, size = 0x4000, scoped, tag = 'scratch operand']
  %s0 = inlined_call_operand.vmem [shape: bf16[32,128], index: 0, kind: input, shape index: {}]
  %s1 = inlined_call_operand.vmem [shape: bf16[128,256], index: 1, kind: input, shape index: {}]
  %s2 = inlined_call_operand.vmem [shape: f32[1,256], index: 2, kind: input, shape index: {}]
  %s3 = inlined_call_operand.vmem [shape: bf16[256,128], index: 3, kind: input, shape index: {}]
  %s4 = inlined_call_operand.vmem [shape: f32[1,128], index: 4, kind: input, shape index: {}]
  %s5 = inlined_call_operand.vmem [shape: f32[1,128], index: 5, kind: input, shape index: {}]
  %s6 = inlined_call_operand.vmem [shape: f32[1,128], index: 6, kind: input, shape index: {}]
  %s7 = inlined_call_operand.vmem [shape: bf16[32,128], index: 7, kind: output, shape index: {}]
  %s8 = sld [smem:[#allocation0]]
  $region46: #{refine_seq2seq_forward.24} parent=0
    _
  %s10 = ssub.s32 1, %s8
  %s11 = scalar_select 0, %s10, %s8
  // Predicated region
  $region2: #{refine_seq2seq_forward.24} parent=0 // pred_check
    _
  $region3: #{refine_seq2seq_forward.24} parent=0 // pred_check_branch
    %13 = sbr.rel (0) target = $region5
  $region4: #{refine_seq2seq_forward.24} parent=0 // pred_region
    _
  $region5: #{refine_seq2seq_forward.24} parent=0 // pred_fallthru
    _
  // Predicated region
  $region6: #{refine_seq2seq_forward.24} parent=0 // pred_check
    _
  $region7: #{refine_seq2seq_forward.24} parent=0 // pred_check_branch
    %15 = sbr.rel (0) target = $region9
  $region8: #{refine_seq2seq_forward.24} parent=0 // pred_region
    _
  $region9: #{refine_seq2seq_forward.24} parent=0 // pred_fallthru
    _
  // Predicated region
  $region10: #{refine_seq2seq_forward.24} parent=0 // pred_check
    _
  $region11: #{refine_seq2seq_forward.24} parent=0 // pred_check_branch
    %17 = sbr.rel (0) target = $region13
  $region12: #{refine_seq2seq_forward.24} parent=0 // pred_region
    _
  $region13: #{refine_seq2seq_forward.24} parent=0 // pred_fallthru
    _
  // Predicated region
  $region14: #{refine_seq2seq_forward.24} parent=0 // pred_check
    _
  $region15: #{refine_seq2seq_forward.24} parent=0 // pred_check_branch
    %19 = sbr.rel (0) target = $region17
  $region16: #{refine_seq2seq_forward.24} parent=0 // pred_region
    _
  $region17: #{refine_seq2seq_forward.24} parent=0 // pred_fallthru
    _
  // Predicated region
  $region18: #{refine_seq2seq_forward.24} parent=0 // pred_check
    _
  $region19: #{refine_seq2seq_forward.24} parent=0 // pred_check_branch
    %21 = sbr.rel (0) target = $region21
  $region20: #{refine_seq2seq_forward.24} parent=0 // pred_region
    _
  $region21: #{refine_seq2seq_forward.24} parent=0 // pred_fallthru
    _
  // Predicated region
  $region22: #{refine_seq2seq_forward.24} parent=0 // pred_check
    _
  $region23: #{refine_seq2seq_forward.24} parent=0 // pred_check_branch
    %23 = sbr.rel (0) target = $region25
  $region24: #{refine_seq2seq_forward.24} parent=0 // pred_region
    _
  $region25: #{refine_seq2seq_forward.24} parent=0 // pred_fallthru
    _
  // Predicated region
  $region26: #{refine_seq2seq_forward.24} parent=0 // pred_check
    _
  $region27: #{refine_seq2seq_forward.24} parent=0 // pred_check_branch
    %25 = sbr.rel (0) target = $region29
  $region28: #{refine_seq2seq_forward.24} parent=0 // pred_region
    _
  $region29: #{refine_seq2seq_forward.24} parent=0 // pred_fallthru
    _
  %p27 = scmp.eq.s32.totalorder 0, 0
  // Predicated region
  $region30: #{refine_seq2seq_forward.24} parent=0 // pred_check
    %p28 = pneg %p27
  $region31: #{refine_seq2seq_forward.24} parent=0 // pred_check_branch
    %30 = sbr.rel (%p28) target = $region33
  $region32: #{refine_seq2seq_forward.24} parent=0 // pred_region
    %31 = vst [vmem:[#allocation2] sm:$0xff] 0.0
    %32 = vst [vmem:[#allocation2 + $0x8] sm:$0xff] 0.0
    %33 = vst [vmem:[#allocation2 + $0x10] sm:$0xff] 0.0
    %34 = vst [vmem:[#allocation2 + $0x18] sm:$0xff] 0.0
  $region33: #{refine_seq2seq_forward.24} parent=0 // pred_fallthru
    _
  %v35 = vld [vmem:[%s0] sm:$0xf]
  %v36 = vld [vmem:[%s0 + $0x4] sm:$0xf]
  %v37 = vld [vmem:[%s0 + $0x8] sm:$0xf]
  %v38 = vld [vmem:[%s0 + $0xc] sm:$0xf]
  %v39 = vld [vmem:[%s1] sm:$0xff]
  %v40 = vld [vmem:[%s1 + $0x8] sm:$0xff]
  %v41 = vld [vmem:[%s1 + $0x10] sm:$0xff]
  %v42 = vld [vmem:[%s1 + $0x18] sm:$0xff]
  %v43 = vld [vmem:[%s1 + $0x20] sm:$0xff]
  %v44 = vld [vmem:[%s1 + $0x28] sm:$0xff]
  %v45 = vld [vmem:[%s1 + $0x30] sm:$0xff]
  %v46 = vld [vmem:[%s1 + $0x38] sm:$0xff]
  %v47 = vld [vmem:[%s1 + $0x40] sm:$0xff]
  %v48 = vld [vmem:[%s1 + $0x48] sm:$0xff]
  %v49 = vld [vmem:[%s1 + $0x50] sm:$0xff]
  %v50 = vld [vmem:[%s1 + $0x58] sm:$0xff]
  %v51 = vld [vmem:[%s1 + $0x60] sm:$0xff]
  %v52 = vld [vmem:[%s1 + $0x68] sm:$0xff]
  %v53 = vld [vmem:[%s1 + $0x70] sm:$0xff]
  %v54 = vld [vmem:[%s1 + $0x78] sm:$0xff]
  %v55 = vld [vmem:[%s2] sm:$0x3]
  %v57 = vlaneseq
  %v58 = vshrl.u32 %v57, 7
  %v59 = vsub.s32 0, %v58
  %v60 = vrot.slane %v55, %v59
  %v61 = vlaneseq
  %v62 = vshrl.u32 %v61, 7
  %v63 = vsub.s32 1, %v62
  %v64 = vrot.slane %v55, %v63
  %v71 = vunpack.c.l.b16 %v35
  %v72 = vunpack.c.l.b16 %v36
  %v73 = vunpack.c.l.b16 %v37
  %v74 = vunpack.c.l.b16 %v38
  %v75 = vpack.c.b16 %v72, %v71
  %v76 = vpack.c.b16 %v74, %v73
  %v95 = vunpack.c.l.b16 %v39
  %v96 = vunpack.c.h.b16 %v39
  %v97 = vunpack.c.l.b16 %v40
  %v98 = vunpack.c.h.b16 %v40
  %v99 = vunpack.c.l.b16 %v41
  %v100 = vunpack.c.h.b16 %v41
  %v101 = vunpack.c.l.b16 %v42
  %v102 = vunpack.c.h.b16 %v42
  %v103 = vunpack.c.l.b16 %v43
  %v104 = vunpack.c.h.b16 %v43
  %v105 = vunpack.c.l.b16 %v44
  %v106 = vunpack.c.h.b16 %v44
  %v107 = vunpack.c.l.b16 %v45
  %v108 = vunpack.c.h.b16 %v45
  %v109 = vunpack.c.l.b16 %v46
  %v110 = vunpack.c.h.b16 %v46
  %v111 = vunpack.c.l.b16 %v47
  %v112 = vunpack.c.h.b16 %v47
  %v113 = vunpack.c.l.b16 %v48
  %v114 = vunpack.c.h.b16 %v48
  %v115 = vunpack.c.l.b16 %v49
  %v116 = vunpack.c.h.b16 %v49
  %v117 = vunpack.c.l.b16 %v50
  %v118 = vunpack.c.h.b16 %v50
  %v119 = vunpack.c.l.b16 %v51
  %v120 = vunpack.c.h.b16 %v51
  %v121 = vunpack.c.l.b16 %v52
  %v122 = vunpack.c.h.b16 %v52
  %v123 = vunpack.c.l.b16 %v53
  %v124 = vunpack.c.h.b16 %v53
  %v125 = vunpack.c.l.b16 %v54
  %v126 = vunpack.c.h.b16 %v54
  %v127 = vpack.c.b16 %v97, %v95
  %v128 = vpack.c.b16 %v98, %v96
  %v129 = vpack.c.b16 %v101, %v99
  %v130 = vpack.c.b16 %v102, %v100
  %v131 = vpack.c.b16 %v105, %v103
  %v132 = vpack.c.b16 %v106, %v104
  %v133 = vpack.c.b16 %v109, %v107
  %v134 = vpack.c.b16 %v110, %v108
  %v135 = vpack.c.b16 %v113, %v111
  %v136 = vpack.c.b16 %v114, %v112
  %v137 = vpack.c.b16 %v117, %v115
  %v138 = vpack.c.b16 %v118, %v116
  %v139 = vpack.c.b16 %v121, %v119
  %v140 = vpack.c.b16 %v122, %v120
  %v141 = vpack.c.b16 %v125, %v123
  %v142 = vpack.c.b16 %v126, %v124
  %159 = vmatprep.subr.bf16.mxu0 %v128
  %160 = vmatpush1.bf16.msra.mxu0 %v127
  %161 = vmatprep.subr.bf16.mxu0 %v130
  %162 = vmatpush1.bf16.msra.mxu0 %v129
  %163 = vmatprep.subr.bf16.mxu0 %v132
  %164 = vmatpush1.bf16.msra.mxu0 %v131
  %165 = vmatprep.subr.bf16.mxu0 %v134
  %166 = vmatpush1.bf16.msra.mxu0 %v133
  %167 = vmatprep.subr.bf16.mxu0 %v136
  %168 = vmatpush1.bf16.msra.mxu0 %v135
  %169 = vmatprep.subr.bf16.mxu0 %v138
  %170 = vmatpush1.bf16.msra.mxu0 %v137
  %171 = vmatprep.subr.bf16.mxu0 %v140
  %172 = vmatpush1.bf16.msra.mxu0 %v139
  %173 = vmatprep.subr.bf16.mxu0 %v142
  %174 = vmatpush1.bf16.msra.mxu0 %v141
  %175 = vmatprep.subr.bf16.mxu0 0
  %176 = vmatpush1.bf16.msra.mxu0 0
  %177 = vmatprep.subr.bf16.mxu0 0
  %178 = vmatpush1.bf16.msra.mxu0 0
  %179 = vmatprep.subr.bf16.mxu0 0
  %180 = vmatpush1.bf16.msra.mxu0 0
  %181 = vmatprep.subr.bf16.mxu0 0
  %182 = vmatpush1.bf16.msra.mxu0 0
  %183 = vmatprep.subr.bf16.mxu0 0
  %184 = vmatpush1.bf16.msra.mxu0 0
  %185 = vmatprep.subr.bf16.mxu0 0
  %186 = vmatpush1.bf16.msra.mxu0 0
  %187 = vmatprep.subr.bf16.mxu0 0
  %188 = vmatpush1.bf16.msra.mxu0 0
  %189 = vmatprep.subr.bf16.mxu0 0
  %190 = vmatpush1.bf16.msra.mxu0 0
  %191 = vmatprep.mubr.bf16.mxu0 0
  %192 = vmatmul.mubr.bf16.gmra.mrb[0].mxu0 %v75
  %v193 = vpop.f32.mrb[0].mxu0
  %v194 = vadd.f32 %v60, %v193
  %v195 = vpop.f32.mrb[0].mxu0
  %v196 = vadd.f32 %v64, %v195
  %v197 = vpop.f32.mrb[0].mxu0
  %v198 = vadd.f32 %v60, %v197
  %v199 = vpop.f32.mrb[0].mxu0
  %v200 = vadd.f32 %v64, %v199
  %201 = vmatprep.mubr.bf16.mxu0 0
  %202 = vmatmul.mubr.bf16.gmra.mrb[0].mxu0 %v76
  %v203 = vpop.f32.mrb[0].mxu0
  %v204 = vadd.f32 %v60, %v203
  %v205 = vpop.f32.mrb[0].mxu0
  %v206 = vadd.f32 %v64, %v205
  %v207 = vpop.f32.mrb[0].mxu0
  %v208 = vadd.f32 %v60, %v207
  %v209 = vpop.f32.mrb[0].mxu0
  %v210 = vadd.f32 %v64, %v209
  %211 = vdwg.mxu0
  %v212 = vmax.f32 %v194, 0.0
  %v213 = vmax.f32 %v196, 0.0
  %v214 = vmax.f32 %v198, 0.0
  %v215 = vmax.f32 %v200, 0.0
  %v216 = vmax.f32 %v204, 0.0
  %v217 = vmax.f32 %v206, 0.0
  %v218 = vmax.f32 %v208, 0.0
  %v219 = vmax.f32 %v210, 0.0
  %v220 = vpack.c.bf16 %v214, %v212
  %v221 = vpack.c.bf16 %v215, %v213
  %v222 = vpack.c.bf16 %v218, %v216
  %v223 = vpack.c.bf16 %v219, %v217
  %v224 = vld [vmem:[#allocation2] sm:$0xff]
  %v225 = vld [vmem:[#allocation2 + $0x8] sm:$0xff]
  %v226 = vld [vmem:[#allocation2 + $0x10] sm:$0xff]
  %v227 = vld [vmem:[#allocation2 + $0x18] sm:$0xff]
  %v228 = vld [vmem:[%s3] sm:$0xf]
  %v229 = vld [vmem:[%s3 + $0x4] sm:$0xf]
  %v230 = vld [vmem:[%s3 + $0x8] sm:$0xf]
  %v231 = vld [vmem:[%s3 + $0xc] sm:$0xf]
  %v232 = vld [vmem:[%s3 + $0x10] sm:$0xf]
  %v233 = vld [vmem:[%s3 + $0x14] sm:$0xf]
  %v234 = vld [vmem:[%s3 + $0x18] sm:$0xf]
  %v235 = vld [vmem:[%s3 + $0x1c] sm:$0xf]
  %v236 = vld [vmem:[%s3 + $0x20] sm:$0xf]
  %v237 = vld [vmem:[%s3 + $0x24] sm:$0xf]
  %v238 = vld [vmem:[%s3 + $0x28] sm:$0xf]
  %v239 = vld [vmem:[%s3 + $0x2c] sm:$0xf]
  %v240 = vld [vmem:[%s3 + $0x30] sm:$0xf]
  %v241 = vld [vmem:[%s3 + $0x34] sm:$0xf]
  %v242 = vld [vmem:[%s3 + $0x38] sm:$0xf]
  %v243 = vld [vmem:[%s3 + $0x3c] sm:$0xf]
  %v244 = vld [vmem:[%s3 + $0x40] sm:$0xf]
  %v245 = vld [vmem:[%s3 + $0x44] sm:$0xf]
  %v246 = vld [vmem:[%s3 + $0x48] sm:$0xf]
  %v247 = vld [vmem:[%s3 + $0x4c] sm:$0xf]
  %v248 = vld [vmem:[%s3 + $0x50] sm:$0xf]
  %v249 = vld [vmem:[%s3 + $0x54] sm:$0xf]
  %v250 = vld [vmem:[%s3 + $0x58] sm:$0xf]
  %v251 = vld [vmem:[%s3 + $0x5c] sm:$0xf]
  %v252 = vld [vmem:[%s3 + $0x60] sm:$0xf]
  %v253 = vld [vmem:[%s3 + $0x64] sm:$0xf]
  %v254 = vld [vmem:[%s3 + $0x68] sm:$0xf]
  %v255 = vld [vmem:[%s3 + $0x6c] sm:$0xf]
  %v256 = vld [vmem:[%s3 + $0x70] sm:$0xf]
  %v257 = vld [vmem:[%s3 + $0x74] sm:$0xf]
  %v258 = vld [vmem:[%s3 + $0x78] sm:$0xf]
  %v259 = vld [vmem:[%s3 + $0x7c] sm:$0xf]
  %v292 = vunpack.c.l.b16 %v228
  %v293 = vunpack.c.l.b16 %v229
  %v294 = vunpack.c.l.b16 %v230
  %v295 = vunpack.c.l.b16 %v231
  %v296 = vunpack.c.l.b16 %v232
  %v297 = vunpack.c.l.b16 %v233
  %v298 = vunpack.c.l.b16 %v234
  %v299 = vunpack.c.l.b16 %v235
  %v300 = vunpack.c.l.b16 %v236
  %v301 = vunpack.c.l.b16 %v237
  %v302 = vunpack.c.l.b16 %v238
  %v303 = vunpack.c.l.b16 %v239
  %v304 = vunpack.c.l.b16 %v240
  %v305 = vunpack.c.l.b16 %v241
  %v306 = vunpack.c.l.b16 %v242
  %v307 = vunpack.c.l.b16 %v243
  %v308 = vunpack.c.l.b16 %v244
  %v309 = vunpack.c.l.b16 %v245
  %v310 = vunpack.c.l.b16 %v246
  %v311 = vunpack.c.l.b16 %v247
  %v312 = vunpack.c.l.b16 %v248
  %v313 = vunpack.c.l.b16 %v249
  %v314 = vunpack.c.l.b16 %v250
  %v315 = vunpack.c.l.b16 %v251
  %v316 = vunpack.c.l.b16 %v252
  %v317 = vunpack.c.l.b16 %v253
  %v318 = vunpack.c.l.b16 %v254
  %v319 = vunpack.c.l.b16 %v255
  %v320 = vunpack.c.l.b16 %v256
  %v321 = vunpack.c.l.b16 %v257
  %v322 = vunpack.c.l.b16 %v258
  %v323 = vunpack.c.l.b16 %v259
  %v324 = vpack.c.b16 %v293, %v292
  %v325 = vpack.c.b16 %v295, %v294
  %v326 = vpack.c.b16 %v297, %v296
  %v327 = vpack.c.b16 %v299, %v298
  %v328 = vpack.c.b16 %v301, %v300
  %v329 = vpack.c.b16 %v303, %v302
  %v330 = vpack.c.b16 %v305, %v304
  %v331 = vpack.c.b16 %v307, %v306
  %v332 = vpack.c.b16 %v309, %v308
  %v333 = vpack.c.b16 %v311, %v310
  %v334 = vpack.c.b16 %v313, %v312
  %v335 = vpack.c.b16 %v315, %v314
  %v336 = vpack.c.b16 %v317, %v316
  %v337 = vpack.c.b16 %v319, %v318
  %v338 = vpack.c.b16 %v321, %v320
  %v339 = vpack.c.b16 %v323, %v322
  %356 = vmatprep.subr.bf16.mxu0 0
  %357 = vmatpush1.bf16.msra.mxu0 %v324
  %358 = vmatprep.subr.bf16.mxu0 0
  %359 = vmatpush1.bf16.msra.mxu0 %v325
  %360 = vmatprep.subr.bf16.mxu0 0
  %361 = vmatpush1.bf16.msra.mxu0 %v326
  %362 = vmatprep.subr.bf16.mxu0 0
  %363 = vmatpush1.bf16.msra.mxu0 %v327
  %364 = vmatprep.subr.bf16.mxu0 0
  %365 = vmatpush1.bf16.msra.mxu0 %v328
  %366 = vmatprep.subr.bf16.mxu0 0
  %367 = vmatpush1.bf16.msra.mxu0 %v329
  %368 = vmatprep.subr.bf16.mxu0 0
  %369 = vmatpush1.bf16.msra.mxu0 %v330
  %370 = vmatprep.subr.bf16.mxu0 0
  %371 = vmatpush1.bf16.msra.mxu0 %v331
  %372 = vmatprep.subr.bf16.mxu0 0
  %373 = vmatpush1.bf16.msra.mxu0 %v332
  %374 = vmatprep.subr.bf16.mxu0 0
  %375 = vmatpush1.bf16.msra.mxu0 %v333
  %376 = vmatprep.subr.bf16.mxu0 0
  %377 = vmatpush1.bf16.msra.mxu0 %v334
  %378 = vmatprep.subr.bf16.mxu0 0
  %379 = vmatpush1.bf16.msra.mxu0 %v335
  %380 = vmatprep.subr.bf16.mxu0 0
  %381 = vmatpush1.bf16.msra.mxu0 %v336
  %382 = vmatprep.subr.bf16.mxu0 0
  %383 = vmatpush1.bf16.msra.mxu0 %v337
  %384 = vmatprep.subr.bf16.mxu0 0
  %385 = vmatpush1.bf16.msra.mxu0 %v338
  %386 = vmatprep.subr.bf16.mxu0 0
  %387 = vmatpush1.bf16.msra.mxu0 %v339
  %388 = vmatprep.mubr.bf16.mxu0 %v221
  %389 = vmatmul.mubr.bf16.gmra.mrb[0].mxu0 %v220
  %v390 = vpop.f32.mrb[0].mxu0
  %v391 = vadd.f32 0.0, %v390
  %v392 = vpop.f32.mrb[0].mxu0
  %v393 = vpop.f32.mrb[0].mxu0
  %v394 = vadd.f32 0.0, %v393
  %v395 = vpop.f32.mrb[0].mxu0
  %396 = vmatprep.mubr.bf16.mxu0 %v223
  %397 = vmatmul.mubr.bf16.gmra.mrb[0].mxu0 %v222
  %v398 = vpop.f32.mrb[0].mxu0
  %v399 = vadd.f32 0.0, %v398
  %v400 = vpop.f32.mrb[0].mxu0
  %v401 = vpop.f32.mrb[0].mxu0
  %v402 = vadd.f32 0.0, %v401
  %v403 = vpop.f32.mrb[0].mxu0
  %404 = vdwg.mxu0
  %v405 = vadd.f32 %v224, %v391
  %v406 = vadd.f32 %v225, %v394
  %v407 = vadd.f32 %v226, %v399
  %v408 = vadd.f32 %v227, %v402
  %409 = vst [vmem:[#allocation2] sm:$0xff] %v405
  %410 = vst [vmem:[#allocation2 + $0x8] sm:$0xff] %v406
  %411 = vst [vmem:[#allocation2 + $0x10] sm:$0xff] %v407
  %412 = vst [vmem:[#allocation2 + $0x18] sm:$0xff] %v408
  // Predicated region
  $region34: #{refine_seq2seq_forward.24} parent=0 // pred_check
    %p413 = pneg %p27
  $region35: #{refine_seq2seq_forward.24} parent=0 // pred_check_branch
    %415 = sbr.rel (%p413) target = $region37
  $region36: #{refine_seq2seq_forward.24} parent=0 // pred_region
    %v416 = vld [vmem:[#allocation2] sm:$0xff]
    %v417 = vld [vmem:[#allocation2 + $0x8] sm:$0xff]
    %v418 = vld [vmem:[#allocation2 + $0x10] sm:$0xff]
    %v419 = vld [vmem:[#allocation2 + $0x18] sm:$0xff]
    %v420 = vld [vmem:[%s4] sm:$0x1]
    %v422 = vlaneseq
    %v423 = vshrl.u32 %v422, 7
    %v424 = vsub.s32 0, %v423
    %v425 = vrot.slane %v420, %v424
    %v427 = vadd.f32 %v416, %v425
    %v428 = vadd.f32 %v417, %v425
    %v429 = vadd.f32 %v418, %v425
    %v430 = vadd.f32 %v419, %v425
    %v431 = vunpack.c.l.bf16 %v35
    %v432 = vunpack.c.l.bf16 %v36
    %v433 = vunpack.c.l.bf16 %v37
    %v434 = vunpack.c.l.bf16 %v38
    %v435 = vadd.f32 %v427, %v431
    %v436 = vadd.f32 %v428, %v432
    %v437 = vadd.f32 %v429, %v433
    %v438 = vadd.f32 %v430, %v434
    %439 = vadd.xlane.f32.xlu0 %v435
    %v440 = vpop.xlane.xlu0 %439
    %441 = vadd.xlane.f32.xlu0 %v436
    %v442 = vpop.xlane.xlu0 %441
    %443 = vadd.xlane.f32.xlu0 %v437
    %v444 = vpop.xlane.xlu0 %443
    %445 = vadd.xlane.f32.xlu0 %v438
    %v446 = vpop.xlane.xlu0 %445
    %v447 = vrcp.pop 128.0
    %v448 = vmul.f32 %v440, %v447
    %v449 = vmul.f32 %v442, %v447
    %v450 = vmul.f32 %v444, %v447
    %v451 = vmul.f32 %v446, %v447
    %v452 = vsub.f32 %v435, %v448
    %v453 = vsub.f32 %v436, %v449
    %v454 = vsub.f32 %v437, %v450
    %v455 = vsub.f32 %v438, %v451
    %v456 = vmul.f32 %v452, %v452
    %v457 = vmul.f32 %v453, %v453
    %v458 = vmul.f32 %v454, %v454
    %v459 = vmul.f32 %v455, %v455
    %460 = vadd.xlane.f32.xlu0 %v456
    %v461 = vpop.xlane.xlu0 %460
    %462 = vadd.xlane.f32.xlu0 %v457
    %v463 = vpop.xlane.xlu0 %462
    %464 = vadd.xlane.f32.xlu0 %v458
    %v465 = vpop.xlane.xlu0 %464
    %466 = vadd.xlane.f32.xlu0 %v459
    %v467 = vpop.xlane.xlu0 %466
    %v468 = vmul.f32 %v461, %v447
    %v469 = vmul.f32 %v463, %v447
    %v470 = vmul.f32 %v465, %v447
    %v471 = vmul.f32 %v467, %v447
    %v472 = vadd.f32 %v468, 1e-05
    %v473 = vadd.f32 %v469, 1e-05
    %v474 = vadd.f32 %v470, 1e-05
    %v475 = vadd.f32 %v471, 1e-05
    %v476 = vrsqrt.pop %v472
    %v477 = vrsqrt.pop %v473
    %v478 = vrsqrt.pop %v474
    %v479 = vrsqrt.pop %v475
    %v480 = vmul.f32 %v452, %v476
    %v481 = vmul.f32 %v453, %v477
    %v482 = vmul.f32 %v454, %v478
    %v483 = vmul.f32 %v455, %v479
    %v484 = vld [vmem:[%s5] sm:$0x1]
    %v486 = vlaneseq
    %v487 = vshrl.u32 %v486, 7
    %v488 = vsub.s32 0, %v487
    %v489 = vrot.slane %v484, %v488
    %v491 = vmul.f32 %v480, %v489
    %v492 = vmul.f32 %v481, %v489
    %v493 = vmul.f32 %v482, %v489
    %v494 = vmul.f32 %v483, %v489
    %v495 = vld [vmem:[%s6] sm:$0x1]
    %v497 = vlaneseq
    %v498 = vshrl.u32 %v497, 7
    %v499 = vsub.s32 0, %v498
    %v500 = vrot.slane %v495, %v499
    %v502 = vadd.f32 %v491, %v500
    %v503 = vadd.f32 %v492, %v500
    %v504 = vadd.f32 %v493, %v500
    %v505 = vadd.f32 %v494, %v500
    %v506 = vpack.c.bf16 %v503, %v502
    %v507 = vpack.c.bf16 %v505, %v504
    %v510 = vunpack.c.l.b16 %v506
    %v511 = vunpack.c.h.b16 %v506
    %v512 = vunpack.c.l.b16 %v507
    %v513 = vunpack.c.h.b16 %v507
    %v514 = vpack.c.b16 %v510, %v510
    %v515 = vpack.c.b16 %v511, %v511
    %v516 = vpack.c.b16 %v512, %v512
    %v517 = vpack.c.b16 %v513, %v513
    %522 = vst [vmem:[%s7] sm:$0xf] %v514
    %523 = vst [vmem:[%s7 + $0x4] sm:$0xf] %v515
    %524 = vst [vmem:[%s7 + $0x8] sm:$0xf] %v516
    %525 = vst [vmem:[%s7 + $0xc] sm:$0xf] %v517
  $region37: #{refine_seq2seq_forward.24} parent=0 // pred_fallthru
    _
  // Predicated region
  $region38: #{refine_seq2seq_forward.24} parent=0 // pred_check
    _
  $region39: #{refine_seq2seq_forward.24} parent=0 // pred_check_branch
    %527 = sbr.rel (0) target = $region41
  $region40: #{refine_seq2seq_forward.24} parent=0 // pred_region
    _
  $region41: #{refine_seq2seq_forward.24} parent=0 // pred_fallthru
    _
  // Predicated region
  $region42: #{refine_seq2seq_forward.24} parent=0 // pred_check
    _
  $region43: #{refine_seq2seq_forward.24} parent=0 // pred_check_branch
    %529 = sbr.rel (0) target = $region45
  $region44: #{refine_seq2seq_forward.24} parent=0 // pred_region
    _
  $region45: #{refine_seq2seq_forward.24} parent=0 // pred_fallthru
    _

// kernel: refine_seq2seq_forward.31
$region0: #{refine_seq2seq_forward.31}
  #allocation0 [shape = 'u32[]', space=smem, size = 0x4, offset = 0x4, fixed_abs, tag = 'smem constant byte address 0x4 - core index']
  #allocation1 [shape = 'u32[144,128]{1,0:T(1,128)}', space=vmem, size = 0x12000, scoped, tag = 'internal scratch']
  #allocation2 [shape = 'f32[32,256]{1,0:T(8,128)}', space=vmem, size = 0x8000, scoped, tag = 'scratch operand']
  %s0 = inlined_call_operand.vmem [shape: bf16[32,128], index: 0, kind: input, shape index: {}]
  %s1 = inlined_call_operand.vmem [shape: bf16[128,256], index: 1, kind: input, shape index: {}]
  %s2 = inlined_call_operand.vmem [shape: f32[1,256], index: 2, kind: input, shape index: {}]
  %s3 = inlined_call_operand.vmem [shape: bf16[32,256], index: 3, kind: output, shape index: {}]
  %s4 = sld [smem:[#allocation0]]
  $region30: #{refine_seq2seq_forward.31} parent=0
    _
  %s6 = ssub.s32 1, %s4
  %s7 = scalar_select 0, %s6, %s4
  // Predicated region
  $region2: #{refine_seq2seq_forward.31} parent=0 // pred_check
    _
  $region3: #{refine_seq2seq_forward.31} parent=0 // pred_check_branch
    %9 = sbr.rel (0) target = $region5
  $region4: #{refine_seq2seq_forward.31} parent=0 // pred_region
    _
  $region5: #{refine_seq2seq_forward.31} parent=0 // pred_fallthru
    _
  // Predicated region
  $region6: #{refine_seq2seq_forward.31} parent=0 // pred_check
    _
  $region7: #{refine_seq2seq_forward.31} parent=0 // pred_check_branch
    %11 = sbr.rel (0) target = $region9
  $region8: #{refine_seq2seq_forward.31} parent=0 // pred_region
    _
  $region9: #{refine_seq2seq_forward.31} parent=0 // pred_fallthru
    _
  // Predicated region
  $region10: #{refine_seq2seq_forward.31} parent=0 // pred_check
    _
  $region11: #{refine_seq2seq_forward.31} parent=0 // pred_check_branch
    %13 = sbr.rel (0) target = $region13
  $region12: #{refine_seq2seq_forward.31} parent=0 // pred_region
    _
  $region13: #{refine_seq2seq_forward.31} parent=0 // pred_fallthru
    _
  %p15 = scmp.eq.s32.totalorder 0, 0
  // Predicated region
  $region14: #{refine_seq2seq_forward.31} parent=0 // pred_check
    %p16 = pneg %p15
  $region15: #{refine_seq2seq_forward.31} parent=0 // pred_check_branch
    %18 = sbr.rel (%p16) target = $region17
  $region16: #{refine_seq2seq_forward.31} parent=0 // pred_region
    %19 = vst [vmem:[#allocation2] sm:$0xff] 0.0
    %20 = vst [vmem:[#allocation2 + $0x8] sm:$0xff] 0.0
    %21 = vst [vmem:[#allocation2 + $0x10] sm:$0xff] 0.0
    %22 = vst [vmem:[#allocation2 + $0x18] sm:$0xff] 0.0
    %23 = vst [vmem:[#allocation2 + $0x20] sm:$0xff] 0.0
    %24 = vst [vmem:[#allocation2 + $0x28] sm:$0xff] 0.0
    %25 = vst [vmem:[#allocation2 + $0x30] sm:$0xff] 0.0
    %26 = vst [vmem:[#allocation2 + $0x38] sm:$0xff] 0.0
  $region17: #{refine_seq2seq_forward.31} parent=0 // pred_fallthru
    _
  %v27 = vld [vmem:[#allocation2] sm:$0xff]
  %v28 = vld [vmem:[#allocation2 + $0x8] sm:$0xff]
  %v29 = vld [vmem:[#allocation2 + $0x10] sm:$0xff]
  %v30 = vld [vmem:[#allocation2 + $0x18] sm:$0xff]
  %v31 = vld [vmem:[#allocation2 + $0x20] sm:$0xff]
  %v32 = vld [vmem:[#allocation2 + $0x28] sm:$0xff]
  %v33 = vld [vmem:[#allocation2 + $0x30] sm:$0xff]
  %v34 = vld [vmem:[#allocation2 + $0x38] sm:$0xff]
  %v35 = vld [vmem:[%s0] sm:$0xf]
  %v36 = vld [vmem:[%s0 + $0x4] sm:$0xf]
  %v37 = vld [vmem:[%s0 + $0x8] sm:$0xf]
  %v38 = vld [vmem:[%s0 + $0xc] sm:$0xf]
  %v39 = vld [vmem:[%s1] sm:$0xff]
  %v40 = vld [vmem:[%s1 + $0x8] sm:$0xff]
  %v41 = vld [vmem:[%s1 + $0x10] sm:$0xff]
  %v42 = vld [vmem:[%s1 + $0x18] sm:$0xff]
  %v43 = vld [vmem:[%s1 + $0x20] sm:$0xff]
  %v44 = vld [vmem:[%s1 + $0x28] sm:$0xff]
  %v45 = vld [vmem:[%s1 + $0x30] sm:$0xff]
  %v46 = vld [vmem:[%s1 + $0x38] sm:$0xff]
  %v47 = vld [vmem:[%s1 + $0x40] sm:$0xff]
  %v48 = vld [vmem:[%s1 + $0x48] sm:$0xff]
  %v49 = vld [vmem:[%s1 + $0x50] sm:$0xff]
  %v50 = vld [vmem:[%s1 + $0x58] sm:$0xff]
  %v51 = vld [vmem:[%s1 + $0x60] sm:$0xff]
  %v52 = vld [vmem:[%s1 + $0x68] sm:$0xff]
  %v53 = vld [vmem:[%s1 + $0x70] sm:$0xff]
  %v54 = vld [vmem:[%s1 + $0x78] sm:$0xff]
  %v59 = vunpack.c.l.b16 %v35
  %v60 = vunpack.c.l.b16 %v36
  %v61 = vunpack.c.l.b16 %v37
  %v62 = vunpack.c.l.b16 %v38
  %v63 = vpack.c.b16 %v60, %v59
  %v64 = vpack.c.b16 %v62, %v61
  %v83 = vunpack.c.l.b16 %v39
  %v84 = vunpack.c.h.b16 %v39
  %v85 = vunpack.c.l.b16 %v40
  %v86 = vunpack.c.h.b16 %v40
  %v87 = vunpack.c.l.b16 %v41
  %v88 = vunpack.c.h.b16 %v41
  %v89 = vunpack.c.l.b16 %v42
  %v90 = vunpack.c.h.b16 %v42
  %v91 = vunpack.c.l.b16 %v43
  %v92 = vunpack.c.h.b16 %v43
  %v93 = vunpack.c.l.b16 %v44
  %v94 = vunpack.c.h.b16 %v44
  %v95 = vunpack.c.l.b16 %v45
  %v96 = vunpack.c.h.b16 %v45
  %v97 = vunpack.c.l.b16 %v46
  %v98 = vunpack.c.h.b16 %v46
  %v99 = vunpack.c.l.b16 %v47
  %v100 = vunpack.c.h.b16 %v47
  %v101 = vunpack.c.l.b16 %v48
  %v102 = vunpack.c.h.b16 %v48
  %v103 = vunpack.c.l.b16 %v49
  %v104 = vunpack.c.h.b16 %v49
  %v105 = vunpack.c.l.b16 %v50
  %v106 = vunpack.c.h.b16 %v50
  %v107 = vunpack.c.l.b16 %v51
  %v108 = vunpack.c.h.b16 %v51
  %v109 = vunpack.c.l.b16 %v52
  %v110 = vunpack.c.h.b16 %v52
  %v111 = vunpack.c.l.b16 %v53
  %v112 = vunpack.c.h.b16 %v53
  %v113 = vunpack.c.l.b16 %v54
  %v114 = vunpack.c.h.b16 %v54
  %v115 = vpack.c.b16 %v85, %v83
  %v116 = vpack.c.b16 %v86, %v84
  %v117 = vpack.c.b16 %v89, %v87
  %v118 = vpack.c.b16 %v90, %v88
  %v119 = vpack.c.b16 %v93, %v91
  %v120 = vpack.c.b16 %v94, %v92
  %v121 = vpack.c.b16 %v97, %v95
  %v122 = vpack.c.b16 %v98, %v96
  %v123 = vpack.c.b16 %v101, %v99
  %v124 = vpack.c.b16 %v102, %v100
  %v125 = vpack.c.b16 %v105, %v103
  %v126 = vpack.c.b16 %v106, %v104
  %v127 = vpack.c.b16 %v109, %v107
  %v128 = vpack.c.b16 %v110, %v108
  %v129 = vpack.c.b16 %v113, %v111
  %v130 = vpack.c.b16 %v114, %v112
  %147 = vmatprep.subr.bf16.mxu0 %v116
  %148 = vmatpush1.bf16.msra.mxu0 %v115
  %149 = vmatprep.subr.bf16.mxu0 %v118
  %150 = vmatpush1.bf16.msra.mxu0 %v117
  %151 = vmatprep.subr.bf16.mxu0 %v120
  %152 = vmatpush1.bf16.msra.mxu0 %v119
  %153 = vmatprep.subr.bf16.mxu0 %v122
  %154 = vmatpush1.bf16.msra.mxu0 %v121
  %155 = vmatprep.subr.bf16.mxu0 %v124
  %156 = vmatpush1.bf16.msra.mxu0 %v123
  %157 = vmatprep.subr.bf16.mxu0 %v126
  %158 = vmatpush1.bf16.msra.mxu0 %v125
  %159 = vmatprep.subr.bf16.mxu0 %v128
  %160 = vmatpush1.bf16.msra.mxu0 %v127
  %161 = vmatprep.subr.bf16.mxu0 %v130
  %162 = vmatpush1.bf16.msra.mxu0 %v129
  %163 = vmatprep.subr.bf16.mxu0 0
  %164 = vmatpush1.bf16.msra.mxu0 0
  %165 = vmatprep.subr.bf16.mxu0 0
  %166 = vmatpush1.bf16.msra.mxu0 0
  %167 = vmatprep.subr.bf16.mxu0 0
  %168 = vmatpush1.bf16.msra.mxu0 0
  %169 = vmatprep.subr.bf16.mxu0 0
  %170 = vmatpush1.bf16.msra.mxu0 0
  %171 = vmatprep.subr.bf16.mxu0 0
  %172 = vmatpush1.bf16.msra.mxu0 0
  %173 = vmatprep.subr.bf16.mxu0 0
  %174 = vmatpush1.bf16.msra.mxu0 0
  %175 = vmatprep.subr.bf16.mxu0 0
  %176 = vmatpush1.bf16.msra.mxu0 0
  %177 = vmatprep.subr.bf16.mxu0 0
  %178 = vmatpush1.bf16.msra.mxu0 0
  %179 = vmatprep.mubr.bf16.mxu0 0
  %180 = vmatmul.mubr.bf16.gmra.mrb[0].mxu0 %v63
  %v181 = vpop.f32.mrb[0].mxu0
  %v182 = vadd.f32 0.0, %v181
  %v183 = vpop.f32.mrb[0].mxu0
  %v184 = vadd.f32 0.0, %v183
  %v185 = vpop.f32.mrb[0].mxu0
  %v186 = vadd.f32 0.0, %v185
  %v187 = vpop.f32.mrb[0].mxu0
  %v188 = vadd.f32 0.0, %v187
  %189 = vmatprep.mubr.bf16.mxu0 0
  %190 = vmatmul.mubr.bf16.gmra.mrb[0].mxu0 %v64
  %v191 = vpop.f32.mrb[0].mxu0
  %v192 = vadd.f32 0.0, %v191
  %v193 = vpop.f32.mrb[0].mxu0
  %v194 = vadd.f32 0.0, %v193
  %v195 = vpop.f32.mrb[0].mxu0
  %v196 = vadd.f32 0.0, %v195
  %v197 = vpop.f32.mrb[0].mxu0
  %v198 = vadd.f32 0.0, %v197
  %199 = vdwg.mxu0
  %v200 = vadd.f32 %v27, %v182
  %v201 = vadd.f32 %v28, %v184
  %v202 = vadd.f32 %v29, %v186
  %v203 = vadd.f32 %v30, %v188
  %v204 = vadd.f32 %v31, %v192
  %v205 = vadd.f32 %v32, %v194
  %v206 = vadd.f32 %v33, %v196
  %v207 = vadd.f32 %v34, %v198
  %208 = vst [vmem:[#allocation2] sm:$0xff] %v200
  %209 = vst [vmem:[#allocation2 + $0x8] sm:$0xff] %v201
  %210 = vst [vmem:[#allocation2 + $0x10] sm:$0xff] %v202
  %211 = vst [vmem:[#allocation2 + $0x18] sm:$0xff] %v203
  %212 = vst [vmem:[#allocation2 + $0x20] sm:$0xff] %v204
  %213 = vst [vmem:[#allocation2 + $0x28] sm:$0xff] %v205
  %214 = vst [vmem:[#allocation2 + $0x30] sm:$0xff] %v206
  %215 = vst [vmem:[#allocation2 + $0x38] sm:$0xff] %v207
  // Predicated region
  $region18: #{refine_seq2seq_forward.31} parent=0 // pred_check
    %p216 = pneg %p15
  $region19: #{refine_seq2seq_forward.31} parent=0 // pred_check_branch
    %218 = sbr.rel (%p216) target = $region21
  $region20: #{refine_seq2seq_forward.31} parent=0 // pred_region
    %v219 = vld [vmem:[#allocation2] sm:$0xff]
    %v220 = vld [vmem:[#allocation2 + $0x8] sm:$0xff]
    %v221 = vld [vmem:[#allocation2 + $0x10] sm:$0xff]
    %v222 = vld [vmem:[#allocation2 + $0x18] sm:$0xff]
    %v223 = vld [vmem:[#allocation2 + $0x20] sm:$0xff]
    %v224 = vld [vmem:[#allocation2 + $0x28] sm:$0xff]
    %v225 = vld [vmem:[#allocation2 + $0x30] sm:$0xff]
    %v226 = vld [vmem:[#allocation2 + $0x38] sm:$0xff]
    %v227 = vld [vmem:[%s2] sm:$0x3]
    %v229 = vlaneseq
    %v230 = vshrl.u32 %v229, 7
    %v231 = vsub.s32 0, %v230
    %v232 = vrot.slane %v227, %v231
    %v233 = vlaneseq
    %v234 = vshrl.u32 %v233, 7
    %v235 = vsub.s32 1, %v234
    %v236 = vrot.slane %v227, %v235
    %v239 = vadd.f32 %v219, %v232
    %v240 = vadd.f32 %v220, %v236
    %v241 = vadd.f32 %v221, %v232
    %v242 = vadd.f32 %v222, %v236
    %v243 = vadd.f32 %v223, %v232
    %v244 = vadd.f32 %v224, %v236
    %v245 = vadd.f32 %v225, %v232
    %v246 = vadd.f32 %v226, %v236
    %v247 = vpack.c.bf16 %v241, %v239
    %v248 = vpack.c.bf16 %v242, %v240
    %v249 = vpack.c.bf16 %v245, %v243
    %v250 = vpack.c.bf16 %v246, %v244
    %v255 = vunpack.c.l.b16 %v247
    %v256 = vunpack.c.l.b16 %v248
    %v257 = vunpack.c.h.b16 %v247
    %v258 = vunpack.c.h.b16 %v248
    %v259 = vunpack.c.l.b16 %v249
    %v260 = vunpack.c.l.b16 %v250
    %v261 = vunpack.c.h.b16 %v249
    %v262 = vunpack.c.h.b16 %v250
    %v263 = vpack.c.b16 %v256, %v255
    %v264 = vpack.c.b16 %v258, %v257
    %v265 = vpack.c.b16 %v260, %v259
    %v266 = vpack.c.b16 %v262, %v261
    %271 = vst [vmem:[%s3] sm:$0xff] %v263
    %272 = vst [vmem:[%s3 + $0x8] sm:$0xff] %v264
    %273 = vst [vmem:[%s3 + $0x10] sm:$0xff] %v265
    %274 = vst [vmem:[%s3 + $0x18] sm:$0xff] %v266
  $region21: #{refine_seq2seq_forward.31} parent=0 // pred_fallthru
    _
  // Predicated region
  $region22: #{refine_seq2seq_forward.31} parent=0 // pred_check
    _
  $region23: #{refine_seq2seq_forward.31} parent=0 // pred_check_branch
    %276 = sbr.rel (0) target = $region25
  $region24: #{refine_seq2seq_forward.31} parent=0 // pred_region
    _
  $region25: #{refine_seq2seq_forward.31} parent=0 // pred_fallthru
    _
  // Predicated region
  $region26: #{refine_seq2seq_forward.31} parent=0 // pred_check
    _
  $region27: #{refine_seq2seq_forward.31} parent=0 // pred_check_branch
    %278 = sbr.rel (0) target = $region29
  $region28: #{refine_seq2seq_forward.31} parent=0 // pred_region
    _
  $region29: #{refine_seq2seq_forward.31} parent=0 // pred_fallthru
    _

// kernel: refine_seq2seq_forward.36
$region0: #{refine_seq2seq_forward.36}
  #allocation0 [shape = 'u32[]', space=smem, size = 0x4, offset = 0x4, fixed_abs, tag = 'smem constant byte address 0x4 - core index']
  #allocation1 [shape = 'u32[144,128]{1,0:T(1,128)}', space=vmem, size = 0x12000, scoped, tag = 'internal scratch']
  #allocation2 [shape = 'f32[16,128]{1,0:T(8,128)}', space=vmem, size = 0x2000, scoped, tag = 'scratch operand']
  %s0 = inlined_call_operand.vmem [shape: bf16[16,128], index: 0, kind: input, shape index: {}]
  %s1 = inlined_call_operand.vmem [shape: bf16[128,128], index: 1, kind: input, shape index: {}]
  %s2 = inlined_call_operand.vmem [shape: f32[1,128], index: 2, kind: input, shape index: {}]
  %s3 = inlined_call_operand.vmem [shape: bf16[16,128], index: 3, kind: output, shape index: {}]
  %s4 = sld [smem:[#allocation0]]
  $region30: #{refine_seq2seq_forward.36} parent=0
    _
  %s6 = ssub.s32 1, %s4
  %s7 = scalar_select 0, %s6, %s4
  // Predicated region
  $region2: #{refine_seq2seq_forward.36} parent=0 // pred_check
    _
  $region3: #{refine_seq2seq_forward.36} parent=0 // pred_check_branch
    %9 = sbr.rel (0) target = $region5
  $region4: #{refine_seq2seq_forward.36} parent=0 // pred_region
    _
  $region5: #{refine_seq2seq_forward.36} parent=0 // pred_fallthru
    _
  // Predicated region
  $region6: #{refine_seq2seq_forward.36} parent=0 // pred_check
    _
  $region7: #{refine_seq2seq_forward.36} parent=0 // pred_check_branch
    %11 = sbr.rel (0) target = $region9
  $region8: #{refine_seq2seq_forward.36} parent=0 // pred_region
    _
  $region9: #{refine_seq2seq_forward.36} parent=0 // pred_fallthru
    _
  // Predicated region
  $region10: #{refine_seq2seq_forward.36} parent=0 // pred_check
    _
  $region11: #{refine_seq2seq_forward.36} parent=0 // pred_check_branch
    %13 = sbr.rel (0) target = $region13
  $region12: #{refine_seq2seq_forward.36} parent=0 // pred_region
    _
  $region13: #{refine_seq2seq_forward.36} parent=0 // pred_fallthru
    _
  %p15 = scmp.eq.s32.totalorder 0, 0
  // Predicated region
  $region14: #{refine_seq2seq_forward.36} parent=0 // pred_check
    %p16 = pneg %p15
  $region15: #{refine_seq2seq_forward.36} parent=0 // pred_check_branch
    %18 = sbr.rel (%p16) target = $region17
  $region16: #{refine_seq2seq_forward.36} parent=0 // pred_region
    %19 = vst [vmem:[#allocation2] sm:$0xff] 0.0
    %20 = vst [vmem:[#allocation2 + $0x8] sm:$0xff] 0.0
  $region17: #{refine_seq2seq_forward.36} parent=0 // pred_fallthru
    _
  %v21 = vld [vmem:[#allocation2] sm:$0xff]
  %v22 = vld [vmem:[#allocation2 + $0x8] sm:$0xff]
  %v23 = vld [vmem:[%s0] sm:$0xf]
  %v24 = vld [vmem:[%s0 + $0x4] sm:$0xf]
  %v25 = vld [vmem:[%s1] sm:$0xf]
  %v26 = vld [vmem:[%s1 + $0x4] sm:$0xf]
  %v27 = vld [vmem:[%s1 + $0x8] sm:$0xf]
  %v28 = vld [vmem:[%s1 + $0xc] sm:$0xf]
  %v29 = vld [vmem:[%s1 + $0x10] sm:$0xf]
  %v30 = vld [vmem:[%s1 + $0x14] sm:$0xf]
  %v31 = vld [vmem:[%s1 + $0x18] sm:$0xf]
  %v32 = vld [vmem:[%s1 + $0x1c] sm:$0xf]
  %v33 = vld [vmem:[%s1 + $0x20] sm:$0xf]
  %v34 = vld [vmem:[%s1 + $0x24] sm:$0xf]
  %v35 = vld [vmem:[%s1 + $0x28] sm:$0xf]
  %v36 = vld [vmem:[%s1 + $0x2c] sm:$0xf]
  %v37 = vld [vmem:[%s1 + $0x30] sm:$0xf]
  %v38 = vld [vmem:[%s1 + $0x34] sm:$0xf]
  %v39 = vld [vmem:[%s1 + $0x38] sm:$0xf]
  %v40 = vld [vmem:[%s1 + $0x3c] sm:$0xf]
  %v43 = vunpack.c.l.b16 %v23
  %v44 = vunpack.c.l.b16 %v24
  %v45 = vpack.c.b16 %v44, %v43
  %v63 = vunpack.c.l.b16 %v25
  %v64 = vunpack.c.l.b16 %v26
  %v65 = vunpack.c.l.b16 %v27
  %v66 = vunpack.c.l.b16 %v28
  %v67 = vunpack.c.l.b16 %v29
  %v68 = vunpack.c.l.b16 %v30
  %v69 = vunpack.c.l.b16 %v31
  %v70 = vunpack.c.l.b16 %v32
  %v71 = vunpack.c.l.b16 %v33
  %v72 = vunpack.c.l.b16 %v34
  %v73 = vunpack.c.l.b16 %v35
  %v74 = vunpack.c.l.b16 %v36
  %v75 = vunpack.c.l.b16 %v37
  %v76 = vunpack.c.l.b16 %v38
  %v77 = vunpack.c.l.b16 %v39
  %v78 = vunpack.c.l.b16 %v40
  %v79 = vpack.c.b16 %v64, %v63
  %v80 = vpack.c.b16 %v66, %v65
  %v81 = vpack.c.b16 %v68, %v67
  %v82 = vpack.c.b16 %v70, %v69
  %v83 = vpack.c.b16 %v72, %v71
  %v84 = vpack.c.b16 %v74, %v73
  %v85 = vpack.c.b16 %v76, %v75
  %v86 = vpack.c.b16 %v78, %v77
  %95 = vmatprep.subr.bf16.mxu0 0
  %96 = vmatpush1.bf16.msra.mxu0 %v79
  %97 = vmatprep.subr.bf16.mxu0 0
  %98 = vmatpush1.bf16.msra.mxu0 %v80
  %99 = vmatprep.subr.bf16.mxu0 0
  %100 = vmatpush1.bf16.msra.mxu0 %v81
  %101 = vmatprep.subr.bf16.mxu0 0
  %102 = vmatpush1.bf16.msra.mxu0 %v82
  %103 = vmatprep.subr.bf16.mxu0 0
  %104 = vmatpush1.bf16.msra.mxu0 %v83
  %105 = vmatprep.subr.bf16.mxu0 0
  %106 = vmatpush1.bf16.msra.mxu0 %v84
  %107 = vmatprep.subr.bf16.mxu0 0
  %108 = vmatpush1.bf16.msra.mxu0 %v85
  %109 = vmatprep.subr.bf16.mxu0 0
  %110 = vmatpush1.bf16.msra.mxu0 %v86
  %111 = vmatprep.subr.bf16.mxu0 0
  %112 = vmatpush1.bf16.msra.mxu0 0
  %113 = vmatprep.subr.bf16.mxu0 0
  %114 = vmatpush1.bf16.msra.mxu0 0
  %115 = vmatprep.subr.bf16.mxu0 0
  %116 = vmatpush1.bf16.msra.mxu0 0
  %117 = vmatprep.subr.bf16.mxu0 0
  %118 = vmatpush1.bf16.msra.mxu0 0
  %119 = vmatprep.subr.bf16.mxu0 0
  %120 = vmatpush1.bf16.msra.mxu0 0
  %121 = vmatprep.subr.bf16.mxu0 0
  %122 = vmatpush1.bf16.msra.mxu0 0
  %123 = vmatprep.subr.bf16.mxu0 0
  %124 = vmatpush1.bf16.msra.mxu0 0
  %125 = vmatprep.subr.bf16.mxu0 0
  %126 = vmatpush1.bf16.msra.mxu0 0
  %127 = vmatprep.mubr.bf16.mxu0 0
  %128 = vmatmul.mubr.bf16.gmra.mrb[0].mxu0 %v45
  %v129 = vpop.f32.mrb[0].mxu0
  %v130 = vadd.f32 0.0, %v129
  %v131 = vpop.f32.mrb[0].mxu0
  %v132 = vpop.f32.mrb[0].mxu0
  %v133 = vadd.f32 0.0, %v132
  %v134 = vpop.f32.mrb[0].mxu0
  %135 = vdwg.mxu0
  %v136 = vadd.f32 %v21, %v130
  %v137 = vadd.f32 %v22, %v133
  %138 = vst [vmem:[#allocation2] sm:$0xff] %v136
  %139 = vst [vmem:[#allocation2 + $0x8] sm:$0xff] %v137
  // Predicated region
  $region18: #{refine_seq2seq_forward.36} parent=0 // pred_check
    %p140 = pneg %p15
  $region19: #{refine_seq2seq_forward.36} parent=0 // pred_check_branch
    %142 = sbr.rel (%p140) target = $region21
  $region20: #{refine_seq2seq_forward.36} parent=0 // pred_region
    %v143 = vld [vmem:[#allocation2] sm:$0xff]
    %v144 = vld [vmem:[#allocation2 + $0x8] sm:$0xff]
    %v145 = vld [vmem:[%s2] sm:$0x1]
    %v147 = vlaneseq
    %v148 = vshrl.u32 %v147, 7
    %v149 = vsub.s32 0, %v148
    %v150 = vrot.slane %v145, %v149
    %v152 = vadd.f32 %v143, %v150
    %v153 = vadd.f32 %v144, %v150
    %v154 = vtanh.pop %v152
    %v155 = vtanh.pop %v153
    %v156 = vpack.c.bf16 %v155, %v154
    %v158 = vunpack.c.l.b16 %v156
    %v159 = vunpack.c.h.b16 %v156
    %v160 = vpack.c.b16 %v158, %v158
    %v161 = vpack.c.b16 %v159, %v159
    %164 = vst [vmem:[%s3] sm:$0xf] %v160
    %165 = vst [vmem:[%s3 + $0x4] sm:$0xf] %v161
  $region21: #{refine_seq2seq_forward.36} parent=0 // pred_fallthru
    _
  // Predicated region
  $region22: #{refine_seq2seq_forward.36} parent=0 // pred_check
    _
  $region23: #{refine_seq2seq_forward.36} parent=0 // pred_check_branch
    %167 = sbr.rel (0) target = $region25
  $region24: #{refine_seq2seq_forward.36} parent=0 // pred_region
    _
  $region25: #{refine_seq2seq_forward.36} parent=0 // pred_fallthru
    _
  // Predicated region
  $region26: #{refine_seq2seq_forward.36} parent=0 // pred_check
    _
  $region27: #{refine_seq2seq_forward.36} parent=0 // pred_check_branch
    %169 = sbr.rel (0) target = $region29
  $region28: #{refine_seq2seq_forward.36} parent=0 // pred_region
    _
  $region29: #{refine_seq2seq_forward.36} parent=0 // pred_fallthru
    _

// kernel: refine_seq2seq_forward.32
$region0: #{refine_seq2seq_forward.32}
  #allocation0 [shape = 'u32[]', space=smem, size = 0x4, offset = 0x4, fixed_abs, tag = 'smem constant byte address 0x4 - core index']
  #allocation1 [shape = 'u32[144,128]{1,0:T(1,128)}', space=vmem, size = 0x12000, scoped, tag = 'internal scratch']
  #allocation2 [shape = 'f32[4,8,1]{2,1,0:T(8,128)}', space=vmem, size = 0x4000, scoped, tag = 'scratch operand']
  #allocation3 [shape = 'f32[4,8,1]{2,1,0:T(8,128)}', space=vmem, size = 0x4000, scoped, tag = 'scratch operand']
  #allocation4 [shape = 'f32[8,128]{1,0:T(8,128)}', space=vmem, size = 0x1000, scoped, tag = 'scratch operand']
  %s0 = inlined_call_operand.vmem [shape: bf16[2,8,128], index: 0, kind: input, shape index: {}]
  %s1 = inlined_call_operand.vmem [shape: bf16[2,16,256], index: 1, kind: input, shape index: {}, may-alias: {1,2}]
  %s2 = inlined_call_operand.vmem [shape: bf16[2,16,256], index: 2, kind: input, shape index: {}, may-alias: {1,2}]
  %s3 = inlined_call_operand.vmem [shape: f32[2,1,16], index: 3, kind: input, shape index: {}]
  %s4 = inlined_call_operand.vmem [shape: bf16[2,8,128], index: 4, kind: output, shape index: {}]
  %s5 = sld [smem:[#allocation0]]
  $region139: #{refine_seq2seq_forward.32} parent=0
    _
  %s7 = ssub.s32 1, %s5
  %s8 = scalar_select 0, %s7, %s5
  $region1: #{refine_seq2seq_forward.32} parent=0
    #allocation5 [shape = 'u8[8192]{0}', space=vmem, size = 0x2000, scoped, tag = 'input window, operand 1']
    #allocation6 [shape = 'u8[8192]{0}', space=vmem, size = 0x2000, scoped, tag = 'input window, operand 2']
    loop: start=0, step=1, limit=4
    $region2: #{refine_seq2seq_forward.32} parent=1 // loop_pre_header
      _
    $region3: #{refine_seq2seq_forward.32} parent=1 // loop_header
      %s10 = sphi 0, %s14
      %p11 = scmp.ge.s32.totalorder %s10, 4
      %s17 = sphi 0, %s36
      %s18 = sphi 0, %s32
      %s19 = sphi 0, %s28
      %s20 = sphi 0, %s17
      %s21 = sphi 0, %s18
      %s22 = sphi 0, %s19
      %s23 = sphi 0, %s20
      %s24 = sphi 0, %s21
      %s25 = sphi 0, %s22
      %s41 = sphi 0, %s43
      %s44 = sphi 0, %s41
      %s45 = sphi 0, %s44
      %s61 = sphi 0, %s45
      %s69 = sphi 0, %s71
      %s72 = sphi 0, %s69
      %s73 = sphi 0, %s72
      %s89 = sphi 0, %s73
      %s97 = sphi 0, %s99
      %s100 = sphi 0, %s97
      %s101 = sphi 0, %s100
      %s117 = sphi 0, %s101
      %s125 = sphi 0, %s127
      %s128 = sphi 0, %s125
      %s129 = sphi 0, %s128
      %s145 = sphi 0, %s129
      %s153 = sphi 0, %s155
      %s156 = sphi 0, %s153
      %s157 = sphi 0, %s156
      %s173 = sphi 0, %s157
    $region4: #{refine_seq2seq_forward.32} parent=1 // loop_header_branch
      %13 = sbr.rel (%p11) target = $region8
    $region5: #{refine_seq2seq_forward.32} parent=1 // loop_body
      %s15 = ssub.s32 %s10, 1
      %s16 = ssub.s32 %s10, 2
      %s26 = sadd.s32 1, %s19
      %p27 = scmp.ge.s32.totalorder %s26, 1
      %s28 = scalar_select %p27, 0, %s26
      %s29 = sadd.s32 1, %s18
      %s30 = scalar_select %p27, %s29, %s18
      %p31 = scmp.ge.s32.totalorder %s30, 1
      %s32 = scalar_select %p31, 0, %s30
      %s33 = sadd.s32 1, %s17
      %s34 = scalar_select %p31, %s33, %s17
      %p35 = scmp.ge.s32.totalorder %s34, 2
      %s36 = scalar_select %p35, 0, %s34
      %s37 = ssub.s32 %s17, %s36
      %s38 = ssub.s32 %s18, %s32
      %s39 = sor.u32 %s37, %s38
      %p40 = scmp.eq.s32.totalorder %s39, 0
      %s42 = sadd.s32 %s41, 1
      %s43 = scalar_select %p40, %s41, %s42
      %p46 = pneg %p40
      %p47 = scmp.eq.s32.totalorder %s10, 1
      %p48 = por %p46, %p47
      %p49 = scmp.ne.s32.totalorder %s41, %s44
      %p50 = scmp.eq.s32.totalorder %s10, 0
      %p51 = por %p49, %p50
      %p52 = scmp.ne.s32.totalorder %s41, %s44
      %p53 = scmp.eq.s32.totalorder %s15, 1
      %p54 = por %p52, %p53
      %p55 = scmp.ne.s32.totalorder %s44, %s45
      %p56 = scmp.eq.s32.totalorder %s15, 0
      %p57 = por %p55, %p56
      %p58 = scmp.ne.s32.totalorder %s44, %s45
      %p59 = scmp.eq.s32.totalorder %s16, 1
      %p60 = por %p58, %p59
      %p62 = scmp.ne.s32.totalorder %s45, %s61
      %p63 = scmp.eq.s32.totalorder %s16, 0
      %p64 = por %p62, %p63
      %s65 = ssub.s32 %s17, %s36
      %s66 = ssub.s32 %s19, %s28
      %s67 = sor.u32 %s65, %s66
      %p68 = scmp.eq.s32.totalorder %s67, 0
      %s70 = sadd.s32 %s69, 1
      %s71 = scalar_select %p68, %s69, %s70
      %p74 = pneg %p68
      %p75 = scmp.eq.s32.totalorder %s10, 1
      %p76 = por %p74, %p75
      %p77 = scmp.ne.s32.totalorder %s69, %s72
      %p78 = scmp.eq.s32.totalorder %s10, 0
      %p79 = por %p77, %p78
      %p80 = scmp.ne.s32.totalorder %s69, %s72
      %p81 = scmp.eq.s32.totalorder %s15, 1
      %p82 = por %p80, %p81
      %p83 = scmp.ne.s32.totalorder %s72, %s73
      %p84 = scmp.eq.s32.totalorder %s15, 0
      %p85 = por %p83, %p84
      %p86 = scmp.ne.s32.totalorder %s72, %s73
      %p87 = scmp.eq.s32.totalorder %s16, 1
      %p88 = por %p86, %p87
      %p90 = scmp.ne.s32.totalorder %s73, %s89
      %p91 = scmp.eq.s32.totalorder %s16, 0
      %p92 = por %p90, %p91
      %s93 = ssub.s32 %s17, %s36
      %s94 = ssub.s32 %s19, %s28
      %s95 = sor.u32 %s93, %s94
      %p96 = scmp.eq.s32.totalorder %s95, 0
      %s98 = sadd.s32 %s97, 1
      %s99 = scalar_select %p96, %s97, %s98
      %p102 = pneg %p96
      %p103 = scmp.eq.s32.totalorder %s10, 1
      %p104 = por %p102, %p103
      %p105 = scmp.ne.s32.totalorder %s97, %s100
      %p106 = scmp.eq.s32.totalorder %s10, 0
      %p107 = por %p105, %p106
      %p108 = scmp.ne.s32.totalorder %s97, %s100
      %p109 = scmp.eq.s32.totalorder %s15, 1
      %p110 = por %p108, %p109
      %p111 = scmp.ne.s32.totalorder %s100, %s101
      %p112 = scmp.eq.s32.totalorder %s15, 0
      %p113 = por %p111, %p112
      %p114 = scmp.ne.s32.totalorder %s100, %s101
      %p115 = scmp.eq.s32.totalorder %s16, 1
      %p116 = por %p114, %p115
      %p118 = scmp.ne.s32.totalorder %s101, %s117
      %p119 = scmp.eq.s32.totalorder %s16, 0
      %p120 = por %p118, %p119
      %s121 = ssub.s32 %s17, %s36
      %s122 = ssub.s32 %s19, %s28
      %s123 = sor.u32 %s121, %s122
      %p124 = scmp.eq.s32.totalorder %s123, 0
      %s126 = sadd.s32 %s125, 1
      %s127 = scalar_select %p124, %s125, %s126
      %p130 = pneg %p124
      %p131 = scmp.eq.s32.totalorder %s10, 1
      %p132 = por %p130, %p131
      %p133 = scmp.ne.s32.totalorder %s125, %s128
      %p134 = scmp.eq.s32.totalorder %s10, 0
      %p135 = por %p133, %p134
      %p136 = scmp.ne.s32.totalorder %s125, %s128
      %p137 = scmp.eq.s32.totalorder %s15, 1
      %p138 = por %p136, %p137
      %p139 = scmp.ne.s32.totalorder %s128, %s129
      %p140 = scmp.eq.s32.totalorder %s15, 0
      %p141 = por %p139, %p140
      %p142 = scmp.ne.s32.totalorder %s128, %s129
      %p143 = scmp.eq.s32.totalorder %s16, 1
      %p144 = por %p142, %p143
      %p146 = scmp.ne.s32.totalorder %s129, %s145
      %p147 = scmp.eq.s32.totalorder %s16, 0
      %p148 = por %p146, %p147
      %s149 = ssub.s32 %s17, %s36
      %s150 = ssub.s32 %s18, %s32
      %s151 = sor.u32 %s149, %s150
      %p152 = scmp.eq.s32.totalorder %s151, 0
      %s154 = sadd.s32 %s153, 1
      %s155 = scalar_select %p152, %s153, %s154
      %p158 = pneg %p152
      %p159 = scmp.eq.s32.totalorder %s10, 1
      %p160 = por %p158, %p159
      %p161 = scmp.ne.s32.totalorder %s153, %s156
      %p162 = scmp.eq.s32.totalorder %s10, 0
      %p163 = por %p161, %p162
      %p164 = scmp.ne.s32.totalorder %s153, %s156
      %p165 = scmp.eq.s32.totalorder %s15, 1
      %p166 = por %p164, %p165
      %p167 = scmp.ne.s32.totalorder %s156, %s157
      %p168 = scmp.eq.s32.totalorder %s15, 0
      %p169 = por %p167, %p168
      %p170 = scmp.ne.s32.totalorder %s156, %s157
      %p171 = scmp.eq.s32.totalorder %s16, 1
      %p172 = por %p170, %p171
      %p174 = scmp.ne.s32.totalorder %s157, %s173
      %p175 = scmp.eq.s32.totalorder %s16, 0
      %p176 = por %p174, %p175
      %p177 = scmp.le.s32.totalorder 1, %s10
      %p178 = scmp.lt.s32.totalorder %s10, 3
      %p179 = pnand %p177, %p178
      %p180 = pneg %p179
      // Predicated region
      $region9: #{refine_seq2seq_forward.32} parent=5 // pred_check
        _
      $region10: #{refine_seq2seq_forward.32} parent=5 // pred_check_branch
        %182 = sbr.rel (%p179) target = $region12
      $region11: #{refine_seq2seq_forward.32} parent=5 // pred_region
        %s183 = ssub.s32 %s10, 1
      $region12: #{refine_seq2seq_forward.32} parent=5 // pred_fallthru
        _
      %p184 = scmp.lt.s32.totalorder %s10, 2
      // Predicated region
      $region13: #{refine_seq2seq_forward.32} parent=5 // pred_check
        %p185 = pneg %p184
      $region14: #{refine_seq2seq_forward.32} parent=5 // pred_check_branch
        %187 = sbr.rel (%p185) target = $region16
      $region15: #{refine_seq2seq_forward.32} parent=5 // pred_region
        // Predicated region
        $region17: #{refine_seq2seq_forward.32} parent=15 // pred_check
          %p188 = pneg %p51
        $region18: #{refine_seq2seq_forward.32} parent=15 // pred_check_branch
          %190 = sbr.rel (%p188) target = $region20
        $region19: #{refine_seq2seq_forward.32} parent=15 // pred_region
          %p191 = scmp.lt.s32.totalorder %s17, 1
          %s192 = scalar_select %p191, %s17, 1
          %p193 = scmp.lt.s32.totalorder %s18, 0
          %s194 = scalar_select %p193, %s18, 0
          %s195 = sadd.s32 %s194, %s192
          %s196 = smul.addr %s195, 4
          %s197 = scalar_lea.vmem %s0, %s196
        $region20: #{refine_seq2seq_forward.32} parent=15 // pred_fallthru
          _
        // Predicated region
        $region21: #{refine_seq2seq_forward.32} parent=15 // pred_check
          %p198 = pneg %p79
        $region22: #{refine_seq2seq_forward.32} parent=15 // pred_check_branch
          %200 = sbr.rel (%p198) target = $region24
        $region23: #{refine_seq2seq_forward.32} parent=15 // pred_region
          %s201 = sand.u32 %s69, 1
          %s202 = sand.u32 %s69, 1
          %s203 = smul.addr %s202, 8
          %s204 = scalar_lea.vmem [#allocation5], %s203
          %s205 = smul.u32 2, %s19
          %s206 = smul.addr %s205, 2
          %s207 = smul.addr %s17, 4
          %s208 = sadd.s32 %s206, %s207
          %s209 = smul.addr %s208, 4
          %s210 = scalar_lea.vmem %s1, %s209
          // Predicated region
          $region25: #{refine_seq2seq_forward.32} parent=23 // pred_check
            _
          $region26: #{refine_seq2seq_forward.32} parent=23 // pred_check_branch
            %212 = sbr.rel (0) target = $region28
          $region27: #{refine_seq2seq_forward.32} parent=23 // pred_region
            // Predicated region
            $region29: #{refine_seq2seq_forward.32} parent=27 // pred_check
              _
            $region30: #{refine_seq2seq_forward.32} parent=27 // pred_check_branch
              %214 = sbr.rel target = $region32
            $region31: #{refine_seq2seq_forward.32} parent=27 // pred_region
              // Predicated region
              $region44: #{refine_seq2seq_forward.32} parent=31 // pred_check
                _
              $region45: #{refine_seq2seq_forward.32} parent=31 // pred_check_branch
                %231 = sbr.rel (0) target = $region47
              $region46: #{refine_seq2seq_forward.32} parent=31 // pred_region
                loop: start=0, step=1, limit=1
                $region48: #{refine_seq2seq_forward.32} parent=46 // loop_pre_header
                  _
                $region49: #{refine_seq2seq_forward.32} parent=46 // loop_header
                  %s233 = sphi 0, %s237
                  %p234 = scmp.ge.s32.totalorder %s233, 1
                  %s238 = sphi %s210, %s210
                  %s239 = sphi %s204, %s204
                $region50: #{refine_seq2seq_forward.32} parent=46 // loop_header_branch
                  %236 = sbr.rel (%p234) target = $region54
                $region51: #{refine_seq2seq_forward.32} parent=46 // loop_body
                  _
                $region52: #{refine_seq2seq_forward.32} parent=46 // loop_footer
                  %s237 = sadd.s32 1, %s233
                $region53: #{refine_seq2seq_forward.32} parent=46 // loop_footer_branch
                  %232 = sbr.rel target = $region49
                $region54: #{refine_seq2seq_forward.32} parent=46 // loop_exit
                  _
                loop: start=0, step=1, limit=1
                $region55: #{refine_seq2seq_forward.32} parent=46 // loop_pre_header
                  _
                $region56: #{refine_seq2seq_forward.32} parent=46 // loop_header
                  %s242 = sphi 0, %s246
                  %p243 = scmp.ge.s32.totalorder %s242, 1
                  %s247 = sphi %s210, %s210
                  %s248 = sphi %s204, %s204
                $region57: #{refine_seq2seq_forward.32} parent=46 // loop_header_branch
                  %245 = sbr.rel (%p243) target = $region61
                $region58: #{refine_seq2seq_forward.32} parent=46 // loop_body
                  %v249 = vld [vmem:[%s247] sm:$0xf]
                  %250 = vst [vmem:[%s248] sm:$0xf] %v249
                  %v251 = vld [vmem:[%s247 + $0x8] sm:$0xf]
                  %252 = vst [vmem:[%s248 + $0x4] sm:$0xf] %v251
                $region59: #{refine_seq2seq_forward.32} parent=46 // loop_footer
                  %s246 = sadd.s32 1, %s242
                $region60: #{refine_seq2seq_forward.32} parent=46 // loop_footer_branch
                  %241 = sbr.rel target = $region56
                $region61: #{refine_seq2seq_forward.32} parent=46 // loop_exit
                  _
              $region47: #{refine_seq2seq_forward.32} parent=31 // pred_fallthru
                _
            $region32: #{refine_seq2seq_forward.32} parent=27 // pred_fallthru
              _
            // Predicated region
            $region33: #{refine_seq2seq_forward.32} parent=27 // pred_check
              _
            $region34: #{refine_seq2seq_forward.32} parent=27 // pred_check_branch
              %216 = sbr.rel (0) target = $region36
            $region35: #{refine_seq2seq_forward.32} parent=27 // pred_region
              loop: start=0, step=1, limit=1
              $region37: #{refine_seq2seq_forward.32} parent=35 // loop_pre_header
                _
              $region38: #{refine_seq2seq_forward.32} parent=35 // loop_header
                %s219 = sphi 0, %s223
                %p220 = scmp.ge.s32.totalorder %s219, 1
                %s224 = sphi %s210, %s210
                %s225 = sphi %s204, %s204
              $region39: #{refine_seq2seq_forward.32} parent=35 // loop_header_branch
                %222 = sbr.rel (%p220) target = $region43
              $region40: #{refine_seq2seq_forward.32} parent=35 // loop_body
                %v226 = vld [vmem:[%s224] sm:$0xf]
                %227 = vst [vmem:[%s225] sm:$0xf] %v226
                %v228 = vld [vmem:[%s224 + $0x8] sm:$0xf]
                %229 = vst [vmem:[%s225 + $0x4] sm:$0xf] %v228
              $region41: #{refine_seq2seq_forward.32} parent=35 // loop_footer
                %s223 = sadd.s32 1, %s219
              $region42: #{refine_seq2seq_forward.32} parent=35 // loop_footer_branch
                %218 = sbr.rel target = $region38
              $region43: #{refine_seq2seq_forward.32} parent=35 // loop_exit
                _
            $region36: #{refine_seq2seq_forward.32} parent=27 // pred_fallthru
              _
          $region28: #{refine_seq2seq_forward.32} parent=23 // pred_fallthru
            _
          %253 = vnop
        $region24: #{refine_seq2seq_forward.32} parent=15 // pred_fallthru
          _
        // Predicated region
        $region62: #{refine_seq2seq_forward.32} parent=15 // pred_check
          %p254 = pneg %p107
        $region63: #{refine_seq2seq_forward.32} parent=15 // pred_check_branch
          %256 = sbr.rel (%p254) target = $region65
        $region64: #{refine_seq2seq_forward.32} parent=15 // pred_region
          %s257 = sand.u32 %s97, 1
          %s258 = sand.u32 %s97, 1
          %s259 = smul.addr %s258, 8
          %s260 = scalar_lea.vmem [#allocation6], %s259
          %s261 = smul.u32 2, %s19
          %s262 = smul.addr %s261, 2
          %s263 = sadd.s32 1, %s262
          %s264 = smul.addr %s17, 4
          %s265 = sadd.s32 %s263, %s264
          %s266 = smul.addr %s265, 4
          %s267 = scalar_lea.vmem %s2, %s266
          // Predicated region
          $region66: #{refine_seq2seq_forward.32} parent=64 // pred_check
            _
          $region67: #{refine_seq2seq_forward.32} parent=64 // pred_check_branch
            %269 = sbr.rel (0) target = $region69
          $region68: #{refine_seq2seq_forward.32} parent=64 // pred_region
            // Predicated region
            $region70: #{refine_seq2seq_forward.32} parent=68 // pred_check
              _
            $region71: #{refine_seq2seq_forward.32} parent=68 // pred_check_branch
              %271 = sbr.rel target = $region73
            $region72: #{refine_seq2seq_forward.32} parent=68 // pred_region
              // Predicated region
              $region85: #{refine_seq2seq_forward.32} parent=72 // pred_check
                _
              $region86: #{refine_seq2seq_forward.32} parent=72 // pred_check_branch
                %288 = sbr.rel (0) target = $region88
              $region87: #{refine_seq2seq_forward.32} parent=72 // pred_region
                loop: start=0, step=1, limit=1
                $region89: #{refine_seq2seq_forward.32} parent=87 // loop_pre_header
                  _
                $region90: #{refine_seq2seq_forward.32} parent=87 // loop_header
                  %s290 = sphi 0, %s294
                  %p291 = scmp.ge.s32.totalorder %s290, 1
                  %s295 = sphi %s267, %s267
                  %s296 = sphi %s260, %s260
                $region91: #{refine_seq2seq_forward.32} parent=87 // loop_header_branch
                  %293 = sbr.rel (%p291) target = $region95
                $region92: #{refine_seq2seq_forward.32} parent=87 // loop_body
                  _
                $region93: #{refine_seq2seq_forward.32} parent=87 // loop_footer
                  %s294 = sadd.s32 1, %s290
                $region94: #{refine_seq2seq_forward.32} parent=87 // loop_footer_branch
                  %289 = sbr.rel target = $region90
                $region95: #{refine_seq2seq_forward.32} parent=87 // loop_exit
                  _
                loop: start=0, step=1, limit=1
                $region96: #{refine_seq2seq_forward.32} parent=87 // loop_pre_header
                  _
                $region97: #{refine_seq2seq_forward.32} parent=87 // loop_header
                  %s299 = sphi 0, %s303
                  %p300 = scmp.ge.s32.totalorder %s299, 1
                  %s304 = sphi %s267, %s267
                  %s305 = sphi %s260, %s260
                $region98: #{refine_seq2seq_forward.32} parent=87 // loop_header_branch
                  %302 = sbr.rel (%p300) target = $region102
                $region99: #{refine_seq2seq_forward.32} parent=87 // loop_body
                  %v306 = vld [vmem:[%s304] sm:$0xf]
                  %307 = vst [vmem:[%s305] sm:$0xf] %v306
                  %v308 = vld [vmem:[%s304 + $0x8] sm:$0xf]
                  %309 = vst [vmem:[%s305 + $0x4] sm:$0xf] %v308
                $region100: #{refine_seq2seq_forward.32} parent=87 // loop_footer
                  %s303 = sadd.s32 1, %s299
                $region101: #{refine_seq2seq_forward.32} parent=87 // loop_footer_branch
                  %298 = sbr.rel target = $region97
                $region102: #{refine_seq2seq_forward.32} parent=87 // loop_exit
                  _
              $region88: #{refine_seq2seq_forward.32} parent=72 // pred_fallthru
                _
            $region73: #{refine_seq2seq_forward.32} parent=68 // pred_fallthru
              _
            // Predicated region
            $region74: #{refine_seq2seq_forward.32} parent=68 // pred_check
              _
            $region75: #{refine_seq2seq_forward.32} parent=68 // pred_check_branch
              %273 = sbr.rel (0) target = $region77
            $region76: #{refine_seq2seq_forward.32} parent=68 // pred_region
              loop: start=0, step=1, limit=1
              $region78: #{refine_seq2seq_forward.32} parent=76 // loop_pre_header
                _
              $region79: #{refine_seq2seq_forward.32} parent=76 // loop_header
                %s276 = sphi 0, %s280
                %p277 = scmp.ge.s32.totalorder %s276, 1
                %s281 = sphi %s267, %s267
                %s282 = sphi %s260, %s260
              $region80: #{refine_seq2seq_forward.32} parent=76 // loop_header_branch
                %279 = sbr.rel (%p277) target = $region84
              $region81: #{refine_seq2seq_forward.32} parent=76 // loop_body
                %v283 = vld [vmem:[%s281] sm:$0xf]
                %284 = vst [vmem:[%s282] sm:$0xf] %v283
                %v285 = vld [vmem:[%s281 + $0x8] sm:$0xf]
                %286 = vst [vmem:[%s282 + $0x4] sm:$0xf] %v285
              $region82: #{refine_seq2seq_forward.32} parent=76 // loop_footer
                %s280 = sadd.s32 1, %s276
              $region83: #{refine_seq2seq_forward.32} parent=76 // loop_footer_branch
                %275 = sbr.rel target = $region79
              $region84: #{refine_seq2seq_forward.32} parent=76 // loop_exit
                _
            $region77: #{refine_seq2seq_forward.32} parent=68 // pred_fallthru
              _
          $region69: #{refine_seq2seq_forward.32} parent=64 // pred_fallthru
            _
          %310 = vnop
        $region65: #{refine_seq2seq_forward.32} parent=15 // pred_fallthru
          _
        // Predicated region
        $region103: #{refine_seq2seq_forward.32} parent=15 // pred_check
          %p311 = pneg %p135
        $region104: #{refine_seq2seq_forward.32} parent=15 // pred_check_branch
          %313 = sbr.rel (%p311) target = $region106
        $region105: #{refine_seq2seq_forward.32} parent=15 // pred_region
          %p314 = scmp.lt.s32.totalorder %s17, 1
          %s315 = scalar_select %p314, %s17, 1
          %p316 = scmp.lt.s32.totalorder %s19, 0
          %s317 = scalar_select %p316, %s19, 0
          %s318 = sadd.s32 %s317, %s315
          %s319 = scalar_lea.vmem %s3, %s318
        $region106: #{refine_seq2seq_forward.32} parent=15 // pred_fallthru
          _
      $region16: #{refine_seq2seq_forward.32} parent=5 // pred_fallthru
        _
      %p320 = scmp.le.s32.totalorder 1, %s10
      %p321 = scmp.lt.s32.totalorder %s10, 3
      %p322 = pnand %p320, %p321
      %p323 = pneg %p322
      // Predicated region
      $region107: #{refine_seq2seq_forward.32} parent=5 // pred_check
        _
      $region108: #{refine_seq2seq_forward.32} parent=5 // pred_check_branch
        %325 = sbr.rel (%p322) target = $region110
      $region109: #{refine_seq2seq_forward.32} parent=5 // pred_region
        %s326 = ssub.s32 %s10, 1
        %s327 = sand.u32 %s72, 1
        %s328 = sand.u32 %s72, 1
        %s329 = smul.addr %s328, 8
        %s330 = scalar_lea.vmem [#allocation5], %s329
        // Predicated region
        $region111: #{refine_seq2seq_forward.32} parent=109 // pred_check
          %p331 = pneg %p85
        $region112: #{refine_seq2seq_forward.32} parent=109 // pred_check_branch
          %333 = sbr.rel (%p331) target = $region114
        $region113: #{refine_seq2seq_forward.32} parent=109 // pred_region
          _
        $region114: #{refine_seq2seq_forward.32} parent=109 // pred_fallthru
          _
        %s334 = sand.u32 %s100, 1
        %s335 = sand.u32 %s100, 1
        %s336 = smul.addr %s335, 8
        %s337 = scalar_lea.vmem [#allocation6], %s336
        // Predicated region
        $region115: #{refine_seq2seq_forward.32} parent=109 // pred_check
          %p338 = pneg %p113
        $region116: #{refine_seq2seq_forward.32} parent=109 // pred_check_branch
          %340 = sbr.rel (%p338) target = $region118
        $region117: #{refine_seq2seq_forward.32} parent=109 // pred_region
          _
        $region118: #{refine_seq2seq_forward.32} parent=109 // pred_fallthru
          _
        %p341 = scmp.lt.s32.totalorder %s20, 1
        %s342 = scalar_select %p341, %s20, 1
        %p343 = scmp.lt.s32.totalorder %s21, 0
        %s344 = scalar_select %p343, %s21, 0
        %s345 = sadd.s32 %s344, %s342
        %s346 = smul.addr %s345, 4
        %s347 = scalar_lea.vmem %s0, %s346
        %p348 = pneg %p57
        %p349 = pneg %p54
        %s350 = sand.u32 %s72, 1
        %s351 = sand.u32 %s72, 1
        %s352 = smul.addr %s351, 8
        %s353 = scalar_lea.vmem [#allocation5], %s352
        %p354 = pneg %p85
        %p355 = pneg %p82
        %s356 = sand.u32 %s100, 1
        %s357 = sand.u32 %s100, 1
        %s358 = smul.addr %s357, 8
        %s359 = scalar_lea.vmem [#allocation6], %s358
        %p360 = pneg %p113
        %p361 = pneg %p110
        %p362 = scmp.lt.s32.totalorder %s20, 1
        %s363 = scalar_select %p362, %s20, 1
        %p364 = scmp.lt.s32.totalorder %s22, 0
        %s365 = scalar_select %p364, %s22, 0
        %s366 = sadd.s32 %s365, %s363
        %s367 = scalar_lea.vmem %s3, %s366
        %p368 = pneg %p141
        %p369 = pneg %p138
        %p370 = pneg %p169
        %p371 = pneg %p166
        %p372 = scmp.lt.s32.totalorder %s20, 1
        %s373 = scalar_select %p372, %s20, 1
        %p374 = scmp.lt.s32.totalorder %s21, 0
        %s375 = scalar_select %p374, %s21, 0
        %s376 = sadd.s32 %s375, %s373
        %s377 = smul.addr %s376, 4
        %s378 = scalar_lea.vmem %s4, %s377
        %p379 = scmp.lt.s32.totalorder %s20, 1
        %s380 = scalar_select %p379, %s20, 1
        %p381 = scmp.lt.s32.totalorder %s21, 0
        %s382 = scalar_select %p381, %s21, 0
        %s383 = sadd.s32 %s382, %s380
        %s384 = smul.addr %s383, 4
        %s385 = scalar_lea.vmem %s0, %s384
        %s386 = smul.u32 2, %s22
        %s387 = smul.u32 2, %s22
        %p388 = scmp.lt.s32.totalorder %s20, 1
        %s389 = scalar_select %p388, %s20, 1
        %p390 = scmp.lt.s32.totalorder %s22, 0
        %s391 = scalar_select %p390, %s22, 0
        %s392 = sadd.s32 %s391, %s389
        %s393 = scalar_lea.vmem %s3, %s392
        %p394 = scmp.lt.s32.totalorder %s20, 1
        %s395 = scalar_select %p394, %s20, 1
        %p396 = scmp.lt.s32.totalorder %s21, 0
        %s397 = scalar_select %p396, %s21, 0
        %s398 = sadd.s32 %s397, %s395
        %s399 = smul.addr %s398, 4
        %s400 = scalar_lea.vmem %s4, %s399
        %p402 = scmp.eq.s32.totalorder %s22, 0
        // Predicated region
        $region119: #{refine_seq2seq_forward.32} parent=109 // pred_check
          %p403 = pneg %p402
        $region120: #{refine_seq2seq_forward.32} parent=109 // pred_check_branch
          %405 = sbr.rel (%p403) target = $region122
        $region121: #{refine_seq2seq_forward.32} parent=109 // pred_region
          %vm406 = vcmask 7168
          %407 = vst.msk [vmem:[#allocation2] sm:$0xff] %vm406, -inf
          %408 = vst.msk [vmem:[#allocation2 + $0x8] sm:$0xff] %vm406, -inf
          %409 = vst.msk [vmem:[#allocation2 + $0x10] sm:$0xff] %vm406, -inf
          %410 = vst.msk [vmem:[#allocation2 + $0x18] sm:$0xff] %vm406, -inf
          %411 = vst.msk [vmem:[#allocation3] sm:$0xff] %vm406, 0.0
          %412 = vst.msk [vmem:[#allocation3 + $0x8] sm:$0xff] %vm406, 0.0
          %413 = vst.msk [vmem:[#allocation3 + $0x10] sm:$0xff] %vm406, 0.0
          %414 = vst.msk [vmem:[#allocation3 + $0x18] sm:$0xff] %vm406, 0.0
          %415 = vst [vmem:[#allocation4] sm:$0xff] 0.0
        $region122: #{refine_seq2seq_forward.32} parent=109 // pred_fallthru
          _
        %v416 = vld [vmem:[%s385] sm:$0xf]
        %v417 = vld [vmem:[%s330] sm:$0xf]
        %v418 = vld [vmem:[%s330 + $0x4] sm:$0xf]
        %v419 = vld [vmem:[%s337] sm:$0xf]
        %v420 = vld [vmem:[%s337 + $0x4] sm:$0xf]
        %v421 = vld [vmem:[%s393] sm:$0x1]
        %v423 = vlaneseq
        %v424 = vshrl.u32 %v423, 7
        %v425 = vsub.s32 0, %v424
        %v426 = vrot.slane %v421, %v425
        %v430 = vunpack.c.l.b16 %v417
        %v431 = vunpack.c.l.b16 %v418
        %v432 = vpack.c.b16 %v431, %v430
        %vm433 = vcmask 261120
        %v435 = vsel %vm433, %v416, 0
        %v438 = vsel %vm433, %v432, 0
        %440 = vmatprep.subr.bf16.mxu0 0
        %441 = vmatpush1.bf16.xpose.msra.mxu0 %v438
        %442 = vmatprep.subr.bf16.mxu0 0
        %443 = vmatpush1.bf16.xpose.msra.mxu0 0
        %444 = vmatprep.subr.bf16.mxu0 0
        %445 = vmatpush1.bf16.xpose.msra.mxu0 0
        %446 = vmatprep.subr.bf16.mxu0 0
        %447 = vmatpush1.bf16.xpose.msra.mxu0 0
        %448 = vmatprep.subr.bf16.mxu0 0
        %449 = vmatpush1.bf16.xpose.msra.mxu0 0
        %450 = vmatprep.subr.bf16.mxu0 0
        %451 = vmatpush1.bf16.xpose.msra.mxu0 0
        %452 = vmatprep.subr.bf16.mxu0 0
        %453 = vmatpush1.bf16.xpose.msra.mxu0 0
        %454 = vmatprep.subr.bf16.mxu0 0
        %455 = vmatpush1.bf16.xpose.msra.mxu0 0
        %456 = vmatprep.subr.bf16.mxu0 0
        %457 = vmatpush1.bf16.xpose.msra.mxu0 0
        %458 = vmatprep.subr.bf16.mxu0 0
        %459 = vmatpush1.bf16.xpose.msra.mxu0 0
        %460 = vmatprep.subr.bf16.mxu0 0
        %461 = vmatpush1.bf16.xpose.msra.mxu0 0
        %462 = vmatprep.subr.bf16.mxu0 0
        %463 = vmatpush1.bf16.xpose.msra.mxu0 0
        %464 = vmatprep.subr.bf16.mxu0 0
        %465 = vmatpush1.bf16.xpose.msra.mxu0 0
        %466 = vmatprep.subr.bf16.mxu0 0
        %467 = vmatpush1.bf16.xpose.msra.mxu0 0
        %468 = vmatprep.subr.bf16.mxu0 0
        %469 = vmatpush1.bf16.xpose.msra.mxu0 0
        %470 = vmatprep.subr.bf16.mxu0 0
        %471 = vmatpush1.bf16.xpose.msra.mxu0 0
        %472 = vmatprep.mubr.bf16.mxu0 0
        %473 = vmatmul.mubr.bf16.gmra.mrb[0].mxu0 %v435
        %v474 = vpop.f32.mrb[0].mxu0
        %v475 = vadd.f32 %v426, %v474
        %v476 = vpop.f32.mrb[0].mxu0
        %v477 = vpop.f32.mrb[0].mxu0
        %v478 = vpop.f32.mrb[0].mxu0
        %479 = vdwg.mxu0
        %v480 = vld [vmem:[#allocation2] sm:$0xff]
        %vm481 = vcmask 130048
        %v482 = vsel %vm481, %v475, -inf
        %483 = vmax.xlane.f32.xlu0 %v482
        %v484 = vpop.xlane.xlu0 %483
        %v485 = vmax.f32 %v480, %v484
        %v486 = vsub.f32 %v480, %v485
        %v487 = vmul.f32 %v486, 1.442695
        %v488 = vpow.pop %v487
        %490 = vset.pattern.permute.xlu0 0
        %491 = vperm.xlu0 %490, %v485
        %v492 = vpop.permute.xlu0 %491
        %v494 = vsub.f32 %v475, %v492
        %v495 = vmul.f32 %v494, 1.442695
        %v496 = vpow.pop %v495
        %v497 = vld [vmem:[#allocation3] sm:$0xff]
        %v498 = vmul.f32 %v488, %v497
        %v499 = vsel %vm481, %v496, 0.0
        %500 = vadd.xlane.f32.xlu0 %v499
        %v501 = vpop.xlane.xlu0 %500
        %v502 = vadd.f32 %v498, %v501
        %vm503 = vcmask 7168
        %504 = vst.msk [vmem:[#allocation3] sm:$0xff] %vm503, %v502
        %v505 = vld [vmem:[#allocation4] sm:$0xff]
        %507 = vset.pattern.permute.xlu0 0
        %508 = vperm.xlu0 %507, %v488
        %v509 = vpop.permute.xlu0 %508
        %v511 = vmul.f32 %v509, %v505
        %v512 = vpack.c.bf16 %v496, %v496
        %v515 = vunpack.c.l.b16 %v419
        %v516 = vunpack.c.l.b16 %v420
        %v517 = vpack.c.b16 %v516, %v515
        %v520 = vsel %vm481, %v512, 0
        %522 = vmatprep.subr.bf16.mxu0 0
        %523 = vmatpush1.bf16.msra.mxu0 %v517
        %524 = vmatprep.subr.bf16.mxu0 0
        %525 = vmatpush1.bf16.msra.mxu0 0
        %526 = vmatprep.subr.bf16.mxu0 0
        %527 = vmatpush1.bf16.msra.mxu0 0
        %528 = vmatprep.subr.bf16.mxu0 0
        %529 = vmatpush1.bf16.msra.mxu0 0
        %530 = vmatprep.subr.bf16.mxu0 0
        %531 = vmatpush1.bf16.msra.mxu0 0
        %532 = vmatprep.subr.bf16.mxu0 0
        %533 = vmatpush1.bf16.msra.mxu0 0
        %534 = vmatprep.subr.bf16.mxu0 0
        %535 = vmatpush1.bf16.msra.mxu0 0
        %536 = vmatprep.subr.bf16.mxu0 0
        %537 = vmatpush1.bf16.msra.mxu0 0
        %538 = vmatprep.subr.bf16.mxu0 0
        %539 = vmatpush1.bf16.msra.mxu0 0
        %540 = vmatprep.subr.bf16.mxu0 0
        %541 = vmatpush1.bf16.msra.mxu0 0
        %542 = vmatprep.subr.bf16.mxu0 0
        %543 = vmatpush1.bf16.msra.mxu0 0
        %544 = vmatprep.subr.bf16.mxu0 0
        %545 = vmatpush1.bf16.msra.mxu0 0
        %546 = vmatprep.subr.bf16.mxu0 0
        %547 = vmatpush1.bf16.msra.mxu0 0
        %548 = vmatprep.subr.bf16.mxu0 0
        %549 = vmatpush1.bf16.msra.mxu0 0
        %550 = vmatprep.subr.bf16.mxu0 0
        %551 = vmatpush1.bf16.msra.mxu0 0
        %552 = vmatprep.subr.bf16.mxu0 0
        %553 = vmatpush1.bf16.msra.mxu0 0
        %554 = vmatprep.mubr.bf16.mxu0 0
        %555 = vmatmul.mubr.bf16.gmra.mrb[0].mxu0 %v520
        %v556 = vpop.f32.mrb[0].mxu0
        %v557 = vadd.f32 0.0, %v556
        %v558 = vpop.f32.mrb[0].mxu0
        %v559 = vpop.f32.mrb[0].mxu0
        %v560 = vpop.f32.mrb[0].mxu0
        %561 = vdwg.mxu0
        %v562 = vadd.f32 %v511, %v557
        %563 = vst.msk [vmem:[#allocation4] sm:$0xff] %vm433, %v562
        %564 = vst.msk [vmem:[#allocation2] sm:$0xff] %vm503, %v485
        %v566 = vunpack.c.l.b16 %v416
        %v567 = vpack.c.b16 %v566, %v566
        %568 = vrot.lane.b32.xlu0 %v567, 96
        %v569 = vpop.permute.xlu0 %568
        %570 = vrot.lane.b32.xlu0 %v432, 96
        %v571 = vpop.permute.xlu0 %570
        %v573 = vsel %vm433, %v569, 0
        %v576 = vsel %vm433, %v571, 0
        %578 = vmatprep.subr.bf16.mxu0 0
        %579 = vmatpush1.bf16.xpose.msra.mxu0 %v576
        %580 = vmatprep.subr.bf16.mxu0 0
        %581 = vmatpush1.bf16.xpose.msra.mxu0 0
        %582 = vmatprep.subr.bf16.mxu0 0
        %583 = vmatpush1.bf16.xpose.msra.mxu0 0
        %584 = vmatprep.subr.bf16.mxu0 0
        %585 = vmatpush1.bf16.xpose.msra.mxu0 0
        %586 = vmatprep.subr.bf16.mxu0 0
        %587 = vmatpush1.bf16.xpose.msra.mxu0 0
        %588 = vmatprep.subr.bf16.mxu0 0
        %589 = vmatpush1.bf16.xpose.msra.mxu0 0
        %590 = vmatprep.subr.bf16.mxu0 0
        %591 = vmatpush1.bf16.xpose.msra.mxu0 0
        %592 = vmatprep.subr.bf16.mxu0 0
        %593 = vmatpush1.bf16.xpose.msra.mxu0 0
        %594 = vmatprep.subr.bf16.mxu0 0
        %595 = vmatpush1.bf16.xpose.msra.mxu0 0
        %596 = vmatprep.subr.bf16.mxu0 0
        %597 = vmatpush1.bf16.xpose.msra.mxu0 0
        %598 = vmatprep.subr.bf16.mxu0 0
        %599 = vmatpush1.bf16.xpose.msra.mxu0 0
        %600 = vmatprep.subr.bf16.mxu0 0
        %601 = vmatpush1.bf16.xpose.msra.mxu0 0
        %602 = vmatprep.subr.bf16.mxu0 0
        %603 = vmatpush1.bf16.xpose.msra.mxu0 0
        %604 = vmatprep.subr.bf16.mxu0 0
        %605 = vmatpush1.bf16.xpose.msra.mxu0 0
        %606 = vmatprep.subr.bf16.mxu0 0
        %607 = vmatpush1.bf16.xpose.msra.mxu0 0
        %608 = vmatprep.subr.bf16.mxu0 0
        %609 = vmatpush1.bf16.xpose.msra.mxu0 0
        %610 = vmatprep.mubr.bf16.mxu0 0
        %611 = vmatmul.mubr.bf16.gmra.mrb[0].mxu0 %v573
        %v612 = vpop.f32.mrb[0].mxu0
        %v613 = vadd.f32 %v426, %v612
        %v614 = vpop.f32.mrb[0].mxu0
        %v615 = vpop.f32.mrb[0].mxu0
        %v616 = vpop.f32.mrb[0].mxu0
        %617 = vdwg.mxu0
        %s618 = scalar_lea.vmem [#allocation2], 8
        %v619 = vld [vmem:[%s618] sm:$0xff]
        %v620 = vsel %vm481, %v613, -inf
        %621 = vmax.xlane.f32.xlu0 %v620
        %v622 = vpop.xlane.xlu0 %621
        %v623 = vmax.f32 %v619, %v622
        %v624 = vsub.f32 %v619, %v623
        %v625 = vmul.f32 %v624, 1.442695
        %v626 = vpow.pop %v625
        %628 = vset.pattern.permute.xlu0 0
        %629 = vperm.xlu0 %628, %v623
        %v630 = vpop.permute.xlu0 %629
        %v632 = vsub.f32 %v613, %v630
        %v633 = vmul.f32 %v632, 1.442695
        %v634 = vpow.pop %v633
        %s635 = scalar_lea.vmem [#allocation3], 8
        %v636 = vld [vmem:[%s635] sm:$0xff]
        %v637 = vmul.f32 %v626, %v636
        %v638 = vsel %vm481, %v634, 0.0
        %639 = vadd.xlane.f32.xlu0 %v638
        %v640 = vpop.xlane.xlu0 %639
        %v641 = vadd.f32 %v637, %v640
        %642 = vst.msk [vmem:[%s635] sm:$0xff] %vm503, %v641
        %v643 = vld [vmem:[#allocation4] sm:$0xff]
        %645 = vset.pattern.permute.xlu0 0
        %646 = vperm.xlu0 %645, %v626
        %v647 = vpop.permute.xlu0 %646
        %v649 = vmul.f32 %v647, %v643
        %v650 = vpack.c.bf16 %v634, %v634
        %651 = vrot.lane.b32.xlu0 %v517, 96
        %v652 = vpop.permute.xlu0 %651
        %v655 = vsel %vm481, %v650, 0
        %657 = vmatprep.subr.bf16.mxu0 0
        %658 = vmatpush1.bf16.msra.mxu0 %v652
        %659 = vmatprep.subr.bf16.mxu0 0
        %660 = vmatpush1.bf16.msra.mxu0 0
        %661 = vmatprep.subr.bf16.mxu0 0
        %662 = vmatpush1.bf16.msra.mxu0 0
        %663 = vmatprep.subr.bf16.mxu0 0
        %664 = vmatpush1.bf16.msra.mxu0 0
        %665 = vmatprep.subr.bf16.mxu0 0
        %666 = vmatpush1.bf16.msra.mxu0 0
        %667 = vmatprep.subr.bf16.mxu0 0
        %668 = vmatpush1.bf16.msra.mxu0 0
        %669 = vmatprep.subr.bf16.mxu0 0
        %670 = vmatpush1.bf16.msra.mxu0 0
        %671 = vmatprep.subr.bf16.mxu0 0
        %672 = vmatpush1.bf16.msra.mxu0 0
        %673 = vmatprep.subr.bf16.mxu0 0
        %674 = vmatpush1.bf16.msra.mxu0 0
        %675 = vmatprep.subr.bf16.mxu0 0
        %676 = vmatpush1.bf16.msra.mxu0 0
        %677 = vmatprep.subr.bf16.mxu0 0
        %678 = vmatpush1.bf16.msra.mxu0 0
        %679 = vmatprep.subr.bf16.mxu0 0
        %680 = vmatpush1.bf16.msra.mxu0 0
        %681 = vmatprep.subr.bf16.mxu0 0
        %682 = vmatpush1.bf16.msra.mxu0 0
        %683 = vmatprep.subr.bf16.mxu0 0
        %684 = vmatpush1.bf16.msra.mxu0 0
        %685 = vmatprep.subr.bf16.mxu0 0
        %686 = vmatpush1.bf16.msra.mxu0 0
        %687 = vmatprep.subr.bf16.mxu0 0
        %688 = vmatpush1.bf16.msra.mxu0 0
        %689 = vmatprep.mubr.bf16.mxu0 0
        %690 = vmatmul.mubr.bf16.gmra.mrb[0].mxu0 %v655
        %v691 = vpop.f32.mrb[0].mxu0
        %v692 = vadd.f32 0.0, %v691
        %v693 = vpop.f32.mrb[0].mxu0
        %v694 = vpop.f32.mrb[0].mxu0
        %v695 = vpop.f32.mrb[0].mxu0
        %696 = vdwg.mxu0
        %698 = vrot.lane.b32.xlu0 %v692, 32
        %v699 = vpop.permute.xlu0 %698
        %v701 = vadd.f32 %v649, %v699
        %vm702 = vcmask 523520
        %703 = vst.msk [vmem:[#allocation4] sm:$0xff] %vm702, %v701
        %704 = vst.msk [vmem:[%s618] sm:$0xff] %vm503, %v623
        %705 = vrot.lane.b32.xlu0 %v567, 64
        %v706 = vpop.permute.xlu0 %705
        %707 = vrot.lane.b32.xlu0 %v432, 64
        %v708 = vpop.permute.xlu0 %707
        %v710 = vsel %vm433, %v706, 0
        %v713 = vsel %vm433, %v708, 0
        %715 = vmatprep.subr.bf16.mxu0 0
        %716 = vmatpush1.bf16.xpose.msra.mxu0 %v713
        %717 = vmatprep.subr.bf16.mxu0 0
        %718 = vmatpush1.bf16.xpose.msra.mxu0 0
        %719 = vmatprep.subr.bf16.mxu0 0
        %720 = vmatpush1.bf16.xpose.msra.mxu0 0
        %721 = vmatprep.subr.bf16.mxu0 0
        %722 = vmatpush1.bf16.xpose.msra.mxu0 0
        %723 = vmatprep.subr.bf16.mxu0 0
        %724 = vmatpush1.bf16.xpose.msra.mxu0 0
        %725 = vmatprep.subr.bf16.mxu0 0
        %726 = vmatpush1.bf16.xpose.msra.mxu0 0
        %727 = vmatprep.subr.bf16.mxu0 0
        %728 = vmatpush1.bf16.xpose.msra.mxu0 0
        %729 = vmatprep.subr.bf16.mxu0 0
        %730 = vmatpush1.bf16.xpose.msra.mxu0 0
        %731 = vmatprep.subr.bf16.mxu0 0
        %732 = vmatpush1.bf16.xpose.msra.mxu0 0
        %733 = vmatprep.subr.bf16.mxu0 0
        %734 = vmatpush1.bf16.xpose.msra.mxu0 0
        %735 = vmatprep.subr.bf16.mxu0 0
        %736 = vmatpush1.bf16.xpose.msra.mxu0 0
        %737 = vmatprep.subr.bf16.mxu0 0
        %738 = vmatpush1.bf16.xpose.msra.mxu0 0
        %739 = vmatprep.subr.bf16.mxu0 0
        %740 = vmatpush1.bf16.xpose.msra.mxu0 0
        %741 = vmatprep.subr.bf16.mxu0 0
        %742 = vmatpush1.bf16.xpose.msra.mxu0 0
        %743 = vmatprep.subr.bf16.mxu0 0
        %744 = vmatpush1.bf16.xpose.msra.mxu0 0
        %745 = vmatprep.subr.bf16.mxu0 0
        %746 = vmatpush1.bf16.xpose.msra.mxu0 0
        %747 = vmatprep.mubr.bf16.mxu0 0
        %748 = vmatmul.mubr.bf16.gmra.mrb[0].mxu0 %v710
        %v749 = vpop.f32.mrb[0].mxu0
        %v750 = vadd.f32 %v426, %v749
        %v751 = vpop.f32.mrb[0].mxu0
        %v752 = vpop.f32.mrb[0].mxu0
        %v753 = vpop.f32.mrb[0].mxu0
        %754 = vdwg.mxu0
        %s755 = scalar_lea.vmem [#allocation2], 16
        %v756 = vld [vmem:[%s755] sm:$0xff]
        %v757 = vsel %vm481, %v750, -inf
        %758 = vmax.xlane.f32.xlu0 %v757
        %v759 = vpop.xlane.xlu0 %758
        %v760 = vmax.f32 %v756, %v759
        %v761 = vsub.f32 %v756, %v760
        %v762 = vmul.f32 %v761, 1.442695
        %v763 = vpow.pop %v762
        %765 = vset.pattern.permute.xlu0 0
        %766 = vperm.xlu0 %765, %v760
        %v767 = vpop.permute.xlu0 %766
        %v769 = vsub.f32 %v750, %v767
        %v770 = vmul.f32 %v769, 1.442695
        %v771 = vpow.pop %v770
        %s772 = scalar_lea.vmem [#allocation3], 16
        %v773 = vld [vmem:[%s772] sm:$0xff]
        %v774 = vmul.f32 %v763, %v773
        %v775 = vsel %vm481, %v771, 0.0
        %776 = vadd.xlane.f32.xlu0 %v775
        %v777 = vpop.xlane.xlu0 %776
        %v778 = vadd.f32 %v774, %v777
        %779 = vst.msk [vmem:[%s772] sm:$0xff] %vm503, %v778
        %v780 = vld [vmem:[#allocation4] sm:$0xff]
        %782 = vset.pattern.permute.xlu0 0
        %783 = vperm.xlu0 %782, %v763
        %v784 = vpop.permute.xlu0 %783
        %v786 = vmul.f32 %v784, %v780
        %v787 = vpack.c.bf16 %v771, %v771
        %788 = vrot.lane.b32.xlu0 %v517, 64
        %v789 = vpop.permute.xlu0 %788
        %v792 = vsel %vm481, %v787, 0
        %794 = vmatprep.subr.bf16.mxu0 0
        %795 = vmatpush1.bf16.msra.mxu0 %v789
        %796 = vmatprep.subr.bf16.mxu0 0
        %797 = vmatpush1.bf16.msra.mxu0 0
        %798 = vmatprep.subr.bf16.mxu0 0
        %799 = vmatpush1.bf16.msra.mxu0 0
        %800 = vmatprep.subr.bf16.mxu0 0
        %801 = vmatpush1.bf16.msra.mxu0 0
        %802 = vmatprep.subr.bf16.mxu0 0
        %803 = vmatpush1.bf16.msra.mxu0 0
        %804 = vmatprep.subr.bf16.mxu0 0
        %805 = vmatpush1.bf16.msra.mxu0 0
        %806 = vmatprep.subr.bf16.mxu0 0
        %807 = vmatpush1.bf16.msra.mxu0 0
        %808 = vmatprep.subr.bf16.mxu0 0
        %809 = vmatpush1.bf16.msra.mxu0 0
        %810 = vmatprep.subr.bf16.mxu0 0
        %811 = vmatpush1.bf16.msra.mxu0 0
        %812 = vmatprep.subr.bf16.mxu0 0
        %813 = vmatpush1.bf16.msra.mxu0 0
        %814 = vmatprep.subr.bf16.mxu0 0
        %815 = vmatpush1.bf16.msra.mxu0 0
        %816 = vmatprep.subr.bf16.mxu0 0
        %817 = vmatpush1.bf16.msra.mxu0 0
        %818 = vmatprep.subr.bf16.mxu0 0
        %819 = vmatpush1.bf16.msra.mxu0 0
        %820 = vmatprep.subr.bf16.mxu0 0
        %821 = vmatpush1.bf16.msra.mxu0 0
        %822 = vmatprep.subr.bf16.mxu0 0
        %823 = vmatpush1.bf16.msra.mxu0 0
        %824 = vmatprep.subr.bf16.mxu0 0
        %825 = vmatpush1.bf16.msra.mxu0 0
        %826 = vmatprep.mubr.bf16.mxu0 0
        %827 = vmatmul.mubr.bf16.gmra.mrb[0].mxu0 %v792
        %v828 = vpop.f32.mrb[0].mxu0
        %v829 = vadd.f32 0.0, %v828
        %v830 = vpop.f32.mrb[0].mxu0
        %v831 = vpop.f32.mrb[0].mxu0
        %v832 = vpop.f32.mrb[0].mxu0
        %833 = vdwg.mxu0
        %835 = vrot.lane.b32.xlu0 %v829, 64
        %v836 = vpop.permute.xlu0 %835
        %v838 = vadd.f32 %v786, %v836
        %vm839 = vcmask 785920
        %840 = vst.msk [vmem:[#allocation4] sm:$0xff] %vm839, %v838
        %841 = vst.msk [vmem:[%s755] sm:$0xff] %vm503, %v760
        %842 = vrot.lane.b32.xlu0 %v567, 32
        %v843 = vpop.permute.xlu0 %842
        %844 = vrot.lane.b32.xlu0 %v432, 32
        %v845 = vpop.permute.xlu0 %844
        %v847 = vsel %vm433, %v843, 0
        %v850 = vsel %vm433, %v845, 0
        %852 = vmatprep.subr.bf16.mxu0 0
        %853 = vmatpush1.bf16.xpose.msra.mxu0 %v850
        %854 = vmatprep.subr.bf16.mxu0 0
        %855 = vmatpush1.bf16.xpose.msra.mxu0 0
        %856 = vmatprep.subr.bf16.mxu0 0
        %857 = vmatpush1.bf16.xpose.msra.mxu0 0
        %858 = vmatprep.subr.bf16.mxu0 0
        %859 = vmatpush1.bf16.xpose.msra.mxu0 0
        %860 = vmatprep.subr.bf16.mxu0 0
        %861 = vmatpush1.bf16.xpose.msra.mxu0 0
        %862 = vmatprep.subr.bf16.mxu0 0
        %863 = vmatpush1.bf16.xpose.msra.mxu0 0
        %864 = vmatprep.subr.bf16.mxu0 0
        %865 = vmatpush1.bf16.xpose.msra.mxu0 0
        %866 = vmatprep.subr.bf16.mxu0 0
        %867 = vmatpush1.bf16.xpose.msra.mxu0 0
        %868 = vmatprep.subr.bf16.mxu0 0
        %869 = vmatpush1.bf16.xpose.msra.mxu0 0
        %870 = vmatprep.subr.bf16.mxu0 0
        %871 = vmatpush1.bf16.xpose.msra.mxu0 0
        %872 = vmatprep.subr.bf16.mxu0 0
        %873 = vmatpush1.bf16.xpose.msra.mxu0 0
        %874 = vmatprep.subr.bf16.mxu0 0
        %875 = vmatpush1.bf16.xpose.msra.mxu0 0
        %876 = vmatprep.subr.bf16.mxu0 0
        %877 = vmatpush1.bf16.xpose.msra.mxu0 0
        %878 = vmatprep.subr.bf16.mxu0 0
        %879 = vmatpush1.bf16.xpose.msra.mxu0 0
        %880 = vmatprep.subr.bf16.mxu0 0
        %881 = vmatpush1.bf16.xpose.msra.mxu0 0
        %882 = vmatprep.subr.bf16.mxu0 0
        %883 = vmatpush1.bf16.xpose.msra.mxu0 0
        %884 = vmatprep.mubr.bf16.mxu0 0
        %885 = vmatmul.mubr.bf16.gmra.mrb[0].mxu0 %v847
        %v886 = vpop.f32.mrb[0].mxu0
        %v887 = vadd.f32 %v426, %v886
        %v888 = vpop.f32.mrb[0].mxu0
        %v889 = vpop.f32.mrb[0].mxu0
        %v890 = vpop.f32.mrb[0].mxu0
        %891 = vdwg.mxu0
        %s892 = scalar_lea.vmem [#allocation2], 24
        %v893 = vld [vmem:[%s892] sm:$0xff]
        %v894 = vsel %vm481, %v887, -inf
        %895 = vmax.xlane.f32.xlu0 %v894
        %v896 = vpop.xlane.xlu0 %895
        %v897 = vmax.f32 %v893, %v896
        %v898 = vsub.f32 %v893, %v897
        %v899 = vmul.f32 %v898, 1.442695
        %v900 = vpow.pop %v899
        %902 = vset.pattern.permute.xlu0 0
        %903 = vperm.xlu0 %902, %v897
        %v904 = vpop.permute.xlu0 %903
        %v906 = vsub.f32 %v887, %v904
        %v907 = vmul.f32 %v906, 1.442695
        %v908 = vpow.pop %v907
        %s909 = scalar_lea.vmem [#allocation3], 24
        %v910 = vld [vmem:[%s909] sm:$0xff]
        %v911 = vmul.f32 %v900, %v910
        %v912 = vsel %vm481, %v908, 0.0
        %913 = vadd.xlane.f32.xlu0 %v912
        %v914 = vpop.xlane.xlu0 %913
        %v915 = vadd.f32 %v911, %v914
        %916 = vst.msk [vmem:[%s909] sm:$0xff] %vm503, %v915
        %v917 = vld [vmem:[#allocation4] sm:$0xff]
        %919 = vset.pattern.permute.xlu0 0
        %920 = vperm.xlu0 %919, %v900
        %v921 = vpop.permute.xlu0 %920
        %v923 = vmul.f32 %v921, %v917
        %v924 = vpack.c.bf16 %v908, %v908
        %925 = vrot.lane.b32.xlu0 %v517, 32
        %v926 = vpop.permute.xlu0 %925
        %v929 = vsel %vm481, %v924, 0
        %931 = vmatprep.subr.bf16.mxu0 0
        %932 = vmatpush1.bf16.msra.mxu0 %v926
        %933 = vmatprep.subr.bf16.mxu0 0
        %934 = vmatpush1.bf16.msra.mxu0 0
        %935 = vmatprep.subr.bf16.mxu0 0
        %936 = vmatpush1.bf16.msra.mxu0 0
        %937 = vmatprep.subr.bf16.mxu0 0
        %938 = vmatpush1.bf16.msra.mxu0 0
        %939 = vmatprep.subr.bf16.mxu0 0
        %940 = vmatpush1.bf16.msra.mxu0 0
        %941 = vmatprep.subr.bf16.mxu0 0
        %942 = vmatpush1.bf16.msra.mxu0 0
        %943 = vmatprep.subr.bf16.mxu0 0
        %944 = vmatpush1.bf16.msra.mxu0 0
        %945 = vmatprep.subr.bf16.mxu0 0
        %946 = vmatpush1.bf16.msra.mxu0 0
        %947 = vmatprep.subr.bf16.mxu0 0
        %948 = vmatpush1.bf16.msra.mxu0 0
        %949 = vmatprep.subr.bf16.mxu0 0
        %950 = vmatpush1.bf16.msra.mxu0 0
        %951 = vmatprep.subr.bf16.mxu0 0
        %952 = vmatpush1.bf16.msra.mxu0 0
        %953 = vmatprep.subr.bf16.mxu0 0
        %954 = vmatpush1.bf16.msra.mxu0 0
        %955 = vmatprep.subr.bf16.mxu0 0
        %956 = vmatpush1.bf16.msra.mxu0 0
        %957 = vmatprep.subr.bf16.mxu0 0
        %958 = vmatpush1.bf16.msra.mxu0 0
        %959 = vmatprep.subr.bf16.mxu0 0
        %960 = vmatpush1.bf16.msra.mxu0 0
        %961 = vmatprep.subr.bf16.mxu0 0
        %962 = vmatpush1.bf16.msra.mxu0 0
        %963 = vmatprep.mubr.bf16.mxu0 0
        %964 = vmatmul.mubr.bf16.gmra.mrb[0].mxu0 %v929
        %v965 = vpop.f32.mrb[0].mxu0
        %v966 = vadd.f32 0.0, %v965
        %v967 = vpop.f32.mrb[0].mxu0
        %v968 = vpop.f32.mrb[0].mxu0
        %v969 = vpop.f32.mrb[0].mxu0
        %970 = vdwg.mxu0
        %972 = vrot.lane.b32.xlu0 %v966, 96
        %v973 = vpop.permute.xlu0 %972
        %v975 = vadd.f32 %v923, %v973
        %vm976 = vcmask 1048320
        %977 = vst.msk [vmem:[#allocation4] sm:$0xff] %vm976, %v975
        %978 = vst.msk [vmem:[%s892] sm:$0xff] %vm503, %v897
        // Predicated region
        $region123: #{refine_seq2seq_forward.32} parent=109 // pred_check
          %p979 = pneg %p402
        $region124: #{refine_seq2seq_forward.32} parent=109 // pred_check_branch
          %981 = sbr.rel (%p979) target = $region126
        $region125: #{refine_seq2seq_forward.32} parent=109 // pred_region
          %v982 = vld [vmem:[#allocation4] sm:$0xff]
          %v983 = vld [vmem:[#allocation3] sm:$0xff]
          %v984 = vrcp.pop %v983
          %986 = vset.pattern.permute.xlu0 0
          %987 = vperm.xlu0 %986, %v984
          %v988 = vpop.permute.xlu0 %987
          %v990 = vmul.f32 %v982, %v988
          %v991 = vld [vmem:[%s635] sm:$0xff]
          %v992 = vrcp.pop %v991
          %994 = vset.pattern.permute.xlu0 0
          %995 = vperm.xlu0 %994, %v992
          %v996 = vpop.permute.xlu0 %995
          %v998 = vmul.f32 %v982, %v996
          %v999 = vld [vmem:[%s772] sm:$0xff]
          %v1000 = vrcp.pop %v999
          %1002 = vset.pattern.permute.xlu0 0
          %1003 = vperm.xlu0 %1002, %v1000
          %v1004 = vpop.permute.xlu0 %1003
          %v1006 = vmul.f32 %v982, %v1004
          %v1007 = vld [vmem:[%s909] sm:$0xff]
          %v1008 = vrcp.pop %v1007
          %1010 = vset.pattern.permute.xlu0 0
          %1011 = vperm.xlu0 %1010, %v1008
          %v1012 = vpop.permute.xlu0 %1011
          %v1014 = vmul.f32 %v982, %v1012
          %v1015 = vsel %vm433, %v990, %v998
          %vm1016 = vcmask 523264
          %v1017 = vsel %vm1016, %v1015, %v1006
          %vm1018 = vcmask 785408
          %v1019 = vsel %vm1018, %v1017, %v1014
          %v1020 = vpack.c.bf16 %v1019, %v1019
          %1021 = vst [vmem:[%s400] sm:$0xf] %v1020
        $region126: #{refine_seq2seq_forward.32} parent=109 // pred_fallthru
          _
        %p1022 = scmp.lt.s32.totalorder %s20, 1
        %s1023 = scalar_select %p1022, %s20, 1
        %p1024 = scmp.lt.s32.totalorder %s21, 0
        %s1025 = scalar_select %p1024, %s21, 0
        %s1026 = sadd.s32 %s1025, %s1023
        %s1027 = smul.addr %s1026, 4
        %s1028 = scalar_lea.vmem %s4, %s1027
        // Predicated region
        $region127: #{refine_seq2seq_forward.32} parent=109 // pred_check
          %p1029 = pneg %p166
        $region128: #{refine_seq2seq_forward.32} parent=109 // pred_check_branch
          %1031 = sbr.rel (%p1029) target = $region130
        $region129: #{refine_seq2seq_forward.32} parent=109 // pred_region
          _
        $region130: #{refine_seq2seq_forward.32} parent=109 // pred_fallthru
          _
      $region110: #{refine_seq2seq_forward.32} parent=5 // pred_fallthru
        _
      %p1032 = scmp.le.s32.totalorder 2, %s10
      // Predicated region
      $region131: #{refine_seq2seq_forward.32} parent=5 // pred_check
        %p1033 = pneg %p1032
      $region132: #{refine_seq2seq_forward.32} parent=5 // pred_check_branch
        %1035 = sbr.rel (%p1033) target = $region134
      $region133: #{refine_seq2seq_forward.32} parent=5 // pred_region
        %s1036 = ssub.s32 %s10, 2
        // Predicated region
        $region135: #{refine_seq2seq_forward.32} parent=133 // pred_check
          %p1037 = pneg %p172
        $region136: #{refine_seq2seq_forward.32} parent=133 // pred_check_branch
          %1039 = sbr.rel (%p1037) target = $region138
        $region137: #{refine_seq2seq_forward.32} parent=133 // pred_region
          %p1040 = scmp.lt.s32.totalorder %s23, 1
          %s1041 = scalar_select %p1040, %s23, 1
          %p1042 = scmp.lt.s32.totalorder %s24, 0
          %s1043 = scalar_select %p1042, %s24, 0
          %s1044 = sadd.s32 %s1043, %s1041
          %s1045 = smul.addr %s1044, 4
          %s1046 = scalar_lea.vmem %s4, %s1045
        $region138: #{refine_seq2seq_forward.32} parent=133 // pred_fallthru
          _
      $region134: #{refine_seq2seq_forward.32} parent=5 // pred_fallthru
        _
    $region6: #{refine_seq2seq_forward.32} parent=1 // loop_footer
      %s14 = sadd.s32 1, %s10
    $region7: #{refine_seq2seq_forward.32} parent=1 // loop_footer_branch
      %9 = sbr.rel target = $region3
    $region8: #{refine_seq2seq_forward.32} parent=1 // loop_exit
      _

// kernel: refine_seq2seq_forward.37
$region0: #{refine_seq2seq_forward.37}
  #allocation0 [shape = 'u32[]', space=smem, size = 0x4, offset = 0x4, fixed_abs, tag = 'smem constant byte address 0x4 - core index']
  #allocation1 [shape = 'u32[144,128]{1,0:T(1,128)}', space=vmem, size = 0x12000, scoped, tag = 'internal scratch']
  #allocation2 [shape = 'f32[16,1]{1,0:T(8,128)}', space=vmem, size = 0x2000, scoped, tag = 'scratch operand']
  #allocation3 [shape = 'f32[16,1]{1,0:T(8,128)}', space=vmem, size = 0x2000, scoped, tag = 'scratch operand']
  #allocation4 [shape = 'f32[16,1]{1,0:T(8,128)}', space=vmem, size = 0x2000, scoped, tag = 'scratch operand']
  %s0 = inlined_call_operand.vmem [shape: bf16[16,128], index: 0, kind: input, shape index: {}]
  %s1 = inlined_call_operand.vmem [shape: bf16[128,256], index: 1, kind: input, shape index: {}]
  %s2 = inlined_call_operand.vmem [shape: s32[16,1], index: 2, kind: input, shape index: {}]
  %s3 = inlined_call_operand.vmem [shape: f32[16,1], index: 3, kind: output, shape index: {}]
  %s4 = sld [smem:[#allocation0]]
  $region30: #{refine_seq2seq_forward.37} parent=0
    _
  %s6 = ssub.s32 1, %s4
  %s7 = scalar_select 0, %s6, %s4
  // Predicated region
  $region2: #{refine_seq2seq_forward.37} parent=0 // pred_check
    _
  $region3: #{refine_seq2seq_forward.37} parent=0 // pred_check_branch
    %9 = sbr.rel (0) target = $region5
  $region4: #{refine_seq2seq_forward.37} parent=0 // pred_region
    _
  $region5: #{refine_seq2seq_forward.37} parent=0 // pred_fallthru
    _
  // Predicated region
  $region6: #{refine_seq2seq_forward.37} parent=0 // pred_check
    _
  $region7: #{refine_seq2seq_forward.37} parent=0 // pred_check_branch
    %11 = sbr.rel (0) target = $region9
  $region8: #{refine_seq2seq_forward.37} parent=0 // pred_region
    _
  $region9: #{refine_seq2seq_forward.37} parent=0 // pred_fallthru
    _
  // Predicated region
  $region10: #{refine_seq2seq_forward.37} parent=0 // pred_check
    _
  $region11: #{refine_seq2seq_forward.37} parent=0 // pred_check_branch
    %13 = sbr.rel (0) target = $region13
  $region12: #{refine_seq2seq_forward.37} parent=0 // pred_region
    _
  $region13: #{refine_seq2seq_forward.37} parent=0 // pred_fallthru
    _
  %p15 = scmp.eq.s32.totalorder 0, 0
  // Predicated region
  $region14: #{refine_seq2seq_forward.37} parent=0 // pred_check
    %p16 = pneg %p15
  $region15: #{refine_seq2seq_forward.37} parent=0 // pred_check_branch
    %18 = sbr.rel (%p16) target = $region17
  $region16: #{refine_seq2seq_forward.37} parent=0 // pred_region
    %vm19 = vcmask 7168
    %20 = vst.msk [vmem:[#allocation2] sm:$0xff] %vm19, -inf
    %21 = vst.msk [vmem:[#allocation2 + $0x8] sm:$0xff] %vm19, -inf
    %22 = vst.msk [vmem:[#allocation3] sm:$0xff] %vm19, 0.0
    %23 = vst.msk [vmem:[#allocation3 + $0x8] sm:$0xff] %vm19, 0.0
    %24 = vst.msk [vmem:[#allocation4] sm:$0xff] %vm19, 0.0
    %25 = vst.msk [vmem:[#allocation4 + $0x8] sm:$0xff] %vm19, 0.0
  $region17: #{refine_seq2seq_forward.37} parent=0 // pred_fallthru
    _
  %v26 = vld [vmem:[%s0] sm:$0xf]
  %v27 = vld [vmem:[%s0 + $0x4] sm:$0xf]
  %v28 = vld [vmem:[%s1] sm:$0xff]
  %v29 = vld [vmem:[%s1 + $0x8] sm:$0xff]
  %v30 = vld [vmem:[%s1 + $0x10] sm:$0xff]
  %v31 = vld [vmem:[%s1 + $0x18] sm:$0xff]
  %v32 = vld [vmem:[%s1 + $0x20] sm:$0xff]
  %v33 = vld [vmem:[%s1 + $0x28] sm:$0xff]
  %v34 = vld [vmem:[%s1 + $0x30] sm:$0xff]
  %v35 = vld [vmem:[%s1 + $0x38] sm:$0xff]
  %v36 = vld [vmem:[%s1 + $0x40] sm:$0xff]
  %v37 = vld [vmem:[%s1 + $0x48] sm:$0xff]
  %v38 = vld [vmem:[%s1 + $0x50] sm:$0xff]
  %v39 = vld [vmem:[%s1 + $0x58] sm:$0xff]
  %v40 = vld [vmem:[%s1 + $0x60] sm:$0xff]
  %v41 = vld [vmem:[%s1 + $0x68] sm:$0xff]
  %v42 = vld [vmem:[%s1 + $0x70] sm:$0xff]
  %v43 = vld [vmem:[%s1 + $0x78] sm:$0xff]
  %v46 = vunpack.c.l.b16 %v26
  %v47 = vunpack.c.l.b16 %v27
  %v48 = vpack.c.b16 %v47, %v46
  %v66 = vunpack.c.l.b16 %v28
  %v67 = vunpack.c.h.b16 %v28
  %v68 = vunpack.c.l.b16 %v29
  %v69 = vunpack.c.h.b16 %v29
  %v70 = vunpack.c.l.b16 %v30
  %v71 = vunpack.c.h.b16 %v30
  %v72 = vunpack.c.l.b16 %v31
  %v73 = vunpack.c.h.b16 %v31
  %v74 = vunpack.c.l.b16 %v32
  %v75 = vunpack.c.h.b16 %v32
  %v76 = vunpack.c.l.b16 %v33
  %v77 = vunpack.c.h.b16 %v33
  %v78 = vunpack.c.l.b16 %v34
  %v79 = vunpack.c.h.b16 %v34
  %v80 = vunpack.c.l.b16 %v35
  %v81 = vunpack.c.h.b16 %v35
  %v82 = vunpack.c.l.b16 %v36
  %v83 = vunpack.c.h.b16 %v36
  %v84 = vunpack.c.l.b16 %v37
  %v85 = vunpack.c.h.b16 %v37
  %v86 = vunpack.c.l.b16 %v38
  %v87 = vunpack.c.h.b16 %v38
  %v88 = vunpack.c.l.b16 %v39
  %v89 = vunpack.c.h.b16 %v39
  %v90 = vunpack.c.l.b16 %v40
  %v91 = vunpack.c.h.b16 %v40
  %v92 = vunpack.c.l.b16 %v41
  %v93 = vunpack.c.h.b16 %v41
  %v94 = vunpack.c.l.b16 %v42
  %v95 = vunpack.c.h.b16 %v42
  %v96 = vunpack.c.l.b16 %v43
  %v97 = vunpack.c.h.b16 %v43
  %v98 = vpack.c.b16 %v68, %v66
  %v99 = vpack.c.b16 %v69, %v67
  %v100 = vpack.c.b16 %v72, %v70
  %v101 = vpack.c.b16 %v73, %v71
  %v102 = vpack.c.b16 %v76, %v74
  %v103 = vpack.c.b16 %v77, %v75
  %v104 = vpack.c.b16 %v80, %v78
  %v105 = vpack.c.b16 %v81, %v79
  %v106 = vpack.c.b16 %v84, %v82
  %v107 = vpack.c.b16 %v85, %v83
  %v108 = vpack.c.b16 %v88, %v86
  %v109 = vpack.c.b16 %v89, %v87
  %v110 = vpack.c.b16 %v92, %v90
  %v111 = vpack.c.b16 %v93, %v91
  %v112 = vpack.c.b16 %v96, %v94
  %v113 = vpack.c.b16 %v97, %v95
  %130 = vmatprep.subr.bf16.mxu0 %v99
  %131 = vmatpush1.bf16.msra.mxu0 %v98
  %132 = vmatprep.subr.bf16.mxu0 %v101
  %133 = vmatpush1.bf16.msra.mxu0 %v100
  %134 = vmatprep.subr.bf16.mxu0 %v103
  %135 = vmatpush1.bf16.msra.mxu0 %v102
  %136 = vmatprep.subr.bf16.mxu0 %v105
  %137 = vmatpush1.bf16.msra.mxu0 %v104
  %138 = vmatprep.subr.bf16.mxu0 %v107
  %139 = vmatpush1.bf16.msra.mxu0 %v106
  %140 = vmatprep.subr.bf16.mxu0 %v109
  %141 = vmatpush1.bf16.msra.mxu0 %v108
  %142 = vmatprep.subr.bf16.mxu0 %v111
  %143 = vmatpush1.bf16.msra.mxu0 %v110
  %144 = vmatprep.subr.bf16.mxu0 %v113
  %145 = vmatpush1.bf16.msra.mxu0 %v112
  %146 = vmatprep.subr.bf16.mxu0 0
  %147 = vmatpush1.bf16.msra.mxu0 0
  %148 = vmatprep.subr.bf16.mxu0 0
  %149 = vmatpush1.bf16.msra.mxu0 0
  %150 = vmatprep.subr.bf16.mxu0 0
  %151 = vmatpush1.bf16.msra.mxu0 0
  %152 = vmatprep.subr.bf16.mxu0 0
  %153 = vmatpush1.bf16.msra.mxu0 0
  %154 = vmatprep.subr.bf16.mxu0 0
  %155 = vmatpush1.bf16.msra.mxu0 0
  %156 = vmatprep.subr.bf16.mxu0 0
  %157 = vmatpush1.bf16.msra.mxu0 0
  %158 = vmatprep.subr.bf16.mxu0 0
  %159 = vmatpush1.bf16.msra.mxu0 0
  %160 = vmatprep.subr.bf16.mxu0 0
  %161 = vmatpush1.bf16.msra.mxu0 0
  %162 = vmatprep.mubr.bf16.mxu0 0
  %163 = vmatmul.mubr.bf16.gmra.mrb[0].mxu0 %v48
  %v164 = vpop.f32.mrb[0].mxu0
  %v165 = vadd.f32 0.0, %v164
  %v166 = vpop.f32.mrb[0].mxu0
  %v167 = vadd.f32 0.0, %v166
  %v168 = vpop.f32.mrb[0].mxu0
  %v169 = vadd.f32 0.0, %v168
  %v170 = vpop.f32.mrb[0].mxu0
  %v171 = vadd.f32 0.0, %v170
  %172 = vdwg.mxu0
  %s173 = smul.u32 0, 256
  %v174 = vlaneseq
  %v175 = vand.u32 %v174, 127
  %v176 = vadd.s32 %v175, 128
  %v177 = vstv %s173
  %v178 = vadd.s32 %v177, %v175
  %v179 = vadd.s32 %v177, %v176
  %v180 = vld [vmem:[#allocation4] sm:$0xff]
  %v181 = vld [vmem:[#allocation4 + $0x8] sm:$0xff]
  %v182 = vld [vmem:[%s2] sm:$0xff]
  %v183 = vld [vmem:[%s2 + $0x8] sm:$0xff]
  %184 = vset.pattern.permute.xlu0 0
  %185 = vperm.xlu0 %184, %v182
  %v186 = vpop.permute.xlu0 %185
  %187 = vset.pattern.permute.xlu0 0
  %188 = vperm.xlu0 %187, %v183
  %v189 = vpop.permute.xlu0 %188
  %vm190 = vcmp.eq.s32.totalorder %v178, %v186
  %vm191 = vcmp.eq.s32.totalorder %v179, %v186
  %vm192 = vcmp.eq.s32.totalorder %v178, %v189
  %vm193 = vcmp.eq.s32.totalorder %v179, %v189
  %v194 = vsel %vm190, %v165, 0.0
  %v195 = vsel %vm191, %v167, 0.0
  %v196 = vsel %vm192, %v169, 0.0
  %v197 = vsel %vm193, %v171, 0.0
  %v198 = vadd.f32 %v194, %v195
  %199 = vadd.xlane.f32.xlu0 %v198
  %v200 = vpop.xlane.xlu0 %199
  %v201 = vadd.f32 %v196, %v197
  %202 = vadd.xlane.f32.xlu0 %v201
  %v203 = vpop.xlane.xlu0 %202
  %v204 = vadd.f32 %v180, %v200
  %v205 = vadd.f32 %v181, %v203
  %vm206 = vcmask 7168
  %207 = vst.msk [vmem:[#allocation4] sm:$0xff] %vm206, %v204
  %208 = vst.msk [vmem:[#allocation4 + $0x8] sm:$0xff] %vm206, %v205
  %v209 = vld [vmem:[#allocation2] sm:$0xff]
  %v210 = vld [vmem:[#allocation2 + $0x8] sm:$0xff]
  %v211 = vmax.f32 %v165, %v167
  %212 = vmax.xlane.f32.xlu0 %v211
  %v213 = vpop.xlane.xlu0 %212
  %v214 = vmax.f32 %v169, %v171
  %215 = vmax.xlane.f32.xlu0 %v214
  %v216 = vpop.xlane.xlu0 %215
  %v217 = vmax.f32 %v209, %v213
  %v218 = vmax.f32 %v210, %v216
  %v219 = vld [vmem:[#allocation3] sm:$0xff]
  %v220 = vld [vmem:[#allocation3 + $0x8] sm:$0xff]
  %v221 = vsub.f32 %v209, %v217
  %v222 = vsub.f32 %v210, %v218
  %v223 = vmul.f32 %v221, 1.442695
  %v224 = vpow.pop %v223
  %v225 = vmul.f32 %v222, 1.442695
  %v226 = vpow.pop %v225
  %v227 = vmul.f32 %v219, %v224
  %v228 = vmul.f32 %v220, %v226
  %230 = vset.pattern.permute.xlu0 0
  %231 = vperm.xlu0 %230, %v217
  %v232 = vpop.permute.xlu0 %231
  %235 = vset.pattern.permute.xlu0 0
  %236 = vperm.xlu0 %235, %v218
  %v237 = vpop.permute.xlu0 %236
  %v239 = vsub.f32 %v165, %v232
  %v240 = vsub.f32 %v167, %v232
  %v241 = vsub.f32 %v169, %v237
  %v242 = vsub.f32 %v171, %v237
  %v243 = vmul.f32 %v239, 1.442695
  %v244 = vpow.pop %v243
  %v245 = vmul.f32 %v240, 1.442695
  %v246 = vpow.pop %v245
  %v247 = vmul.f32 %v241, 1.442695
  %v248 = vpow.pop %v247
  %v249 = vmul.f32 %v242, 1.442695
  %v250 = vpow.pop %v249
  %v251 = vadd.f32 %v244, %v246
  %252 = vadd.xlane.f32.xlu0 %v251
  %v253 = vpop.xlane.xlu0 %252
  %v254 = vadd.f32 %v248, %v250
  %255 = vadd.xlane.f32.xlu0 %v254
  %v256 = vpop.xlane.xlu0 %255
  %v257 = vadd.f32 %v227, %v253
  %v258 = vadd.f32 %v228, %v256
  %259 = vst.msk [vmem:[#allocation3] sm:$0xff] %vm206, %v257
  %260 = vst.msk [vmem:[#allocation3 + $0x8] sm:$0xff] %vm206, %v258
  %261 = vst.msk [vmem:[#allocation2] sm:$0xff] %vm206, %v217
  %262 = vst.msk [vmem:[#allocation2 + $0x8] sm:$0xff] %vm206, %v218
  // Predicated region
  $region18: #{refine_seq2seq_forward.37} parent=0 // pred_check
    %p263 = pneg %p15
  $region19: #{refine_seq2seq_forward.37} parent=0 // pred_check_branch
    %265 = sbr.rel (%p263) target = $region21
  $region20: #{refine_seq2seq_forward.37} parent=0 // pred_region
    %v266 = vld [vmem:[#allocation2] sm:$0xff]
    %v267 = vld [vmem:[#allocation2 + $0x8] sm:$0xff]
    %v268 = vld [vmem:[#allocation3] sm:$0xff]
    %v269 = vld [vmem:[#allocation3 + $0x8] sm:$0xff]
    %v270 = vlog2.pop %v268
    %v271 = vmul.f32 %v270, 0.6931472
    %v272 = vlog2.pop %v269
    %v273 = vmul.f32 %v272, 0.6931472
    %v274 = vadd.f32 %v266, %v271
    %v275 = vadd.f32 %v267, %v273
    %v276 = vld [vmem:[#allocation4] sm:$0xff]
    %v277 = vld [vmem:[#allocation4 + $0x8] sm:$0xff]
    %v278 = vsub.f32 %v274, %v276
    %v279 = vsub.f32 %v275, %v277
    %280 = vst.msk [vmem:[%s3] sm:$0xff] %vm206, %v278
    %281 = vst.msk [vmem:[%s3 + $0x8] sm:$0xff] %vm206, %v279
  $region21: #{refine_seq2seq_forward.37} parent=0 // pred_fallthru
    _
  // Predicated region
  $region22: #{refine_seq2seq_forward.37} parent=0 // pred_check
    _
  $region23: #{refine_seq2seq_forward.37} parent=0 // pred_check_branch
    %283 = sbr.rel (0) target = $region25
  $region24: #{refine_seq2seq_forward.37} parent=0 // pred_region
    _
  $region25: #{refine_seq2seq_forward.37} parent=0 // pred_fallthru
    _
  // Predicated region
  $region26: #{refine_seq2seq_forward.37} parent=0 // pred_check
    _
  $region27: #{refine_seq2seq_forward.37} parent=0 // pred_check_branch
    %285 = sbr.rel (0) target = $region29
  $region28: #{refine_seq2seq_forward.37} parent=0 // pred_region
    _
  $region29: #{refine_seq2seq_forward.37} parent=0 // pred_fallthru
    _

// kernel: refine_seq2seq_forward.35
$region0: #{refine_seq2seq_forward.35}
  #allocation0 [shape = 'u32[]', space=smem, size = 0x4, offset = 0x4, fixed_abs, tag = 'smem constant byte address 0x4 - core index']
  #allocation1 [shape = 'u32[144,128]{1,0:T(1,128)}', space=vmem, size = 0x12000, scoped, tag = 'internal scratch']
  #allocation2 [shape = 'f32[16,128]{1,0:T(8,128)}', space=vmem, size = 0x2000, scoped, tag = 'scratch operand']
  %s0 = inlined_call_operand.vmem [shape: bf16[16,128], index: 0, kind: input, shape index: {}]
  %s1 = inlined_call_operand.vmem [shape: bf16[128,256], index: 1, kind: input, shape index: {}]
  %s2 = inlined_call_operand.vmem [shape: f32[1,256], index: 2, kind: input, shape index: {}]
  %s3 = inlined_call_operand.vmem [shape: bf16[256,128], index: 3, kind: input, shape index: {}]
  %s4 = inlined_call_operand.vmem [shape: f32[1,128], index: 4, kind: input, shape index: {}]
  %s5 = inlined_call_operand.vmem [shape: f32[1,128], index: 5, kind: input, shape index: {}]
  %s6 = inlined_call_operand.vmem [shape: f32[1,128], index: 6, kind: input, shape index: {}]
  %s7 = inlined_call_operand.vmem [shape: bf16[16,128], index: 7, kind: output, shape index: {}]
  %s8 = sld [smem:[#allocation0]]
  $region46: #{refine_seq2seq_forward.35} parent=0
    _
  %s10 = ssub.s32 1, %s8
  %s11 = scalar_select 0, %s10, %s8
  // Predicated region
  $region2: #{refine_seq2seq_forward.35} parent=0 // pred_check
    _
  $region3: #{refine_seq2seq_forward.35} parent=0 // pred_check_branch
    %13 = sbr.rel (0) target = $region5
  $region4: #{refine_seq2seq_forward.35} parent=0 // pred_region
    _
  $region5: #{refine_seq2seq_forward.35} parent=0 // pred_fallthru
    _
  // Predicated region
  $region6: #{refine_seq2seq_forward.35} parent=0 // pred_check
    _
  $region7: #{refine_seq2seq_forward.35} parent=0 // pred_check_branch
    %15 = sbr.rel (0) target = $region9
  $region8: #{refine_seq2seq_forward.35} parent=0 // pred_region
    _
  $region9: #{refine_seq2seq_forward.35} parent=0 // pred_fallthru
    _
  // Predicated region
  $region10: #{refine_seq2seq_forward.35} parent=0 // pred_check
    _
  $region11: #{refine_seq2seq_forward.35} parent=0 // pred_check_branch
    %17 = sbr.rel (0) target = $region13
  $region12: #{refine_seq2seq_forward.35} parent=0 // pred_region
    _
  $region13: #{refine_seq2seq_forward.35} parent=0 // pred_fallthru
    _
  // Predicated region
  $region14: #{refine_seq2seq_forward.35} parent=0 // pred_check
    _
  $region15: #{refine_seq2seq_forward.35} parent=0 // pred_check_branch
    %19 = sbr.rel (0) target = $region17
  $region16: #{refine_seq2seq_forward.35} parent=0 // pred_region
    _
  $region17: #{refine_seq2seq_forward.35} parent=0 // pred_fallthru
    _
  // Predicated region
  $region18: #{refine_seq2seq_forward.35} parent=0 // pred_check
    _
  $region19: #{refine_seq2seq_forward.35} parent=0 // pred_check_branch
    %21 = sbr.rel (0) target = $region21
  $region20: #{refine_seq2seq_forward.35} parent=0 // pred_region
    _
  $region21: #{refine_seq2seq_forward.35} parent=0 // pred_fallthru
    _
  // Predicated region
  $region22: #{refine_seq2seq_forward.35} parent=0 // pred_check
    _
  $region23: #{refine_seq2seq_forward.35} parent=0 // pred_check_branch
    %23 = sbr.rel (0) target = $region25
  $region24: #{refine_seq2seq_forward.35} parent=0 // pred_region
    _
  $region25: #{refine_seq2seq_forward.35} parent=0 // pred_fallthru
    _
  // Predicated region
  $region26: #{refine_seq2seq_forward.35} parent=0 // pred_check
    _
  $region27: #{refine_seq2seq_forward.35} parent=0 // pred_check_branch
    %25 = sbr.rel (0) target = $region29
  $region28: #{refine_seq2seq_forward.35} parent=0 // pred_region
    _
  $region29: #{refine_seq2seq_forward.35} parent=0 // pred_fallthru
    _
  %p27 = scmp.eq.s32.totalorder 0, 0
  // Predicated region
  $region30: #{refine_seq2seq_forward.35} parent=0 // pred_check
    %p28 = pneg %p27
  $region31: #{refine_seq2seq_forward.35} parent=0 // pred_check_branch
    %30 = sbr.rel (%p28) target = $region33
  $region32: #{refine_seq2seq_forward.35} parent=0 // pred_region
    %31 = vst [vmem:[#allocation2] sm:$0xff] 0.0
    %32 = vst [vmem:[#allocation2 + $0x8] sm:$0xff] 0.0
  $region33: #{refine_seq2seq_forward.35} parent=0 // pred_fallthru
    _
  %v33 = vld [vmem:[%s0] sm:$0xf]
  %v34 = vld [vmem:[%s0 + $0x4] sm:$0xf]
  %v35 = vld [vmem:[%s1] sm:$0xff]
  %v36 = vld [vmem:[%s1 + $0x8] sm:$0xff]
  %v37 = vld [vmem:[%s1 + $0x10] sm:$0xff]
  %v38 = vld [vmem:[%s1 + $0x18] sm:$0xff]
  %v39 = vld [vmem:[%s1 + $0x20] sm:$0xff]
  %v40 = vld [vmem:[%s1 + $0x28] sm:$0xff]
  %v41 = vld [vmem:[%s1 + $0x30] sm:$0xff]
  %v42 = vld [vmem:[%s1 + $0x38] sm:$0xff]
  %v43 = vld [vmem:[%s1 + $0x40] sm:$0xff]
  %v44 = vld [vmem:[%s1 + $0x48] sm:$0xff]
  %v45 = vld [vmem:[%s1 + $0x50] sm:$0xff]
  %v46 = vld [vmem:[%s1 + $0x58] sm:$0xff]
  %v47 = vld [vmem:[%s1 + $0x60] sm:$0xff]
  %v48 = vld [vmem:[%s1 + $0x68] sm:$0xff]
  %v49 = vld [vmem:[%s1 + $0x70] sm:$0xff]
  %v50 = vld [vmem:[%s1 + $0x78] sm:$0xff]
  %v51 = vld [vmem:[%s2] sm:$0x3]
  %v53 = vlaneseq
  %v54 = vshrl.u32 %v53, 7
  %v55 = vsub.s32 0, %v54
  %v56 = vrot.slane %v51, %v55
  %v57 = vlaneseq
  %v58 = vshrl.u32 %v57, 7
  %v59 = vsub.s32 1, %v58
  %v60 = vrot.slane %v51, %v59
  %v65 = vunpack.c.l.b16 %v33
  %v66 = vunpack.c.l.b16 %v34
  %v67 = vpack.c.b16 %v66, %v65
  %v85 = vunpack.c.l.b16 %v35
  %v86 = vunpack.c.h.b16 %v35
  %v87 = vunpack.c.l.b16 %v36
  %v88 = vunpack.c.h.b16 %v36
  %v89 = vunpack.c.l.b16 %v37
  %v90 = vunpack.c.h.b16 %v37
  %v91 = vunpack.c.l.b16 %v38
  %v92 = vunpack.c.h.b16 %v38
  %v93 = vunpack.c.l.b16 %v39
  %v94 = vunpack.c.h.b16 %v39
  %v95 = vunpack.c.l.b16 %v40
  %v96 = vunpack.c.h.b16 %v40
  %v97 = vunpack.c.l.b16 %v41
  %v98 = vunpack.c.h.b16 %v41
  %v99 = vunpack.c.l.b16 %v42
  %v100 = vunpack.c.h.b16 %v42
  %v101 = vunpack.c.l.b16 %v43
  %v102 = vunpack.c.h.b16 %v43
  %v103 = vunpack.c.l.b16 %v44
  %v104 = vunpack.c.h.b16 %v44
  %v105 = vunpack.c.l.b16 %v45
  %v106 = vunpack.c.h.b16 %v45
  %v107 = vunpack.c.l.b16 %v46
  %v108 = vunpack.c.h.b16 %v46
  %v109 = vunpack.c.l.b16 %v47
  %v110 = vunpack.c.h.b16 %v47
  %v111 = vunpack.c.l.b16 %v48
  %v112 = vunpack.c.h.b16 %v48
  %v113 = vunpack.c.l.b16 %v49
  %v114 = vunpack.c.h.b16 %v49
  %v115 = vunpack.c.l.b16 %v50
  %v116 = vunpack.c.h.b16 %v50
  %v117 = vpack.c.b16 %v87, %v85
  %v118 = vpack.c.b16 %v88, %v86
  %v119 = vpack.c.b16 %v91, %v89
  %v120 = vpack.c.b16 %v92, %v90
  %v121 = vpack.c.b16 %v95, %v93
  %v122 = vpack.c.b16 %v96, %v94
  %v123 = vpack.c.b16 %v99, %v97
  %v124 = vpack.c.b16 %v100, %v98
  %v125 = vpack.c.b16 %v103, %v101
  %v126 = vpack.c.b16 %v104, %v102
  %v127 = vpack.c.b16 %v107, %v105
  %v128 = vpack.c.b16 %v108, %v106
  %v129 = vpack.c.b16 %v111, %v109
  %v130 = vpack.c.b16 %v112, %v110
  %v131 = vpack.c.b16 %v115, %v113
  %v132 = vpack.c.b16 %v116, %v114
  %149 = vmatprep.subr.bf16.mxu0 %v118
  %150 = vmatpush1.bf16.msra.mxu0 %v117
  %151 = vmatprep.subr.bf16.mxu0 %v120
  %152 = vmatpush1.bf16.msra.mxu0 %v119
  %153 = vmatprep.subr.bf16.mxu0 %v122
  %154 = vmatpush1.bf16.msra.mxu0 %v121
  %155 = vmatprep.subr.bf16.mxu0 %v124
  %156 = vmatpush1.bf16.msra.mxu0 %v123
  %157 = vmatprep.subr.bf16.mxu0 %v126
  %158 = vmatpush1.bf16.msra.mxu0 %v125
  %159 = vmatprep.subr.bf16.mxu0 %v128
  %160 = vmatpush1.bf16.msra.mxu0 %v127
  %161 = vmatprep.subr.bf16.mxu0 %v130
  %162 = vmatpush1.bf16.msra.mxu0 %v129
  %163 = vmatprep.subr.bf16.mxu0 %v132
  %164 = vmatpush1.bf16.msra.mxu0 %v131
  %165 = vmatprep.subr.bf16.mxu0 0
  %166 = vmatpush1.bf16.msra.mxu0 0
  %167 = vmatprep.subr.bf16.mxu0 0
  %168 = vmatpush1.bf16.msra.mxu0 0
  %169 = vmatprep.subr.bf16.mxu0 0
  %170 = vmatpush1.bf16.msra.mxu0 0
  %171 = vmatprep.subr.bf16.mxu0 0
  %172 = vmatpush1.bf16.msra.mxu0 0
  %173 = vmatprep.subr.bf16.mxu0 0
  %174 = vmatpush1.bf16.msra.mxu0 0
  %175 = vmatprep.subr.bf16.mxu0 0
  %176 = vmatpush1.bf16.msra.mxu0 0
  %177 = vmatprep.subr.bf16.mxu0 0
  %178 = vmatpush1.bf16.msra.mxu0 0
  %179 = vmatprep.subr.bf16.mxu0 0
  %180 = vmatpush1.bf16.msra.mxu0 0
  %181 = vmatprep.mubr.bf16.mxu0 0
  %182 = vmatmul.mubr.bf16.gmra.mrb[0].mxu0 %v67
  %v183 = vpop.f32.mrb[0].mxu0
  %v184 = vadd.f32 %v56, %v183
  %v185 = vpop.f32.mrb[0].mxu0
  %v186 = vadd.f32 %v60, %v185
  %v187 = vpop.f32.mrb[0].mxu0
  %v188 = vadd.f32 %v56, %v187
  %v189 = vpop.f32.mrb[0].mxu0
  %v190 = vadd.f32 %v60, %v189
  %191 = vdwg.mxu0
  %v192 = vmax.f32 %v184, 0.0
  %v193 = vmax.f32 %v186, 0.0
  %v194 = vmax.f32 %v188, 0.0
  %v195 = vmax.f32 %v190, 0.0
  %v196 = vpack.c.bf16 %v194, %v192
  %v197 = vpack.c.bf16 %v195, %v193
  %v198 = vld [vmem:[#allocation2] sm:$0xff]
  %v199 = vld [vmem:[#allocation2 + $0x8] sm:$0xff]
  %v200 = vld [vmem:[%s3] sm:$0xf]
  %v201 = vld [vmem:[%s3 + $0x4] sm:$0xf]
  %v202 = vld [vmem:[%s3 + $0x8] sm:$0xf]
  %v203 = vld [vmem:[%s3 + $0xc] sm:$0xf]
  %v204 = vld [vmem:[%s3 + $0x10] sm:$0xf]
  %v205 = vld [vmem:[%s3 + $0x14] sm:$0xf]
  %v206 = vld [vmem:[%s3 + $0x18] sm:$0xf]
  %v207 = vld [vmem:[%s3 + $0x1c] sm:$0xf]
  %v208 = vld [vmem:[%s3 + $0x20] sm:$0xf]
  %v209 = vld [vmem:[%s3 + $0x24] sm:$0xf]
  %v210 = vld [vmem:[%s3 + $0x28] sm:$0xf]
  %v211 = vld [vmem:[%s3 + $0x2c] sm:$0xf]
  %v212 = vld [vmem:[%s3 + $0x30] sm:$0xf]
  %v213 = vld [vmem:[%s3 + $0x34] sm:$0xf]
  %v214 = vld [vmem:[%s3 + $0x38] sm:$0xf]
  %v215 = vld [vmem:[%s3 + $0x3c] sm:$0xf]
  %v216 = vld [vmem:[%s3 + $0x40] sm:$0xf]
  %v217 = vld [vmem:[%s3 + $0x44] sm:$0xf]
  %v218 = vld [vmem:[%s3 + $0x48] sm:$0xf]
  %v219 = vld [vmem:[%s3 + $0x4c] sm:$0xf]
  %v220 = vld [vmem:[%s3 + $0x50] sm:$0xf]
  %v221 = vld [vmem:[%s3 + $0x54] sm:$0xf]
  %v222 = vld [vmem:[%s3 + $0x58] sm:$0xf]
  %v223 = vld [vmem:[%s3 + $0x5c] sm:$0xf]
  %v224 = vld [vmem:[%s3 + $0x60] sm:$0xf]
  %v225 = vld [vmem:[%s3 + $0x64] sm:$0xf]
  %v226 = vld [vmem:[%s3 + $0x68] sm:$0xf]
  %v227 = vld [vmem:[%s3 + $0x6c] sm:$0xf]
  %v228 = vld [vmem:[%s3 + $0x70] sm:$0xf]
  %v229 = vld [vmem:[%s3 + $0x74] sm:$0xf]
  %v230 = vld [vmem:[%s3 + $0x78] sm:$0xf]
  %v231 = vld [vmem:[%s3 + $0x7c] sm:$0xf]
  %v264 = vunpack.c.l.b16 %v200
  %v265 = vunpack.c.l.b16 %v201
  %v266 = vunpack.c.l.b16 %v202
  %v267 = vunpack.c.l.b16 %v203
  %v268 = vunpack.c.l.b16 %v204
  %v269 = vunpack.c.l.b16 %v205
  %v270 = vunpack.c.l.b16 %v206
  %v271 = vunpack.c.l.b16 %v207
  %v272 = vunpack.c.l.b16 %v208
  %v273 = vunpack.c.l.b16 %v209
  %v274 = vunpack.c.l.b16 %v210
  %v275 = vunpack.c.l.b16 %v211
  %v276 = vunpack.c.l.b16 %v212
  %v277 = vunpack.c.l.b16 %v213
  %v278 = vunpack.c.l.b16 %v214
  %v279 = vunpack.c.l.b16 %v215
  %v280 = vunpack.c.l.b16 %v216
  %v281 = vunpack.c.l.b16 %v217
  %v282 = vunpack.c.l.b16 %v218
  %v283 = vunpack.c.l.b16 %v219
  %v284 = vunpack.c.l.b16 %v220
  %v285 = vunpack.c.l.b16 %v221
  %v286 = vunpack.c.l.b16 %v222
  %v287 = vunpack.c.l.b16 %v223
  %v288 = vunpack.c.l.b16 %v224
  %v289 = vunpack.c.l.b16 %v225
  %v290 = vunpack.c.l.b16 %v226
  %v291 = vunpack.c.l.b16 %v227
  %v292 = vunpack.c.l.b16 %v228
  %v293 = vunpack.c.l.b16 %v229
  %v294 = vunpack.c.l.b16 %v230
  %v295 = vunpack.c.l.b16 %v231
  %v296 = vpack.c.b16 %v265, %v264
  %v297 = vpack.c.b16 %v267, %v266
  %v298 = vpack.c.b16 %v269, %v268
  %v299 = vpack.c.b16 %v271, %v270
  %v300 = vpack.c.b16 %v273, %v272
  %v301 = vpack.c.b16 %v275, %v274
  %v302 = vpack.c.b16 %v277, %v276
  %v303 = vpack.c.b16 %v279, %v278
  %v304 = vpack.c.b16 %v281, %v280
  %v305 = vpack.c.b16 %v283, %v282
  %v306 = vpack.c.b16 %v285, %v284
  %v307 = vpack.c.b16 %v287, %v286
  %v308 = vpack.c.b16 %v289, %v288
  %v309 = vpack.c.b16 %v291, %v290
  %v310 = vpack.c.b16 %v293, %v292
  %v311 = vpack.c.b16 %v295, %v294
  %328 = vmatprep.subr.bf16.mxu0 0
  %329 = vmatpush1.bf16.msra.mxu0 %v296
  %330 = vmatprep.subr.bf16.mxu0 0
  %331 = vmatpush1.bf16.msra.mxu0 %v297
  %332 = vmatprep.subr.bf16.mxu0 0
  %333 = vmatpush1.bf16.msra.mxu0 %v298
  %334 = vmatprep.subr.bf16.mxu0 0
  %335 = vmatpush1.bf16.msra.mxu0 %v299
  %336 = vmatprep.subr.bf16.mxu0 0
  %337 = vmatpush1.bf16.msra.mxu0 %v300
  %338 = vmatprep.subr.bf16.mxu0 0
  %339 = vmatpush1.bf16.msra.mxu0 %v301
  %340 = vmatprep.subr.bf16.mxu0 0
  %341 = vmatpush1.bf16.msra.mxu0 %v302
  %342 = vmatprep.subr.bf16.mxu0 0
  %343 = vmatpush1.bf16.msra.mxu0 %v303
  %344 = vmatprep.subr.bf16.mxu0 0
  %345 = vmatpush1.bf16.msra.mxu0 %v304
  %346 = vmatprep.subr.bf16.mxu0 0
  %347 = vmatpush1.bf16.msra.mxu0 %v305
  %348 = vmatprep.subr.bf16.mxu0 0
  %349 = vmatpush1.bf16.msra.mxu0 %v306
  %350 = vmatprep.subr.bf16.mxu0 0
  %351 = vmatpush1.bf16.msra.mxu0 %v307
  %352 = vmatprep.subr.bf16.mxu0 0
  %353 = vmatpush1.bf16.msra.mxu0 %v308
  %354 = vmatprep.subr.bf16.mxu0 0
  %355 = vmatpush1.bf16.msra.mxu0 %v309
  %356 = vmatprep.subr.bf16.mxu0 0
  %357 = vmatpush1.bf16.msra.mxu0 %v310
  %358 = vmatprep.subr.bf16.mxu0 0
  %359 = vmatpush1.bf16.msra.mxu0 %v311
  %360 = vmatprep.mubr.bf16.mxu0 %v197
  %361 = vmatmul.mubr.bf16.gmra.mrb[0].mxu0 %v196
  %v362 = vpop.f32.mrb[0].mxu0
  %v363 = vadd.f32 0.0, %v362
  %v364 = vpop.f32.mrb[0].mxu0
  %v365 = vpop.f32.mrb[0].mxu0
  %v366 = vadd.f32 0.0, %v365
  %v367 = vpop.f32.mrb[0].mxu0
  %368 = vdwg.mxu0
  %v369 = vadd.f32 %v198, %v363
  %v370 = vadd.f32 %v199, %v366
  %371 = vst [vmem:[#allocation2] sm:$0xff] %v369
  %372 = vst [vmem:[#allocation2 + $0x8] sm:$0xff] %v370
  // Predicated region
  $region34: #{refine_seq2seq_forward.35} parent=0 // pred_check
    %p373 = pneg %p27
  $region35: #{refine_seq2seq_forward.35} parent=0 // pred_check_branch
    %375 = sbr.rel (%p373) target = $region37
  $region36: #{refine_seq2seq_forward.35} parent=0 // pred_region
    %v376 = vld [vmem:[#allocation2] sm:$0xff]
    %v377 = vld [vmem:[#allocation2 + $0x8] sm:$0xff]
    %v378 = vld [vmem:[%s4] sm:$0x1]
    %v380 = vlaneseq
    %v381 = vshrl.u32 %v380, 7
    %v382 = vsub.s32 0, %v381
    %v383 = vrot.slane %v378, %v382
    %v385 = vadd.f32 %v376, %v383
    %v386 = vadd.f32 %v377, %v383
    %v387 = vunpack.c.l.bf16 %v33
    %v388 = vunpack.c.l.bf16 %v34
    %v389 = vadd.f32 %v385, %v387
    %v390 = vadd.f32 %v386, %v388
    %391 = vadd.xlane.f32.xlu0 %v389
    %v392 = vpop.xlane.xlu0 %391
    %393 = vadd.xlane.f32.xlu0 %v390
    %v394 = vpop.xlane.xlu0 %393
    %v395 = vrcp.pop 128.0
    %v396 = vmul.f32 %v392, %v395
    %v397 = vmul.f32 %v394, %v395
    %v398 = vsub.f32 %v389, %v396
    %v399 = vsub.f32 %v390, %v397
    %v400 = vmul.f32 %v398, %v398
    %v401 = vmul.f32 %v399, %v399
    %402 = vadd.xlane.f32.xlu0 %v400
    %v403 = vpop.xlane.xlu0 %402
    %404 = vadd.xlane.f32.xlu0 %v401
    %v405 = vpop.xlane.xlu0 %404
    %v406 = vmul.f32 %v403, %v395
    %v407 = vmul.f32 %v405, %v395
    %v408 = vadd.f32 %v406, 1e-05
    %v409 = vadd.f32 %v407, 1e-05
    %v410 = vrsqrt.pop %v408
    %v411 = vrsqrt.pop %v409
    %v412 = vmul.f32 %v398, %v410
    %v413 = vmul.f32 %v399, %v411
    %v414 = vld [vmem:[%s5] sm:$0x1]
    %v416 = vlaneseq
    %v417 = vshrl.u32 %v416, 7
    %v418 = vsub.s32 0, %v417
    %v419 = vrot.slane %v414, %v418
    %v421 = vmul.f32 %v412, %v419
    %v422 = vmul.f32 %v413, %v419
    %v423 = vld [vmem:[%s6] sm:$0x1]
    %v425 = vlaneseq
    %v426 = vshrl.u32 %v425, 7
    %v427 = vsub.s32 0, %v426
    %v428 = vrot.slane %v423, %v427
    %v430 = vadd.f32 %v421, %v428
    %v431 = vadd.f32 %v422, %v428
    %v432 = vpack.c.bf16 %v431, %v430
    %v434 = vunpack.c.l.b16 %v432
    %v435 = vunpack.c.h.b16 %v432
    %v436 = vpack.c.b16 %v434, %v434
    %v437 = vpack.c.b16 %v435, %v435
    %440 = vst [vmem:[%s7] sm:$0xf] %v436
    %441 = vst [vmem:[%s7 + $0x4] sm:$0xf] %v437
  $region37: #{refine_seq2seq_forward.35} parent=0 // pred_fallthru
    _
  // Predicated region
  $region38: #{refine_seq2seq_forward.35} parent=0 // pred_check
    _
  $region39: #{refine_seq2seq_forward.35} parent=0 // pred_check_branch
    %443 = sbr.rel (0) target = $region41
  $region40: #{refine_seq2seq_forward.35} parent=0 // pred_region
    _
  $region41: #{refine_seq2seq_forward.35} parent=0 // pred_fallthru
    _
  // Predicated region
  $region42: #{refine_seq2seq_forward.35} parent=0 // pred_check
    _
  $region43: #{refine_seq2seq_forward.35} parent=0 // pred_check_branch
    %445 = sbr.rel (0) target = $region45
  $region44: #{refine_seq2seq_forward.35} parent=0 // pred_region
    _
  $region45: #{refine_seq2seq_forward.35} parent=0 // pred_fallthru
    _

</llo_original>
